<compile_context>
chip_gen: v7x
topology: tpu7x:2x2x1
jax: 0.10.0
libtpu: 0.0.40
codegen_flags: <defaults>
</compile_context>

<pallas_src>
import jax
import jax.numpy as jnp
from jax import lax
from jax.experimental import pallas as pl
from jax.experimental.pallas import tpu as pltpu


def _up2_matrix(in_size: int) -> jnp.ndarray:
    """(2*in_size, in_size) matrix M s.t. M @ v == bilinear 2x upsample of v
    with PyTorch align_corners=False semantics (half-pixel centers, clamped)."""
    out_size = 2 * in_size
    o = jnp.arange(out_size, dtype=jnp.float32)
    src = jnp.maximum((o + 0.5) * 0.5 - 0.5, 0.0)          # clamp negatives to 0
    i0 = jnp.floor(src).astype(jnp.int32)
    i1 = jnp.minimum(i0 + 1, in_size - 1)                   # clamp upper edge
    f = src - i0.astype(jnp.float32)
    m = jnp.zeros((out_size, in_size), jnp.float32)
    m = m.at[jnp.arange(out_size), i0].add(1.0 - f)
    m = m.at[jnp.arange(out_size), i1].add(f)
    return m


def _upsample_conv_kernel(x_ref, uh_ref, gw_ref, w_ref, o_ref, upad_ref):
    # x_ref  : (1, C, H, W)        VMEM, compute dtype
    # uh_ref : (H2, H)             VMEM  (height upsample matrix)
    # gw_ref : (W, W2)             VMEM  (width upsample matrix, transposed)
    # w_ref  : (9, Cout, C)        VMEM  (conv weights, tap-major)
    # o_ref  : (1, Cout, H2*W2)    VMEM  (lane-dense output block)
    # upad_ref: (C, H2+2, W2+2)    VMEM scratch, zero border for 'same' conv
    C, H, W = x_ref.shape[1], x_ref.shape[2], x_ref.shape[3]
    Cout = o_ref.shape[1]
    H2, W2 = 2 * H, 2 * W
    cdt = x_ref.dtype

    x3 = x_ref[0]                                               # (C, H, W)

    # ---- height pass: batched channel matmul on the MXU -------------------
    uh_b = jnp.broadcast_to(uh_ref[...][None, :, :], (C, H2, H))  # (C, H2, H)
    xh = jnp.einsum('cah,chw->caw', uh_b, x3,
                    preferred_element_type=jnp.float32)         # (C, H2, W) f32

    # ---- width pass: one big GEMM (C*H2, W) @ (W, W2) ----------------------
    up = jnp.dot(xh.reshape(C * H2, W).astype(cdt), gw_ref[...],
                 preferred_element_type=jnp.float32)            # (C*H2, W2) f32

    # ---- stage upsampled planes into zero-bordered VMEM scratch ------------
    upad_ref[...] = jnp.zeros_like(upad_ref)
    upad_ref[:, 1:H2 + 1, 1:W2 + 1] = up.reshape(C, H2, W2).astype(cdt)

    # ---- 3x3 'same' conv: 9 per-tap channel-contraction matmuls on the MXU -
    acc = jnp.zeros((Cout, H2 * W2), jnp.float32)
    for dh in range(3):                                         # only 9 taps unrolled
        for dw in range(3):
            s = upad_ref[:, dh:dh + H2, dw:dw + W2].reshape(C, H2 * W2)
            acc = acc + jnp.dot(w_ref[dh * 3 + dw], s,
                                preferred_element_type=jnp.float32)
    o_ref[0] = acc.astype(o_ref.dtype)                          # lane-dense store


def upsample_module(x_nchw: jnp.ndarray, w_oihw: jnp.ndarray,
                    *, compute_dtype=jnp.float32) -> jnp.ndarray:
    """Forward pass of Upsample(n_feat): bilinear 2x upsample + 3x3 conv (no bias)."""
    N, C, H, W = x_nchw.shape
    Cout = w_oihw.shape[0]
    assert w_oihw.shape == (Cout, C, 3, 3)
    H2, W2 = 2 * H, 2 * W
    out_dtype = x_nchw.dtype

    uh = _up2_matrix(H).astype(compute_dtype)                   # (H2, H)
    gw = _up2_matrix(W).T.astype(compute_dtype)                 # (W, W2)
    # conv weights, tap-major: (3,3,Cout,C) -> (9, Cout, C), kept in VMEM
    w_taps = jnp.transpose(w_oihw.astype(compute_dtype), (2, 3, 0, 1)).reshape(9, Cout, C)
    x_in = x_nchw.astype(compute_dtype)

    out_flat = pl.pallas_call(
        _upsample_conv_kernel,
        out_shape=jax.ShapeDtypeStruct((N, Cout, H2 * W2), out_dtype),
        grid_spec=pltpu.PrefetchScalarGridSpec(
            num_scalar_prefetch=0,
            grid=(N,),
            in_specs=[
                pl.BlockSpec((1, C, H, W), lambda n: (n, 0, 0, 0)),
                pl.BlockSpec((H2, H), lambda n: (0, 0)),
                pl.BlockSpec((W, W2), lambda n: (0, 0)),
                pl.BlockSpec((9, Cout, C), lambda n: (0, 0, 0)),
            ],
            out_specs=pl.BlockSpec((1, Cout, H2 * W2), lambda n: (n, 0, 0)),
            scratch_shapes=[pltpu.VMEM((C, H2 + 2, W2 + 2), compute_dtype)],
        ),
        compiler_params=pltpu.CompilerParams(
            dimension_semantics=("parallel",),
            vmem_limit_bytes=32 * 1024 * 1024),
    )(x_in, uh, gw, w_taps)

    return out_flat.reshape(N, Cout, H2, W2)


# ---------------- pure-JAX reference (PyTorch semantics) ----------------
def _reference(x_nchw, w_oihw):
    N, C, H, W = x_nchw.shape

    def src(out_size, in_size):
        o = jnp.arange(out_size, dtype=jnp.float32)
        s = jnp.maximum((o + 0.5) * 0.5 - 0.5, 0.0)
        i0 = jnp.floor(s).astype(jnp.int32)
        i1 = jnp.minimum(i0 + 1, in_size - 1)
        f = s - i0.astype(jnp.float32)
        return i0, i1, f

    h0, h1, fh = src(2 * H, H)
    w0, w1, fw = src(2 * W, W)
    top = (x_nchw[:, :, h0, :] * (1.0 - fh)[None, None, :, None]
           + x_nchw[:, :, h1, :] * fh[None, None, :, None])
    up = (top[:, :, :, w0] * (1.0 - fw)[None, None, None, :]
          + top[:, :, :, w1] * fw[None, None, None, :])
    out = lax.conv_general_dilated(
        up, w_oihw, window_strides=(1, 1), padding=((1, 1), (1, 1)),
        dimension_numbers=("NCHW", "OIHW", "NCHW"))
    return out


if __name__ == "__main__":
    key = jax.random.PRNGKey(0)
    n_feat = 8
    N, H, W = 2, 16, 16

    kx, kw = jax.random.split(key)
    x = jax.random.normal(kx, (N, n_feat, H, W), dtype=jnp.float32)

    # Conv2d(n_feat, n_feat//2, 3, bias=False) weight, torch OIHW layout,
    # deterministic uniform init (Kaiming-uniform-like bound).
    fan_in = n_feat * 3 * 3
    bound = 1.0 / (fan_in ** 0.5)
    w_oihw = jax.random.uniform(kw, (n_feat // 2, n_feat, 3, 3),
                                minval=-bound, maxval=bound, dtype=jnp.float32)

    ref = _reference(x, w_oihw)

    # f32 path (tight check)
    out = jax.block_until_ready(upsample_module(x, w_oihw))
    assert out.shape == (N, n_feat // 2, 2 * H, 2 * W), out.shape
    assert jnp.allclose(out, ref, atol=1e-4, rtol=1e-4), \
        float(jnp.max(jnp.abs(out - ref)))

    # bf16 MXU-operand path with f32 accumulation (v6e/v7x throughput knob)
    out_bf = jax.block_until_ready(
        upsample_module(x, w_oihw, compute_dtype=jnp.bfloat16))
    assert out_bf.shape == ref.shape
    assert jnp.allclose(out_bf, ref, atol=5e-2, rtol=5e-2), \
        float(jnp.max(jnp.abs(out_bf - ref)))

    print("KERNEL_OK")
</pallas_src>

<mosaic_0001>
module attributes {stable_mosaic.version = 11 : i64} {
  func.func @_upsample_conv_kernel(%arg0: i32, %arg1: memref<1x8x16x16xf32, #tpu.memory_space<vmem>>, %arg2: memref<32x16xf32, #tpu.memory_space<vmem>>, %arg3: memref<16x32xf32, #tpu.memory_space<vmem>>, %arg4: memref<9x4x8xf32, #tpu.memory_space<vmem>>, %arg5: memref<1x4x1024xf32, #tpu.memory_space<vmem>>, %arg6: memref<8x34x34xf32, #tpu.memory_space<vmem>>) attributes {dimension_semantics = [#tpu.dimension_semantics<parallel>], iteration_bounds = array<i64: 2>, scalar_prefetch = 0 : i64, scratch_operands = 1 : i64, tpu.core_type = #tpu.core_type<tc>, window_params = [{transform_indices = @transform_0, window_bounds = array<i64: 1, 8, 16, 16>}, {pipeline_mode = #tpu.pipeline_mode<synchronous>, transform_indices = @transform_1, window_bounds = array<i64: 32, 16>}, {pipeline_mode = #tpu.pipeline_mode<synchronous>, transform_indices = @transform_2, window_bounds = array<i64: 16, 32>}, {pipeline_mode = #tpu.pipeline_mode<synchronous>, transform_indices = @transform_3, window_bounds = array<i64: 9, 4, 8>}, {transform_indices = @transform_4, window_bounds = array<i64: 1, 4, 1024>}]} {
    %c0 = arith.constant 0 : index
    %c0_0 = arith.constant 0 : index
    %c0_1 = arith.constant 0 : index
    %c0_2 = arith.constant 0 : index
    %0 = vector.load %arg1[%c0, %c0_0, %c0_1, %c0_2] : memref<1x8x16x16xf32, #tpu.memory_space<vmem>>, vector<1x8x16x16xf32>
    %1 = vector.shape_cast %0 : vector<1x8x16x16xf32> to vector<8x16x16xf32>
    %c0_3 = arith.constant 0 : index
    %c0_4 = arith.constant 0 : index
    %2 = vector.load %arg2[%c0_3, %c0_4] : memref<32x16xf32, #tpu.memory_space<vmem>>, vector<32x16xf32>
    %3 = vector.shape_cast %2 : vector<32x16xf32> to vector<1x32x16xf32>
    %4 = vector.shape_cast %3 : vector<1x32x16xf32> to vector<1x32x16xf32>
    %5 = vector.broadcast %4 : vector<1x32x16xf32> to vector<8x32x16xf32>
    "tpu.trace_start"() <{level = 10 : i32, message = "cah,chw->caw"}> : () -> ()
    %cst = arith.constant dense<0.000000e+00> : vector<8x32x16xf32>
    %6 = tpu.matmul %5, %1, %cst {dimension_numbers = #tpu.dot_dimension_numbers<[2], [1], [1], [2], [0, 0, 0, 1, 1, 2], [0], [0]>} : vector<8x32x16xf32>, vector<8x16x16xf32>, vector<8x32x16xf32> -> vector<8x32x16xf32>
    "tpu.trace_stop"() : () -> ()
    %7 = vector.shape_cast %6 : vector<8x32x16xf32> to vector<256x16xf32>
    %c0_5 = arith.constant 0 : index
    %c0_6 = arith.constant 0 : index
    %8 = vector.load %arg3[%c0_5, %c0_6] : memref<16x32xf32, #tpu.memory_space<vmem>>, vector<16x32xf32>
    %cst_7 = arith.constant dense<0.000000e+00> : vector<256x32xf32>
    %9 = tpu.matmul %7, %8, %cst_7 {dimension_numbers = #tpu.dot_dimension_numbers<[1], [0], [0], [1], [0, 0, 1, 1], [], []>} : vector<256x16xf32>, vector<16x32xf32>, vector<256x32xf32> -> vector<256x32xf32>
    %cst_8 = arith.constant 0.000000e+00 : f32
    %10 = vector.broadcast %cst_8 : f32 to vector<8x34x34xf32>
    %c0_9 = arith.constant 0 : index
    %c0_10 = arith.constant 0 : index
    %c0_11 = arith.constant 0 : index
    %11 = vector.load %arg6[%c0_9, %c0_10, %c0_11] : memref<8x34x34xf32, #tpu.memory_space<vmem>>, vector<8x34x34xf32>
    tpu.vector_store %arg6[%c0_9, %c0_10, %c0_11], %10 {strides = array<i32>} : memref<8x34x34xf32, #tpu.memory_space<vmem>>, vector<8x34x34xf32>,
    %12 = vector.shape_cast %9 : vector<256x32xf32> to vector<8x32x32xf32>
    %c0_12 = arith.constant 0 : index
    %c1 = arith.constant 1 : index
    %c1_13 = arith.constant 1 : index
    %13 = vector.load %arg6[%c0_12, %c1, %c1_13] : memref<8x34x34xf32, #tpu.memory_space<vmem>>, vector<8x32x32xf32>
    tpu.vector_store %arg6[%c0_12, %c1, %c1_13], %12 {strides = array<i32>} : memref<8x34x34xf32, #tpu.memory_space<vmem>>, vector<8x32x32xf32>,
    %cst_14 = arith.constant 0.000000e+00 : f32
    %14 = vector.broadcast %cst_14 : f32 to vector<4x1024xf32>
    %c0_15 = arith.constant 0 : index
    %c0_16 = arith.constant 0 : index
    %c0_17 = arith.constant 0 : index
    %15 = vector.load %arg6[%c0_15, %c0_16, %c0_17] : memref<8x34x34xf32, #tpu.memory_space<vmem>>, vector<8x32x32xf32>
    %16 = vector.shape_cast %15 : vector<8x32x32xf32> to vector<8x1024xf32>
    %c0_18 = arith.constant 0 : index
    %c0_19 = arith.constant 0 : index
    %c0_20 = arith.constant 0 : index
    %17 = vector.load %arg4[%c0_18, %c0_19, %c0_20] : memref<9x4x8xf32, #tpu.memory_space<vmem>>, vector<1x4x8xf32>
    %18 = vector.shape_cast %17 : vector<1x4x8xf32> to vector<4x8xf32>
    %cst_21 = arith.constant dense<0.000000e+00> : vector<4x1024xf32>
    %19 = tpu.matmul %18, %16, %cst_21 {dimension_numbers = #tpu.dot_dimension_numbers<[1], [0], [0], [1], [0, 0, 1, 1], [], []>} : vector<4x8xf32>, vector<8x1024xf32>, vector<4x1024xf32> -> vector<4x1024xf32>
    %20 = arith.addf %14, %19 : vector<4x1024xf32>
    %c0_22 = arith.constant 0 : index
    %c0_23 = arith.constant 0 : index
    %c1_24 = arith.constant 1 : index
    %21 = vector.load %arg6[%c0_22, %c0_23, %c1_24] : memref<8x34x34xf32, #tpu.memory_space<vmem>>, vector<8x32x32xf32>
    %22 = vector.shape_cast %21 : vector<8x32x32xf32> to vector<8x1024xf32>
    %c1_25 = arith.constant 1 : index
    %c0_26 = arith.constant 0 : index
    %c0_27 = arith.constant 0 : index
    %23 = vector.load %arg4[%c1_25, %c0_26, %c0_27] : memref<9x4x8xf32, #tpu.memory_space<vmem>>, vector<1x4x8xf32>
    %24 = vector.shape_cast %23 : vector<1x4x8xf32> to vector<4x8xf32>
    %cst_28 = arith.constant dense<0.000000e+00> : vector<4x1024xf32>
    %25 = tpu.matmul %24, %22, %cst_28 {dimension_numbers = #tpu.dot_dimension_numbers<[1], [0], [0], [1], [0, 0, 1, 1], [], []>} : vector<4x8xf32>, vector<8x1024xf32>, vector<4x1024xf32> -> vector<4x1024xf32>
    %26 = arith.addf %20, %25 : vector<4x1024xf32>
    %c0_29 = arith.constant 0 : index
    %c0_30 = arith.constant 0 : index
    %c2 = arith.constant 2 : index
    %27 = vector.load %arg6[%c0_29, %c0_30, %c2] : memref<8x34x34xf32, #tpu.memory_space<vmem>>, vector<8x32x32xf32>
    %28 = vector.shape_cast %27 : vector<8x32x32xf32> to vector<8x1024xf32>
    %c2_31 = arith.constant 2 : index
    %c0_32 = arith.constant 0 : index
    %c0_33 = arith.constant 0 : index
    %29 = vector.load %arg4[%c2_31, %c0_32, %c0_33] : memref<9x4x8xf32, #tpu.memory_space<vmem>>, vector<1x4x8xf32>
    %30 = vector.shape_cast %29 : vector<1x4x8xf32> to vector<4x8xf32>
    %cst_34 = arith.constant dense<0.000000e+00> : vector<4x1024xf32>
    %31 = tpu.matmul %30, %28, %cst_34 {dimension_numbers = #tpu.dot_dimension_numbers<[1], [0], [0], [1], [0, 0, 1, 1], [], []>} : vector<4x8xf32>, vector<8x1024xf32>, vector<4x1024xf32> -> vector<4x1024xf32>
    %32 = arith.addf %26, %31 : vector<4x1024xf32>
    %c0_35 = arith.constant 0 : index
    %c1_36 = arith.constant 1 : index
    %c0_37 = arith.constant 0 : index
    %33 = vector.load %arg6[%c0_35, %c1_36, %c0_37] : memref<8x34x34xf32, #tpu.memory_space<vmem>>, vector<8x32x32xf32>
    %34 = vector.shape_cast %33 : vector<8x32x32xf32> to vector<8x1024xf32>
    %c3 = arith.constant 3 : index
    %c0_38 = arith.constant 0 : index
    %c0_39 = arith.constant 0 : index
    %35 = vector.load %arg4[%c3, %c0_38, %c0_39] : memref<9x4x8xf32, #tpu.memory_space<vmem>>, vector<1x4x8xf32>
    %36 = vector.shape_cast %35 : vector<1x4x8xf32> to vector<4x8xf32>
    %cst_40 = arith.constant dense<0.000000e+00> : vector<4x1024xf32>
    %37 = tpu.matmul %36, %34, %cst_40 {dimension_numbers = #tpu.dot_dimension_numbers<[1], [0], [0], [1], [0, 0, 1, 1], [], []>} : vector<4x8xf32>, vector<8x1024xf32>, vector<4x1024xf32> -> vector<4x1024xf32>
    %38 = arith.addf %32, %37 : vector<4x1024xf32>
    %c0_41 = arith.constant 0 : index
    %c1_42 = arith.constant 1 : index
    %c1_43 = arith.constant 1 : index
    %39 = vector.load %arg6[%c0_41, %c1_42, %c1_43] : memref<8x34x34xf32, #tpu.memory_space<vmem>>, vector<8x32x32xf32>
    %40 = vector.shape_cast %39 : vector<8x32x32xf32> to vector<8x1024xf32>
    %c4 = arith.constant 4 : index
    %c0_44 = arith.constant 0 : index
    %c0_45 = arith.constant 0 : index
    %41 = vector.load %arg4[%c4, %c0_44, %c0_45] : memref<9x4x8xf32, #tpu.memory_space<vmem>>, vector<1x4x8xf32>
    %42 = vector.shape_cast %41 : vector<1x4x8xf32> to vector<4x8xf32>
    %cst_46 = arith.constant dense<0.000000e+00> : vector<4x1024xf32>
    %43 = tpu.matmul %42, %40, %cst_46 {dimension_numbers = #tpu.dot_dimension_numbers<[1], [0], [0], [1], [0, 0, 1, 1], [], []>} : vector<4x8xf32>, vector<8x1024xf32>, vector<4x1024xf32> -> vector<4x1024xf32>
    %44 = arith.addf %38, %43 : vector<4x1024xf32>
    %c0_47 = arith.constant 0 : index
    %c1_48 = arith.constant 1 : index
    %c2_49 = arith.constant 2 : index
    %45 = vector.load %arg6[%c0_47, %c1_48, %c2_49] : memref<8x34x34xf32, #tpu.memory_space<vmem>>, vector<8x32x32xf32>
    %46 = vector.shape_cast %45 : vector<8x32x32xf32> to vector<8x1024xf32>
    %c5 = arith.constant 5 : index
    %c0_50 = arith.constant 0 : index
    %c0_51 = arith.constant 0 : index
    %47 = vector.load %arg4[%c5, %c0_50, %c0_51] : memref<9x4x8xf32, #tpu.memory_space<vmem>>, vector<1x4x8xf32>
    %48 = vector.shape_cast %47 : vector<1x4x8xf32> to vector<4x8xf32>
    %cst_52 = arith.constant dense<0.000000e+00> : vector<4x1024xf32>
    %49 = tpu.matmul %48, %46, %cst_52 {dimension_numbers = #tpu.dot_dimension_numbers<[1], [0], [0], [1], [0, 0, 1, 1], [], []>} : vector<4x8xf32>, vector<8x1024xf32>, vector<4x1024xf32> -> vector<4x1024xf32>
    %50 = arith.addf %44, %49 : vector<4x1024xf32>
    %c0_53 = arith.constant 0 : index
    %c2_54 = arith.constant 2 : index
    %c0_55 = arith.constant 0 : index
    %51 = vector.load %arg6[%c0_53, %c2_54, %c0_55] : memref<8x34x34xf32, #tpu.memory_space<vmem>>, vector<8x32x32xf32>
    %52 = vector.shape_cast %51 : vector<8x32x32xf32> to vector<8x1024xf32>
    %c6 = arith.constant 6 : index
    %c0_56 = arith.constant 0 : index
    %c0_57 = arith.constant 0 : index
    %53 = vector.load %arg4[%c6, %c0_56, %c0_57] : memref<9x4x8xf32, #tpu.memory_space<vmem>>, vector<1x4x8xf32>
    %54 = vector.shape_cast %53 : vector<1x4x8xf32> to vector<4x8xf32>
    %cst_58 = arith.constant dense<0.000000e+00> : vector<4x1024xf32>
    %55 = tpu.matmul %54, %52, %cst_58 {dimension_numbers = #tpu.dot_dimension_numbers<[1], [0], [0], [1], [0, 0, 1, 1], [], []>} : vector<4x8xf32>, vector<8x1024xf32>, vector<4x1024xf32> -> vector<4x1024xf32>
    %56 = arith.addf %50, %55 : vector<4x1024xf32>
    %c0_59 = arith.constant 0 : index
    %c2_60 = arith.constant 2 : index
    %c1_61 = arith.constant 1 : index
    %57 = vector.load %arg6[%c0_59, %c2_60, %c1_61] : memref<8x34x34xf32, #tpu.memory_space<vmem>>, vector<8x32x32xf32>
    %58 = vector.shape_cast %57 : vector<8x32x32xf32> to vector<8x1024xf32>
    %c7 = arith.constant 7 : index
    %c0_62 = arith.constant 0 : index
    %c0_63 = arith.constant 0 : index
    %59 = vector.load %arg4[%c7, %c0_62, %c0_63] : memref<9x4x8xf32, #tpu.memory_space<vmem>>, vector<1x4x8xf32>
    %60 = vector.shape_cast %59 : vector<1x4x8xf32> to vector<4x8xf32>
    %cst_64 = arith.constant dense<0.000000e+00> : vector<4x1024xf32>
    %61 = tpu.matmul %60, %58, %cst_64 {dimension_numbers = #tpu.dot_dimension_numbers<[1], [0], [0], [1], [0, 0, 1, 1], [], []>} : vector<4x8xf32>, vector<8x1024xf32>, vector<4x1024xf32> -> vector<4x1024xf32>
    %62 = arith.addf %56, %61 : vector<4x1024xf32>
    %c0_65 = arith.constant 0 : index
    %c2_66 = arith.constant 2 : index
    %c2_67 = arith.constant 2 : index
    %63 = vector.load %arg6[%c0_65, %c2_66, %c2_67] : memref<8x34x34xf32, #tpu.memory_space<vmem>>, vector<8x32x32xf32>
    %64 = vector.shape_cast %63 : vector<8x32x32xf32> to vector<8x1024xf32>
    %c8 = arith.constant 8 : index
    %c0_68 = arith.constant 0 : index
    %c0_69 = arith.constant 0 : index
    %65 = vector.load %arg4[%c8, %c0_68, %c0_69] : memref<9x4x8xf32, #tpu.memory_space<vmem>>, vector<1x4x8xf32>
    %66 = vector.shape_cast %65 : vector<1x4x8xf32> to vector<4x8xf32>
    %cst_70 = arith.constant dense<0.000000e+00> : vector<4x1024xf32>
    %67 = tpu.matmul %66, %64, %cst_70 {dimension_numbers = #tpu.dot_dimension_numbers<[1], [0], [0], [1], [0, 0, 1, 1], [], []>} : vector<4x8xf32>, vector<8x1024xf32>, vector<4x1024xf32> -> vector<4x1024xf32>
    %68 = arith.addf %62, %67 : vector<4x1024xf32>
    %c0_71 = arith.constant 0 : index
    %c0_72 = arith.constant 0 : index
    %c0_73 = arith.constant 0 : index
    %69 = vector.load %arg5[%c0_71, %c0_72, %c0_73] : memref<1x4x1024xf32, #tpu.memory_space<vmem>>, vector<1x4x1024xf32>
    %70 = vector.shape_cast %69 : vector<1x4x1024xf32> to vector<4x1024xf32>
    %71 = vector.shape_cast %68 : vector<4x1024xf32> to vector<1x4x1024xf32>
    tpu.vector_store %arg5[%c0_71, %c0_72, %c0_73], %71 {strides = array<i32>} : memref<1x4x1024xf32, #tpu.memory_space<vmem>>, vector<1x4x1024xf32>,
    return
  }
  func.func @transform_0(%arg0: i32) -> (i32, i32, i32, i32) {
    %c0_i32 = arith.constant 0 : i32
    %c0_i32_0 = arith.constant 0 : i32
    %c0_i32_1 = arith.constant 0 : i32
    %c0_i32_2 = arith.constant 0 : i32
    return %arg0, %c0_i32, %c0_i32_0, %c0_i32_1 : i32, i32, i32, i32
  }
  func.func @transform_1(%arg0: i32) -> (i32, i32) {
    %c0_i32 = arith.constant 0 : i32
    %c0_i32_0 = arith.constant 0 : i32
    %c0_i32_1 = arith.constant 0 : i32
    return %c0_i32, %c0_i32_0 : i32, i32
  }
  func.func @transform_2(%arg0: i32) -> (i32, i32) {
    %c0_i32 = arith.constant 0 : i32
    %c0_i32_0 = arith.constant 0 : i32
    %c0_i32_1 = arith.constant 0 : i32
    return %c0_i32, %c0_i32_0 : i32, i32
  }
  func.func @transform_3(%arg0: i32) -> (i32, i32, i32) {
    %c0_i32 = arith.constant 0 : i32
    %c0_i32_0 = arith.constant 0 : i32
    %c0_i32_1 = arith.constant 0 : i32
    %c0_i32_2 = arith.constant 0 : i32
    return %c0_i32, %c0_i32_0, %c0_i32_1 : i32, i32, i32
  }
  func.func @transform_4(%arg0: i32) -> (i32, i32, i32) {
    %c0_i32 = arith.constant 0 : i32
    %c0_i32_0 = arith.constant 0 : i32
    %c0_i32_1 = arith.constant 0 : i32
    return %arg0, %c0_i32, %c0_i32_0 : i32, i32, i32
  }
}

</mosaic_0001>

<llo_original>
// kernel: tpu_custom_call.1
$region0: #{tpu_custom_call.1}
  #allocation0 [shape = 'u32[]', space=smem, size = 0x4, offset = 0x4, fixed_abs, tag = 'smem constant byte address 0x4 - core index']
  #allocation1 [shape = 'u32[144,128]{1,0:T(1,128)}', space=vmem, size = 0x12000, scoped, tag = 'internal scratch']
  #allocation2 [shape = 'f32[8,34,34]{2,1,0:T(8,128)}', space=vmem, size = 0x28000, scoped, tag = 'scratch operand']
  %s0 = inlined_call_operand.hbm [shape: f32[2,8,16,16], index: 0, kind: input, shape index: {}]
  %s1 = inlined_call_operand.vmem [shape: f32[32,16], index: 1, kind: input, shape index: {}]
  %s2 = inlined_call_operand.vmem [shape: f32[16,32], index: 2, kind: input, shape index: {}]
  %s3 = inlined_call_operand.vmem [shape: f32[9,4,8], index: 3, kind: input, shape index: {}]
  %s4 = inlined_call_operand.hbm [shape: f32[2,4,1024], index: 4, kind: output, shape index: {}]
  %s5 = sld [smem:[#allocation0]]
  $region53: #{tpu_custom_call.1} parent=0
    _
  %s7 = ssub.s32 1, %s5
  %s8 = scalar_select 0, %s7, %s5
  $region1: #{tpu_custom_call.1} parent=0
    #allocation3 [shape = 'u8[131072]{0}', space=vmem, size = 0x20000, scoped, tag = 'input window, operand 0']
    #allocation4 [shape = 's32[2]{0}', space=sflag, size = 0x8, scoped, tag = 'scoped memory for tpu_custom_call.1']
    #allocation5 [shape = 's32[2]{0}', space=sflag, size = 0x8, scoped, tag = 'scoped memory for tpu_custom_call.1']
    #allocation6 [shape = 'u8[32768]{0}', space=vmem, size = 0x8000, scoped, tag = 'output window, operand 0']
    %9 = vsyncpa [#allocation4], 0
    %s10 = scalar_lea.sflag [#allocation4], 1
    %11 = vsyncpa %s10, 0
    %12 = vsyncpa [#allocation5], 0
    %s13 = scalar_lea.sflag [#allocation5], 1
    %14 = vsyncpa %s13, 0
    loop: start=0, step=1, limit=4
    $region2: #{tpu_custom_call.1} parent=1 // loop_pre_header
      _
    $region3: #{tpu_custom_call.1} parent=1 // loop_header
      %s16 = sphi 0, %s20
      %p17 = scmp.ge.s32.totalorder %s16, 4
      %s26 = sphi 0, %s28
      %s29 = sphi 0, %s26
      %s30 = sphi 0, %s29
      %s46 = sphi 0, %s30
      %s50 = sphi 0, %s50
      %s52 = sphi 0, %s50
      %s53 = sphi 0, %s52
      %s67 = sphi 0, %s53
      %s71 = sphi 0, %s71
      %s73 = sphi 0, %s71
      %s74 = sphi 0, %s73
      %s88 = sphi 0, %s74
      %s92 = sphi 0, %s92
      %s94 = sphi 0, %s92
      %s95 = sphi 0, %s94
      %s109 = sphi 0, %s95
      %s115 = sphi 0, %s117
      %s118 = sphi 0, %s115
      %s119 = sphi 0, %s118
      %s135 = sphi 0, %s119
    $region4: #{tpu_custom_call.1} parent=1 // loop_header_branch
      %19 = sbr.rel (%p17) target = $region8
    $region5: #{tpu_custom_call.1} parent=1 // loop_body
      %s21 = ssub.s32 %s16, 1
      %s22 = ssub.s32 %s16, 2
      %s23 = sadd.s32 %s16, 1
      %s24 = ssub.s32 %s16, %s23
      %p25 = scmp.eq.s32.totalorder %s24, 0
      %s27 = sadd.s32 %s26, 1
      %s28 = scalar_select %p25, %s26, %s27
      %p31 = pneg %p25
      %p32 = scmp.eq.s32.totalorder %s16, 1
      %p33 = por %p31, %p32
      %p34 = scmp.ne.s32.totalorder %s26, %s29
      %p35 = scmp.eq.s32.totalorder %s16, 0
      %p36 = por %p34, %p35
      %p37 = scmp.ne.s32.totalorder %s26, %s29
      %p38 = scmp.eq.s32.totalorder %s21, 1
      %p39 = por %p37, %p38
      %p40 = scmp.ne.s32.totalorder %s29, %s30
      %p41 = scmp.eq.s32.totalorder %s21, 0
      %p42 = por %p40, %p41
      %p43 = scmp.ne.s32.totalorder %s29, %s30
      %p44 = scmp.eq.s32.totalorder %s22, 1
      %p45 = por %p43, %p44
      %p47 = scmp.ne.s32.totalorder %s30, %s46
      %p48 = scmp.eq.s32.totalorder %s22, 0
      %p49 = por %p47, %p48
      %s51 = sadd.s32 %s50, 1
      %p54 = scmp.eq.s32.totalorder %s16, 1
      %p55 = scmp.ne.s32.totalorder %s50, %s52
      %p56 = scmp.eq.s32.totalorder %s16, 0
      %p57 = por %p55, %p56
      %p58 = scmp.ne.s32.totalorder %s50, %s52
      %p59 = scmp.eq.s32.totalorder %s21, 1
      %p60 = por %p58, %p59
      %p61 = scmp.ne.s32.totalorder %s52, %s53
      %p62 = scmp.eq.s32.totalorder %s21, 0
      %p63 = por %p61, %p62
      %p64 = scmp.ne.s32.totalorder %s52, %s53
      %p65 = scmp.eq.s32.totalorder %s22, 1
      %p66 = por %p64, %p65
      %p68 = scmp.ne.s32.totalorder %s53, %s67
      %p69 = scmp.eq.s32.totalorder %s22, 0
      %p70 = por %p68, %p69
      %s72 = sadd.s32 %s71, 1
      %p75 = scmp.eq.s32.totalorder %s16, 1
      %p76 = scmp.ne.s32.totalorder %s71, %s73
      %p77 = scmp.eq.s32.totalorder %s16, 0
      %p78 = por %p76, %p77
      %p79 = scmp.ne.s32.totalorder %s71, %s73
      %p80 = scmp.eq.s32.totalorder %s21, 1
      %p81 = por %p79, %p80
      %p82 = scmp.ne.s32.totalorder %s73, %s74
      %p83 = scmp.eq.s32.totalorder %s21, 0
      %p84 = por %p82, %p83
      %p85 = scmp.ne.s32.totalorder %s73, %s74
      %p86 = scmp.eq.s32.totalorder %s22, 1
      %p87 = por %p85, %p86
      %p89 = scmp.ne.s32.totalorder %s74, %s88
      %p90 = scmp.eq.s32.totalorder %s22, 0
      %p91 = por %p89, %p90
      %s93 = sadd.s32 %s92, 1
      %p96 = scmp.eq.s32.totalorder %s16, 1
      %p97 = scmp.ne.s32.totalorder %s92, %s94
      %p98 = scmp.eq.s32.totalorder %s16, 0
      %p99 = por %p97, %p98
      %p100 = scmp.ne.s32.totalorder %s92, %s94
      %p101 = scmp.eq.s32.totalorder %s21, 1
      %p102 = por %p100, %p101
      %p103 = scmp.ne.s32.totalorder %s94, %s95
      %p104 = scmp.eq.s32.totalorder %s21, 0
      %p105 = por %p103, %p104
      %p106 = scmp.ne.s32.totalorder %s94, %s95
      %p107 = scmp.eq.s32.totalorder %s22, 1
      %p108 = por %p106, %p107
      %p110 = scmp.ne.s32.totalorder %s95, %s109
      %p111 = scmp.eq.s32.totalorder %s22, 0
      %p112 = por %p110, %p111
      %s113 = ssub.s32 %s16, %s23
      %p114 = scmp.eq.s32.totalorder %s113, 0
      %s116 = sadd.s32 %s115, 1
      %s117 = scalar_select %p114, %s115, %s116
      %p120 = pneg %p114
      %p121 = scmp.eq.s32.totalorder %s16, 1
      %p122 = por %p120, %p121
      %p123 = scmp.ne.s32.totalorder %s115, %s118
      %p124 = scmp.eq.s32.totalorder %s16, 0
      %p125 = por %p123, %p124
      %p126 = scmp.ne.s32.totalorder %s115, %s118
      %p127 = scmp.eq.s32.totalorder %s21, 1
      %p128 = por %p126, %p127
      %p129 = scmp.ne.s32.totalorder %s118, %s119
      %p130 = scmp.eq.s32.totalorder %s21, 0
      %p131 = por %p129, %p130
      %p132 = scmp.ne.s32.totalorder %s118, %s119
      %p133 = scmp.eq.s32.totalorder %s22, 1
      %p134 = por %p132, %p133
      %p136 = scmp.ne.s32.totalorder %s119, %s135
      %p137 = scmp.eq.s32.totalorder %s22, 0
      %p138 = por %p136, %p137
      %p139 = scmp.le.s32.totalorder 1, %s16
      %p140 = scmp.lt.s32.totalorder %s16, 3
      %p141 = pnand %p139, %p140
      %p142 = pneg %p141
      // Predicated region
      $region9: #{tpu_custom_call.1} parent=5 // pred_check
        _
      $region10: #{tpu_custom_call.1} parent=5 // pred_check_branch
        %144 = sbr.rel (%p141) target = $region12
      $region11: #{tpu_custom_call.1} parent=5 // pred_region
        %s145 = ssub.s32 %s16, 1
        // Predicated region
        $region13: #{tpu_custom_call.1} parent=11 // pred_check
          %p146 = pneg %p63
        $region14: #{tpu_custom_call.1} parent=11 // pred_check_branch
          %148 = sbr.rel (%p146) target = $region16
        $region15: #{tpu_custom_call.1} parent=11 // pred_region
          _
        $region16: #{tpu_custom_call.1} parent=11 // pred_fallthru
          _
        // Predicated region
        $region17: #{tpu_custom_call.1} parent=11 // pred_check
          %p149 = pneg %p84
        $region18: #{tpu_custom_call.1} parent=11 // pred_check_branch
          %151 = sbr.rel (%p149) target = $region20
        $region19: #{tpu_custom_call.1} parent=11 // pred_region
          _
        $region20: #{tpu_custom_call.1} parent=11 // pred_fallthru
          _
        // Predicated region
        $region21: #{tpu_custom_call.1} parent=11 // pred_check
          %p152 = pneg %p105
        $region22: #{tpu_custom_call.1} parent=11 // pred_check_branch
          %154 = sbr.rel (%p152) target = $region24
        $region23: #{tpu_custom_call.1} parent=11 // pred_region
          _
        $region24: #{tpu_custom_call.1} parent=11 // pred_fallthru
          _
      $region12: #{tpu_custom_call.1} parent=5 // pred_fallthru
        _
      %p155 = scmp.lt.s32.totalorder %s16, 2
      // Predicated region
      $region25: #{tpu_custom_call.1} parent=5 // pred_check
        %p156 = pneg %p155
      $region26: #{tpu_custom_call.1} parent=5 // pred_check_branch
        %158 = sbr.rel (%p156) target = $region28
      $region27: #{tpu_custom_call.1} parent=5 // pred_region
        // Predicated region
        $region29: #{tpu_custom_call.1} parent=27 // pred_check
          %p159 = pneg %p36
        $region30: #{tpu_custom_call.1} parent=27 // pred_check_branch
          %161 = sbr.rel (%p159) target = $region32
        $region31: #{tpu_custom_call.1} parent=27 // pred_region
          %s162 = sand.u32 %s26, 1
          %s163 = scalar_lea.sflag [#allocation4], %s162
          %s164 = sand.u32 %s26, 1
          %s165 = smul.addr %s164, 128
          %s166 = scalar_lea.vmem [#allocation3], %s165
          %s168 = ssub.s32 2048, 2048
          %169 = vsyncadd %s163, %s168
          %s170 = smul.addr %s16, 16
          %s171 = smul.addr %s170, 128
          %s172 = scalar_lea.hbm %s0, %s171
          %s173 = sshll.u32 %s166, 4
          %s174 = int_to_ptr.vmem [resolvable:$true] %s173
          %179 = dma.hbm_to_vmem [thread:$0]  %s172, 2048, %s174, %s163, 128, 128, 8
        $region32: #{tpu_custom_call.1} parent=27 // pred_fallthru
          _
      $region28: #{tpu_custom_call.1} parent=5 // pred_fallthru
        _
      %p180 = scmp.le.s32.totalorder 1, %s16
      %p181 = scmp.lt.s32.totalorder %s16, 3
      %p182 = pnand %p180, %p181
      %p183 = pneg %p182
      // Predicated region
      $region33: #{tpu_custom_call.1} parent=5 // pred_check
        _
      $region34: #{tpu_custom_call.1} parent=5 // pred_check_branch
        %185 = sbr.rel (%p182) target = $region36
      $region35: #{tpu_custom_call.1} parent=5 // pred_region
        %s186 = ssub.s32 %s16, 1
        %s187 = sand.u32 %s29, 1
        %s188 = scalar_lea.sflag [#allocation4], %s187
        %s189 = sand.u32 %s29, 1
        %s190 = smul.addr %s189, 128
        %s191 = scalar_lea.vmem [#allocation3], %s190
        // Predicated region
        $region37: #{tpu_custom_call.1} parent=35 // pred_check
          %p192 = pneg %p42
        $region38: #{tpu_custom_call.1} parent=35 // pred_check_branch
          %194 = sbr.rel (%p192) target = $region40
        $region39: #{tpu_custom_call.1} parent=35 // pred_region
          %195 = dma.done %s188, 2048
        $region40: #{tpu_custom_call.1} parent=35 // pred_fallthru
          _
        %s196 = sand.u32 %s29, 1
        %s197 = scalar_lea.sflag [#allocation4], %s196
        %s198 = sand.u32 %s29, 1
        %s199 = smul.addr %s198, 128
        %s200 = scalar_lea.vmem [#allocation3], %s199
        %p201 = pneg %p42
        %p202 = pneg %p39
        %p203 = pneg %p63
        %p204 = pneg %p60
        %p205 = pneg %p84
        %p206 = pneg %p81
        %p207 = pneg %p105
        %p208 = pneg %p102
        %p209 = pneg %p131
        %p210 = pneg %p128
        %s211 = sand.u32 %s118, 1
        %s212 = scalar_lea.sflag [#allocation5], %s211
        %s213 = sand.u32 %s118, 1
        %s214 = smul.addr %s213, 32
        %s215 = scalar_lea.vmem [#allocation6], %s214
        %v216 = vld [vmem:[%s191] sm:$0xff]
        %v217 = vld [vmem:[%s191 + $0x8] sm:$0xff]
        %v218 = vld [vmem:[%s191 + $0x10] sm:$0xff]
        %v219 = vld [vmem:[%s191 + $0x18] sm:$0xff]
        %v220 = vld [vmem:[%s191 + $0x20] sm:$0xff]
        %v221 = vld [vmem:[%s191 + $0x28] sm:$0xff]
        %v222 = vld [vmem:[%s191 + $0x30] sm:$0xff]
        %v223 = vld [vmem:[%s191 + $0x38] sm:$0xff]
        %v224 = vld [vmem:[%s191 + $0x40] sm:$0xff]
        %v225 = vld [vmem:[%s191 + $0x48] sm:$0xff]
        %v226 = vld [vmem:[%s191 + $0x50] sm:$0xff]
        %v227 = vld [vmem:[%s191 + $0x58] sm:$0xff]
        %v228 = vld [vmem:[%s191 + $0x60] sm:$0xff]
        %v229 = vld [vmem:[%s191 + $0x68] sm:$0xff]
        %v230 = vld [vmem:[%s191 + $0x70] sm:$0xff]
        %v231 = vld [vmem:[%s191 + $0x78] sm:$0xff]
        %v232 = vld [vmem:[%s1] sm:$0xff]
        %v233 = vld [vmem:[%s1 + $0x8] sm:$0xff]
        %v234 = vld [vmem:[%s1 + $0x10] sm:$0xff]
        %v235 = vld [vmem:[%s1 + $0x18] sm:$0xff]
        %vm236 = vcmask 130048
        %v238 = vsel %vm236, %v232, 0
        %v241 = vsel %vm236, %v233, 0
        %v244 = vsel %vm236, %v234, 0
        %v247 = vsel %vm236, %v235, 0
        %249 = vmatprep.subr.mxu0 0.0
        %250 = vmatpush1.msra.mxu0 %v216
        %251 = vmatprep.subr.mxu0 0.0
        %252 = vmatpush1.msra.mxu0 %v217
        %253 = vmatprep.subr.mxu0 0.0
        %254 = vmatpush1.msra.mxu0 0.0
        %255 = vmatprep.subr.mxu0 0.0
        %256 = vmatpush1.msra.mxu0 0.0
        %257 = vmatprep.subr.mxu0 0.0
        %258 = vmatpush1.msra.mxu0 0.0
        %259 = vmatprep.subr.mxu0 0.0
        %260 = vmatpush1.msra.mxu0 0.0
        %261 = vmatprep.subr.mxu0 0.0
        %262 = vmatpush1.msra.mxu0 0.0
        %263 = vmatprep.subr.mxu0 0.0
        %264 = vmatpush1.msra.mxu0 0.0
        %265 = vmatprep.subr.mxu0 0.0
        %266 = vmatpush1.msra.mxu0 0.0
        %267 = vmatprep.subr.mxu0 0.0
        %268 = vmatpush1.msra.mxu0 0.0
        %269 = vmatprep.subr.mxu0 0.0
        %270 = vmatpush1.msra.mxu0 0.0
        %271 = vmatprep.subr.mxu0 0.0
        %272 = vmatpush1.msra.mxu0 0.0
        %273 = vmatprep.subr.mxu0 0.0
        %274 = vmatpush1.msra.mxu0 0.0
        %275 = vmatprep.subr.mxu0 0.0
        %276 = vmatpush1.msra.mxu0 0.0
        %277 = vmatprep.subr.mxu0 0.0
        %278 = vmatpush1.msra.mxu0 0.0
        %279 = vmatprep.subr.mxu0 0.0
        %280 = vmatpush1.msra.mxu0 0.0
        %281 = vmatprep.subr.mxu0 0.0
        %282 = vmatpush1.msra.mxu0 0.0
        %283 = vmatprep.subr.mxu0 0.0
        %284 = vmatpush1.msra.mxu0 0.0
        %285 = vmatprep.subr.mxu0 0.0
        %286 = vmatpush1.msra.mxu0 0.0
        %287 = vmatprep.subr.mxu0 0.0
        %288 = vmatpush1.msra.mxu0 0.0
        %289 = vmatprep.subr.mxu0 0.0
        %290 = vmatpush1.msra.mxu0 0.0
        %291 = vmatprep.subr.mxu0 0.0
        %292 = vmatpush1.msra.mxu0 0.0
        %293 = vmatprep.subr.mxu0 0.0
        %294 = vmatpush1.msra.mxu0 0.0
        %295 = vmatprep.subr.mxu0 0.0
        %296 = vmatpush1.msra.mxu0 0.0
        %297 = vmatprep.subr.mxu0 0.0
        %298 = vmatpush1.msra.mxu0 0.0
        %299 = vmatprep.subr.mxu0 0.0
        %300 = vmatpush1.msra.mxu0 0.0
        %301 = vmatprep.subr.mxu0 0.0
        %302 = vmatpush1.msra.mxu0 0.0
        %303 = vmatprep.subr.mxu0 0.0
        %304 = vmatpush1.msra.mxu0 0.0
        %305 = vmatprep.subr.mxu0 0.0
        %306 = vmatpush1.msra.mxu0 0.0
        %307 = vmatprep.subr.mxu0 0.0
        %308 = vmatpush1.msra.mxu0 0.0
        %309 = vmatprep.subr.mxu0 0.0
        %310 = vmatpush1.msra.mxu0 0.0
        %311 = vmatprep.subr.mxu0 0.0
        %312 = vmatpush1.msra.mxu0 0.0
        %313 = vmatprep.mubr.f32.mxu0 0.0
        %314 = vmatmul.mubr.f32.gmra.mrb[0].mxu0 %v238
        %v315 = vpop.f32.mrb[0].mxu0
        %v316 = vadd.f32 0.0, %v315
        %v317 = vpop.f32.mrb[0].mxu0
        %318 = vmatprep.mubr.f32.mxu0 0.0
        %319 = vmatmul.mubr.f32.gmra.mrb[0].mxu0 %v241
        %v320 = vpop.f32.mrb[0].mxu0
        %v321 = vadd.f32 0.0, %v320
        %v322 = vpop.f32.mrb[0].mxu0
        %323 = vmatprep.mubr.f32.mxu0 0.0
        %324 = vmatmul.mubr.f32.gmra.mrb[0].mxu0 %v244
        %v325 = vpop.f32.mrb[0].mxu0
        %v326 = vadd.f32 0.0, %v325
        %v327 = vpop.f32.mrb[0].mxu0
        %328 = vmatprep.mubr.f32.mxu0 0.0
        %329 = vmatmul.mubr.f32.gmra.mrb[0].mxu0 %v247
        %v330 = vpop.f32.mrb[0].mxu0
        %v331 = vadd.f32 0.0, %v330
        %v332 = vpop.f32.mrb[0].mxu0
        %333 = vdwg.mxu0
        %334 = vmatprep.subr.mxu0 0.0
        %335 = vmatpush1.msra.mxu0 %v218
        %336 = vmatprep.subr.mxu0 0.0
        %337 = vmatpush1.msra.mxu0 %v219
        %338 = vmatprep.subr.mxu0 0.0
        %339 = vmatpush1.msra.mxu0 0.0
        %340 = vmatprep.subr.mxu0 0.0
        %341 = vmatpush1.msra.mxu0 0.0
        %342 = vmatprep.subr.mxu0 0.0
        %343 = vmatpush1.msra.mxu0 0.0
        %344 = vmatprep.subr.mxu0 0.0
        %345 = vmatpush1.msra.mxu0 0.0
        %346 = vmatprep.subr.mxu0 0.0
        %347 = vmatpush1.msra.mxu0 0.0
        %348 = vmatprep.subr.mxu0 0.0
        %349 = vmatpush1.msra.mxu0 0.0
        %350 = vmatprep.subr.mxu0 0.0
        %351 = vmatpush1.msra.mxu0 0.0
        %352 = vmatprep.subr.mxu0 0.0
        %353 = vmatpush1.msra.mxu0 0.0
        %354 = vmatprep.subr.mxu0 0.0
        %355 = vmatpush1.msra.mxu0 0.0
        %356 = vmatprep.subr.mxu0 0.0
        %357 = vmatpush1.msra.mxu0 0.0
        %358 = vmatprep.subr.mxu0 0.0
        %359 = vmatpush1.msra.mxu0 0.0
        %360 = vmatprep.subr.mxu0 0.0
        %361 = vmatpush1.msra.mxu0 0.0
        %362 = vmatprep.subr.mxu0 0.0
        %363 = vmatpush1.msra.mxu0 0.0
        %364 = vmatprep.subr.mxu0 0.0
        %365 = vmatpush1.msra.mxu0 0.0
        %366 = vmatprep.subr.mxu0 0.0
        %367 = vmatpush1.msra.mxu0 0.0
        %368 = vmatprep.subr.mxu0 0.0
        %369 = vmatpush1.msra.mxu0 0.0
        %370 = vmatprep.subr.mxu0 0.0
        %371 = vmatpush1.msra.mxu0 0.0
        %372 = vmatprep.subr.mxu0 0.0
        %373 = vmatpush1.msra.mxu0 0.0
        %374 = vmatprep.subr.mxu0 0.0
        %375 = vmatpush1.msra.mxu0 0.0
        %376 = vmatprep.subr.mxu0 0.0
        %377 = vmatpush1.msra.mxu0 0.0
        %378 = vmatprep.subr.mxu0 0.0
        %379 = vmatpush1.msra.mxu0 0.0
        %380 = vmatprep.subr.mxu0 0.0
        %381 = vmatpush1.msra.mxu0 0.0
        %382 = vmatprep.subr.mxu0 0.0
        %383 = vmatpush1.msra.mxu0 0.0
        %384 = vmatprep.subr.mxu0 0.0
        %385 = vmatpush1.msra.mxu0 0.0
        %386 = vmatprep.subr.mxu0 0.0
        %387 = vmatpush1.msra.mxu0 0.0
        %388 = vmatprep.subr.mxu0 0.0
        %389 = vmatpush1.msra.mxu0 0.0
        %390 = vmatprep.subr.mxu0 0.0
        %391 = vmatpush1.msra.mxu0 0.0
        %392 = vmatprep.subr.mxu0 0.0
        %393 = vmatpush1.msra.mxu0 0.0
        %394 = vmatprep.subr.mxu0 0.0
        %395 = vmatpush1.msra.mxu0 0.0
        %396 = vmatprep.subr.mxu0 0.0
        %397 = vmatpush1.msra.mxu0 0.0
        %398 = vmatprep.mubr.f32.mxu0 0.0
        %399 = vmatmul.mubr.f32.gmra.mrb[0].mxu0 %v238
        %v400 = vpop.f32.mrb[0].mxu0
        %v401 = vadd.f32 0.0, %v400
        %v402 = vpop.f32.mrb[0].mxu0
        %403 = vmatprep.mubr.f32.mxu0 0.0
        %404 = vmatmul.mubr.f32.gmra.mrb[0].mxu0 %v241
        %v405 = vpop.f32.mrb[0].mxu0
        %v406 = vadd.f32 0.0, %v405
        %v407 = vpop.f32.mrb[0].mxu0
        %408 = vmatprep.mubr.f32.mxu0 0.0
        %409 = vmatmul.mubr.f32.gmra.mrb[0].mxu0 %v244
        %v410 = vpop.f32.mrb[0].mxu0
        %v411 = vadd.f32 0.0, %v410
        %v412 = vpop.f32.mrb[0].mxu0
        %413 = vmatprep.mubr.f32.mxu0 0.0
        %414 = vmatmul.mubr.f32.gmra.mrb[0].mxu0 %v247
        %v415 = vpop.f32.mrb[0].mxu0
        %v416 = vadd.f32 0.0, %v415
        %v417 = vpop.f32.mrb[0].mxu0
        %418 = vdwg.mxu0
        %419 = vmatprep.subr.mxu0 0.0
        %420 = vmatpush1.msra.mxu0 %v220
        %421 = vmatprep.subr.mxu0 0.0
        %422 = vmatpush1.msra.mxu0 %v221
        %423 = vmatprep.subr.mxu0 0.0
        %424 = vmatpush1.msra.mxu0 0.0
        %425 = vmatprep.subr.mxu0 0.0
        %426 = vmatpush1.msra.mxu0 0.0
        %427 = vmatprep.subr.mxu0 0.0
        %428 = vmatpush1.msra.mxu0 0.0
        %429 = vmatprep.subr.mxu0 0.0
        %430 = vmatpush1.msra.mxu0 0.0
        %431 = vmatprep.subr.mxu0 0.0
        %432 = vmatpush1.msra.mxu0 0.0
        %433 = vmatprep.subr.mxu0 0.0
        %434 = vmatpush1.msra.mxu0 0.0
        %435 = vmatprep.subr.mxu0 0.0
        %436 = vmatpush1.msra.mxu0 0.0
        %437 = vmatprep.subr.mxu0 0.0
        %438 = vmatpush1.msra.mxu0 0.0
        %439 = vmatprep.subr.mxu0 0.0
        %440 = vmatpush1.msra.mxu0 0.0
        %441 = vmatprep.subr.mxu0 0.0
        %442 = vmatpush1.msra.mxu0 0.0
        %443 = vmatprep.subr.mxu0 0.0
        %444 = vmatpush1.msra.mxu0 0.0
        %445 = vmatprep.subr.mxu0 0.0
        %446 = vmatpush1.msra.mxu0 0.0
        %447 = vmatprep.subr.mxu0 0.0
        %448 = vmatpush1.msra.mxu0 0.0
        %449 = vmatprep.subr.mxu0 0.0
        %450 = vmatpush1.msra.mxu0 0.0
        %451 = vmatprep.subr.mxu0 0.0
        %452 = vmatpush1.msra.mxu0 0.0
        %453 = vmatprep.subr.mxu0 0.0
        %454 = vmatpush1.msra.mxu0 0.0
        %455 = vmatprep.subr.mxu0 0.0
        %456 = vmatpush1.msra.mxu0 0.0
        %457 = vmatprep.subr.mxu0 0.0
        %458 = vmatpush1.msra.mxu0 0.0
        %459 = vmatprep.subr.mxu0 0.0
        %460 = vmatpush1.msra.mxu0 0.0
        %461 = vmatprep.subr.mxu0 0.0
        %462 = vmatpush1.msra.mxu0 0.0
        %463 = vmatprep.subr.mxu0 0.0
        %464 = vmatpush1.msra.mxu0 0.0
        %465 = vmatprep.subr.mxu0 0.0
        %466 = vmatpush1.msra.mxu0 0.0
        %467 = vmatprep.subr.mxu0 0.0
        %468 = vmatpush1.msra.mxu0 0.0
        %469 = vmatprep.subr.mxu0 0.0
        %470 = vmatpush1.msra.mxu0 0.0
        %471 = vmatprep.subr.mxu0 0.0
        %472 = vmatpush1.msra.mxu0 0.0
        %473 = vmatprep.subr.mxu0 0.0
        %474 = vmatpush1.msra.mxu0 0.0
        %475 = vmatprep.subr.mxu0 0.0
        %476 = vmatpush1.msra.mxu0 0.0
        %477 = vmatprep.subr.mxu0 0.0
        %478 = vmatpush1.msra.mxu0 0.0
        %479 = vmatprep.subr.mxu0 0.0
        %480 = vmatpush1.msra.mxu0 0.0
        %481 = vmatprep.subr.mxu0 0.0
        %482 = vmatpush1.msra.mxu0 0.0
        %483 = vmatprep.mubr.f32.mxu0 0.0
        %484 = vmatmul.mubr.f32.gmra.mrb[0].mxu0 %v238
        %v485 = vpop.f32.mrb[0].mxu0
        %v486 = vadd.f32 0.0, %v485
        %v487 = vpop.f32.mrb[0].mxu0
        %488 = vmatprep.mubr.f32.mxu0 0.0
        %489 = vmatmul.mubr.f32.gmra.mrb[0].mxu0 %v241
        %v490 = vpop.f32.mrb[0].mxu0
        %v491 = vadd.f32 0.0, %v490
        %v492 = vpop.f32.mrb[0].mxu0
        %493 = vmatprep.mubr.f32.mxu0 0.0
        %494 = vmatmul.mubr.f32.gmra.mrb[0].mxu0 %v244
        %v495 = vpop.f32.mrb[0].mxu0
        %v496 = vadd.f32 0.0, %v495
        %v497 = vpop.f32.mrb[0].mxu0
        %498 = vmatprep.mubr.f32.mxu0 0.0
        %499 = vmatmul.mubr.f32.gmra.mrb[0].mxu0 %v247
        %v500 = vpop.f32.mrb[0].mxu0
        %v501 = vadd.f32 0.0, %v500
        %v502 = vpop.f32.mrb[0].mxu0
        %503 = vdwg.mxu0
        %504 = vmatprep.subr.mxu0 0.0
        %505 = vmatpush1.msra.mxu0 %v222
        %506 = vmatprep.subr.mxu0 0.0
        %507 = vmatpush1.msra.mxu0 %v223
        %508 = vmatprep.subr.mxu0 0.0
        %509 = vmatpush1.msra.mxu0 0.0
        %510 = vmatprep.subr.mxu0 0.0
        %511 = vmatpush1.msra.mxu0 0.0
        %512 = vmatprep.subr.mxu0 0.0
        %513 = vmatpush1.msra.mxu0 0.0
        %514 = vmatprep.subr.mxu0 0.0
        %515 = vmatpush1.msra.mxu0 0.0
        %516 = vmatprep.subr.mxu0 0.0
        %517 = vmatpush1.msra.mxu0 0.0
        %518 = vmatprep.subr.mxu0 0.0
        %519 = vmatpush1.msra.mxu0 0.0
        %520 = vmatprep.subr.mxu0 0.0
        %521 = vmatpush1.msra.mxu0 0.0
        %522 = vmatprep.subr.mxu0 0.0
        %523 = vmatpush1.msra.mxu0 0.0
        %524 = vmatprep.subr.mxu0 0.0
        %525 = vmatpush1.msra.mxu0 0.0
        %526 = vmatprep.subr.mxu0 0.0
        %527 = vmatpush1.msra.mxu0 0.0
        %528 = vmatprep.subr.mxu0 0.0
        %529 = vmatpush1.msra.mxu0 0.0
        %530 = vmatprep.subr.mxu0 0.0
        %531 = vmatpush1.msra.mxu0 0.0
        %532 = vmatprep.subr.mxu0 0.0
        %533 = vmatpush1.msra.mxu0 0.0
        %534 = vmatprep.subr.mxu0 0.0
        %535 = vmatpush1.msra.mxu0 0.0
        %536 = vmatprep.subr.mxu0 0.0
        %537 = vmatpush1.msra.mxu0 0.0
        %538 = vmatprep.subr.mxu0 0.0
        %539 = vmatpush1.msra.mxu0 0.0
        %540 = vmatprep.subr.mxu0 0.0
        %541 = vmatpush1.msra.mxu0 0.0
        %542 = vmatprep.subr.mxu0 0.0
        %543 = vmatpush1.msra.mxu0 0.0
        %544 = vmatprep.subr.mxu0 0.0
        %545 = vmatpush1.msra.mxu0 0.0
        %546 = vmatprep.subr.mxu0 0.0
        %547 = vmatpush1.msra.mxu0 0.0
        %548 = vmatprep.subr.mxu0 0.0
        %549 = vmatpush1.msra.mxu0 0.0
        %550 = vmatprep.subr.mxu0 0.0
        %551 = vmatpush1.msra.mxu0 0.0
        %552 = vmatprep.subr.mxu0 0.0
        %553 = vmatpush1.msra.mxu0 0.0
        %554 = vmatprep.subr.mxu0 0.0
        %555 = vmatpush1.msra.mxu0 0.0
        %556 = vmatprep.subr.mxu0 0.0
        %557 = vmatpush1.msra.mxu0 0.0
        %558 = vmatprep.subr.mxu0 0.0
        %559 = vmatpush1.msra.mxu0 0.0
        %560 = vmatprep.subr.mxu0 0.0
        %561 = vmatpush1.msra.mxu0 0.0
        %562 = vmatprep.subr.mxu0 0.0
        %563 = vmatpush1.msra.mxu0 0.0
        %564 = vmatprep.subr.mxu0 0.0
        %565 = vmatpush1.msra.mxu0 0.0
        %566 = vmatprep.subr.mxu0 0.0
        %567 = vmatpush1.msra.mxu0 0.0
        %568 = vmatprep.mubr.f32.mxu0 0.0
        %569 = vmatmul.mubr.f32.gmra.mrb[0].mxu0 %v238
        %v570 = vpop.f32.mrb[0].mxu0
        %v571 = vadd.f32 0.0, %v570
        %v572 = vpop.f32.mrb[0].mxu0
        %573 = vmatprep.mubr.f32.mxu0 0.0
        %574 = vmatmul.mubr.f32.gmra.mrb[0].mxu0 %v241
        %v575 = vpop.f32.mrb[0].mxu0
        %v576 = vadd.f32 0.0, %v575
        %v577 = vpop.f32.mrb[0].mxu0
        %578 = vmatprep.mubr.f32.mxu0 0.0
        %579 = vmatmul.mubr.f32.gmra.mrb[0].mxu0 %v244
        %v580 = vpop.f32.mrb[0].mxu0
        %v581 = vadd.f32 0.0, %v580
        %v582 = vpop.f32.mrb[0].mxu0
        %583 = vmatprep.mubr.f32.mxu0 0.0
        %584 = vmatmul.mubr.f32.gmra.mrb[0].mxu0 %v247
        %v585 = vpop.f32.mrb[0].mxu0
        %v586 = vadd.f32 0.0, %v585
        %v587 = vpop.f32.mrb[0].mxu0
        %588 = vdwg.mxu0
        %589 = vmatprep.subr.mxu0 0.0
        %590 = vmatpush1.msra.mxu0 %v224
        %591 = vmatprep.subr.mxu0 0.0
        %592 = vmatpush1.msra.mxu0 %v225
        %593 = vmatprep.subr.mxu0 0.0
        %594 = vmatpush1.msra.mxu0 0.0
        %595 = vmatprep.subr.mxu0 0.0
        %596 = vmatpush1.msra.mxu0 0.0
        %597 = vmatprep.subr.mxu0 0.0
        %598 = vmatpush1.msra.mxu0 0.0
        %599 = vmatprep.subr.mxu0 0.0
        %600 = vmatpush1.msra.mxu0 0.0
        %601 = vmatprep.subr.mxu0 0.0
        %602 = vmatpush1.msra.mxu0 0.0
        %603 = vmatprep.subr.mxu0 0.0
        %604 = vmatpush1.msra.mxu0 0.0
        %605 = vmatprep.subr.mxu0 0.0
        %606 = vmatpush1.msra.mxu0 0.0
        %607 = vmatprep.subr.mxu0 0.0
        %608 = vmatpush1.msra.mxu0 0.0
        %609 = vmatprep.subr.mxu0 0.0
        %610 = vmatpush1.msra.mxu0 0.0
        %611 = vmatprep.subr.mxu0 0.0
        %612 = vmatpush1.msra.mxu0 0.0
        %613 = vmatprep.subr.mxu0 0.0
        %614 = vmatpush1.msra.mxu0 0.0
        %615 = vmatprep.subr.mxu0 0.0
        %616 = vmatpush1.msra.mxu0 0.0
        %617 = vmatprep.subr.mxu0 0.0
        %618 = vmatpush1.msra.mxu0 0.0
        %619 = vmatprep.subr.mxu0 0.0
        %620 = vmatpush1.msra.mxu0 0.0
        %621 = vmatprep.subr.mxu0 0.0
        %622 = vmatpush1.msra.mxu0 0.0
        %623 = vmatprep.subr.mxu0 0.0
        %624 = vmatpush1.msra.mxu0 0.0
        %625 = vmatprep.subr.mxu0 0.0
        %626 = vmatpush1.msra.mxu0 0.0
        %627 = vmatprep.subr.mxu0 0.0
        %628 = vmatpush1.msra.mxu0 0.0
        %629 = vmatprep.subr.mxu0 0.0
        %630 = vmatpush1.msra.mxu0 0.0
        %631 = vmatprep.subr.mxu0 0.0
        %632 = vmatpush1.msra.mxu0 0.0
        %633 = vmatprep.subr.mxu0 0.0
        %634 = vmatpush1.msra.mxu0 0.0
        %635 = vmatprep.subr.mxu0 0.0
        %636 = vmatpush1.msra.mxu0 0.0
        %637 = vmatprep.subr.mxu0 0.0
        %638 = vmatpush1.msra.mxu0 0.0
        %639 = vmatprep.subr.mxu0 0.0
        %640 = vmatpush1.msra.mxu0 0.0
        %641 = vmatprep.subr.mxu0 0.0
        %642 = vmatpush1.msra.mxu0 0.0
        %643 = vmatprep.subr.mxu0 0.0
        %644 = vmatpush1.msra.mxu0 0.0
        %645 = vmatprep.subr.mxu0 0.0
        %646 = vmatpush1.msra.mxu0 0.0
        %647 = vmatprep.subr.mxu0 0.0
        %648 = vmatpush1.msra.mxu0 0.0
        %649 = vmatprep.subr.mxu0 0.0
        %650 = vmatpush1.msra.mxu0 0.0
        %651 = vmatprep.subr.mxu0 0.0
        %652 = vmatpush1.msra.mxu0 0.0
        %653 = vmatprep.mubr.f32.mxu0 0.0
        %654 = vmatmul.mubr.f32.gmra.mrb[0].mxu0 %v238
        %v655 = vpop.f32.mrb[0].mxu0
        %v656 = vadd.f32 0.0, %v655
        %v657 = vpop.f32.mrb[0].mxu0
        %658 = vmatprep.mubr.f32.mxu0 0.0
        %659 = vmatmul.mubr.f32.gmra.mrb[0].mxu0 %v241
        %v660 = vpop.f32.mrb[0].mxu0
        %v661 = vadd.f32 0.0, %v660
        %v662 = vpop.f32.mrb[0].mxu0
        %663 = vmatprep.mubr.f32.mxu0 0.0
        %664 = vmatmul.mubr.f32.gmra.mrb[0].mxu0 %v244
        %v665 = vpop.f32.mrb[0].mxu0
        %v666 = vadd.f32 0.0, %v665
        %v667 = vpop.f32.mrb[0].mxu0
        %668 = vmatprep.mubr.f32.mxu0 0.0
        %669 = vmatmul.mubr.f32.gmra.mrb[0].mxu0 %v247
        %v670 = vpop.f32.mrb[0].mxu0
        %v671 = vadd.f32 0.0, %v670
        %v672 = vpop.f32.mrb[0].mxu0
        %673 = vdwg.mxu0
        %674 = vmatprep.subr.mxu0 0.0
        %675 = vmatpush1.msra.mxu0 %v226
        %676 = vmatprep.subr.mxu0 0.0
        %677 = vmatpush1.msra.mxu0 %v227
        %678 = vmatprep.subr.mxu0 0.0
        %679 = vmatpush1.msra.mxu0 0.0
        %680 = vmatprep.subr.mxu0 0.0
        %681 = vmatpush1.msra.mxu0 0.0
        %682 = vmatprep.subr.mxu0 0.0
        %683 = vmatpush1.msra.mxu0 0.0
        %684 = vmatprep.subr.mxu0 0.0
        %685 = vmatpush1.msra.mxu0 0.0
        %686 = vmatprep.subr.mxu0 0.0
        %687 = vmatpush1.msra.mxu0 0.0
        %688 = vmatprep.subr.mxu0 0.0
        %689 = vmatpush1.msra.mxu0 0.0
        %690 = vmatprep.subr.mxu0 0.0
        %691 = vmatpush1.msra.mxu0 0.0
        %692 = vmatprep.subr.mxu0 0.0
        %693 = vmatpush1.msra.mxu0 0.0
        %694 = vmatprep.subr.mxu0 0.0
        %695 = vmatpush1.msra.mxu0 0.0
        %696 = vmatprep.subr.mxu0 0.0
        %697 = vmatpush1.msra.mxu0 0.0
        %698 = vmatprep.subr.mxu0 0.0
        %699 = vmatpush1.msra.mxu0 0.0
        %700 = vmatprep.subr.mxu0 0.0
        %701 = vmatpush1.msra.mxu0 0.0
        %702 = vmatprep.subr.mxu0 0.0
        %703 = vmatpush1.msra.mxu0 0.0
        %704 = vmatprep.subr.mxu0 0.0
        %705 = vmatpush1.msra.mxu0 0.0
        %706 = vmatprep.subr.mxu0 0.0
        %707 = vmatpush1.msra.mxu0 0.0
        %708 = vmatprep.subr.mxu0 0.0
        %709 = vmatpush1.msra.mxu0 0.0
        %710 = vmatprep.subr.mxu0 0.0
        %711 = vmatpush1.msra.mxu0 0.0
        %712 = vmatprep.subr.mxu0 0.0
        %713 = vmatpush1.msra.mxu0 0.0
        %714 = vmatprep.subr.mxu0 0.0
        %715 = vmatpush1.msra.mxu0 0.0
        %716 = vmatprep.subr.mxu0 0.0
        %717 = vmatpush1.msra.mxu0 0.0
        %718 = vmatprep.subr.mxu0 0.0
        %719 = vmatpush1.msra.mxu0 0.0
        %720 = vmatprep.subr.mxu0 0.0
        %721 = vmatpush1.msra.mxu0 0.0
        %722 = vmatprep.subr.mxu0 0.0
        %723 = vmatpush1.msra.mxu0 0.0
        %724 = vmatprep.subr.mxu0 0.0
        %725 = vmatpush1.msra.mxu0 0.0
        %726 = vmatprep.subr.mxu0 0.0
        %727 = vmatpush1.msra.mxu0 0.0
        %728 = vmatprep.subr.mxu0 0.0
        %729 = vmatpush1.msra.mxu0 0.0
        %730 = vmatprep.subr.mxu0 0.0
        %731 = vmatpush1.msra.mxu0 0.0
        %732 = vmatprep.subr.mxu0 0.0
        %733 = vmatpush1.msra.mxu0 0.0
        %734 = vmatprep.subr.mxu0 0.0
        %735 = vmatpush1.msra.mxu0 0.0
        %736 = vmatprep.subr.mxu0 0.0
        %737 = vmatpush1.msra.mxu0 0.0
        %738 = vmatprep.mubr.f32.mxu0 0.0
        %739 = vmatmul.mubr.f32.gmra.mrb[0].mxu0 %v238
        %v740 = vpop.f32.mrb[0].mxu0
        %v741 = vadd.f32 0.0, %v740
        %v742 = vpop.f32.mrb[0].mxu0
        %743 = vmatprep.mubr.f32.mxu0 0.0
        %744 = vmatmul.mubr.f32.gmra.mrb[0].mxu0 %v241
        %v745 = vpop.f32.mrb[0].mxu0
        %v746 = vadd.f32 0.0, %v745
        %v747 = vpop.f32.mrb[0].mxu0
        %748 = vmatprep.mubr.f32.mxu0 0.0
        %749 = vmatmul.mubr.f32.gmra.mrb[0].mxu0 %v244
        %v750 = vpop.f32.mrb[0].mxu0
        %v751 = vadd.f32 0.0, %v750
        %v752 = vpop.f32.mrb[0].mxu0
        %753 = vmatprep.mubr.f32.mxu0 0.0
        %754 = vmatmul.mubr.f32.gmra.mrb[0].mxu0 %v247
        %v755 = vpop.f32.mrb[0].mxu0
        %v756 = vadd.f32 0.0, %v755
        %v757 = vpop.f32.mrb[0].mxu0
        %758 = vdwg.mxu0
        %759 = vmatprep.subr.mxu0 0.0
        %760 = vmatpush1.msra.mxu0 %v228
        %761 = vmatprep.subr.mxu0 0.0
        %762 = vmatpush1.msra.mxu0 %v229
        %763 = vmatprep.subr.mxu0 0.0
        %764 = vmatpush1.msra.mxu0 0.0
        %765 = vmatprep.subr.mxu0 0.0
        %766 = vmatpush1.msra.mxu0 0.0
        %767 = vmatprep.subr.mxu0 0.0
        %768 = vmatpush1.msra.mxu0 0.0
        %769 = vmatprep.subr.mxu0 0.0
        %770 = vmatpush1.msra.mxu0 0.0
        %771 = vmatprep.subr.mxu0 0.0
        %772 = vmatpush1.msra.mxu0 0.0
        %773 = vmatprep.subr.mxu0 0.0
        %774 = vmatpush1.msra.mxu0 0.0
        %775 = vmatprep.subr.mxu0 0.0
        %776 = vmatpush1.msra.mxu0 0.0
        %777 = vmatprep.subr.mxu0 0.0
        %778 = vmatpush1.msra.mxu0 0.0
        %779 = vmatprep.subr.mxu0 0.0
        %780 = vmatpush1.msra.mxu0 0.0
        %781 = vmatprep.subr.mxu0 0.0
        %782 = vmatpush1.msra.mxu0 0.0
        %783 = vmatprep.subr.mxu0 0.0
        %784 = vmatpush1.msra.mxu0 0.0
        %785 = vmatprep.subr.mxu0 0.0
        %786 = vmatpush1.msra.mxu0 0.0
        %787 = vmatprep.subr.mxu0 0.0
        %788 = vmatpush1.msra.mxu0 0.0
        %789 = vmatprep.subr.mxu0 0.0
        %790 = vmatpush1.msra.mxu0 0.0
        %791 = vmatprep.subr.mxu0 0.0
        %792 = vmatpush1.msra.mxu0 0.0
        %793 = vmatprep.subr.mxu0 0.0
        %794 = vmatpush1.msra.mxu0 0.0
        %795 = vmatprep.subr.mxu0 0.0
        %796 = vmatpush1.msra.mxu0 0.0
        %797 = vmatprep.subr.mxu0 0.0
        %798 = vmatpush1.msra.mxu0 0.0
        %799 = vmatprep.subr.mxu0 0.0
        %800 = vmatpush1.msra.mxu0 0.0
        %801 = vmatprep.subr.mxu0 0.0
        %802 = vmatpush1.msra.mxu0 0.0
        %803 = vmatprep.subr.mxu0 0.0
        %804 = vmatpush1.msra.mxu0 0.0
        %805 = vmatprep.subr.mxu0 0.0
        %806 = vmatpush1.msra.mxu0 0.0
        %807 = vmatprep.subr.mxu0 0.0
        %808 = vmatpush1.msra.mxu0 0.0
        %809 = vmatprep.subr.mxu0 0.0
        %810 = vmatpush1.msra.mxu0 0.0
        %811 = vmatprep.subr.mxu0 0.0
        %812 = vmatpush1.msra.mxu0 0.0
        %813 = vmatprep.subr.mxu0 0.0
        %814 = vmatpush1.msra.mxu0 0.0
        %815 = vmatprep.subr.mxu0 0.0
        %816 = vmatpush1.msra.mxu0 0.0
        %817 = vmatprep.subr.mxu0 0.0
        %818 = vmatpush1.msra.mxu0 0.0
        %819 = vmatprep.subr.mxu0 0.0
        %820 = vmatpush1.msra.mxu0 0.0
        %821 = vmatprep.subr.mxu0 0.0
        %822 = vmatpush1.msra.mxu0 0.0
        %823 = vmatprep.mubr.f32.mxu0 0.0
        %824 = vmatmul.mubr.f32.gmra.mrb[0].mxu0 %v238
        %v825 = vpop.f32.mrb[0].mxu0
        %v826 = vadd.f32 0.0, %v825
        %v827 = vpop.f32.mrb[0].mxu0
        %828 = vmatprep.mubr.f32.mxu0 0.0
        %829 = vmatmul.mubr.f32.gmra.mrb[0].mxu0 %v241
        %v830 = vpop.f32.mrb[0].mxu0
        %v831 = vadd.f32 0.0, %v830
        %v832 = vpop.f32.mrb[0].mxu0
        %833 = vmatprep.mubr.f32.mxu0 0.0
        %834 = vmatmul.mubr.f32.gmra.mrb[0].mxu0 %v244
        %v835 = vpop.f32.mrb[0].mxu0
        %v836 = vadd.f32 0.0, %v835
        %v837 = vpop.f32.mrb[0].mxu0
        %838 = vmatprep.mubr.f32.mxu0 0.0
        %839 = vmatmul.mubr.f32.gmra.mrb[0].mxu0 %v247
        %v840 = vpop.f32.mrb[0].mxu0
        %v841 = vadd.f32 0.0, %v840
        %v842 = vpop.f32.mrb[0].mxu0
        %843 = vdwg.mxu0
        %844 = vmatprep.subr.mxu0 0.0
        %845 = vmatpush1.msra.mxu0 %v230
        %846 = vmatprep.subr.mxu0 0.0
        %847 = vmatpush1.msra.mxu0 %v231
        %848 = vmatprep.subr.mxu0 0.0
        %849 = vmatpush1.msra.mxu0 0.0
        %850 = vmatprep.subr.mxu0 0.0
        %851 = vmatpush1.msra.mxu0 0.0
        %852 = vmatprep.subr.mxu0 0.0
        %853 = vmatpush1.msra.mxu0 0.0
        %854 = vmatprep.subr.mxu0 0.0
        %855 = vmatpush1.msra.mxu0 0.0
        %856 = vmatprep.subr.mxu0 0.0
        %857 = vmatpush1.msra.mxu0 0.0
        %858 = vmatprep.subr.mxu0 0.0
        %859 = vmatpush1.msra.mxu0 0.0
        %860 = vmatprep.subr.mxu0 0.0
        %861 = vmatpush1.msra.mxu0 0.0
        %862 = vmatprep.subr.mxu0 0.0
        %863 = vmatpush1.msra.mxu0 0.0
        %864 = vmatprep.subr.mxu0 0.0
        %865 = vmatpush1.msra.mxu0 0.0
        %866 = vmatprep.subr.mxu0 0.0
        %867 = vmatpush1.msra.mxu0 0.0
        %868 = vmatprep.subr.mxu0 0.0
        %869 = vmatpush1.msra.mxu0 0.0
        %870 = vmatprep.subr.mxu0 0.0
        %871 = vmatpush1.msra.mxu0 0.0
        %872 = vmatprep.subr.mxu0 0.0
        %873 = vmatpush1.msra.mxu0 0.0
        %874 = vmatprep.subr.mxu0 0.0
        %875 = vmatpush1.msra.mxu0 0.0
        %876 = vmatprep.subr.mxu0 0.0
        %877 = vmatpush1.msra.mxu0 0.0
        %878 = vmatprep.subr.mxu0 0.0
        %879 = vmatpush1.msra.mxu0 0.0
        %880 = vmatprep.subr.mxu0 0.0
        %881 = vmatpush1.msra.mxu0 0.0
        %882 = vmatprep.subr.mxu0 0.0
        %883 = vmatpush1.msra.mxu0 0.0
        %884 = vmatprep.subr.mxu0 0.0
        %885 = vmatpush1.msra.mxu0 0.0
        %886 = vmatprep.subr.mxu0 0.0
        %887 = vmatpush1.msra.mxu0 0.0
        %888 = vmatprep.subr.mxu0 0.0
        %889 = vmatpush1.msra.mxu0 0.0
        %890 = vmatprep.subr.mxu0 0.0
        %891 = vmatpush1.msra.mxu0 0.0
        %892 = vmatprep.subr.mxu0 0.0
        %893 = vmatpush1.msra.mxu0 0.0
        %894 = vmatprep.subr.mxu0 0.0
        %895 = vmatpush1.msra.mxu0 0.0
        %896 = vmatprep.subr.mxu0 0.0
        %897 = vmatpush1.msra.mxu0 0.0
        %898 = vmatprep.subr.mxu0 0.0
        %899 = vmatpush1.msra.mxu0 0.0
        %900 = vmatprep.subr.mxu0 0.0
        %901 = vmatpush1.msra.mxu0 0.0
        %902 = vmatprep.subr.mxu0 0.0
        %903 = vmatpush1.msra.mxu0 0.0
        %904 = vmatprep.subr.mxu0 0.0
        %905 = vmatpush1.msra.mxu0 0.0
        %906 = vmatprep.subr.mxu0 0.0
        %907 = vmatpush1.msra.mxu0 0.0
        %908 = vmatprep.mubr.f32.mxu0 0.0
        %909 = vmatmul.mubr.f32.gmra.mrb[0].mxu0 %v238
        %v910 = vpop.f32.mrb[0].mxu0
        %v911 = vadd.f32 0.0, %v910
        %v912 = vpop.f32.mrb[0].mxu0
        %913 = vmatprep.mubr.f32.mxu0 0.0
        %914 = vmatmul.mubr.f32.gmra.mrb[0].mxu0 %v241
        %v915 = vpop.f32.mrb[0].mxu0
        %v916 = vadd.f32 0.0, %v915
        %v917 = vpop.f32.mrb[0].mxu0
        %918 = vmatprep.mubr.f32.mxu0 0.0
        %919 = vmatmul.mubr.f32.gmra.mrb[0].mxu0 %v244
        %v920 = vpop.f32.mrb[0].mxu0
        %v921 = vadd.f32 0.0, %v920
        %v922 = vpop.f32.mrb[0].mxu0
        %923 = vmatprep.mubr.f32.mxu0 0.0
        %924 = vmatmul.mubr.f32.gmra.mrb[0].mxu0 %v247
        %v925 = vpop.f32.mrb[0].mxu0
        %v926 = vadd.f32 0.0, %v925
        %v927 = vpop.f32.mrb[0].mxu0
        %928 = vdwg.mxu0
        %v929 = vld [vmem:[%s2] sm:$0xff]
        %v930 = vld [vmem:[%s2 + $0x8] sm:$0xff]
        %v932 = vsel %vm236, %v316, 0
        %v935 = vsel %vm236, %v321, 0
        %v938 = vsel %vm236, %v326, 0
        %v941 = vsel %vm236, %v331, 0
        %v944 = vsel %vm236, %v401, 0
        %v947 = vsel %vm236, %v406, 0
        %v950 = vsel %vm236, %v411, 0
        %v953 = vsel %vm236, %v416, 0
        %v956 = vsel %vm236, %v486, 0
        %v959 = vsel %vm236, %v491, 0
        %v962 = vsel %vm236, %v496, 0
        %v965 = vsel %vm236, %v501, 0
        %v968 = vsel %vm236, %v571, 0
        %v971 = vsel %vm236, %v576, 0
        %v974 = vsel %vm236, %v581, 0
        %v977 = vsel %vm236, %v586, 0
        %v980 = vsel %vm236, %v656, 0
        %v983 = vsel %vm236, %v661, 0
        %v986 = vsel %vm236, %v666, 0
        %v989 = vsel %vm236, %v671, 0
        %v992 = vsel %vm236, %v741, 0
        %v995 = vsel %vm236, %v746, 0
        %v998 = vsel %vm236, %v751, 0
        %v1001 = vsel %vm236, %v756, 0
        %v1004 = vsel %vm236, %v826, 0
        %v1007 = vsel %vm236, %v831, 0
        %v1010 = vsel %vm236, %v836, 0
        %v1013 = vsel %vm236, %v841, 0
        %v1016 = vsel %vm236, %v911, 0
        %v1019 = vsel %vm236, %v916, 0
        %v1022 = vsel %vm236, %v921, 0
        %v1025 = vsel %vm236, %v926, 0
        %1027 = vmatprep.subr.mxu0 0.0
        %1028 = vmatpush1.msra.mxu0 %v929
        %1029 = vmatprep.subr.mxu0 0.0
        %1030 = vmatpush1.msra.mxu0 %v930
        %1031 = vmatprep.subr.mxu0 0.0
        %1032 = vmatpush1.msra.mxu0 0.0
        %1033 = vmatprep.subr.mxu0 0.0
        %1034 = vmatpush1.msra.mxu0 0.0
        %1035 = vmatprep.subr.mxu0 0.0
        %1036 = vmatpush1.msra.mxu0 0.0
        %1037 = vmatprep.subr.mxu0 0.0
        %1038 = vmatpush1.msra.mxu0 0.0
        %1039 = vmatprep.subr.mxu0 0.0
        %1040 = vmatpush1.msra.mxu0 0.0
        %1041 = vmatprep.subr.mxu0 0.0
        %1042 = vmatpush1.msra.mxu0 0.0
        %1043 = vmatprep.subr.mxu0 0.0
        %1044 = vmatpush1.msra.mxu0 0.0
        %1045 = vmatprep.subr.mxu0 0.0
        %1046 = vmatpush1.msra.mxu0 0.0
        %1047 = vmatprep.subr.mxu0 0.0
        %1048 = vmatpush1.msra.mxu0 0.0
        %1049 = vmatprep.subr.mxu0 0.0
        %1050 = vmatpush1.msra.mxu0 0.0
        %1051 = vmatprep.subr.mxu0 0.0
        %1052 = vmatpush1.msra.mxu0 0.0
        %1053 = vmatprep.subr.mxu0 0.0
        %1054 = vmatpush1.msra.mxu0 0.0
        %1055 = vmatprep.subr.mxu0 0.0
        %1056 = vmatpush1.msra.mxu0 0.0
        %1057 = vmatprep.subr.mxu0 0.0
        %1058 = vmatpush1.msra.mxu0 0.0
        %1059 = vmatprep.subr.mxu0 0.0
        %1060 = vmatpush1.msra.mxu0 0.0
        %1061 = vmatprep.subr.mxu0 0.0
        %1062 = vmatpush1.msra.mxu0 0.0
        %1063 = vmatprep.subr.mxu0 0.0
        %1064 = vmatpush1.msra.mxu0 0.0
        %1065 = vmatprep.subr.mxu0 0.0
        %1066 = vmatpush1.msra.mxu0 0.0
        %1067 = vmatprep.subr.mxu0 0.0
        %1068 = vmatpush1.msra.mxu0 0.0
        %1069 = vmatprep.subr.mxu0 0.0
        %1070 = vmatpush1.msra.mxu0 0.0
        %1071 = vmatprep.subr.mxu0 0.0
        %1072 = vmatpush1.msra.mxu0 0.0
        %1073 = vmatprep.subr.mxu0 0.0
        %1074 = vmatpush1.msra.mxu0 0.0
        %1075 = vmatprep.subr.mxu0 0.0
        %1076 = vmatpush1.msra.mxu0 0.0
        %1077 = vmatprep.subr.mxu0 0.0
        %1078 = vmatpush1.msra.mxu0 0.0
        %1079 = vmatprep.subr.mxu0 0.0
        %1080 = vmatpush1.msra.mxu0 0.0
        %1081 = vmatprep.subr.mxu0 0.0
        %1082 = vmatpush1.msra.mxu0 0.0
        %1083 = vmatprep.subr.mxu0 0.0
        %1084 = vmatpush1.msra.mxu0 0.0
        %1085 = vmatprep.subr.mxu0 0.0
        %1086 = vmatpush1.msra.mxu0 0.0
        %1087 = vmatprep.subr.mxu0 0.0
        %1088 = vmatpush1.msra.mxu0 0.0
        %1089 = vmatprep.subr.mxu0 0.0
        %1090 = vmatpush1.msra.mxu0 0.0
        %1091 = vmatprep.mubr.f32.mxu0 0.0
        %1092 = vmatmul.mubr.f32.gmra.mrb[0].mxu0 %v932
        %v1093 = vpop.f32.mrb[0].mxu0
        %v1094 = vadd.f32 0.0, %v1093
        %v1095 = vpop.f32.mrb[0].mxu0
        %1096 = vmatprep.mubr.f32.mxu0 0.0
        %1097 = vmatmul.mubr.f32.gmra.mrb[0].mxu0 %v935
        %v1098 = vpop.f32.mrb[0].mxu0
        %v1099 = vadd.f32 0.0, %v1098
        %v1100 = vpop.f32.mrb[0].mxu0
        %1101 = vmatprep.mubr.f32.mxu0 0.0
        %1102 = vmatmul.mubr.f32.gmra.mrb[0].mxu0 %v938
        %v1103 = vpop.f32.mrb[0].mxu0
        %v1104 = vadd.f32 0.0, %v1103
        %v1105 = vpop.f32.mrb[0].mxu0
        %1106 = vmatprep.mubr.f32.mxu0 0.0
        %1107 = vmatmul.mubr.f32.gmra.mrb[0].mxu0 %v941
        %v1108 = vpop.f32.mrb[0].mxu0
        %v1109 = vadd.f32 0.0, %v1108
        %v1110 = vpop.f32.mrb[0].mxu0
        %1111 = vmatprep.mubr.f32.mxu0 0.0
        %1112 = vmatmul.mubr.f32.gmra.mrb[0].mxu0 %v944
        %v1113 = vpop.f32.mrb[0].mxu0
        %v1114 = vadd.f32 0.0, %v1113
        %v1115 = vpop.f32.mrb[0].mxu0
        %1116 = vmatprep.mubr.f32.mxu0 0.0
        %1117 = vmatmul.mubr.f32.gmra.mrb[0].mxu0 %v947
        %v1118 = vpop.f32.mrb[0].mxu0
        %v1119 = vadd.f32 0.0, %v1118
        %v1120 = vpop.f32.mrb[0].mxu0
        %1121 = vmatprep.mubr.f32.mxu0 0.0
        %1122 = vmatmul.mubr.f32.gmra.mrb[0].mxu0 %v950
        %v1123 = vpop.f32.mrb[0].mxu0
        %v1124 = vadd.f32 0.0, %v1123
        %v1125 = vpop.f32.mrb[0].mxu0
        %1126 = vmatprep.mubr.f32.mxu0 0.0
        %1127 = vmatmul.mubr.f32.gmra.mrb[0].mxu0 %v953
        %v1128 = vpop.f32.mrb[0].mxu0
        %v1129 = vadd.f32 0.0, %v1128
        %v1130 = vpop.f32.mrb[0].mxu0
        %1131 = vmatprep.mubr.f32.mxu0 0.0
        %1132 = vmatmul.mubr.f32.gmra.mrb[0].mxu0 %v956
        %v1133 = vpop.f32.mrb[0].mxu0
        %v1134 = vadd.f32 0.0, %v1133
        %v1135 = vpop.f32.mrb[0].mxu0
        %1136 = vmatprep.mubr.f32.mxu0 0.0
        %1137 = vmatmul.mubr.f32.gmra.mrb[0].mxu0 %v959
        %v1138 = vpop.f32.mrb[0].mxu0
        %v1139 = vadd.f32 0.0, %v1138
        %v1140 = vpop.f32.mrb[0].mxu0
        %1141 = vmatprep.mubr.f32.mxu0 0.0
        %1142 = vmatmul.mubr.f32.gmra.mrb[0].mxu0 %v962
        %v1143 = vpop.f32.mrb[0].mxu0
        %v1144 = vadd.f32 0.0, %v1143
        %v1145 = vpop.f32.mrb[0].mxu0
        %1146 = vmatprep.mubr.f32.mxu0 0.0
        %1147 = vmatmul.mubr.f32.gmra.mrb[0].mxu0 %v965
        %v1148 = vpop.f32.mrb[0].mxu0
        %v1149 = vadd.f32 0.0, %v1148
        %v1150 = vpop.f32.mrb[0].mxu0
        %1151 = vmatprep.mubr.f32.mxu0 0.0
        %1152 = vmatmul.mubr.f32.gmra.mrb[0].mxu0 %v968
        %v1153 = vpop.f32.mrb[0].mxu0
        %v1154 = vadd.f32 0.0, %v1153
        %v1155 = vpop.f32.mrb[0].mxu0
        %1156 = vmatprep.mubr.f32.mxu0 0.0
        %1157 = vmatmul.mubr.f32.gmra.mrb[0].mxu0 %v971
        %v1158 = vpop.f32.mrb[0].mxu0
        %v1159 = vadd.f32 0.0, %v1158
        %v1160 = vpop.f32.mrb[0].mxu0
        %1161 = vmatprep.mubr.f32.mxu0 0.0
        %1162 = vmatmul.mubr.f32.gmra.mrb[0].mxu0 %v974
        %v1163 = vpop.f32.mrb[0].mxu0
        %v1164 = vadd.f32 0.0, %v1163
        %v1165 = vpop.f32.mrb[0].mxu0
        %1166 = vmatprep.mubr.f32.mxu0 0.0
        %1167 = vmatmul.mubr.f32.gmra.mrb[0].mxu0 %v977
        %v1168 = vpop.f32.mrb[0].mxu0
        %v1169 = vadd.f32 0.0, %v1168
        %v1170 = vpop.f32.mrb[0].mxu0
        %1171 = vmatprep.mubr.f32.mxu0 0.0
        %1172 = vmatmul.mubr.f32.gmra.mrb[0].mxu0 %v980
        %v1173 = vpop.f32.mrb[0].mxu0
        %v1174 = vadd.f32 0.0, %v1173
        %v1175 = vpop.f32.mrb[0].mxu0
        %1176 = vmatprep.mubr.f32.mxu0 0.0
        %1177 = vmatmul.mubr.f32.gmra.mrb[0].mxu0 %v983
        %v1178 = vpop.f32.mrb[0].mxu0
        %v1179 = vadd.f32 0.0, %v1178
        %v1180 = vpop.f32.mrb[0].mxu0
        %1181 = vmatprep.mubr.f32.mxu0 0.0
        %1182 = vmatmul.mubr.f32.gmra.mrb[0].mxu0 %v986
        %v1183 = vpop.f32.mrb[0].mxu0
        %v1184 = vadd.f32 0.0, %v1183
        %v1185 = vpop.f32.mrb[0].mxu0
        %1186 = vmatprep.mubr.f32.mxu0 0.0
        %1187 = vmatmul.mubr.f32.gmra.mrb[0].mxu0 %v989
        %v1188 = vpop.f32.mrb[0].mxu0
        %v1189 = vadd.f32 0.0, %v1188
        %v1190 = vpop.f32.mrb[0].mxu0
        %1191 = vmatprep.mubr.f32.mxu0 0.0
        %1192 = vmatmul.mubr.f32.gmra.mrb[0].mxu0 %v992
        %v1193 = vpop.f32.mrb[0].mxu0
        %v1194 = vadd.f32 0.0, %v1193
        %v1195 = vpop.f32.mrb[0].mxu0
        %1196 = vmatprep.mubr.f32.mxu0 0.0
        %1197 = vmatmul.mubr.f32.gmra.mrb[0].mxu0 %v995
        %v1198 = vpop.f32.mrb[0].mxu0
        %v1199 = vadd.f32 0.0, %v1198
        %v1200 = vpop.f32.mrb[0].mxu0
        %1201 = vmatprep.mubr.f32.mxu0 0.0
        %1202 = vmatmul.mubr.f32.gmra.mrb[0].mxu0 %v998
        %v1203 = vpop.f32.mrb[0].mxu0
        %v1204 = vadd.f32 0.0, %v1203
        %v1205 = vpop.f32.mrb[0].mxu0
        %1206 = vmatprep.mubr.f32.mxu0 0.0
        %1207 = vmatmul.mubr.f32.gmra.mrb[0].mxu0 %v1001
        %v1208 = vpop.f32.mrb[0].mxu0
        %v1209 = vadd.f32 0.0, %v1208
        %v1210 = vpop.f32.mrb[0].mxu0
        %1211 = vmatprep.mubr.f32.mxu0 0.0
        %1212 = vmatmul.mubr.f32.gmra.mrb[0].mxu0 %v1004
        %v1213 = vpop.f32.mrb[0].mxu0
        %v1214 = vadd.f32 0.0, %v1213
        %v1215 = vpop.f32.mrb[0].mxu0
        %1216 = vmatprep.mubr.f32.mxu0 0.0
        %1217 = vmatmul.mubr.f32.gmra.mrb[0].mxu0 %v1007
        %v1218 = vpop.f32.mrb[0].mxu0
        %v1219 = vadd.f32 0.0, %v1218
        %v1220 = vpop.f32.mrb[0].mxu0
        %1221 = vmatprep.mubr.f32.mxu0 0.0
        %1222 = vmatmul.mubr.f32.gmra.mrb[0].mxu0 %v1010
        %v1223 = vpop.f32.mrb[0].mxu0
        %v1224 = vadd.f32 0.0, %v1223
        %v1225 = vpop.f32.mrb[0].mxu0
        %1226 = vmatprep.mubr.f32.mxu0 0.0
        %1227 = vmatmul.mubr.f32.gmra.mrb[0].mxu0 %v1013
        %v1228 = vpop.f32.mrb[0].mxu0
        %v1229 = vadd.f32 0.0, %v1228
        %v1230 = vpop.f32.mrb[0].mxu0
        %1231 = vmatprep.mubr.f32.mxu0 0.0
        %1232 = vmatmul.mubr.f32.gmra.mrb[0].mxu0 %v1016
        %v1233 = vpop.f32.mrb[0].mxu0
        %v1234 = vadd.f32 0.0, %v1233
        %v1235 = vpop.f32.mrb[0].mxu0
        %1236 = vmatprep.mubr.f32.mxu0 0.0
        %1237 = vmatmul.mubr.f32.gmra.mrb[0].mxu0 %v1019
        %v1238 = vpop.f32.mrb[0].mxu0
        %v1239 = vadd.f32 0.0, %v1238
        %v1240 = vpop.f32.mrb[0].mxu0
        %1241 = vmatprep.mubr.f32.mxu0 0.0
        %1242 = vmatmul.mubr.f32.gmra.mrb[0].mxu0 %v1022
        %v1243 = vpop.f32.mrb[0].mxu0
        %v1244 = vadd.f32 0.0, %v1243
        %v1245 = vpop.f32.mrb[0].mxu0
        %1246 = vmatprep.mubr.f32.mxu0 0.0
        %1247 = vmatmul.mubr.f32.gmra.mrb[0].mxu0 %v1025
        %v1248 = vpop.f32.mrb[0].mxu0
        %v1249 = vadd.f32 0.0, %v1248
        %v1250 = vpop.f32.mrb[0].mxu0
        %1251 = vdwg.mxu0
        %vm1252 = vcmask 277504
        %1253 = vst.msk [vmem:[#allocation2] sm:$0xff] %vm1252, 0.0
        %1254 = vst.msk [vmem:[#allocation2 + $0x8] sm:$0xff] %vm1252, 0.0
        %1255 = vst.msk [vmem:[#allocation2 + $0x10] sm:$0xff] %vm1252, 0.0
        %1256 = vst.msk [vmem:[#allocation2 + $0x18] sm:$0xff] %vm1252, 0.0
        %vm1257 = vcmask 271360
        %1258 = vst.msk [vmem:[#allocation2 + $0x20] sm:$0x3] %vm1257, 0.0
        %1259 = vst.msk [vmem:[#allocation2 + $0x28] sm:$0xff] %vm1252, 0.0
        %1260 = vst.msk [vmem:[#allocation2 + $0x30] sm:$0xff] %vm1252, 0.0
        %1261 = vst.msk [vmem:[#allocation2 + $0x38] sm:$0xff] %vm1252, 0.0
        %1262 = vst.msk [vmem:[#allocation2 + $0x40] sm:$0xff] %vm1252, 0.0
        %1263 = vst.msk [vmem:[#allocation2 + $0x48] sm:$0x3] %vm1257, 0.0
        %1264 = vst.msk [vmem:[#allocation2 + $0x50] sm:$0xff] %vm1252, 0.0
        %1265 = vst.msk [vmem:[#allocation2 + $0x58] sm:$0xff] %vm1252, 0.0
        %1266 = vst.msk [vmem:[#allocation2 + $0x60] sm:$0xff] %vm1252, 0.0
        %1267 = vst.msk [vmem:[#allocation2 + $0x68] sm:$0xff] %vm1252, 0.0
        %1268 = vst.msk [vmem:[#allocation2 + $0x70] sm:$0x3] %vm1257, 0.0
        %1269 = vst.msk [vmem:[#allocation2 + $0x78] sm:$0xff] %vm1252, 0.0
        %1270 = vst.msk [vmem:[#allocation2 + $0x80] sm:$0xff] %vm1252, 0.0
        %1271 = vst.msk [vmem:[#allocation2 + $0x88] sm:$0xff] %vm1252, 0.0
        %1272 = vst.msk [vmem:[#allocation2 + $0x90] sm:$0xff] %vm1252, 0.0
        %1273 = vst.msk [vmem:[#allocation2 + $0x98] sm:$0x3] %vm1257, 0.0
        %1274 = vst.msk [vmem:[#allocation2 + $0xa0] sm:$0xff] %vm1252, 0.0
        %1275 = vst.msk [vmem:[#allocation2 + $0xa8] sm:$0xff] %vm1252, 0.0
        %1276 = vst.msk [vmem:[#allocation2 + $0xb0] sm:$0xff] %vm1252, 0.0
        %1277 = vst.msk [vmem:[#allocation2 + $0xb8] sm:$0xff] %vm1252, 0.0
        %1278 = vst.msk [vmem:[#allocation2 + $0xc0] sm:$0x3] %vm1257, 0.0
        %1279 = vst.msk [vmem:[#allocation2 + $0xc8] sm:$0xff] %vm1252, 0.0
        %1280 = vst.msk [vmem:[#allocation2 + $0xd0] sm:$0xff] %vm1252, 0.0
        %1281 = vst.msk [vmem:[#allocation2 + $0xd8] sm:$0xff] %vm1252, 0.0
        %1282 = vst.msk [vmem:[#allocation2 + $0xe0] sm:$0xff] %vm1252, 0.0
        %1283 = vst.msk [vmem:[#allocation2 + $0xe8] sm:$0x3] %vm1257, 0.0
        %1284 = vst.msk [vmem:[#allocation2 + $0xf0] sm:$0xff] %vm1252, 0.0
        %1285 = vst.msk [vmem:[#allocation2 + $0xf8] sm:$0xff] %vm1252, 0.0
        %1286 = vst.msk [vmem:[#allocation2 + $0x100] sm:$0xff] %vm1252, 0.0
        %1287 = vst.msk [vmem:[#allocation2 + $0x108] sm:$0xff] %vm1252, 0.0
        %1288 = vst.msk [vmem:[#allocation2 + $0x110] sm:$0x3] %vm1257, 0.0
        %1289 = vst.msk [vmem:[#allocation2 + $0x118] sm:$0xff] %vm1252, 0.0
        %1290 = vst.msk [vmem:[#allocation2 + $0x120] sm:$0xff] %vm1252, 0.0
        %1291 = vst.msk [vmem:[#allocation2 + $0x128] sm:$0xff] %vm1252, 0.0
        %1292 = vst.msk [vmem:[#allocation2 + $0x130] sm:$0xff] %vm1252, 0.0
        %1293 = vst.msk [vmem:[#allocation2 + $0x138] sm:$0x3] %vm1257, 0.0
        %1326 = vrot.lane.b32.xlu0 %v1094, 1
        %v1327 = vpop.permute.xlu0 %1326
        %1328 = vrot.lane.b32.xlu0 %v1099, 1
        %v1329 = vpop.permute.xlu0 %1328
        %1330 = vrot.lane.b32.xlu0 %v1104, 1
        %v1331 = vpop.permute.xlu0 %1330
        %1332 = vrot.lane.b32.xlu0 %v1109, 1
        %v1333 = vpop.permute.xlu0 %1332
        %1334 = vrot.lane.b32.xlu0 %v1114, 1
        %v1335 = vpop.permute.xlu0 %1334
        %1336 = vrot.lane.b32.xlu0 %v1119, 1
        %v1337 = vpop.permute.xlu0 %1336
        %1338 = vrot.lane.b32.xlu0 %v1124, 1
        %v1339 = vpop.permute.xlu0 %1338
        %1340 = vrot.lane.b32.xlu0 %v1129, 1
        %v1341 = vpop.permute.xlu0 %1340
        %1342 = vrot.lane.b32.xlu0 %v1134, 1
        %v1343 = vpop.permute.xlu0 %1342
        %1344 = vrot.lane.b32.xlu0 %v1139, 1
        %v1345 = vpop.permute.xlu0 %1344
        %1346 = vrot.lane.b32.xlu0 %v1144, 1
        %v1347 = vpop.permute.xlu0 %1346
        %1348 = vrot.lane.b32.xlu0 %v1149, 1
        %v1349 = vpop.permute.xlu0 %1348
        %1350 = vrot.lane.b32.xlu0 %v1154, 1
        %v1351 = vpop.permute.xlu0 %1350
        %1352 = vrot.lane.b32.xlu0 %v1159, 1
        %v1353 = vpop.permute.xlu0 %1352
        %1354 = vrot.lane.b32.xlu0 %v1164, 1
        %v1355 = vpop.permute.xlu0 %1354
        %1356 = vrot.lane.b32.xlu0 %v1169, 1
        %v1357 = vpop.permute.xlu0 %1356
        %1358 = vrot.lane.b32.xlu0 %v1174, 1
        %v1359 = vpop.permute.xlu0 %1358
        %1360 = vrot.lane.b32.xlu0 %v1179, 1
        %v1361 = vpop.permute.xlu0 %1360
        %1362 = vrot.lane.b32.xlu0 %v1184, 1
        %v1363 = vpop.permute.xlu0 %1362
        %1364 = vrot.lane.b32.xlu0 %v1189, 1
        %v1365 = vpop.permute.xlu0 %1364
        %1366 = vrot.lane.b32.xlu0 %v1194, 1
        %v1367 = vpop.permute.xlu0 %1366
        %1368 = vrot.lane.b32.xlu0 %v1199, 1
        %v1369 = vpop.permute.xlu0 %1368
        %1370 = vrot.lane.b32.xlu0 %v1204, 1
        %v1371 = vpop.permute.xlu0 %1370
        %1372 = vrot.lane.b32.xlu0 %v1209, 1
        %v1373 = vpop.permute.xlu0 %1372
        %1374 = vrot.lane.b32.xlu0 %v1214, 1
        %v1375 = vpop.permute.xlu0 %1374
        %1376 = vrot.lane.b32.xlu0 %v1219, 1
        %v1377 = vpop.permute.xlu0 %1376
        %1378 = vrot.lane.b32.xlu0 %v1224, 1
        %v1379 = vpop.permute.xlu0 %1378
        %1380 = vrot.lane.b32.xlu0 %v1229, 1
        %v1381 = vpop.permute.xlu0 %1380
        %1382 = vrot.lane.b32.xlu0 %v1234, 1
        %v1383 = vpop.permute.xlu0 %1382
        %1384 = vrot.lane.b32.xlu0 %v1239, 1
        %v1385 = vpop.permute.xlu0 %1384
        %1386 = vrot.lane.b32.xlu0 %v1244, 1
        %v1387 = vpop.permute.xlu0 %1386
        %1388 = vrot.lane.b32.xlu0 %v1249, 1
        %v1389 = vpop.permute.xlu0 %1388
        %vm1422 = vcmask 269320
        %1423 = vst.msk [vmem:[#allocation2 + $0x1] sm:$0xff] %vm1422, %v1327
        %1424 = vst.msk [vmem:[#allocation2 + $0x9] sm:$0xff] %vm1422, %v1329
        %1425 = vst.msk [vmem:[#allocation2 + $0x11] sm:$0xff] %vm1422, %v1331
        %1426 = vst.msk [vmem:[#allocation2 + $0x19] sm:$0xff] %vm1422, %v1333
        %1427 = vst.msk [vmem:[#allocation2 + $0x29] sm:$0xff] %vm1422, %v1335
        %1428 = vst.msk [vmem:[#allocation2 + $0x31] sm:$0xff] %vm1422, %v1337
        %1429 = vst.msk [vmem:[#allocation2 + $0x39] sm:$0xff] %vm1422, %v1339
        %1430 = vst.msk [vmem:[#allocation2 + $0x41] sm:$0xff] %vm1422, %v1341
        %1431 = vst.msk [vmem:[#allocation2 + $0x51] sm:$0xff] %vm1422, %v1343
        %1432 = vst.msk [vmem:[#allocation2 + $0x59] sm:$0xff] %vm1422, %v1345
        %1433 = vst.msk [vmem:[#allocation2 + $0x61] sm:$0xff] %vm1422, %v1347
        %1434 = vst.msk [vmem:[#allocation2 + $0x69] sm:$0xff] %vm1422, %v1349
        %1435 = vst.msk [vmem:[#allocation2 + $0x79] sm:$0xff] %vm1422, %v1351
        %1436 = vst.msk [vmem:[#allocation2 + $0x81] sm:$0xff] %vm1422, %v1353
        %1437 = vst.msk [vmem:[#allocation2 + $0x89] sm:$0xff] %vm1422, %v1355
        %1438 = vst.msk [vmem:[#allocation2 + $0x91] sm:$0xff] %vm1422, %v1357
        %1439 = vst.msk [vmem:[#allocation2 + $0xa1] sm:$0xff] %vm1422, %v1359
        %1440 = vst.msk [vmem:[#allocation2 + $0xa9] sm:$0xff] %vm1422, %v1361
        %1441 = vst.msk [vmem:[#allocation2 + $0xb1] sm:$0xff] %vm1422, %v1363
        %1442 = vst.msk [vmem:[#allocation2 + $0xb9] sm:$0xff] %vm1422, %v1365
        %1443 = vst.msk [vmem:[#allocation2 + $0xc9] sm:$0xff] %vm1422, %v1367
        %1444 = vst.msk [vmem:[#allocation2 + $0xd1] sm:$0xff] %vm1422, %v1369
        %1445 = vst.msk [vmem:[#allocation2 + $0xd9] sm:$0xff] %vm1422, %v1371
        %1446 = vst.msk [vmem:[#allocation2 + $0xe1] sm:$0xff] %vm1422, %v1373
        %1447 = vst.msk [vmem:[#allocation2 + $0xf1] sm:$0xff] %vm1422, %v1375
        %1448 = vst.msk [vmem:[#allocation2 + $0xf9] sm:$0xff] %vm1422, %v1377
        %1449 = vst.msk [vmem:[#allocation2 + $0x101] sm:$0xff] %vm1422, %v1379
        %1450 = vst.msk [vmem:[#allocation2 + $0x109] sm:$0xff] %vm1422, %v1381
        %1451 = vst.msk [vmem:[#allocation2 + $0x119] sm:$0xff] %vm1422, %v1383
        %1452 = vst.msk [vmem:[#allocation2 + $0x121] sm:$0xff] %vm1422, %v1385
        %1453 = vst.msk [vmem:[#allocation2 + $0x129] sm:$0xff] %vm1422, %v1387
        %1454 = vst.msk [vmem:[#allocation2 + $0x131] sm:$0xff] %vm1422, %v1389
        %v1455 = vld [vmem:[#allocation2] sm:$0xff]
        %v1456 = vld [vmem:[#allocation2 + $0x8] sm:$0xff]
        %v1457 = vld [vmem:[#allocation2 + $0x10] sm:$0xff]
        %v1458 = vld [vmem:[#allocation2 + $0x18] sm:$0xff]
        %v1459 = vld [vmem:[#allocation2 + $0x28] sm:$0xff]
        %v1460 = vld [vmem:[#allocation2 + $0x30] sm:$0xff]
        %v1461 = vld [vmem:[#allocation2 + $0x38] sm:$0xff]
        %v1462 = vld [vmem:[#allocation2 + $0x40] sm:$0xff]
        %v1463 = vld [vmem:[#allocation2 + $0x50] sm:$0xff]
        %v1464 = vld [vmem:[#allocation2 + $0x58] sm:$0xff]
        %v1465 = vld [vmem:[#allocation2 + $0x60] sm:$0xff]
        %v1466 = vld [vmem:[#allocation2 + $0x68] sm:$0xff]
        %v1467 = vld [vmem:[#allocation2 + $0x78] sm:$0xff]
        %v1468 = vld [vmem:[#allocation2 + $0x80] sm:$0xff]
        %v1469 = vld [vmem:[#allocation2 + $0x88] sm:$0xff]
        %v1470 = vld [vmem:[#allocation2 + $0x90] sm:$0xff]
        %v1471 = vld [vmem:[#allocation2 + $0xa0] sm:$0xff]
        %v1472 = vld [vmem:[#allocation2 + $0xa8] sm:$0xff]
        %v1473 = vld [vmem:[#allocation2 + $0xb0] sm:$0xff]
        %v1474 = vld [vmem:[#allocation2 + $0xb8] sm:$0xff]
        %v1475 = vld [vmem:[#allocation2 + $0xc8] sm:$0xff]
        %v1476 = vld [vmem:[#allocation2 + $0xd0] sm:$0xff]
        %v1477 = vld [vmem:[#allocation2 + $0xd8] sm:$0xff]
        %v1478 = vld [vmem:[#allocation2 + $0xe0] sm:$0xff]
        %v1479 = vld [vmem:[#allocation2 + $0xf0] sm:$0xff]
        %v1480 = vld [vmem:[#allocation2 + $0xf8] sm:$0xff]
        %v1481 = vld [vmem:[#allocation2 + $0x100] sm:$0xff]
        %v1482 = vld [vmem:[#allocation2 + $0x108] sm:$0xff]
        %v1483 = vld [vmem:[#allocation2 + $0x118] sm:$0xff]
        %v1484 = vld [vmem:[#allocation2 + $0x120] sm:$0xff]
        %v1485 = vld [vmem:[#allocation2 + $0x128] sm:$0xff]
        %v1486 = vld [vmem:[#allocation2 + $0x130] sm:$0xff]
        %v1487 = vcombine.low %v1455, %v1463
        %v1488 = vcombine.high %v1455, %v1463
        %v1490 = vunpack.c.l.s4 1983009808
        %v1491 = vunpack.c.0.s8 %v1490
        %v1492 = vlaneseq
        %v1493 = vshrl.u32 %v1492, 7
        %v1494 = vsub.s32 %v1491, %v1493
        %v1495 = vrot.slane %v1487, %v1494
        %v1497 = vunpack.c.l.s4 1983009808
        %v1498 = vunpack.c.0.s8 %v1497
        %v1499 = vlaneseq
        %v1500 = vshrl.u32 %v1499, 7
        %v1501 = vsub.s32 %v1498, %v1500
        %v1502 = vrot.slane %v1488, %v1501
        %v1503 = vcombine.low %v1459, %v1467
        %v1504 = vcombine.high %v1459, %v1467
        %v1506 = vunpack.c.l.s4 1983009808
        %v1507 = vunpack.c.0.s8 %v1506
        %v1508 = vlaneseq
        %v1509 = vshrl.u32 %v1508, 7
        %v1510 = vsub.s32 %v1507, %v1509
        %v1511 = vrot.slane %v1503, %v1510
        %v1513 = vunpack.c.l.s4 1983009808
        %v1514 = vunpack.c.0.s8 %v1513
        %v1515 = vlaneseq
        %v1516 = vshrl.u32 %v1515, 7
        %v1517 = vsub.s32 %v1514, %v1516
        %v1518 = vrot.slane %v1504, %v1517
        %v1519 = vcombine.low %v1471, %v1479
        %v1520 = vcombine.high %v1471, %v1479
        %v1522 = vunpack.c.l.s4 1983009808
        %v1523 = vunpack.c.0.s8 %v1522
        %v1524 = vlaneseq
        %v1525 = vshrl.u32 %v1524, 7
        %v1526 = vsub.s32 %v1523, %v1525
        %v1527 = vrot.slane %v1519, %v1526
        %v1529 = vunpack.c.l.s4 1983009808
        %v1530 = vunpack.c.0.s8 %v1529
        %v1531 = vlaneseq
        %v1532 = vshrl.u32 %v1531, 7
        %v1533 = vsub.s32 %v1530, %v1532
        %v1534 = vrot.slane %v1520, %v1533
        %v1535 = vcombine.low %v1475, %v1483
        %v1536 = vcombine.high %v1475, %v1483
        %v1538 = vunpack.c.l.s4 1983009808
        %v1539 = vunpack.c.0.s8 %v1538
        %v1540 = vlaneseq
        %v1541 = vshrl.u32 %v1540, 7
        %v1542 = vsub.s32 %v1539, %v1541
        %v1543 = vrot.slane %v1535, %v1542
        %v1545 = vunpack.c.l.s4 1983009808
        %v1546 = vunpack.c.0.s8 %v1545
        %v1547 = vlaneseq
        %v1548 = vshrl.u32 %v1547, 7
        %v1549 = vsub.s32 %v1546, %v1548
        %v1550 = vrot.slane %v1536, %v1549
        %v1551 = vcombine.low %v1495, %v1511
        %v1552 = vcombine.high %v1495, %v1511
        %v1554 = vunpack.c.l.s4 1934713408
        %v1555 = vunpack.c.0.s8 %v1554
        %v1556 = vlaneseq
        %v1557 = vshrl.u32 %v1556, 7
        %v1558 = vsub.s32 %v1555, %v1557
        %v1559 = vrot.slane %v1551, %v1558
        %v1561 = vunpack.c.l.s4 1934713408
        %v1562 = vunpack.c.0.s8 %v1561
        %v1563 = vlaneseq
        %v1564 = vshrl.u32 %v1563, 7
        %v1565 = vsub.s32 %v1562, %v1564
        %v1566 = vrot.slane %v1552, %v1565
        %v1567 = vcombine.low %v1502, %v1518
        %v1568 = vcombine.high %v1502, %v1518
        %v1570 = vunpack.c.l.s4 1934713408
        %v1571 = vunpack.c.0.s8 %v1570
        %v1572 = vlaneseq
        %v1573 = vshrl.u32 %v1572, 7
        %v1574 = vsub.s32 %v1571, %v1573
        %v1575 = vrot.slane %v1567, %v1574
        %v1577 = vunpack.c.l.s4 1934713408
        %v1578 = vunpack.c.0.s8 %v1577
        %v1579 = vlaneseq
        %v1580 = vshrl.u32 %v1579, 7
        %v1581 = vsub.s32 %v1578, %v1580
        %v1582 = vrot.slane %v1568, %v1581
        %v1583 = vcombine.low %v1527, %v1543
        %v1584 = vcombine.high %v1527, %v1543
        %v1586 = vunpack.c.l.s4 1934713408
        %v1587 = vunpack.c.0.s8 %v1586
        %v1588 = vlaneseq
        %v1589 = vshrl.u32 %v1588, 7
        %v1590 = vsub.s32 %v1587, %v1589
        %v1591 = vrot.slane %v1583, %v1590
        %v1593 = vunpack.c.l.s4 1934713408
        %v1594 = vunpack.c.0.s8 %v1593
        %v1595 = vlaneseq
        %v1596 = vshrl.u32 %v1595, 7
        %v1597 = vsub.s32 %v1594, %v1596
        %v1598 = vrot.slane %v1584, %v1597
        %v1599 = vcombine.low %v1534, %v1550
        %v1600 = vcombine.high %v1534, %v1550
        %v1602 = vunpack.c.l.s4 1934713408
        %v1603 = vunpack.c.0.s8 %v1602
        %v1604 = vlaneseq
        %v1605 = vshrl.u32 %v1604, 7
        %v1606 = vsub.s32 %v1603, %v1605
        %v1607 = vrot.slane %v1599, %v1606
        %v1609 = vunpack.c.l.s4 1934713408
        %v1610 = vunpack.c.0.s8 %v1609
        %v1611 = vlaneseq
        %v1612 = vshrl.u32 %v1611, 7
        %v1613 = vsub.s32 %v1610, %v1612
        %v1614 = vrot.slane %v1600, %v1613
        %v1615 = vcombine.low %v1559, %v1591
        %v1616 = vcombine.high %v1559, %v1591
        %v1617 = vcombine.low %v1566, %v1598
        %v1618 = vcombine.high %v1566, %v1598
        %v1619 = vcombine.low %v1575, %v1607
        %v1620 = vcombine.high %v1575, %v1607
        %v1621 = vcombine.low %v1582, %v1614
        %v1622 = vcombine.high %v1582, %v1614
        %v1623 = vcombine.low %v1456, %v1464
        %v1624 = vcombine.high %v1456, %v1464
        %v1626 = vunpack.c.l.s4 1983009808
        %v1627 = vunpack.c.0.s8 %v1626
        %v1628 = vlaneseq
        %v1629 = vshrl.u32 %v1628, 7
        %v1630 = vsub.s32 %v1627, %v1629
        %v1631 = vrot.slane %v1623, %v1630
        %v1633 = vunpack.c.l.s4 1983009808
        %v1634 = vunpack.c.0.s8 %v1633
        %v1635 = vlaneseq
        %v1636 = vshrl.u32 %v1635, 7
        %v1637 = vsub.s32 %v1634, %v1636
        %v1638 = vrot.slane %v1624, %v1637
        %v1639 = vcombine.low %v1460, %v1468
        %v1640 = vcombine.high %v1460, %v1468
        %v1642 = vunpack.c.l.s4 1983009808
        %v1643 = vunpack.c.0.s8 %v1642
        %v1644 = vlaneseq
        %v1645 = vshrl.u32 %v1644, 7
        %v1646 = vsub.s32 %v1643, %v1645
        %v1647 = vrot.slane %v1639, %v1646
        %v1649 = vunpack.c.l.s4 1983009808
        %v1650 = vunpack.c.0.s8 %v1649
        %v1651 = vlaneseq
        %v1652 = vshrl.u32 %v1651, 7
        %v1653 = vsub.s32 %v1650, %v1652
        %v1654 = vrot.slane %v1640, %v1653
        %v1655 = vcombine.low %v1472, %v1480
        %v1656 = vcombine.high %v1472, %v1480
        %v1658 = vunpack.c.l.s4 1983009808
        %v1659 = vunpack.c.0.s8 %v1658
        %v1660 = vlaneseq
        %v1661 = vshrl.u32 %v1660, 7
        %v1662 = vsub.s32 %v1659, %v1661
        %v1663 = vrot.slane %v1655, %v1662
        %v1665 = vunpack.c.l.s4 1983009808
        %v1666 = vunpack.c.0.s8 %v1665
        %v1667 = vlaneseq
        %v1668 = vshrl.u32 %v1667, 7
        %v1669 = vsub.s32 %v1666, %v1668
        %v1670 = vrot.slane %v1656, %v1669
        %v1671 = vcombine.low %v1476, %v1484
        %v1672 = vcombine.high %v1476, %v1484
        %v1674 = vunpack.c.l.s4 1983009808
        %v1675 = vunpack.c.0.s8 %v1674
        %v1676 = vlaneseq
        %v1677 = vshrl.u32 %v1676, 7
        %v1678 = vsub.s32 %v1675, %v1677
        %v1679 = vrot.slane %v1671, %v1678
        %v1681 = vunpack.c.l.s4 1983009808
        %v1682 = vunpack.c.0.s8 %v1681
        %v1683 = vlaneseq
        %v1684 = vshrl.u32 %v1683, 7
        %v1685 = vsub.s32 %v1682, %v1684
        %v1686 = vrot.slane %v1672, %v1685
        %v1687 = vcombine.low %v1631, %v1647
        %v1688 = vcombine.high %v1631, %v1647
        %v1690 = vunpack.c.l.s4 1934713408
        %v1691 = vunpack.c.0.s8 %v1690
        %v1692 = vlaneseq
        %v1693 = vshrl.u32 %v1692, 7
        %v1694 = vsub.s32 %v1691, %v1693
        %v1695 = vrot.slane %v1687, %v1694
        %v1697 = vunpack.c.l.s4 1934713408
        %v1698 = vunpack.c.0.s8 %v1697
        %v1699 = vlaneseq
        %v1700 = vshrl.u32 %v1699, 7
        %v1701 = vsub.s32 %v1698, %v1700
        %v1702 = vrot.slane %v1688, %v1701
        %v1703 = vcombine.low %v1638, %v1654
        %v1704 = vcombine.high %v1638, %v1654
        %v1706 = vunpack.c.l.s4 1934713408
        %v1707 = vunpack.c.0.s8 %v1706
        %v1708 = vlaneseq
        %v1709 = vshrl.u32 %v1708, 7
        %v1710 = vsub.s32 %v1707, %v1709
        %v1711 = vrot.slane %v1703, %v1710
        %v1713 = vunpack.c.l.s4 1934713408
        %v1714 = vunpack.c.0.s8 %v1713
        %v1715 = vlaneseq
        %v1716 = vshrl.u32 %v1715, 7
        %v1717 = vsub.s32 %v1714, %v1716
        %v1718 = vrot.slane %v1704, %v1717
        %v1719 = vcombine.low %v1663, %v1679
        %v1720 = vcombine.high %v1663, %v1679
        %v1722 = vunpack.c.l.s4 1934713408
        %v1723 = vunpack.c.0.s8 %v1722
        %v1724 = vlaneseq
        %v1725 = vshrl.u32 %v1724, 7
        %v1726 = vsub.s32 %v1723, %v1725
        %v1727 = vrot.slane %v1719, %v1726
        %v1729 = vunpack.c.l.s4 1934713408
        %v1730 = vunpack.c.0.s8 %v1729
        %v1731 = vlaneseq
        %v1732 = vshrl.u32 %v1731, 7
        %v1733 = vsub.s32 %v1730, %v1732
        %v1734 = vrot.slane %v1720, %v1733
        %v1735 = vcombine.low %v1670, %v1686
        %v1736 = vcombine.high %v1670, %v1686
        %v1738 = vunpack.c.l.s4 1934713408
        %v1739 = vunpack.c.0.s8 %v1738
        %v1740 = vlaneseq
        %v1741 = vshrl.u32 %v1740, 7
        %v1742 = vsub.s32 %v1739, %v1741
        %v1743 = vrot.slane %v1735, %v1742
        %v1745 = vunpack.c.l.s4 1934713408
        %v1746 = vunpack.c.0.s8 %v1745
        %v1747 = vlaneseq
        %v1748 = vshrl.u32 %v1747, 7
        %v1749 = vsub.s32 %v1746, %v1748
        %v1750 = vrot.slane %v1736, %v1749
        %v1751 = vcombine.low %v1695, %v1727
        %v1752 = vcombine.high %v1695, %v1727
        %v1753 = vcombine.low %v1702, %v1734
        %v1754 = vcombine.high %v1702, %v1734
        %v1755 = vcombine.low %v1711, %v1743
        %v1756 = vcombine.high %v1711, %v1743
        %v1757 = vcombine.low %v1718, %v1750
        %v1758 = vcombine.high %v1718, %v1750
        %v1759 = vcombine.low %v1457, %v1465
        %v1760 = vcombine.high %v1457, %v1465
        %v1762 = vunpack.c.l.s4 1983009808
        %v1763 = vunpack.c.0.s8 %v1762
        %v1764 = vlaneseq
        %v1765 = vshrl.u32 %v1764, 7
        %v1766 = vsub.s32 %v1763, %v1765
        %v1767 = vrot.slane %v1759, %v1766
        %v1769 = vunpack.c.l.s4 1983009808
        %v1770 = vunpack.c.0.s8 %v1769
        %v1771 = vlaneseq
        %v1772 = vshrl.u32 %v1771, 7
        %v1773 = vsub.s32 %v1770, %v1772
        %v1774 = vrot.slane %v1760, %v1773
        %v1775 = vcombine.low %v1461, %v1469
        %v1776 = vcombine.high %v1461, %v1469
        %v1778 = vunpack.c.l.s4 1983009808
        %v1779 = vunpack.c.0.s8 %v1778
        %v1780 = vlaneseq
        %v1781 = vshrl.u32 %v1780, 7
        %v1782 = vsub.s32 %v1779, %v1781
        %v1783 = vrot.slane %v1775, %v1782
        %v1785 = vunpack.c.l.s4 1983009808
        %v1786 = vunpack.c.0.s8 %v1785
        %v1787 = vlaneseq
        %v1788 = vshrl.u32 %v1787, 7
        %v1789 = vsub.s32 %v1786, %v1788
        %v1790 = vrot.slane %v1776, %v1789
        %v1791 = vcombine.low %v1473, %v1481
        %v1792 = vcombine.high %v1473, %v1481
        %v1794 = vunpack.c.l.s4 1983009808
        %v1795 = vunpack.c.0.s8 %v1794
        %v1796 = vlaneseq
        %v1797 = vshrl.u32 %v1796, 7
        %v1798 = vsub.s32 %v1795, %v1797
        %v1799 = vrot.slane %v1791, %v1798
        %v1801 = vunpack.c.l.s4 1983009808
        %v1802 = vunpack.c.0.s8 %v1801
        %v1803 = vlaneseq
        %v1804 = vshrl.u32 %v1803, 7
        %v1805 = vsub.s32 %v1802, %v1804
        %v1806 = vrot.slane %v1792, %v1805
        %v1807 = vcombine.low %v1477, %v1485
        %v1808 = vcombine.high %v1477, %v1485
        %v1810 = vunpack.c.l.s4 1983009808
        %v1811 = vunpack.c.0.s8 %v1810
        %v1812 = vlaneseq
        %v1813 = vshrl.u32 %v1812, 7
        %v1814 = vsub.s32 %v1811, %v1813
        %v1815 = vrot.slane %v1807, %v1814
        %v1817 = vunpack.c.l.s4 1983009808
        %v1818 = vunpack.c.0.s8 %v1817
        %v1819 = vlaneseq
        %v1820 = vshrl.u32 %v1819, 7
        %v1821 = vsub.s32 %v1818, %v1820
        %v1822 = vrot.slane %v1808, %v1821
        %v1823 = vcombine.low %v1767, %v1783
        %v1824 = vcombine.high %v1767, %v1783
        %v1826 = vunpack.c.l.s4 1934713408
        %v1827 = vunpack.c.0.s8 %v1826
        %v1828 = vlaneseq
        %v1829 = vshrl.u32 %v1828, 7
        %v1830 = vsub.s32 %v1827, %v1829
        %v1831 = vrot.slane %v1823, %v1830
        %v1833 = vunpack.c.l.s4 1934713408
        %v1834 = vunpack.c.0.s8 %v1833
        %v1835 = vlaneseq
        %v1836 = vshrl.u32 %v1835, 7
        %v1837 = vsub.s32 %v1834, %v1836
        %v1838 = vrot.slane %v1824, %v1837
        %v1839 = vcombine.low %v1774, %v1790
        %v1840 = vcombine.high %v1774, %v1790
        %v1842 = vunpack.c.l.s4 1934713408
        %v1843 = vunpack.c.0.s8 %v1842
        %v1844 = vlaneseq
        %v1845 = vshrl.u32 %v1844, 7
        %v1846 = vsub.s32 %v1843, %v1845
        %v1847 = vrot.slane %v1839, %v1846
        %v1849 = vunpack.c.l.s4 1934713408
        %v1850 = vunpack.c.0.s8 %v1849
        %v1851 = vlaneseq
        %v1852 = vshrl.u32 %v1851, 7
        %v1853 = vsub.s32 %v1850, %v1852
        %v1854 = vrot.slane %v1840, %v1853
        %v1855 = vcombine.low %v1799, %v1815
        %v1856 = vcombine.high %v1799, %v1815
        %v1858 = vunpack.c.l.s4 1934713408
        %v1859 = vunpack.c.0.s8 %v1858
        %v1860 = vlaneseq
        %v1861 = vshrl.u32 %v1860, 7
        %v1862 = vsub.s32 %v1859, %v1861
        %v1863 = vrot.slane %v1855, %v1862
        %v1865 = vunpack.c.l.s4 1934713408
        %v1866 = vunpack.c.0.s8 %v1865
        %v1867 = vlaneseq
        %v1868 = vshrl.u32 %v1867, 7
        %v1869 = vsub.s32 %v1866, %v1868
        %v1870 = vrot.slane %v1856, %v1869
        %v1871 = vcombine.low %v1806, %v1822
        %v1872 = vcombine.high %v1806, %v1822
        %v1874 = vunpack.c.l.s4 1934713408
        %v1875 = vunpack.c.0.s8 %v1874
        %v1876 = vlaneseq
        %v1877 = vshrl.u32 %v1876, 7
        %v1878 = vsub.s32 %v1875, %v1877
        %v1879 = vrot.slane %v1871, %v1878
        %v1881 = vunpack.c.l.s4 1934713408
        %v1882 = vunpack.c.0.s8 %v1881
        %v1883 = vlaneseq
        %v1884 = vshrl.u32 %v1883, 7
        %v1885 = vsub.s32 %v1882, %v1884
        %v1886 = vrot.slane %v1872, %v1885
        %v1887 = vcombine.low %v1831, %v1863
        %v1888 = vcombine.high %v1831, %v1863
        %v1889 = vcombine.low %v1838, %v1870
        %v1890 = vcombine.high %v1838, %v1870
        %v1891 = vcombine.low %v1847, %v1879
        %v1892 = vcombine.high %v1847, %v1879
        %v1893 = vcombine.low %v1854, %v1886
        %v1894 = vcombine.high %v1854, %v1886
        %v1895 = vcombine.low %v1458, %v1466
        %v1896 = vcombine.high %v1458, %v1466
        %v1898 = vunpack.c.l.s4 1983009808
        %v1899 = vunpack.c.0.s8 %v1898
        %v1900 = vlaneseq
        %v1901 = vshrl.u32 %v1900, 7
        %v1902 = vsub.s32 %v1899, %v1901
        %v1903 = vrot.slane %v1895, %v1902
        %v1905 = vunpack.c.l.s4 1983009808
        %v1906 = vunpack.c.0.s8 %v1905
        %v1907 = vlaneseq
        %v1908 = vshrl.u32 %v1907, 7
        %v1909 = vsub.s32 %v1906, %v1908
        %v1910 = vrot.slane %v1896, %v1909
        %v1911 = vcombine.low %v1462, %v1470
        %v1912 = vcombine.high %v1462, %v1470
        %v1914 = vunpack.c.l.s4 1983009808
        %v1915 = vunpack.c.0.s8 %v1914
        %v1916 = vlaneseq
        %v1917 = vshrl.u32 %v1916, 7
        %v1918 = vsub.s32 %v1915, %v1917
        %v1919 = vrot.slane %v1911, %v1918
        %v1921 = vunpack.c.l.s4 1983009808
        %v1922 = vunpack.c.0.s8 %v1921
        %v1923 = vlaneseq
        %v1924 = vshrl.u32 %v1923, 7
        %v1925 = vsub.s32 %v1922, %v1924
        %v1926 = vrot.slane %v1912, %v1925
        %v1927 = vcombine.low %v1474, %v1482
        %v1928 = vcombine.high %v1474, %v1482
        %v1930 = vunpack.c.l.s4 1983009808
        %v1931 = vunpack.c.0.s8 %v1930
        %v1932 = vlaneseq
        %v1933 = vshrl.u32 %v1932, 7
        %v1934 = vsub.s32 %v1931, %v1933
        %v1935 = vrot.slane %v1927, %v1934
        %v1937 = vunpack.c.l.s4 1983009808
        %v1938 = vunpack.c.0.s8 %v1937
        %v1939 = vlaneseq
        %v1940 = vshrl.u32 %v1939, 7
        %v1941 = vsub.s32 %v1938, %v1940
        %v1942 = vrot.slane %v1928, %v1941
        %v1943 = vcombine.low %v1478, %v1486
        %v1944 = vcombine.high %v1478, %v1486
        %v1946 = vunpack.c.l.s4 1983009808
        %v1947 = vunpack.c.0.s8 %v1946
        %v1948 = vlaneseq
        %v1949 = vshrl.u32 %v1948, 7
        %v1950 = vsub.s32 %v1947, %v1949
        %v1951 = vrot.slane %v1943, %v1950
        %v1953 = vunpack.c.l.s4 1983009808
        %v1954 = vunpack.c.0.s8 %v1953
        %v1955 = vlaneseq
        %v1956 = vshrl.u32 %v1955, 7
        %v1957 = vsub.s32 %v1954, %v1956
        %v1958 = vrot.slane %v1944, %v1957
        %v1959 = vcombine.low %v1903, %v1919
        %v1960 = vcombine.high %v1903, %v1919
        %v1962 = vunpack.c.l.s4 1934713408
        %v1963 = vunpack.c.0.s8 %v1962
        %v1964 = vlaneseq
        %v1965 = vshrl.u32 %v1964, 7
        %v1966 = vsub.s32 %v1963, %v1965
        %v1967 = vrot.slane %v1959, %v1966
        %v1969 = vunpack.c.l.s4 1934713408
        %v1970 = vunpack.c.0.s8 %v1969
        %v1971 = vlaneseq
        %v1972 = vshrl.u32 %v1971, 7
        %v1973 = vsub.s32 %v1970, %v1972
        %v1974 = vrot.slane %v1960, %v1973
        %v1975 = vcombine.low %v1910, %v1926
        %v1976 = vcombine.high %v1910, %v1926
        %v1978 = vunpack.c.l.s4 1934713408
        %v1979 = vunpack.c.0.s8 %v1978
        %v1980 = vlaneseq
        %v1981 = vshrl.u32 %v1980, 7
        %v1982 = vsub.s32 %v1979, %v1981
        %v1983 = vrot.slane %v1975, %v1982
        %v1985 = vunpack.c.l.s4 1934713408
        %v1986 = vunpack.c.0.s8 %v1985
        %v1987 = vlaneseq
        %v1988 = vshrl.u32 %v1987, 7
        %v1989 = vsub.s32 %v1986, %v1988
        %v1990 = vrot.slane %v1976, %v1989
        %v1991 = vcombine.low %v1935, %v1951
        %v1992 = vcombine.high %v1935, %v1951
        %v1994 = vunpack.c.l.s4 1934713408
        %v1995 = vunpack.c.0.s8 %v1994
        %v1996 = vlaneseq
        %v1997 = vshrl.u32 %v1996, 7
        %v1998 = vsub.s32 %v1995, %v1997
        %v1999 = vrot.slane %v1991, %v1998
        %v2001 = vunpack.c.l.s4 1934713408
        %v2002 = vunpack.c.0.s8 %v2001
        %v2003 = vlaneseq
        %v2004 = vshrl.u32 %v2003, 7
        %v2005 = vsub.s32 %v2002, %v2004
        %v2006 = vrot.slane %v1992, %v2005
        %v2007 = vcombine.low %v1942, %v1958
        %v2008 = vcombine.high %v1942, %v1958
        %v2010 = vunpack.c.l.s4 1934713408
        %v2011 = vunpack.c.0.s8 %v2010
        %v2012 = vlaneseq
        %v2013 = vshrl.u32 %v2012, 7
        %v2014 = vsub.s32 %v2011, %v2013
        %v2015 = vrot.slane %v2007, %v2014
        %v2017 = vunpack.c.l.s4 1934713408
        %v2018 = vunpack.c.0.s8 %v2017
        %v2019 = vlaneseq
        %v2020 = vshrl.u32 %v2019, 7
        %v2021 = vsub.s32 %v2018, %v2020
        %v2022 = vrot.slane %v2008, %v2021
        %v2023 = vcombine.low %v1967, %v1999
        %v2024 = vcombine.high %v1967, %v1999
        %v2025 = vcombine.low %v1974, %v2006
        %v2026 = vcombine.high %v1974, %v2006
        %v2027 = vcombine.low %v1983, %v2015
        %v2028 = vcombine.high %v1983, %v2015
        %v2029 = vcombine.low %v1990, %v2022
        %v2030 = vcombine.high %v1990, %v2022
        %2032 = vrot.lane.b32.xlu0 %v1616, 32
        %v2033 = vpop.permute.xlu0 %2032
        %2036 = vrot.lane.b32.xlu0 %v1617, 64
        %v2037 = vpop.permute.xlu0 %2036
        %2040 = vrot.lane.b32.xlu0 %v1618, 96
        %v2041 = vpop.permute.xlu0 %2040
        %2044 = vrot.lane.b32.xlu0 %v1620, 32
        %v2045 = vpop.permute.xlu0 %2044
        %2048 = vrot.lane.b32.xlu0 %v1621, 64
        %v2049 = vpop.permute.xlu0 %2048
        %2052 = vrot.lane.b32.xlu0 %v1622, 96
        %v2053 = vpop.permute.xlu0 %2052
        %2056 = vrot.lane.b32.xlu0 %v1752, 32
        %v2057 = vpop.permute.xlu0 %2056
        %2060 = vrot.lane.b32.xlu0 %v1753, 64
        %v2061 = vpop.permute.xlu0 %2060
        %2064 = vrot.lane.b32.xlu0 %v1754, 96
        %v2065 = vpop.permute.xlu0 %2064
        %2068 = vrot.lane.b32.xlu0 %v1756, 32
        %v2069 = vpop.permute.xlu0 %2068
        %2072 = vrot.lane.b32.xlu0 %v1757, 64
        %v2073 = vpop.permute.xlu0 %2072
        %2076 = vrot.lane.b32.xlu0 %v1758, 96
        %v2077 = vpop.permute.xlu0 %2076
        %2080 = vrot.lane.b32.xlu0 %v1888, 32
        %v2081 = vpop.permute.xlu0 %2080
        %2084 = vrot.lane.b32.xlu0 %v1889, 64
        %v2085 = vpop.permute.xlu0 %2084
        %2088 = vrot.lane.b32.xlu0 %v1890, 96
        %v2089 = vpop.permute.xlu0 %2088
        %2092 = vrot.lane.b32.xlu0 %v1892, 32
        %v2093 = vpop.permute.xlu0 %2092
        %2096 = vrot.lane.b32.xlu0 %v1893, 64
        %v2097 = vpop.permute.xlu0 %2096
        %2100 = vrot.lane.b32.xlu0 %v1894, 96
        %v2101 = vpop.permute.xlu0 %2100
        %2104 = vrot.lane.b32.xlu0 %v2024, 32
        %v2105 = vpop.permute.xlu0 %2104
        %2108 = vrot.lane.b32.xlu0 %v2025, 64
        %v2109 = vpop.permute.xlu0 %2108
        %2112 = vrot.lane.b32.xlu0 %v2026, 96
        %v2113 = vpop.permute.xlu0 %2112
        %2116 = vrot.lane.b32.xlu0 %v2028, 32
        %v2117 = vpop.permute.xlu0 %2116
        %2120 = vrot.lane.b32.xlu0 %v2029, 64
        %v2121 = vpop.permute.xlu0 %2120
        %2124 = vrot.lane.b32.xlu0 %v2030, 96
        %v2125 = vpop.permute.xlu0 %2124
        %vm2127 = vcmask 261120
        %v2128 = vsel %vm2127, %v1615, %v2033
        %vm2129 = vcmask 523264
        %v2130 = vsel %vm2129, %v2128, %v2037
        %vm2131 = vcmask 785408
        %v2132 = vsel %vm2131, %v2130, %v2041
        %v2133 = vsel %vm2127, %v1619, %v2045
        %v2134 = vsel %vm2129, %v2133, %v2049
        %v2135 = vsel %vm2131, %v2134, %v2053
        %v2136 = vsel %vm2127, %v1751, %v2057
        %v2137 = vsel %vm2129, %v2136, %v2061
        %v2138 = vsel %vm2131, %v2137, %v2065
        %v2139 = vsel %vm2127, %v1755, %v2069
        %v2140 = vsel %vm2129, %v2139, %v2073
        %v2141 = vsel %vm2131, %v2140, %v2077
        %v2142 = vsel %vm2127, %v1887, %v2081
        %v2143 = vsel %vm2129, %v2142, %v2085
        %v2144 = vsel %vm2131, %v2143, %v2089
        %v2145 = vsel %vm2127, %v1891, %v2093
        %v2146 = vsel %vm2129, %v2145, %v2097
        %v2147 = vsel %vm2131, %v2146, %v2101
        %v2148 = vsel %vm2127, %v2023, %v2105
        %v2149 = vsel %vm2129, %v2148, %v2109
        %v2150 = vsel %vm2131, %v2149, %v2113
        %v2151 = vsel %vm2127, %v2027, %v2117
        %v2152 = vsel %vm2129, %v2151, %v2121
        %v2153 = vsel %vm2131, %v2152, %v2125
        %v2154 = vld [vmem:[%s3] sm:$0xf]
        %2187 = vrot.lane.b32.xlu0 %v1455, 127
        %v2188 = vpop.permute.xlu0 %2187
        %2189 = vrot.lane.b32.xlu0 %v1456, 127
        %v2190 = vpop.permute.xlu0 %2189
        %2191 = vrot.lane.b32.xlu0 %v1457, 127
        %v2192 = vpop.permute.xlu0 %2191
        %2193 = vrot.lane.b32.xlu0 %v1458, 127
        %v2194 = vpop.permute.xlu0 %2193
        %2195 = vrot.lane.b32.xlu0 %v1459, 127
        %v2196 = vpop.permute.xlu0 %2195
        %2197 = vrot.lane.b32.xlu0 %v1460, 127
        %v2198 = vpop.permute.xlu0 %2197
        %2199 = vrot.lane.b32.xlu0 %v1461, 127
        %v2200 = vpop.permute.xlu0 %2199
        %2201 = vrot.lane.b32.xlu0 %v1462, 127
        %v2202 = vpop.permute.xlu0 %2201
        %2203 = vrot.lane.b32.xlu0 %v1463, 127
        %v2204 = vpop.permute.xlu0 %2203
        %2205 = vrot.lane.b32.xlu0 %v1464, 127
        %v2206 = vpop.permute.xlu0 %2205
        %2207 = vrot.lane.b32.xlu0 %v1465, 127
        %v2208 = vpop.permute.xlu0 %2207
        %2209 = vrot.lane.b32.xlu0 %v1466, 127
        %v2210 = vpop.permute.xlu0 %2209
        %2211 = vrot.lane.b32.xlu0 %v1467, 127
        %v2212 = vpop.permute.xlu0 %2211
        %2213 = vrot.lane.b32.xlu0 %v1468, 127
        %v2214 = vpop.permute.xlu0 %2213
        %2215 = vrot.lane.b32.xlu0 %v1469, 127
        %v2216 = vpop.permute.xlu0 %2215
        %2217 = vrot.lane.b32.xlu0 %v1470, 127
        %v2218 = vpop.permute.xlu0 %2217
        %2219 = vrot.lane.b32.xlu0 %v1471, 127
        %v2220 = vpop.permute.xlu0 %2219
        %2221 = vrot.lane.b32.xlu0 %v1472, 127
        %v2222 = vpop.permute.xlu0 %2221
        %2223 = vrot.lane.b32.xlu0 %v1473, 127
        %v2224 = vpop.permute.xlu0 %2223
        %2225 = vrot.lane.b32.xlu0 %v1474, 127
        %v2226 = vpop.permute.xlu0 %2225
        %2227 = vrot.lane.b32.xlu0 %v1475, 127
        %v2228 = vpop.permute.xlu0 %2227
        %2229 = vrot.lane.b32.xlu0 %v1476, 127
        %v2230 = vpop.permute.xlu0 %2229
        %2231 = vrot.lane.b32.xlu0 %v1477, 127
        %v2232 = vpop.permute.xlu0 %2231
        %2233 = vrot.lane.b32.xlu0 %v1478, 127
        %v2234 = vpop.permute.xlu0 %2233
        %2235 = vrot.lane.b32.xlu0 %v1479, 127
        %v2236 = vpop.permute.xlu0 %2235
        %2237 = vrot.lane.b32.xlu0 %v1480, 127
        %v2238 = vpop.permute.xlu0 %2237
        %2239 = vrot.lane.b32.xlu0 %v1481, 127
        %v2240 = vpop.permute.xlu0 %2239
        %2241 = vrot.lane.b32.xlu0 %v1482, 127
        %v2242 = vpop.permute.xlu0 %2241
        %2243 = vrot.lane.b32.xlu0 %v1483, 127
        %v2244 = vpop.permute.xlu0 %2243
        %2245 = vrot.lane.b32.xlu0 %v1484, 127
        %v2246 = vpop.permute.xlu0 %2245
        %2247 = vrot.lane.b32.xlu0 %v1485, 127
        %v2248 = vpop.permute.xlu0 %2247
        %2249 = vrot.lane.b32.xlu0 %v1486, 127
        %v2250 = vpop.permute.xlu0 %2249
        %v2283 = vcombine.low %v2188, %v2204
        %v2284 = vcombine.high %v2188, %v2204
        %v2286 = vunpack.c.l.s4 1983009808
        %v2287 = vunpack.c.0.s8 %v2286
        %v2288 = vlaneseq
        %v2289 = vshrl.u32 %v2288, 7
        %v2290 = vsub.s32 %v2287, %v2289
        %v2291 = vrot.slane %v2283, %v2290
        %v2293 = vunpack.c.l.s4 1983009808
        %v2294 = vunpack.c.0.s8 %v2293
        %v2295 = vlaneseq
        %v2296 = vshrl.u32 %v2295, 7
        %v2297 = vsub.s32 %v2294, %v2296
        %v2298 = vrot.slane %v2284, %v2297
        %v2299 = vcombine.low %v2196, %v2212
        %v2300 = vcombine.high %v2196, %v2212
        %v2302 = vunpack.c.l.s4 1983009808
        %v2303 = vunpack.c.0.s8 %v2302
        %v2304 = vlaneseq
        %v2305 = vshrl.u32 %v2304, 7
        %v2306 = vsub.s32 %v2303, %v2305
        %v2307 = vrot.slane %v2299, %v2306
        %v2309 = vunpack.c.l.s4 1983009808
        %v2310 = vunpack.c.0.s8 %v2309
        %v2311 = vlaneseq
        %v2312 = vshrl.u32 %v2311, 7
        %v2313 = vsub.s32 %v2310, %v2312
        %v2314 = vrot.slane %v2300, %v2313
        %v2315 = vcombine.low %v2220, %v2236
        %v2316 = vcombine.high %v2220, %v2236
        %v2318 = vunpack.c.l.s4 1983009808
        %v2319 = vunpack.c.0.s8 %v2318
        %v2320 = vlaneseq
        %v2321 = vshrl.u32 %v2320, 7
        %v2322 = vsub.s32 %v2319, %v2321
        %v2323 = vrot.slane %v2315, %v2322
        %v2325 = vunpack.c.l.s4 1983009808
        %v2326 = vunpack.c.0.s8 %v2325
        %v2327 = vlaneseq
        %v2328 = vshrl.u32 %v2327, 7
        %v2329 = vsub.s32 %v2326, %v2328
        %v2330 = vrot.slane %v2316, %v2329
        %v2331 = vcombine.low %v2228, %v2244
        %v2332 = vcombine.high %v2228, %v2244
        %v2334 = vunpack.c.l.s4 1983009808
        %v2335 = vunpack.c.0.s8 %v2334
        %v2336 = vlaneseq
        %v2337 = vshrl.u32 %v2336, 7
        %v2338 = vsub.s32 %v2335, %v2337
        %v2339 = vrot.slane %v2331, %v2338
        %v2341 = vunpack.c.l.s4 1983009808
        %v2342 = vunpack.c.0.s8 %v2341
        %v2343 = vlaneseq
        %v2344 = vshrl.u32 %v2343, 7
        %v2345 = vsub.s32 %v2342, %v2344
        %v2346 = vrot.slane %v2332, %v2345
        %v2347 = vcombine.low %v2291, %v2307
        %v2348 = vcombine.high %v2291, %v2307
        %v2350 = vunpack.c.l.s4 1934713408
        %v2351 = vunpack.c.0.s8 %v2350
        %v2352 = vlaneseq
        %v2353 = vshrl.u32 %v2352, 7
        %v2354 = vsub.s32 %v2351, %v2353
        %v2355 = vrot.slane %v2347, %v2354
        %v2357 = vunpack.c.l.s4 1934713408
        %v2358 = vunpack.c.0.s8 %v2357
        %v2359 = vlaneseq
        %v2360 = vshrl.u32 %v2359, 7
        %v2361 = vsub.s32 %v2358, %v2360
        %v2362 = vrot.slane %v2348, %v2361
        %v2363 = vcombine.low %v2298, %v2314
        %v2364 = vcombine.high %v2298, %v2314
        %v2366 = vunpack.c.l.s4 1934713408
        %v2367 = vunpack.c.0.s8 %v2366
        %v2368 = vlaneseq
        %v2369 = vshrl.u32 %v2368, 7
        %v2370 = vsub.s32 %v2367, %v2369
        %v2371 = vrot.slane %v2363, %v2370
        %v2373 = vunpack.c.l.s4 1934713408
        %v2374 = vunpack.c.0.s8 %v2373
        %v2375 = vlaneseq
        %v2376 = vshrl.u32 %v2375, 7
        %v2377 = vsub.s32 %v2374, %v2376
        %v2378 = vrot.slane %v2364, %v2377
        %v2379 = vcombine.low %v2323, %v2339
        %v2380 = vcombine.high %v2323, %v2339
        %v2382 = vunpack.c.l.s4 1934713408
        %v2383 = vunpack.c.0.s8 %v2382
        %v2384 = vlaneseq
        %v2385 = vshrl.u32 %v2384, 7
        %v2386 = vsub.s32 %v2383, %v2385
        %v2387 = vrot.slane %v2379, %v2386
        %v2389 = vunpack.c.l.s4 1934713408
        %v2390 = vunpack.c.0.s8 %v2389
        %v2391 = vlaneseq
        %v2392 = vshrl.u32 %v2391, 7
        %v2393 = vsub.s32 %v2390, %v2392
        %v2394 = vrot.slane %v2380, %v2393
        %v2395 = vcombine.low %v2330, %v2346
        %v2396 = vcombine.high %v2330, %v2346
        %v2398 = vunpack.c.l.s4 1934713408
        %v2399 = vunpack.c.0.s8 %v2398
        %v2400 = vlaneseq
        %v2401 = vshrl.u32 %v2400, 7
        %v2402 = vsub.s32 %v2399, %v2401
        %v2403 = vrot.slane %v2395, %v2402
        %v2405 = vunpack.c.l.s4 1934713408
        %v2406 = vunpack.c.0.s8 %v2405
        %v2407 = vlaneseq
        %v2408 = vshrl.u32 %v2407, 7
        %v2409 = vsub.s32 %v2406, %v2408
        %v2410 = vrot.slane %v2396, %v2409
        %v2411 = vcombine.low %v2355, %v2387
        %v2412 = vcombine.high %v2355, %v2387
        %v2413 = vcombine.low %v2362, %v2394
        %v2414 = vcombine.high %v2362, %v2394
        %v2415 = vcombine.low %v2371, %v2403
        %v2416 = vcombine.high %v2371, %v2403
        %v2417 = vcombine.low %v2378, %v2410
        %v2418 = vcombine.high %v2378, %v2410
        %v2419 = vcombine.low %v2190, %v2206
        %v2420 = vcombine.high %v2190, %v2206
        %v2422 = vunpack.c.l.s4 1983009808
        %v2423 = vunpack.c.0.s8 %v2422
        %v2424 = vlaneseq
        %v2425 = vshrl.u32 %v2424, 7
        %v2426 = vsub.s32 %v2423, %v2425
        %v2427 = vrot.slane %v2419, %v2426
        %v2429 = vunpack.c.l.s4 1983009808
        %v2430 = vunpack.c.0.s8 %v2429
        %v2431 = vlaneseq
        %v2432 = vshrl.u32 %v2431, 7
        %v2433 = vsub.s32 %v2430, %v2432
        %v2434 = vrot.slane %v2420, %v2433
        %v2435 = vcombine.low %v2198, %v2214
        %v2436 = vcombine.high %v2198, %v2214
        %v2438 = vunpack.c.l.s4 1983009808
        %v2439 = vunpack.c.0.s8 %v2438
        %v2440 = vlaneseq
        %v2441 = vshrl.u32 %v2440, 7
        %v2442 = vsub.s32 %v2439, %v2441
        %v2443 = vrot.slane %v2435, %v2442
        %v2445 = vunpack.c.l.s4 1983009808
        %v2446 = vunpack.c.0.s8 %v2445
        %v2447 = vlaneseq
        %v2448 = vshrl.u32 %v2447, 7
        %v2449 = vsub.s32 %v2446, %v2448
        %v2450 = vrot.slane %v2436, %v2449
        %v2451 = vcombine.low %v2222, %v2238
        %v2452 = vcombine.high %v2222, %v2238
        %v2454 = vunpack.c.l.s4 1983009808
        %v2455 = vunpack.c.0.s8 %v2454
        %v2456 = vlaneseq
        %v2457 = vshrl.u32 %v2456, 7
        %v2458 = vsub.s32 %v2455, %v2457
        %v2459 = vrot.slane %v2451, %v2458
        %v2461 = vunpack.c.l.s4 1983009808
        %v2462 = vunpack.c.0.s8 %v2461
        %v2463 = vlaneseq
        %v2464 = vshrl.u32 %v2463, 7
        %v2465 = vsub.s32 %v2462, %v2464
        %v2466 = vrot.slane %v2452, %v2465
        %v2467 = vcombine.low %v2230, %v2246
        %v2468 = vcombine.high %v2230, %v2246
        %v2470 = vunpack.c.l.s4 1983009808
        %v2471 = vunpack.c.0.s8 %v2470
        %v2472 = vlaneseq
        %v2473 = vshrl.u32 %v2472, 7
        %v2474 = vsub.s32 %v2471, %v2473
        %v2475 = vrot.slane %v2467, %v2474
        %v2477 = vunpack.c.l.s4 1983009808
        %v2478 = vunpack.c.0.s8 %v2477
        %v2479 = vlaneseq
        %v2480 = vshrl.u32 %v2479, 7
        %v2481 = vsub.s32 %v2478, %v2480
        %v2482 = vrot.slane %v2468, %v2481
        %v2483 = vcombine.low %v2427, %v2443
        %v2484 = vcombine.high %v2427, %v2443
        %v2486 = vunpack.c.l.s4 1934713408
        %v2487 = vunpack.c.0.s8 %v2486
        %v2488 = vlaneseq
        %v2489 = vshrl.u32 %v2488, 7
        %v2490 = vsub.s32 %v2487, %v2489
        %v2491 = vrot.slane %v2483, %v2490
        %v2493 = vunpack.c.l.s4 1934713408
        %v2494 = vunpack.c.0.s8 %v2493
        %v2495 = vlaneseq
        %v2496 = vshrl.u32 %v2495, 7
        %v2497 = vsub.s32 %v2494, %v2496
        %v2498 = vrot.slane %v2484, %v2497
        %v2499 = vcombine.low %v2434, %v2450
        %v2500 = vcombine.high %v2434, %v2450
        %v2502 = vunpack.c.l.s4 1934713408
        %v2503 = vunpack.c.0.s8 %v2502
        %v2504 = vlaneseq
        %v2505 = vshrl.u32 %v2504, 7
        %v2506 = vsub.s32 %v2503, %v2505
        %v2507 = vrot.slane %v2499, %v2506
        %v2509 = vunpack.c.l.s4 1934713408
        %v2510 = vunpack.c.0.s8 %v2509
        %v2511 = vlaneseq
        %v2512 = vshrl.u32 %v2511, 7
        %v2513 = vsub.s32 %v2510, %v2512
        %v2514 = vrot.slane %v2500, %v2513
        %v2515 = vcombine.low %v2459, %v2475
        %v2516 = vcombine.high %v2459, %v2475
        %v2518 = vunpack.c.l.s4 1934713408
        %v2519 = vunpack.c.0.s8 %v2518
        %v2520 = vlaneseq
        %v2521 = vshrl.u32 %v2520, 7
        %v2522 = vsub.s32 %v2519, %v2521
        %v2523 = vrot.slane %v2515, %v2522
        %v2525 = vunpack.c.l.s4 1934713408
        %v2526 = vunpack.c.0.s8 %v2525
        %v2527 = vlaneseq
        %v2528 = vshrl.u32 %v2527, 7
        %v2529 = vsub.s32 %v2526, %v2528
        %v2530 = vrot.slane %v2516, %v2529
        %v2531 = vcombine.low %v2466, %v2482
        %v2532 = vcombine.high %v2466, %v2482
        %v2534 = vunpack.c.l.s4 1934713408
        %v2535 = vunpack.c.0.s8 %v2534
        %v2536 = vlaneseq
        %v2537 = vshrl.u32 %v2536, 7
        %v2538 = vsub.s32 %v2535, %v2537
        %v2539 = vrot.slane %v2531, %v2538
        %v2541 = vunpack.c.l.s4 1934713408
        %v2542 = vunpack.c.0.s8 %v2541
        %v2543 = vlaneseq
        %v2544 = vshrl.u32 %v2543, 7
        %v2545 = vsub.s32 %v2542, %v2544
        %v2546 = vrot.slane %v2532, %v2545
        %v2547 = vcombine.low %v2491, %v2523
        %v2548 = vcombine.high %v2491, %v2523
        %v2549 = vcombine.low %v2498, %v2530
        %v2550 = vcombine.high %v2498, %v2530
        %v2551 = vcombine.low %v2507, %v2539
        %v2552 = vcombine.high %v2507, %v2539
        %v2553 = vcombine.low %v2514, %v2546
        %v2554 = vcombine.high %v2514, %v2546
        %v2555 = vcombine.low %v2192, %v2208
        %v2556 = vcombine.high %v2192, %v2208
        %v2558 = vunpack.c.l.s4 1983009808
        %v2559 = vunpack.c.0.s8 %v2558
        %v2560 = vlaneseq
        %v2561 = vshrl.u32 %v2560, 7
        %v2562 = vsub.s32 %v2559, %v2561
        %v2563 = vrot.slane %v2555, %v2562
        %v2565 = vunpack.c.l.s4 1983009808
        %v2566 = vunpack.c.0.s8 %v2565
        %v2567 = vlaneseq
        %v2568 = vshrl.u32 %v2567, 7
        %v2569 = vsub.s32 %v2566, %v2568
        %v2570 = vrot.slane %v2556, %v2569
        %v2571 = vcombine.low %v2200, %v2216
        %v2572 = vcombine.high %v2200, %v2216
        %v2574 = vunpack.c.l.s4 1983009808
        %v2575 = vunpack.c.0.s8 %v2574
        %v2576 = vlaneseq
        %v2577 = vshrl.u32 %v2576, 7
        %v2578 = vsub.s32 %v2575, %v2577
        %v2579 = vrot.slane %v2571, %v2578
        %v2581 = vunpack.c.l.s4 1983009808
        %v2582 = vunpack.c.0.s8 %v2581
        %v2583 = vlaneseq
        %v2584 = vshrl.u32 %v2583, 7
        %v2585 = vsub.s32 %v2582, %v2584
        %v2586 = vrot.slane %v2572, %v2585
        %v2587 = vcombine.low %v2224, %v2240
        %v2588 = vcombine.high %v2224, %v2240
        %v2590 = vunpack.c.l.s4 1983009808
        %v2591 = vunpack.c.0.s8 %v2590
        %v2592 = vlaneseq
        %v2593 = vshrl.u32 %v2592, 7
        %v2594 = vsub.s32 %v2591, %v2593
        %v2595 = vrot.slane %v2587, %v2594
        %v2597 = vunpack.c.l.s4 1983009808
        %v2598 = vunpack.c.0.s8 %v2597
        %v2599 = vlaneseq
        %v2600 = vshrl.u32 %v2599, 7
        %v2601 = vsub.s32 %v2598, %v2600
        %v2602 = vrot.slane %v2588, %v2601
        %v2603 = vcombine.low %v2232, %v2248
        %v2604 = vcombine.high %v2232, %v2248
        %v2606 = vunpack.c.l.s4 1983009808
        %v2607 = vunpack.c.0.s8 %v2606
        %v2608 = vlaneseq
        %v2609 = vshrl.u32 %v2608, 7
        %v2610 = vsub.s32 %v2607, %v2609
        %v2611 = vrot.slane %v2603, %v2610
        %v2613 = vunpack.c.l.s4 1983009808
        %v2614 = vunpack.c.0.s8 %v2613
        %v2615 = vlaneseq
        %v2616 = vshrl.u32 %v2615, 7
        %v2617 = vsub.s32 %v2614, %v2616
        %v2618 = vrot.slane %v2604, %v2617
        %v2619 = vcombine.low %v2563, %v2579
        %v2620 = vcombine.high %v2563, %v2579
        %v2622 = vunpack.c.l.s4 1934713408
        %v2623 = vunpack.c.0.s8 %v2622
        %v2624 = vlaneseq
        %v2625 = vshrl.u32 %v2624, 7
        %v2626 = vsub.s32 %v2623, %v2625
        %v2627 = vrot.slane %v2619, %v2626
        %v2629 = vunpack.c.l.s4 1934713408
        %v2630 = vunpack.c.0.s8 %v2629
        %v2631 = vlaneseq
        %v2632 = vshrl.u32 %v2631, 7
        %v2633 = vsub.s32 %v2630, %v2632
        %v2634 = vrot.slane %v2620, %v2633
        %v2635 = vcombine.low %v2570, %v2586
        %v2636 = vcombine.high %v2570, %v2586
        %v2638 = vunpack.c.l.s4 1934713408
        %v2639 = vunpack.c.0.s8 %v2638
        %v2640 = vlaneseq
        %v2641 = vshrl.u32 %v2640, 7
        %v2642 = vsub.s32 %v2639, %v2641
        %v2643 = vrot.slane %v2635, %v2642
        %v2645 = vunpack.c.l.s4 1934713408
        %v2646 = vunpack.c.0.s8 %v2645
        %v2647 = vlaneseq
        %v2648 = vshrl.u32 %v2647, 7
        %v2649 = vsub.s32 %v2646, %v2648
        %v2650 = vrot.slane %v2636, %v2649
        %v2651 = vcombine.low %v2595, %v2611
        %v2652 = vcombine.high %v2595, %v2611
        %v2654 = vunpack.c.l.s4 1934713408
        %v2655 = vunpack.c.0.s8 %v2654
        %v2656 = vlaneseq
        %v2657 = vshrl.u32 %v2656, 7
        %v2658 = vsub.s32 %v2655, %v2657
        %v2659 = vrot.slane %v2651, %v2658
        %v2661 = vunpack.c.l.s4 1934713408
        %v2662 = vunpack.c.0.s8 %v2661
        %v2663 = vlaneseq
        %v2664 = vshrl.u32 %v2663, 7
        %v2665 = vsub.s32 %v2662, %v2664
        %v2666 = vrot.slane %v2652, %v2665
        %v2667 = vcombine.low %v2602, %v2618
        %v2668 = vcombine.high %v2602, %v2618
        %v2670 = vunpack.c.l.s4 1934713408
        %v2671 = vunpack.c.0.s8 %v2670
        %v2672 = vlaneseq
        %v2673 = vshrl.u32 %v2672, 7
        %v2674 = vsub.s32 %v2671, %v2673
        %v2675 = vrot.slane %v2667, %v2674
        %v2677 = vunpack.c.l.s4 1934713408
        %v2678 = vunpack.c.0.s8 %v2677
        %v2679 = vlaneseq
        %v2680 = vshrl.u32 %v2679, 7
        %v2681 = vsub.s32 %v2678, %v2680
        %v2682 = vrot.slane %v2668, %v2681
        %v2683 = vcombine.low %v2627, %v2659
        %v2684 = vcombine.high %v2627, %v2659
        %v2685 = vcombine.low %v2634, %v2666
        %v2686 = vcombine.high %v2634, %v2666
        %v2687 = vcombine.low %v2643, %v2675
        %v2688 = vcombine.high %v2643, %v2675
        %v2689 = vcombine.low %v2650, %v2682
        %v2690 = vcombine.high %v2650, %v2682
        %v2691 = vcombine.low %v2194, %v2210
        %v2692 = vcombine.high %v2194, %v2210
        %v2694 = vunpack.c.l.s4 1983009808
        %v2695 = vunpack.c.0.s8 %v2694
        %v2696 = vlaneseq
        %v2697 = vshrl.u32 %v2696, 7
        %v2698 = vsub.s32 %v2695, %v2697
        %v2699 = vrot.slane %v2691, %v2698
        %v2701 = vunpack.c.l.s4 1983009808
        %v2702 = vunpack.c.0.s8 %v2701
        %v2703 = vlaneseq
        %v2704 = vshrl.u32 %v2703, 7
        %v2705 = vsub.s32 %v2702, %v2704
        %v2706 = vrot.slane %v2692, %v2705
        %v2707 = vcombine.low %v2202, %v2218
        %v2708 = vcombine.high %v2202, %v2218
        %v2710 = vunpack.c.l.s4 1983009808
        %v2711 = vunpack.c.0.s8 %v2710
        %v2712 = vlaneseq
        %v2713 = vshrl.u32 %v2712, 7
        %v2714 = vsub.s32 %v2711, %v2713
        %v2715 = vrot.slane %v2707, %v2714
        %v2717 = vunpack.c.l.s4 1983009808
        %v2718 = vunpack.c.0.s8 %v2717
        %v2719 = vlaneseq
        %v2720 = vshrl.u32 %v2719, 7
        %v2721 = vsub.s32 %v2718, %v2720
        %v2722 = vrot.slane %v2708, %v2721
        %v2723 = vcombine.low %v2226, %v2242
        %v2724 = vcombine.high %v2226, %v2242
        %v2726 = vunpack.c.l.s4 1983009808
        %v2727 = vunpack.c.0.s8 %v2726
        %v2728 = vlaneseq
        %v2729 = vshrl.u32 %v2728, 7
        %v2730 = vsub.s32 %v2727, %v2729
        %v2731 = vrot.slane %v2723, %v2730
        %v2733 = vunpack.c.l.s4 1983009808
        %v2734 = vunpack.c.0.s8 %v2733
        %v2735 = vlaneseq
        %v2736 = vshrl.u32 %v2735, 7
        %v2737 = vsub.s32 %v2734, %v2736
        %v2738 = vrot.slane %v2724, %v2737
        %v2739 = vcombine.low %v2234, %v2250
        %v2740 = vcombine.high %v2234, %v2250
        %v2742 = vunpack.c.l.s4 1983009808
        %v2743 = vunpack.c.0.s8 %v2742
        %v2744 = vlaneseq
        %v2745 = vshrl.u32 %v2744, 7
        %v2746 = vsub.s32 %v2743, %v2745
        %v2747 = vrot.slane %v2739, %v2746
        %v2749 = vunpack.c.l.s4 1983009808
        %v2750 = vunpack.c.0.s8 %v2749
        %v2751 = vlaneseq
        %v2752 = vshrl.u32 %v2751, 7
        %v2753 = vsub.s32 %v2750, %v2752
        %v2754 = vrot.slane %v2740, %v2753
        %v2755 = vcombine.low %v2699, %v2715
        %v2756 = vcombine.high %v2699, %v2715
        %v2758 = vunpack.c.l.s4 1934713408
        %v2759 = vunpack.c.0.s8 %v2758
        %v2760 = vlaneseq
        %v2761 = vshrl.u32 %v2760, 7
        %v2762 = vsub.s32 %v2759, %v2761
        %v2763 = vrot.slane %v2755, %v2762
        %v2765 = vunpack.c.l.s4 1934713408
        %v2766 = vunpack.c.0.s8 %v2765
        %v2767 = vlaneseq
        %v2768 = vshrl.u32 %v2767, 7
        %v2769 = vsub.s32 %v2766, %v2768
        %v2770 = vrot.slane %v2756, %v2769
        %v2771 = vcombine.low %v2706, %v2722
        %v2772 = vcombine.high %v2706, %v2722
        %v2774 = vunpack.c.l.s4 1934713408
        %v2775 = vunpack.c.0.s8 %v2774
        %v2776 = vlaneseq
        %v2777 = vshrl.u32 %v2776, 7
        %v2778 = vsub.s32 %v2775, %v2777
        %v2779 = vrot.slane %v2771, %v2778
        %v2781 = vunpack.c.l.s4 1934713408
        %v2782 = vunpack.c.0.s8 %v2781
        %v2783 = vlaneseq
        %v2784 = vshrl.u32 %v2783, 7
        %v2785 = vsub.s32 %v2782, %v2784
        %v2786 = vrot.slane %v2772, %v2785
        %v2787 = vcombine.low %v2731, %v2747
        %v2788 = vcombine.high %v2731, %v2747
        %v2790 = vunpack.c.l.s4 1934713408
        %v2791 = vunpack.c.0.s8 %v2790
        %v2792 = vlaneseq
        %v2793 = vshrl.u32 %v2792, 7
        %v2794 = vsub.s32 %v2791, %v2793
        %v2795 = vrot.slane %v2787, %v2794
        %v2797 = vunpack.c.l.s4 1934713408
        %v2798 = vunpack.c.0.s8 %v2797
        %v2799 = vlaneseq
        %v2800 = vshrl.u32 %v2799, 7
        %v2801 = vsub.s32 %v2798, %v2800
        %v2802 = vrot.slane %v2788, %v2801
        %v2803 = vcombine.low %v2738, %v2754
        %v2804 = vcombine.high %v2738, %v2754
        %v2806 = vunpack.c.l.s4 1934713408
        %v2807 = vunpack.c.0.s8 %v2806
        %v2808 = vlaneseq
        %v2809 = vshrl.u32 %v2808, 7
        %v2810 = vsub.s32 %v2807, %v2809
        %v2811 = vrot.slane %v2803, %v2810
        %v2813 = vunpack.c.l.s4 1934713408
        %v2814 = vunpack.c.0.s8 %v2813
        %v2815 = vlaneseq
        %v2816 = vshrl.u32 %v2815, 7
        %v2817 = vsub.s32 %v2814, %v2816
        %v2818 = vrot.slane %v2804, %v2817
        %v2819 = vcombine.low %v2763, %v2795
        %v2820 = vcombine.high %v2763, %v2795
        %v2821 = vcombine.low %v2770, %v2802
        %v2822 = vcombine.high %v2770, %v2802
        %v2823 = vcombine.low %v2779, %v2811
        %v2824 = vcombine.high %v2779, %v2811
        %v2825 = vcombine.low %v2786, %v2818
        %v2826 = vcombine.high %v2786, %v2818
        %2828 = vrot.lane.b32.xlu0 %v2412, 32
        %v2829 = vpop.permute.xlu0 %2828
        %2832 = vrot.lane.b32.xlu0 %v2413, 64
        %v2833 = vpop.permute.xlu0 %2832
        %2836 = vrot.lane.b32.xlu0 %v2414, 96
        %v2837 = vpop.permute.xlu0 %2836
        %2840 = vrot.lane.b32.xlu0 %v2416, 32
        %v2841 = vpop.permute.xlu0 %2840
        %2844 = vrot.lane.b32.xlu0 %v2417, 64
        %v2845 = vpop.permute.xlu0 %2844
        %2848 = vrot.lane.b32.xlu0 %v2418, 96
        %v2849 = vpop.permute.xlu0 %2848
        %2852 = vrot.lane.b32.xlu0 %v2548, 32
        %v2853 = vpop.permute.xlu0 %2852
        %2856 = vrot.lane.b32.xlu0 %v2549, 64
        %v2857 = vpop.permute.xlu0 %2856
        %2860 = vrot.lane.b32.xlu0 %v2550, 96
        %v2861 = vpop.permute.xlu0 %2860
        %2864 = vrot.lane.b32.xlu0 %v2552, 32
        %v2865 = vpop.permute.xlu0 %2864
        %2868 = vrot.lane.b32.xlu0 %v2553, 64
        %v2869 = vpop.permute.xlu0 %2868
        %2872 = vrot.lane.b32.xlu0 %v2554, 96
        %v2873 = vpop.permute.xlu0 %2872
        %2876 = vrot.lane.b32.xlu0 %v2684, 32
        %v2877 = vpop.permute.xlu0 %2876
        %2880 = vrot.lane.b32.xlu0 %v2685, 64
        %v2881 = vpop.permute.xlu0 %2880
        %2884 = vrot.lane.b32.xlu0 %v2686, 96
        %v2885 = vpop.permute.xlu0 %2884
        %2888 = vrot.lane.b32.xlu0 %v2688, 32
        %v2889 = vpop.permute.xlu0 %2888
        %2892 = vrot.lane.b32.xlu0 %v2689, 64
        %v2893 = vpop.permute.xlu0 %2892
        %2896 = vrot.lane.b32.xlu0 %v2690, 96
        %v2897 = vpop.permute.xlu0 %2896
        %2900 = vrot.lane.b32.xlu0 %v2820, 32
        %v2901 = vpop.permute.xlu0 %2900
        %2904 = vrot.lane.b32.xlu0 %v2821, 64
        %v2905 = vpop.permute.xlu0 %2904
        %2908 = vrot.lane.b32.xlu0 %v2822, 96
        %v2909 = vpop.permute.xlu0 %2908
        %2912 = vrot.lane.b32.xlu0 %v2824, 32
        %v2913 = vpop.permute.xlu0 %2912
        %2916 = vrot.lane.b32.xlu0 %v2825, 64
        %v2917 = vpop.permute.xlu0 %2916
        %2920 = vrot.lane.b32.xlu0 %v2826, 96
        %v2921 = vpop.permute.xlu0 %2920
        %v2923 = vsel %vm2127, %v2411, %v2829
        %v2924 = vsel %vm2129, %v2923, %v2833
        %v2925 = vsel %vm2131, %v2924, %v2837
        %v2926 = vsel %vm2127, %v2415, %v2841
        %v2927 = vsel %vm2129, %v2926, %v2845
        %v2928 = vsel %vm2131, %v2927, %v2849
        %v2929 = vsel %vm2127, %v2547, %v2853
        %v2930 = vsel %vm2129, %v2929, %v2857
        %v2931 = vsel %vm2131, %v2930, %v2861
        %v2932 = vsel %vm2127, %v2551, %v2865
        %v2933 = vsel %vm2129, %v2932, %v2869
        %v2934 = vsel %vm2131, %v2933, %v2873
        %v2935 = vsel %vm2127, %v2683, %v2877
        %v2936 = vsel %vm2129, %v2935, %v2881
        %v2937 = vsel %vm2131, %v2936, %v2885
        %v2938 = vsel %vm2127, %v2687, %v2889
        %v2939 = vsel %vm2129, %v2938, %v2893
        %v2940 = vsel %vm2131, %v2939, %v2897
        %v2941 = vsel %vm2127, %v2819, %v2901
        %v2942 = vsel %vm2129, %v2941, %v2905
        %v2943 = vsel %vm2131, %v2942, %v2909
        %v2944 = vsel %vm2127, %v2823, %v2913
        %v2945 = vsel %vm2129, %v2944, %v2917
        %v2946 = vsel %vm2131, %v2945, %v2921
        %s2947 = scalar_lea.vmem %s3, 4
        %v2948 = vld [vmem:[%s2947] sm:$0xf]
        %vm2949 = vcmask 64512
        %v2951 = vsel %vm2949, %v2948, 0
        %2953 = vmatprep.subr.mxu0 %v2928
        %2954 = vmatpush1.msra.mxu0 %v2925
        %2955 = vmatprep.subr.mxu0 0.0
        %2956 = vmatpush1.msra.mxu0 0.0
        %2957 = vmatprep.subr.mxu0 0.0
        %2958 = vmatpush1.msra.mxu0 0.0
        %2959 = vmatprep.subr.mxu0 0.0
        %2960 = vmatpush1.msra.mxu0 0.0
        %2961 = vmatprep.subr.mxu0 0.0
        %2962 = vmatpush1.msra.mxu0 0.0
        %2963 = vmatprep.subr.mxu0 0.0
        %2964 = vmatpush1.msra.mxu0 0.0
        %2965 = vmatprep.subr.mxu0 0.0
        %2966 = vmatpush1.msra.mxu0 0.0
        %2967 = vmatprep.subr.mxu0 0.0
        %2968 = vmatpush1.msra.mxu0 0.0
        %2969 = vmatprep.subr.mxu0 0.0
        %2970 = vmatpush1.msra.mxu0 0.0
        %2971 = vmatprep.subr.mxu0 0.0
        %2972 = vmatpush1.msra.mxu0 0.0
        %2973 = vmatprep.subr.mxu0 0.0
        %2974 = vmatpush1.msra.mxu0 0.0
        %2975 = vmatprep.subr.mxu0 0.0
        %2976 = vmatpush1.msra.mxu0 0.0
        %2977 = vmatprep.subr.mxu0 0.0
        %2978 = vmatpush1.msra.mxu0 0.0
        %2979 = vmatprep.subr.mxu0 0.0
        %2980 = vmatpush1.msra.mxu0 0.0
        %2981 = vmatprep.subr.mxu0 0.0
        %2982 = vmatpush1.msra.mxu0 0.0
        %2983 = vmatprep.subr.mxu0 0.0
        %2984 = vmatpush1.msra.mxu0 0.0
        %2985 = vmatprep.subr.mxu0 0.0
        %2986 = vmatpush1.msra.mxu0 0.0
        %2987 = vmatprep.subr.mxu0 0.0
        %2988 = vmatpush1.msra.mxu0 0.0
        %2989 = vmatprep.subr.mxu0 0.0
        %2990 = vmatpush1.msra.mxu0 0.0
        %2991 = vmatprep.subr.mxu0 0.0
        %2992 = vmatpush1.msra.mxu0 0.0
        %2993 = vmatprep.subr.mxu0 0.0
        %2994 = vmatpush1.msra.mxu0 0.0
        %2995 = vmatprep.subr.mxu0 0.0
        %2996 = vmatpush1.msra.mxu0 0.0
        %2997 = vmatprep.subr.mxu0 0.0
        %2998 = vmatpush1.msra.mxu0 0.0
        %2999 = vmatprep.subr.mxu0 0.0
        %3000 = vmatpush1.msra.mxu0 0.0
        %3001 = vmatprep.subr.mxu0 0.0
        %3002 = vmatpush1.msra.mxu0 0.0
        %3003 = vmatprep.subr.mxu0 0.0
        %3004 = vmatpush1.msra.mxu0 0.0
        %3005 = vmatprep.subr.mxu0 0.0
        %3006 = vmatpush1.msra.mxu0 0.0
        %3007 = vmatprep.subr.mxu0 0.0
        %3008 = vmatpush1.msra.mxu0 0.0
        %3009 = vmatprep.subr.mxu0 0.0
        %3010 = vmatpush1.msra.mxu0 0.0
        %3011 = vmatprep.subr.mxu0 0.0
        %3012 = vmatpush1.msra.mxu0 0.0
        %3013 = vmatprep.subr.mxu0 0.0
        %3014 = vmatpush1.msra.mxu0 0.0
        %3015 = vmatprep.subr.mxu0 0.0
        %3016 = vmatpush1.msra.mxu0 0.0
        %3017 = vmatprep.mubr.f32.mxu0 0.0
        %3018 = vmatmul.mubr.f32.gmra.mrb[0].mxu0 %v2951
        %v3019 = vpop.f32.mrb[0].mxu0
        %v3020 = vadd.f32 0.0, %v3019
        %v3021 = vpop.f32.mrb[0].mxu0
        %v3022 = vadd.f32 0.0, %v3021
        %3023 = vdwg.mxu0
        %3024 = vmatprep.subr.mxu0 %v2934
        %3025 = vmatpush1.msra.mxu0 %v2931
        %3026 = vmatprep.subr.mxu0 0.0
        %3027 = vmatpush1.msra.mxu0 0.0
        %3028 = vmatprep.subr.mxu0 0.0
        %3029 = vmatpush1.msra.mxu0 0.0
        %3030 = vmatprep.subr.mxu0 0.0
        %3031 = vmatpush1.msra.mxu0 0.0
        %3032 = vmatprep.subr.mxu0 0.0
        %3033 = vmatpush1.msra.mxu0 0.0
        %3034 = vmatprep.subr.mxu0 0.0
        %3035 = vmatpush1.msra.mxu0 0.0
        %3036 = vmatprep.subr.mxu0 0.0
        %3037 = vmatpush1.msra.mxu0 0.0
        %3038 = vmatprep.subr.mxu0 0.0
        %3039 = vmatpush1.msra.mxu0 0.0
        %3040 = vmatprep.subr.mxu0 0.0
        %3041 = vmatpush1.msra.mxu0 0.0
        %3042 = vmatprep.subr.mxu0 0.0
        %3043 = vmatpush1.msra.mxu0 0.0
        %3044 = vmatprep.subr.mxu0 0.0
        %3045 = vmatpush1.msra.mxu0 0.0
        %3046 = vmatprep.subr.mxu0 0.0
        %3047 = vmatpush1.msra.mxu0 0.0
        %3048 = vmatprep.subr.mxu0 0.0
        %3049 = vmatpush1.msra.mxu0 0.0
        %3050 = vmatprep.subr.mxu0 0.0
        %3051 = vmatpush1.msra.mxu0 0.0
        %3052 = vmatprep.subr.mxu0 0.0
        %3053 = vmatpush1.msra.mxu0 0.0
        %3054 = vmatprep.subr.mxu0 0.0
        %3055 = vmatpush1.msra.mxu0 0.0
        %3056 = vmatprep.subr.mxu0 0.0
        %3057 = vmatpush1.msra.mxu0 0.0
        %3058 = vmatprep.subr.mxu0 0.0
        %3059 = vmatpush1.msra.mxu0 0.0
        %3060 = vmatprep.subr.mxu0 0.0
        %3061 = vmatpush1.msra.mxu0 0.0
        %3062 = vmatprep.subr.mxu0 0.0
        %3063 = vmatpush1.msra.mxu0 0.0
        %3064 = vmatprep.subr.mxu0 0.0
        %3065 = vmatpush1.msra.mxu0 0.0
        %3066 = vmatprep.subr.mxu0 0.0
        %3067 = vmatpush1.msra.mxu0 0.0
        %3068 = vmatprep.subr.mxu0 0.0
        %3069 = vmatpush1.msra.mxu0 0.0
        %3070 = vmatprep.subr.mxu0 0.0
        %3071 = vmatpush1.msra.mxu0 0.0
        %3072 = vmatprep.subr.mxu0 0.0
        %3073 = vmatpush1.msra.mxu0 0.0
        %3074 = vmatprep.subr.mxu0 0.0
        %3075 = vmatpush1.msra.mxu0 0.0
        %3076 = vmatprep.subr.mxu0 0.0
        %3077 = vmatpush1.msra.mxu0 0.0
        %3078 = vmatprep.subr.mxu0 0.0
        %3079 = vmatpush1.msra.mxu0 0.0
        %3080 = vmatprep.subr.mxu0 0.0
        %3081 = vmatpush1.msra.mxu0 0.0
        %3082 = vmatprep.subr.mxu0 0.0
        %3083 = vmatpush1.msra.mxu0 0.0
        %3084 = vmatprep.subr.mxu0 0.0
        %3085 = vmatpush1.msra.mxu0 0.0
        %3086 = vmatprep.subr.mxu0 0.0
        %3087 = vmatpush1.msra.mxu0 0.0
        %3088 = vmatprep.mubr.f32.mxu0 0.0
        %3089 = vmatmul.mubr.f32.gmra.mrb[0].mxu0 %v2951
        %v3090 = vpop.f32.mrb[0].mxu0
        %v3091 = vadd.f32 0.0, %v3090
        %v3092 = vpop.f32.mrb[0].mxu0
        %v3093 = vadd.f32 0.0, %v3092
        %3094 = vdwg.mxu0
        %3095 = vmatprep.subr.mxu0 %v2940
        %3096 = vmatpush1.msra.mxu0 %v2937
        %3097 = vmatprep.subr.mxu0 0.0
        %3098 = vmatpush1.msra.mxu0 0.0
        %3099 = vmatprep.subr.mxu0 0.0
        %3100 = vmatpush1.msra.mxu0 0.0
        %3101 = vmatprep.subr.mxu0 0.0
        %3102 = vmatpush1.msra.mxu0 0.0
        %3103 = vmatprep.subr.mxu0 0.0
        %3104 = vmatpush1.msra.mxu0 0.0
        %3105 = vmatprep.subr.mxu0 0.0
        %3106 = vmatpush1.msra.mxu0 0.0
        %3107 = vmatprep.subr.mxu0 0.0
        %3108 = vmatpush1.msra.mxu0 0.0
        %3109 = vmatprep.subr.mxu0 0.0
        %3110 = vmatpush1.msra.mxu0 0.0
        %3111 = vmatprep.subr.mxu0 0.0
        %3112 = vmatpush1.msra.mxu0 0.0
        %3113 = vmatprep.subr.mxu0 0.0
        %3114 = vmatpush1.msra.mxu0 0.0
        %3115 = vmatprep.subr.mxu0 0.0
        %3116 = vmatpush1.msra.mxu0 0.0
        %3117 = vmatprep.subr.mxu0 0.0
        %3118 = vmatpush1.msra.mxu0 0.0
        %3119 = vmatprep.subr.mxu0 0.0
        %3120 = vmatpush1.msra.mxu0 0.0
        %3121 = vmatprep.subr.mxu0 0.0
        %3122 = vmatpush1.msra.mxu0 0.0
        %3123 = vmatprep.subr.mxu0 0.0
        %3124 = vmatpush1.msra.mxu0 0.0
        %3125 = vmatprep.subr.mxu0 0.0
        %3126 = vmatpush1.msra.mxu0 0.0
        %3127 = vmatprep.subr.mxu0 0.0
        %3128 = vmatpush1.msra.mxu0 0.0
        %3129 = vmatprep.subr.mxu0 0.0
        %3130 = vmatpush1.msra.mxu0 0.0
        %3131 = vmatprep.subr.mxu0 0.0
        %3132 = vmatpush1.msra.mxu0 0.0
        %3133 = vmatprep.subr.mxu0 0.0
        %3134 = vmatpush1.msra.mxu0 0.0
        %3135 = vmatprep.subr.mxu0 0.0
        %3136 = vmatpush1.msra.mxu0 0.0
        %3137 = vmatprep.subr.mxu0 0.0
        %3138 = vmatpush1.msra.mxu0 0.0
        %3139 = vmatprep.subr.mxu0 0.0
        %3140 = vmatpush1.msra.mxu0 0.0
        %3141 = vmatprep.subr.mxu0 0.0
        %3142 = vmatpush1.msra.mxu0 0.0
        %3143 = vmatprep.subr.mxu0 0.0
        %3144 = vmatpush1.msra.mxu0 0.0
        %3145 = vmatprep.subr.mxu0 0.0
        %3146 = vmatpush1.msra.mxu0 0.0
        %3147 = vmatprep.subr.mxu0 0.0
        %3148 = vmatpush1.msra.mxu0 0.0
        %3149 = vmatprep.subr.mxu0 0.0
        %3150 = vmatpush1.msra.mxu0 0.0
        %3151 = vmatprep.subr.mxu0 0.0
        %3152 = vmatpush1.msra.mxu0 0.0
        %3153 = vmatprep.subr.mxu0 0.0
        %3154 = vmatpush1.msra.mxu0 0.0
        %3155 = vmatprep.subr.mxu0 0.0
        %3156 = vmatpush1.msra.mxu0 0.0
        %3157 = vmatprep.subr.mxu0 0.0
        %3158 = vmatpush1.msra.mxu0 0.0
        %3159 = vmatprep.mubr.f32.mxu0 0.0
        %3160 = vmatmul.mubr.f32.gmra.mrb[0].mxu0 %v2951
        %v3161 = vpop.f32.mrb[0].mxu0
        %v3162 = vadd.f32 0.0, %v3161
        %v3163 = vpop.f32.mrb[0].mxu0
        %v3164 = vadd.f32 0.0, %v3163
        %3165 = vdwg.mxu0
        %3166 = vmatprep.subr.mxu0 %v2946
        %3167 = vmatpush1.msra.mxu0 %v2943
        %3168 = vmatprep.subr.mxu0 0.0
        %3169 = vmatpush1.msra.mxu0 0.0
        %3170 = vmatprep.subr.mxu0 0.0
        %3171 = vmatpush1.msra.mxu0 0.0
        %3172 = vmatprep.subr.mxu0 0.0
        %3173 = vmatpush1.msra.mxu0 0.0
        %3174 = vmatprep.subr.mxu0 0.0
        %3175 = vmatpush1.msra.mxu0 0.0
        %3176 = vmatprep.subr.mxu0 0.0
        %3177 = vmatpush1.msra.mxu0 0.0
        %3178 = vmatprep.subr.mxu0 0.0
        %3179 = vmatpush1.msra.mxu0 0.0
        %3180 = vmatprep.subr.mxu0 0.0
        %3181 = vmatpush1.msra.mxu0 0.0
        %3182 = vmatprep.subr.mxu0 0.0
        %3183 = vmatpush1.msra.mxu0 0.0
        %3184 = vmatprep.subr.mxu0 0.0
        %3185 = vmatpush1.msra.mxu0 0.0
        %3186 = vmatprep.subr.mxu0 0.0
        %3187 = vmatpush1.msra.mxu0 0.0
        %3188 = vmatprep.subr.mxu0 0.0
        %3189 = vmatpush1.msra.mxu0 0.0
        %3190 = vmatprep.subr.mxu0 0.0
        %3191 = vmatpush1.msra.mxu0 0.0
        %3192 = vmatprep.subr.mxu0 0.0
        %3193 = vmatpush1.msra.mxu0 0.0
        %3194 = vmatprep.subr.mxu0 0.0
        %3195 = vmatpush1.msra.mxu0 0.0
        %3196 = vmatprep.subr.mxu0 0.0
        %3197 = vmatpush1.msra.mxu0 0.0
        %3198 = vmatprep.subr.mxu0 0.0
        %3199 = vmatpush1.msra.mxu0 0.0
        %3200 = vmatprep.subr.mxu0 0.0
        %3201 = vmatpush1.msra.mxu0 0.0
        %3202 = vmatprep.subr.mxu0 0.0
        %3203 = vmatpush1.msra.mxu0 0.0
        %3204 = vmatprep.subr.mxu0 0.0
        %3205 = vmatpush1.msra.mxu0 0.0
        %3206 = vmatprep.subr.mxu0 0.0
        %3207 = vmatpush1.msra.mxu0 0.0
        %3208 = vmatprep.subr.mxu0 0.0
        %3209 = vmatpush1.msra.mxu0 0.0
        %3210 = vmatprep.subr.mxu0 0.0
        %3211 = vmatpush1.msra.mxu0 0.0
        %3212 = vmatprep.subr.mxu0 0.0
        %3213 = vmatpush1.msra.mxu0 0.0
        %3214 = vmatprep.subr.mxu0 0.0
        %3215 = vmatpush1.msra.mxu0 0.0
        %3216 = vmatprep.subr.mxu0 0.0
        %3217 = vmatpush1.msra.mxu0 0.0
        %3218 = vmatprep.subr.mxu0 0.0
        %3219 = vmatpush1.msra.mxu0 0.0
        %3220 = vmatprep.subr.mxu0 0.0
        %3221 = vmatpush1.msra.mxu0 0.0
        %3222 = vmatprep.subr.mxu0 0.0
        %3223 = vmatpush1.msra.mxu0 0.0
        %3224 = vmatprep.subr.mxu0 0.0
        %3225 = vmatpush1.msra.mxu0 0.0
        %3226 = vmatprep.subr.mxu0 0.0
        %3227 = vmatpush1.msra.mxu0 0.0
        %3228 = vmatprep.subr.mxu0 0.0
        %3229 = vmatpush1.msra.mxu0 0.0
        %3230 = vmatprep.mubr.f32.mxu0 0.0
        %3231 = vmatmul.mubr.f32.gmra.mrb[0].mxu0 %v2951
        %v3232 = vpop.f32.mrb[0].mxu0
        %v3233 = vadd.f32 0.0, %v3232
        %v3234 = vpop.f32.mrb[0].mxu0
        %v3235 = vadd.f32 0.0, %v3234
        %3236 = vdwg.mxu0
        %v3238 = vsel %vm2949, %v2154, 0
        %3240 = vmatprep.subr.mxu0 %v2135
        %3241 = vmatpush1.msra.mxu0 %v2132
        %3242 = vmatprep.subr.mxu0 0.0
        %3243 = vmatpush1.msra.mxu0 0.0
        %3244 = vmatprep.subr.mxu0 0.0
        %3245 = vmatpush1.msra.mxu0 0.0
        %3246 = vmatprep.subr.mxu0 0.0
        %3247 = vmatpush1.msra.mxu0 0.0
        %3248 = vmatprep.subr.mxu0 0.0
        %3249 = vmatpush1.msra.mxu0 0.0
        %3250 = vmatprep.subr.mxu0 0.0
        %3251 = vmatpush1.msra.mxu0 0.0
        %3252 = vmatprep.subr.mxu0 0.0
        %3253 = vmatpush1.msra.mxu0 0.0
        %3254 = vmatprep.subr.mxu0 0.0
        %3255 = vmatpush1.msra.mxu0 0.0
        %3256 = vmatprep.subr.mxu0 0.0
        %3257 = vmatpush1.msra.mxu0 0.0
        %3258 = vmatprep.subr.mxu0 0.0
        %3259 = vmatpush1.msra.mxu0 0.0
        %3260 = vmatprep.subr.mxu0 0.0
        %3261 = vmatpush1.msra.mxu0 0.0
        %3262 = vmatprep.subr.mxu0 0.0
        %3263 = vmatpush1.msra.mxu0 0.0
        %3264 = vmatprep.subr.mxu0 0.0
        %3265 = vmatpush1.msra.mxu0 0.0
        %3266 = vmatprep.subr.mxu0 0.0
        %3267 = vmatpush1.msra.mxu0 0.0
        %3268 = vmatprep.subr.mxu0 0.0
        %3269 = vmatpush1.msra.mxu0 0.0
        %3270 = vmatprep.subr.mxu0 0.0
        %3271 = vmatpush1.msra.mxu0 0.0
        %3272 = vmatprep.subr.mxu0 0.0
        %3273 = vmatpush1.msra.mxu0 0.0
        %3274 = vmatprep.subr.mxu0 0.0
        %3275 = vmatpush1.msra.mxu0 0.0
        %3276 = vmatprep.subr.mxu0 0.0
        %3277 = vmatpush1.msra.mxu0 0.0
        %3278 = vmatprep.subr.mxu0 0.0
        %3279 = vmatpush1.msra.mxu0 0.0
        %3280 = vmatprep.subr.mxu0 0.0
        %3281 = vmatpush1.msra.mxu0 0.0
        %3282 = vmatprep.subr.mxu0 0.0
        %3283 = vmatpush1.msra.mxu0 0.0
        %3284 = vmatprep.subr.mxu0 0.0
        %3285 = vmatpush1.msra.mxu0 0.0
        %3286 = vmatprep.subr.mxu0 0.0
        %3287 = vmatpush1.msra.mxu0 0.0
        %3288 = vmatprep.subr.mxu0 0.0
        %3289 = vmatpush1.msra.mxu0 0.0
        %3290 = vmatprep.subr.mxu0 0.0
        %3291 = vmatpush1.msra.mxu0 0.0
        %3292 = vmatprep.subr.mxu0 0.0
        %3293 = vmatpush1.msra.mxu0 0.0
        %3294 = vmatprep.subr.mxu0 0.0
        %3295 = vmatpush1.msra.mxu0 0.0
        %3296 = vmatprep.subr.mxu0 0.0
        %3297 = vmatpush1.msra.mxu0 0.0
        %3298 = vmatprep.subr.mxu0 0.0
        %3299 = vmatpush1.msra.mxu0 0.0
        %3300 = vmatprep.subr.mxu0 0.0
        %3301 = vmatpush1.msra.mxu0 0.0
        %3302 = vmatprep.subr.mxu0 0.0
        %3303 = vmatpush1.msra.mxu0 0.0
        %3304 = vmatprep.mubr.f32.mxu0 0.0
        %3305 = vmatmul.mubr.f32.gmra.mrb[0].mxu0 %v3238
        %v3306 = vpop.f32.mrb[0].mxu0
        %v3307 = vadd.f32 %v3020, %v3306
        %v3308 = vpop.f32.mrb[0].mxu0
        %v3309 = vadd.f32 %v3022, %v3308
        %3310 = vdwg.mxu0
        %3311 = vmatprep.subr.mxu0 %v2141
        %3312 = vmatpush1.msra.mxu0 %v2138
        %3313 = vmatprep.subr.mxu0 0.0
        %3314 = vmatpush1.msra.mxu0 0.0
        %3315 = vmatprep.subr.mxu0 0.0
        %3316 = vmatpush1.msra.mxu0 0.0
        %3317 = vmatprep.subr.mxu0 0.0
        %3318 = vmatpush1.msra.mxu0 0.0
        %3319 = vmatprep.subr.mxu0 0.0
        %3320 = vmatpush1.msra.mxu0 0.0
        %3321 = vmatprep.subr.mxu0 0.0
        %3322 = vmatpush1.msra.mxu0 0.0
        %3323 = vmatprep.subr.mxu0 0.0
        %3324 = vmatpush1.msra.mxu0 0.0
        %3325 = vmatprep.subr.mxu0 0.0
        %3326 = vmatpush1.msra.mxu0 0.0
        %3327 = vmatprep.subr.mxu0 0.0
        %3328 = vmatpush1.msra.mxu0 0.0
        %3329 = vmatprep.subr.mxu0 0.0
        %3330 = vmatpush1.msra.mxu0 0.0
        %3331 = vmatprep.subr.mxu0 0.0
        %3332 = vmatpush1.msra.mxu0 0.0
        %3333 = vmatprep.subr.mxu0 0.0
        %3334 = vmatpush1.msra.mxu0 0.0
        %3335 = vmatprep.subr.mxu0 0.0
        %3336 = vmatpush1.msra.mxu0 0.0
        %3337 = vmatprep.subr.mxu0 0.0
        %3338 = vmatpush1.msra.mxu0 0.0
        %3339 = vmatprep.subr.mxu0 0.0
        %3340 = vmatpush1.msra.mxu0 0.0
        %3341 = vmatprep.subr.mxu0 0.0
        %3342 = vmatpush1.msra.mxu0 0.0
        %3343 = vmatprep.subr.mxu0 0.0
        %3344 = vmatpush1.msra.mxu0 0.0
        %3345 = vmatprep.subr.mxu0 0.0
        %3346 = vmatpush1.msra.mxu0 0.0
        %3347 = vmatprep.subr.mxu0 0.0
        %3348 = vmatpush1.msra.mxu0 0.0
        %3349 = vmatprep.subr.mxu0 0.0
        %3350 = vmatpush1.msra.mxu0 0.0
        %3351 = vmatprep.subr.mxu0 0.0
        %3352 = vmatpush1.msra.mxu0 0.0
        %3353 = vmatprep.subr.mxu0 0.0
        %3354 = vmatpush1.msra.mxu0 0.0
        %3355 = vmatprep.subr.mxu0 0.0
        %3356 = vmatpush1.msra.mxu0 0.0
        %3357 = vmatprep.subr.mxu0 0.0
        %3358 = vmatpush1.msra.mxu0 0.0
        %3359 = vmatprep.subr.mxu0 0.0
        %3360 = vmatpush1.msra.mxu0 0.0
        %3361 = vmatprep.subr.mxu0 0.0
        %3362 = vmatpush1.msra.mxu0 0.0
        %3363 = vmatprep.subr.mxu0 0.0
        %3364 = vmatpush1.msra.mxu0 0.0
        %3365 = vmatprep.subr.mxu0 0.0
        %3366 = vmatpush1.msra.mxu0 0.0
        %3367 = vmatprep.subr.mxu0 0.0
        %3368 = vmatpush1.msra.mxu0 0.0
        %3369 = vmatprep.subr.mxu0 0.0
        %3370 = vmatpush1.msra.mxu0 0.0
        %3371 = vmatprep.subr.mxu0 0.0
        %3372 = vmatpush1.msra.mxu0 0.0
        %3373 = vmatprep.subr.mxu0 0.0
        %3374 = vmatpush1.msra.mxu0 0.0
        %3375 = vmatprep.mubr.f32.mxu0 0.0
        %3376 = vmatmul.mubr.f32.gmra.mrb[0].mxu0 %v3238
        %v3377 = vpop.f32.mrb[0].mxu0
        %v3378 = vadd.f32 %v3091, %v3377
        %v3379 = vpop.f32.mrb[0].mxu0
        %v3380 = vadd.f32 %v3093, %v3379
        %3381 = vdwg.mxu0
        %3382 = vmatprep.subr.mxu0 %v2147
        %3383 = vmatpush1.msra.mxu0 %v2144
        %3384 = vmatprep.subr.mxu0 0.0
        %3385 = vmatpush1.msra.mxu0 0.0
        %3386 = vmatprep.subr.mxu0 0.0
        %3387 = vmatpush1.msra.mxu0 0.0
        %3388 = vmatprep.subr.mxu0 0.0
        %3389 = vmatpush1.msra.mxu0 0.0
        %3390 = vmatprep.subr.mxu0 0.0
        %3391 = vmatpush1.msra.mxu0 0.0
        %3392 = vmatprep.subr.mxu0 0.0
        %3393 = vmatpush1.msra.mxu0 0.0
        %3394 = vmatprep.subr.mxu0 0.0
        %3395 = vmatpush1.msra.mxu0 0.0
        %3396 = vmatprep.subr.mxu0 0.0
        %3397 = vmatpush1.msra.mxu0 0.0
        %3398 = vmatprep.subr.mxu0 0.0
        %3399 = vmatpush1.msra.mxu0 0.0
        %3400 = vmatprep.subr.mxu0 0.0
        %3401 = vmatpush1.msra.mxu0 0.0
        %3402 = vmatprep.subr.mxu0 0.0
        %3403 = vmatpush1.msra.mxu0 0.0
        %3404 = vmatprep.subr.mxu0 0.0
        %3405 = vmatpush1.msra.mxu0 0.0
        %3406 = vmatprep.subr.mxu0 0.0
        %3407 = vmatpush1.msra.mxu0 0.0
        %3408 = vmatprep.subr.mxu0 0.0
        %3409 = vmatpush1.msra.mxu0 0.0
        %3410 = vmatprep.subr.mxu0 0.0
        %3411 = vmatpush1.msra.mxu0 0.0
        %3412 = vmatprep.subr.mxu0 0.0
        %3413 = vmatpush1.msra.mxu0 0.0
        %3414 = vmatprep.subr.mxu0 0.0
        %3415 = vmatpush1.msra.mxu0 0.0
        %3416 = vmatprep.subr.mxu0 0.0
        %3417 = vmatpush1.msra.mxu0 0.0
        %3418 = vmatprep.subr.mxu0 0.0
        %3419 = vmatpush1.msra.mxu0 0.0
        %3420 = vmatprep.subr.mxu0 0.0
        %3421 = vmatpush1.msra.mxu0 0.0
        %3422 = vmatprep.subr.mxu0 0.0
        %3423 = vmatpush1.msra.mxu0 0.0
        %3424 = vmatprep.subr.mxu0 0.0
        %3425 = vmatpush1.msra.mxu0 0.0
        %3426 = vmatprep.subr.mxu0 0.0
        %3427 = vmatpush1.msra.mxu0 0.0
        %3428 = vmatprep.subr.mxu0 0.0
        %3429 = vmatpush1.msra.mxu0 0.0
        %3430 = vmatprep.subr.mxu0 0.0
        %3431 = vmatpush1.msra.mxu0 0.0
        %3432 = vmatprep.subr.mxu0 0.0
        %3433 = vmatpush1.msra.mxu0 0.0
        %3434 = vmatprep.subr.mxu0 0.0
        %3435 = vmatpush1.msra.mxu0 0.0
        %3436 = vmatprep.subr.mxu0 0.0
        %3437 = vmatpush1.msra.mxu0 0.0
        %3438 = vmatprep.subr.mxu0 0.0
        %3439 = vmatpush1.msra.mxu0 0.0
        %3440 = vmatprep.subr.mxu0 0.0
        %3441 = vmatpush1.msra.mxu0 0.0
        %3442 = vmatprep.subr.mxu0 0.0
        %3443 = vmatpush1.msra.mxu0 0.0
        %3444 = vmatprep.subr.mxu0 0.0
        %3445 = vmatpush1.msra.mxu0 0.0
        %3446 = vmatprep.mubr.f32.mxu0 0.0
        %3447 = vmatmul.mubr.f32.gmra.mrb[0].mxu0 %v3238
        %v3448 = vpop.f32.mrb[0].mxu0
        %v3449 = vadd.f32 %v3162, %v3448
        %v3450 = vpop.f32.mrb[0].mxu0
        %v3451 = vadd.f32 %v3164, %v3450
        %3452 = vdwg.mxu0
        %3453 = vmatprep.subr.mxu0 %v2153
        %3454 = vmatpush1.msra.mxu0 %v2150
        %3455 = vmatprep.subr.mxu0 0.0
        %3456 = vmatpush1.msra.mxu0 0.0
        %3457 = vmatprep.subr.mxu0 0.0
        %3458 = vmatpush1.msra.mxu0 0.0
        %3459 = vmatprep.subr.mxu0 0.0
        %3460 = vmatpush1.msra.mxu0 0.0
        %3461 = vmatprep.subr.mxu0 0.0
        %3462 = vmatpush1.msra.mxu0 0.0
        %3463 = vmatprep.subr.mxu0 0.0
        %3464 = vmatpush1.msra.mxu0 0.0
        %3465 = vmatprep.subr.mxu0 0.0
        %3466 = vmatpush1.msra.mxu0 0.0
        %3467 = vmatprep.subr.mxu0 0.0
        %3468 = vmatpush1.msra.mxu0 0.0
        %3469 = vmatprep.subr.mxu0 0.0
        %3470 = vmatpush1.msra.mxu0 0.0
        %3471 = vmatprep.subr.mxu0 0.0
        %3472 = vmatpush1.msra.mxu0 0.0
        %3473 = vmatprep.subr.mxu0 0.0
        %3474 = vmatpush1.msra.mxu0 0.0
        %3475 = vmatprep.subr.mxu0 0.0
        %3476 = vmatpush1.msra.mxu0 0.0
        %3477 = vmatprep.subr.mxu0 0.0
        %3478 = vmatpush1.msra.mxu0 0.0
        %3479 = vmatprep.subr.mxu0 0.0
        %3480 = vmatpush1.msra.mxu0 0.0
        %3481 = vmatprep.subr.mxu0 0.0
        %3482 = vmatpush1.msra.mxu0 0.0
        %3483 = vmatprep.subr.mxu0 0.0
        %3484 = vmatpush1.msra.mxu0 0.0
        %3485 = vmatprep.subr.mxu0 0.0
        %3486 = vmatpush1.msra.mxu0 0.0
        %3487 = vmatprep.subr.mxu0 0.0
        %3488 = vmatpush1.msra.mxu0 0.0
        %3489 = vmatprep.subr.mxu0 0.0
        %3490 = vmatpush1.msra.mxu0 0.0
        %3491 = vmatprep.subr.mxu0 0.0
        %3492 = vmatpush1.msra.mxu0 0.0
        %3493 = vmatprep.subr.mxu0 0.0
        %3494 = vmatpush1.msra.mxu0 0.0
        %3495 = vmatprep.subr.mxu0 0.0
        %3496 = vmatpush1.msra.mxu0 0.0
        %3497 = vmatprep.subr.mxu0 0.0
        %3498 = vmatpush1.msra.mxu0 0.0
        %3499 = vmatprep.subr.mxu0 0.0
        %3500 = vmatpush1.msra.mxu0 0.0
        %3501 = vmatprep.subr.mxu0 0.0
        %3502 = vmatpush1.msra.mxu0 0.0
        %3503 = vmatprep.subr.mxu0 0.0
        %3504 = vmatpush1.msra.mxu0 0.0
        %3505 = vmatprep.subr.mxu0 0.0
        %3506 = vmatpush1.msra.mxu0 0.0
        %3507 = vmatprep.subr.mxu0 0.0
        %3508 = vmatpush1.msra.mxu0 0.0
        %3509 = vmatprep.subr.mxu0 0.0
        %3510 = vmatpush1.msra.mxu0 0.0
        %3511 = vmatprep.subr.mxu0 0.0
        %3512 = vmatpush1.msra.mxu0 0.0
        %3513 = vmatprep.subr.mxu0 0.0
        %3514 = vmatpush1.msra.mxu0 0.0
        %3515 = vmatprep.subr.mxu0 0.0
        %3516 = vmatpush1.msra.mxu0 0.0
        %3517 = vmatprep.mubr.f32.mxu0 0.0
        %3518 = vmatmul.mubr.f32.gmra.mrb[0].mxu0 %v3238
        %v3519 = vpop.f32.mrb[0].mxu0
        %v3520 = vadd.f32 %v3233, %v3519
        %v3521 = vpop.f32.mrb[0].mxu0
        %v3522 = vadd.f32 %v3235, %v3521
        %3523 = vdwg.mxu0
        %v3524 = vld [vmem:[#allocation2] sm:$0xff]
        %v3525 = vld [vmem:[#allocation2 + $0x8] sm:$0xff]
        %v3526 = vld [vmem:[#allocation2 + $0x10] sm:$0xff]
        %v3527 = vld [vmem:[#allocation2 + $0x18] sm:$0xff]
        %v3528 = vld [vmem:[#allocation2 + $0x28] sm:$0xff]
        %v3529 = vld [vmem:[#allocation2 + $0x30] sm:$0xff]
        %v3530 = vld [vmem:[#allocation2 + $0x38] sm:$0xff]
        %v3531 = vld [vmem:[#allocation2 + $0x40] sm:$0xff]
        %v3532 = vld [vmem:[#allocation2 + $0x50] sm:$0xff]
        %v3533 = vld [vmem:[#allocation2 + $0x58] sm:$0xff]
        %v3534 = vld [vmem:[#allocation2 + $0x60] sm:$0xff]
        %v3535 = vld [vmem:[#allocation2 + $0x68] sm:$0xff]
        %v3536 = vld [vmem:[#allocation2 + $0x78] sm:$0xff]
        %v3537 = vld [vmem:[#allocation2 + $0x80] sm:$0xff]
        %v3538 = vld [vmem:[#allocation2 + $0x88] sm:$0xff]
        %v3539 = vld [vmem:[#allocation2 + $0x90] sm:$0xff]
        %v3540 = vld [vmem:[#allocation2 + $0xa0] sm:$0xff]
        %v3541 = vld [vmem:[#allocation2 + $0xa8] sm:$0xff]
        %v3542 = vld [vmem:[#allocation2 + $0xb0] sm:$0xff]
        %v3543 = vld [vmem:[#allocation2 + $0xb8] sm:$0xff]
        %v3544 = vld [vmem:[#allocation2 + $0xc8] sm:$0xff]
        %v3545 = vld [vmem:[#allocation2 + $0xd0] sm:$0xff]
        %v3546 = vld [vmem:[#allocation2 + $0xd8] sm:$0xff]
        %v3547 = vld [vmem:[#allocation2 + $0xe0] sm:$0xff]
        %v3548 = vld [vmem:[#allocation2 + $0xf0] sm:$0xff]
        %v3549 = vld [vmem:[#allocation2 + $0xf8] sm:$0xff]
        %v3550 = vld [vmem:[#allocation2 + $0x100] sm:$0xff]
        %v3551 = vld [vmem:[#allocation2 + $0x108] sm:$0xff]
        %v3552 = vld [vmem:[#allocation2 + $0x118] sm:$0xff]
        %v3553 = vld [vmem:[#allocation2 + $0x120] sm:$0xff]
        %v3554 = vld [vmem:[#allocation2 + $0x128] sm:$0xff]
        %v3555 = vld [vmem:[#allocation2 + $0x130] sm:$0xff]
        %3588 = vrot.lane.b32.xlu0 %v3524, 126
        %v3589 = vpop.permute.xlu0 %3588
        %3590 = vrot.lane.b32.xlu0 %v3525, 126
        %v3591 = vpop.permute.xlu0 %3590
        %3592 = vrot.lane.b32.xlu0 %v3526, 126
        %v3593 = vpop.permute.xlu0 %3592
        %3594 = vrot.lane.b32.xlu0 %v3527, 126
        %v3595 = vpop.permute.xlu0 %3594
        %3596 = vrot.lane.b32.xlu0 %v3528, 126
        %v3597 = vpop.permute.xlu0 %3596
        %3598 = vrot.lane.b32.xlu0 %v3529, 126
        %v3599 = vpop.permute.xlu0 %3598
        %3600 = vrot.lane.b32.xlu0 %v3530, 126
        %v3601 = vpop.permute.xlu0 %3600
        %3602 = vrot.lane.b32.xlu0 %v3531, 126
        %v3603 = vpop.permute.xlu0 %3602
        %3604 = vrot.lane.b32.xlu0 %v3532, 126
        %v3605 = vpop.permute.xlu0 %3604
        %3606 = vrot.lane.b32.xlu0 %v3533, 126
        %v3607 = vpop.permute.xlu0 %3606
        %3608 = vrot.lane.b32.xlu0 %v3534, 126
        %v3609 = vpop.permute.xlu0 %3608
        %3610 = vrot.lane.b32.xlu0 %v3535, 126
        %v3611 = vpop.permute.xlu0 %3610
        %3612 = vrot.lane.b32.xlu0 %v3536, 126
        %v3613 = vpop.permute.xlu0 %3612
        %3614 = vrot.lane.b32.xlu0 %v3537, 126
        %v3615 = vpop.permute.xlu0 %3614
        %3616 = vrot.lane.b32.xlu0 %v3538, 126
        %v3617 = vpop.permute.xlu0 %3616
        %3618 = vrot.lane.b32.xlu0 %v3539, 126
        %v3619 = vpop.permute.xlu0 %3618
        %3620 = vrot.lane.b32.xlu0 %v3540, 126
        %v3621 = vpop.permute.xlu0 %3620
        %3622 = vrot.lane.b32.xlu0 %v3541, 126
        %v3623 = vpop.permute.xlu0 %3622
        %3624 = vrot.lane.b32.xlu0 %v3542, 126
        %v3625 = vpop.permute.xlu0 %3624
        %3626 = vrot.lane.b32.xlu0 %v3543, 126
        %v3627 = vpop.permute.xlu0 %3626
        %3628 = vrot.lane.b32.xlu0 %v3544, 126
        %v3629 = vpop.permute.xlu0 %3628
        %3630 = vrot.lane.b32.xlu0 %v3545, 126
        %v3631 = vpop.permute.xlu0 %3630
        %3632 = vrot.lane.b32.xlu0 %v3546, 126
        %v3633 = vpop.permute.xlu0 %3632
        %3634 = vrot.lane.b32.xlu0 %v3547, 126
        %v3635 = vpop.permute.xlu0 %3634
        %3636 = vrot.lane.b32.xlu0 %v3548, 126
        %v3637 = vpop.permute.xlu0 %3636
        %3638 = vrot.lane.b32.xlu0 %v3549, 126
        %v3639 = vpop.permute.xlu0 %3638
        %3640 = vrot.lane.b32.xlu0 %v3550, 126
        %v3641 = vpop.permute.xlu0 %3640
        %3642 = vrot.lane.b32.xlu0 %v3551, 126
        %v3643 = vpop.permute.xlu0 %3642
        %3644 = vrot.lane.b32.xlu0 %v3552, 126
        %v3645 = vpop.permute.xlu0 %3644
        %3646 = vrot.lane.b32.xlu0 %v3553, 126
        %v3647 = vpop.permute.xlu0 %3646
        %3648 = vrot.lane.b32.xlu0 %v3554, 126
        %v3649 = vpop.permute.xlu0 %3648
        %3650 = vrot.lane.b32.xlu0 %v3555, 126
        %v3651 = vpop.permute.xlu0 %3650
        %v3684 = vcombine.low %v3589, %v3605
        %v3685 = vcombine.high %v3589, %v3605
        %v3687 = vunpack.c.l.s4 1983009808
        %v3688 = vunpack.c.0.s8 %v3687
        %v3689 = vlaneseq
        %v3690 = vshrl.u32 %v3689, 7
        %v3691 = vsub.s32 %v3688, %v3690
        %v3692 = vrot.slane %v3684, %v3691
        %v3694 = vunpack.c.l.s4 1983009808
        %v3695 = vunpack.c.0.s8 %v3694
        %v3696 = vlaneseq
        %v3697 = vshrl.u32 %v3696, 7
        %v3698 = vsub.s32 %v3695, %v3697
        %v3699 = vrot.slane %v3685, %v3698
        %v3700 = vcombine.low %v3597, %v3613
        %v3701 = vcombine.high %v3597, %v3613
        %v3703 = vunpack.c.l.s4 1983009808
        %v3704 = vunpack.c.0.s8 %v3703
        %v3705 = vlaneseq
        %v3706 = vshrl.u32 %v3705, 7
        %v3707 = vsub.s32 %v3704, %v3706
        %v3708 = vrot.slane %v3700, %v3707
        %v3710 = vunpack.c.l.s4 1983009808
        %v3711 = vunpack.c.0.s8 %v3710
        %v3712 = vlaneseq
        %v3713 = vshrl.u32 %v3712, 7
        %v3714 = vsub.s32 %v3711, %v3713
        %v3715 = vrot.slane %v3701, %v3714
        %v3716 = vcombine.low %v3621, %v3637
        %v3717 = vcombine.high %v3621, %v3637
        %v3719 = vunpack.c.l.s4 1983009808
        %v3720 = vunpack.c.0.s8 %v3719
        %v3721 = vlaneseq
        %v3722 = vshrl.u32 %v3721, 7
        %v3723 = vsub.s32 %v3720, %v3722
        %v3724 = vrot.slane %v3716, %v3723
        %v3726 = vunpack.c.l.s4 1983009808
        %v3727 = vunpack.c.0.s8 %v3726
        %v3728 = vlaneseq
        %v3729 = vshrl.u32 %v3728, 7
        %v3730 = vsub.s32 %v3727, %v3729
        %v3731 = vrot.slane %v3717, %v3730
        %v3732 = vcombine.low %v3629, %v3645
        %v3733 = vcombine.high %v3629, %v3645
        %v3735 = vunpack.c.l.s4 1983009808
        %v3736 = vunpack.c.0.s8 %v3735
        %v3737 = vlaneseq
        %v3738 = vshrl.u32 %v3737, 7
        %v3739 = vsub.s32 %v3736, %v3738
        %v3740 = vrot.slane %v3732, %v3739
        %v3742 = vunpack.c.l.s4 1983009808
        %v3743 = vunpack.c.0.s8 %v3742
        %v3744 = vlaneseq
        %v3745 = vshrl.u32 %v3744, 7
        %v3746 = vsub.s32 %v3743, %v3745
        %v3747 = vrot.slane %v3733, %v3746
        %v3748 = vcombine.low %v3692, %v3708
        %v3749 = vcombine.high %v3692, %v3708
        %v3751 = vunpack.c.l.s4 1934713408
        %v3752 = vunpack.c.0.s8 %v3751
        %v3753 = vlaneseq
        %v3754 = vshrl.u32 %v3753, 7
        %v3755 = vsub.s32 %v3752, %v3754
        %v3756 = vrot.slane %v3748, %v3755
        %v3758 = vunpack.c.l.s4 1934713408
        %v3759 = vunpack.c.0.s8 %v3758
        %v3760 = vlaneseq
        %v3761 = vshrl.u32 %v3760, 7
        %v3762 = vsub.s32 %v3759, %v3761
        %v3763 = vrot.slane %v3749, %v3762
        %v3764 = vcombine.low %v3699, %v3715
        %v3765 = vcombine.high %v3699, %v3715
        %v3767 = vunpack.c.l.s4 1934713408
        %v3768 = vunpack.c.0.s8 %v3767
        %v3769 = vlaneseq
        %v3770 = vshrl.u32 %v3769, 7
        %v3771 = vsub.s32 %v3768, %v3770
        %v3772 = vrot.slane %v3764, %v3771
        %v3774 = vunpack.c.l.s4 1934713408
        %v3775 = vunpack.c.0.s8 %v3774
        %v3776 = vlaneseq
        %v3777 = vshrl.u32 %v3776, 7
        %v3778 = vsub.s32 %v3775, %v3777
        %v3779 = vrot.slane %v3765, %v3778
        %v3780 = vcombine.low %v3724, %v3740
        %v3781 = vcombine.high %v3724, %v3740
        %v3783 = vunpack.c.l.s4 1934713408
        %v3784 = vunpack.c.0.s8 %v3783
        %v3785 = vlaneseq
        %v3786 = vshrl.u32 %v3785, 7
        %v3787 = vsub.s32 %v3784, %v3786
        %v3788 = vrot.slane %v3780, %v3787
        %v3790 = vunpack.c.l.s4 1934713408
        %v3791 = vunpack.c.0.s8 %v3790
        %v3792 = vlaneseq
        %v3793 = vshrl.u32 %v3792, 7
        %v3794 = vsub.s32 %v3791, %v3793
        %v3795 = vrot.slane %v3781, %v3794
        %v3796 = vcombine.low %v3731, %v3747
        %v3797 = vcombine.high %v3731, %v3747
        %v3799 = vunpack.c.l.s4 1934713408
        %v3800 = vunpack.c.0.s8 %v3799
        %v3801 = vlaneseq
        %v3802 = vshrl.u32 %v3801, 7
        %v3803 = vsub.s32 %v3800, %v3802
        %v3804 = vrot.slane %v3796, %v3803
        %v3806 = vunpack.c.l.s4 1934713408
        %v3807 = vunpack.c.0.s8 %v3806
        %v3808 = vlaneseq
        %v3809 = vshrl.u32 %v3808, 7
        %v3810 = vsub.s32 %v3807, %v3809
        %v3811 = vrot.slane %v3797, %v3810
        %v3812 = vcombine.low %v3756, %v3788
        %v3813 = vcombine.high %v3756, %v3788
        %v3814 = vcombine.low %v3763, %v3795
        %v3815 = vcombine.high %v3763, %v3795
        %v3816 = vcombine.low %v3772, %v3804
        %v3817 = vcombine.high %v3772, %v3804
        %v3818 = vcombine.low %v3779, %v3811
        %v3819 = vcombine.high %v3779, %v3811
        %v3820 = vcombine.low %v3591, %v3607
        %v3821 = vcombine.high %v3591, %v3607
        %v3823 = vunpack.c.l.s4 1983009808
        %v3824 = vunpack.c.0.s8 %v3823
        %v3825 = vlaneseq
        %v3826 = vshrl.u32 %v3825, 7
        %v3827 = vsub.s32 %v3824, %v3826
        %v3828 = vrot.slane %v3820, %v3827
        %v3830 = vunpack.c.l.s4 1983009808
        %v3831 = vunpack.c.0.s8 %v3830
        %v3832 = vlaneseq
        %v3833 = vshrl.u32 %v3832, 7
        %v3834 = vsub.s32 %v3831, %v3833
        %v3835 = vrot.slane %v3821, %v3834
        %v3836 = vcombine.low %v3599, %v3615
        %v3837 = vcombine.high %v3599, %v3615
        %v3839 = vunpack.c.l.s4 1983009808
        %v3840 = vunpack.c.0.s8 %v3839
        %v3841 = vlaneseq
        %v3842 = vshrl.u32 %v3841, 7
        %v3843 = vsub.s32 %v3840, %v3842
        %v3844 = vrot.slane %v3836, %v3843
        %v3846 = vunpack.c.l.s4 1983009808
        %v3847 = vunpack.c.0.s8 %v3846
        %v3848 = vlaneseq
        %v3849 = vshrl.u32 %v3848, 7
        %v3850 = vsub.s32 %v3847, %v3849
        %v3851 = vrot.slane %v3837, %v3850
        %v3852 = vcombine.low %v3623, %v3639
        %v3853 = vcombine.high %v3623, %v3639
        %v3855 = vunpack.c.l.s4 1983009808
        %v3856 = vunpack.c.0.s8 %v3855
        %v3857 = vlaneseq
        %v3858 = vshrl.u32 %v3857, 7
        %v3859 = vsub.s32 %v3856, %v3858
        %v3860 = vrot.slane %v3852, %v3859
        %v3862 = vunpack.c.l.s4 1983009808
        %v3863 = vunpack.c.0.s8 %v3862
        %v3864 = vlaneseq
        %v3865 = vshrl.u32 %v3864, 7
        %v3866 = vsub.s32 %v3863, %v3865
        %v3867 = vrot.slane %v3853, %v3866
        %v3868 = vcombine.low %v3631, %v3647
        %v3869 = vcombine.high %v3631, %v3647
        %v3871 = vunpack.c.l.s4 1983009808
        %v3872 = vunpack.c.0.s8 %v3871
        %v3873 = vlaneseq
        %v3874 = vshrl.u32 %v3873, 7
        %v3875 = vsub.s32 %v3872, %v3874
        %v3876 = vrot.slane %v3868, %v3875
        %v3878 = vunpack.c.l.s4 1983009808
        %v3879 = vunpack.c.0.s8 %v3878
        %v3880 = vlaneseq
        %v3881 = vshrl.u32 %v3880, 7
        %v3882 = vsub.s32 %v3879, %v3881
        %v3883 = vrot.slane %v3869, %v3882
        %v3884 = vcombine.low %v3828, %v3844
        %v3885 = vcombine.high %v3828, %v3844
        %v3887 = vunpack.c.l.s4 1934713408
        %v3888 = vunpack.c.0.s8 %v3887
        %v3889 = vlaneseq
        %v3890 = vshrl.u32 %v3889, 7
        %v3891 = vsub.s32 %v3888, %v3890
        %v3892 = vrot.slane %v3884, %v3891
        %v3894 = vunpack.c.l.s4 1934713408
        %v3895 = vunpack.c.0.s8 %v3894
        %v3896 = vlaneseq
        %v3897 = vshrl.u32 %v3896, 7
        %v3898 = vsub.s32 %v3895, %v3897
        %v3899 = vrot.slane %v3885, %v3898
        %v3900 = vcombine.low %v3835, %v3851
        %v3901 = vcombine.high %v3835, %v3851
        %v3903 = vunpack.c.l.s4 1934713408
        %v3904 = vunpack.c.0.s8 %v3903
        %v3905 = vlaneseq
        %v3906 = vshrl.u32 %v3905, 7
        %v3907 = vsub.s32 %v3904, %v3906
        %v3908 = vrot.slane %v3900, %v3907
        %v3910 = vunpack.c.l.s4 1934713408
        %v3911 = vunpack.c.0.s8 %v3910
        %v3912 = vlaneseq
        %v3913 = vshrl.u32 %v3912, 7
        %v3914 = vsub.s32 %v3911, %v3913
        %v3915 = vrot.slane %v3901, %v3914
        %v3916 = vcombine.low %v3860, %v3876
        %v3917 = vcombine.high %v3860, %v3876
        %v3919 = vunpack.c.l.s4 1934713408
        %v3920 = vunpack.c.0.s8 %v3919
        %v3921 = vlaneseq
        %v3922 = vshrl.u32 %v3921, 7
        %v3923 = vsub.s32 %v3920, %v3922
        %v3924 = vrot.slane %v3916, %v3923
        %v3926 = vunpack.c.l.s4 1934713408
        %v3927 = vunpack.c.0.s8 %v3926
        %v3928 = vlaneseq
        %v3929 = vshrl.u32 %v3928, 7
        %v3930 = vsub.s32 %v3927, %v3929
        %v3931 = vrot.slane %v3917, %v3930
        %v3932 = vcombine.low %v3867, %v3883
        %v3933 = vcombine.high %v3867, %v3883
        %v3935 = vunpack.c.l.s4 1934713408
        %v3936 = vunpack.c.0.s8 %v3935
        %v3937 = vlaneseq
        %v3938 = vshrl.u32 %v3937, 7
        %v3939 = vsub.s32 %v3936, %v3938
        %v3940 = vrot.slane %v3932, %v3939
        %v3942 = vunpack.c.l.s4 1934713408
        %v3943 = vunpack.c.0.s8 %v3942
        %v3944 = vlaneseq
        %v3945 = vshrl.u32 %v3944, 7
        %v3946 = vsub.s32 %v3943, %v3945
        %v3947 = vrot.slane %v3933, %v3946
        %v3948 = vcombine.low %v3892, %v3924
        %v3949 = vcombine.high %v3892, %v3924
        %v3950 = vcombine.low %v3899, %v3931
        %v3951 = vcombine.high %v3899, %v3931
        %v3952 = vcombine.low %v3908, %v3940
        %v3953 = vcombine.high %v3908, %v3940
        %v3954 = vcombine.low %v3915, %v3947
        %v3955 = vcombine.high %v3915, %v3947
        %v3956 = vcombine.low %v3593, %v3609
        %v3957 = vcombine.high %v3593, %v3609
        %v3959 = vunpack.c.l.s4 1983009808
        %v3960 = vunpack.c.0.s8 %v3959
        %v3961 = vlaneseq
        %v3962 = vshrl.u32 %v3961, 7
        %v3963 = vsub.s32 %v3960, %v3962
        %v3964 = vrot.slane %v3956, %v3963
        %v3966 = vunpack.c.l.s4 1983009808
        %v3967 = vunpack.c.0.s8 %v3966
        %v3968 = vlaneseq
        %v3969 = vshrl.u32 %v3968, 7
        %v3970 = vsub.s32 %v3967, %v3969
        %v3971 = vrot.slane %v3957, %v3970
        %v3972 = vcombine.low %v3601, %v3617
        %v3973 = vcombine.high %v3601, %v3617
        %v3975 = vunpack.c.l.s4 1983009808
        %v3976 = vunpack.c.0.s8 %v3975
        %v3977 = vlaneseq
        %v3978 = vshrl.u32 %v3977, 7
        %v3979 = vsub.s32 %v3976, %v3978
        %v3980 = vrot.slane %v3972, %v3979
        %v3982 = vunpack.c.l.s4 1983009808
        %v3983 = vunpack.c.0.s8 %v3982
        %v3984 = vlaneseq
        %v3985 = vshrl.u32 %v3984, 7
        %v3986 = vsub.s32 %v3983, %v3985
        %v3987 = vrot.slane %v3973, %v3986
        %v3988 = vcombine.low %v3625, %v3641
        %v3989 = vcombine.high %v3625, %v3641
        %v3991 = vunpack.c.l.s4 1983009808
        %v3992 = vunpack.c.0.s8 %v3991
        %v3993 = vlaneseq
        %v3994 = vshrl.u32 %v3993, 7
        %v3995 = vsub.s32 %v3992, %v3994
        %v3996 = vrot.slane %v3988, %v3995
        %v3998 = vunpack.c.l.s4 1983009808
        %v3999 = vunpack.c.0.s8 %v3998
        %v4000 = vlaneseq
        %v4001 = vshrl.u32 %v4000, 7
        %v4002 = vsub.s32 %v3999, %v4001
        %v4003 = vrot.slane %v3989, %v4002
        %v4004 = vcombine.low %v3633, %v3649
        %v4005 = vcombine.high %v3633, %v3649
        %v4007 = vunpack.c.l.s4 1983009808
        %v4008 = vunpack.c.0.s8 %v4007
        %v4009 = vlaneseq
        %v4010 = vshrl.u32 %v4009, 7
        %v4011 = vsub.s32 %v4008, %v4010
        %v4012 = vrot.slane %v4004, %v4011
        %v4014 = vunpack.c.l.s4 1983009808
        %v4015 = vunpack.c.0.s8 %v4014
        %v4016 = vlaneseq
        %v4017 = vshrl.u32 %v4016, 7
        %v4018 = vsub.s32 %v4015, %v4017
        %v4019 = vrot.slane %v4005, %v4018
        %v4020 = vcombine.low %v3964, %v3980
        %v4021 = vcombine.high %v3964, %v3980
        %v4023 = vunpack.c.l.s4 1934713408
        %v4024 = vunpack.c.0.s8 %v4023
        %v4025 = vlaneseq
        %v4026 = vshrl.u32 %v4025, 7
        %v4027 = vsub.s32 %v4024, %v4026
        %v4028 = vrot.slane %v4020, %v4027
        %v4030 = vunpack.c.l.s4 1934713408
        %v4031 = vunpack.c.0.s8 %v4030
        %v4032 = vlaneseq
        %v4033 = vshrl.u32 %v4032, 7
        %v4034 = vsub.s32 %v4031, %v4033
        %v4035 = vrot.slane %v4021, %v4034
        %v4036 = vcombine.low %v3971, %v3987
        %v4037 = vcombine.high %v3971, %v3987
        %v4039 = vunpack.c.l.s4 1934713408
        %v4040 = vunpack.c.0.s8 %v4039
        %v4041 = vlaneseq
        %v4042 = vshrl.u32 %v4041, 7
        %v4043 = vsub.s32 %v4040, %v4042
        %v4044 = vrot.slane %v4036, %v4043
        %v4046 = vunpack.c.l.s4 1934713408
        %v4047 = vunpack.c.0.s8 %v4046
        %v4048 = vlaneseq
        %v4049 = vshrl.u32 %v4048, 7
        %v4050 = vsub.s32 %v4047, %v4049
        %v4051 = vrot.slane %v4037, %v4050
        %v4052 = vcombine.low %v3996, %v4012
        %v4053 = vcombine.high %v3996, %v4012
        %v4055 = vunpack.c.l.s4 1934713408
        %v4056 = vunpack.c.0.s8 %v4055
        %v4057 = vlaneseq
        %v4058 = vshrl.u32 %v4057, 7
        %v4059 = vsub.s32 %v4056, %v4058
        %v4060 = vrot.slane %v4052, %v4059
        %v4062 = vunpack.c.l.s4 1934713408
        %v4063 = vunpack.c.0.s8 %v4062
        %v4064 = vlaneseq
        %v4065 = vshrl.u32 %v4064, 7
        %v4066 = vsub.s32 %v4063, %v4065
        %v4067 = vrot.slane %v4053, %v4066
        %v4068 = vcombine.low %v4003, %v4019
        %v4069 = vcombine.high %v4003, %v4019
        %v4071 = vunpack.c.l.s4 1934713408
        %v4072 = vunpack.c.0.s8 %v4071
        %v4073 = vlaneseq
        %v4074 = vshrl.u32 %v4073, 7
        %v4075 = vsub.s32 %v4072, %v4074
        %v4076 = vrot.slane %v4068, %v4075
        %v4078 = vunpack.c.l.s4 1934713408
        %v4079 = vunpack.c.0.s8 %v4078
        %v4080 = vlaneseq
        %v4081 = vshrl.u32 %v4080, 7
        %v4082 = vsub.s32 %v4079, %v4081
        %v4083 = vrot.slane %v4069, %v4082
        %v4084 = vcombine.low %v4028, %v4060
        %v4085 = vcombine.high %v4028, %v4060
        %v4086 = vcombine.low %v4035, %v4067
        %v4087 = vcombine.high %v4035, %v4067
        %v4088 = vcombine.low %v4044, %v4076
        %v4089 = vcombine.high %v4044, %v4076
        %v4090 = vcombine.low %v4051, %v4083
        %v4091 = vcombine.high %v4051, %v4083
        %v4092 = vcombine.low %v3595, %v3611
        %v4093 = vcombine.high %v3595, %v3611
        %v4095 = vunpack.c.l.s4 1983009808
        %v4096 = vunpack.c.0.s8 %v4095
        %v4097 = vlaneseq
        %v4098 = vshrl.u32 %v4097, 7
        %v4099 = vsub.s32 %v4096, %v4098
        %v4100 = vrot.slane %v4092, %v4099
        %v4102 = vunpack.c.l.s4 1983009808
        %v4103 = vunpack.c.0.s8 %v4102
        %v4104 = vlaneseq
        %v4105 = vshrl.u32 %v4104, 7
        %v4106 = vsub.s32 %v4103, %v4105
        %v4107 = vrot.slane %v4093, %v4106
        %v4108 = vcombine.low %v3603, %v3619
        %v4109 = vcombine.high %v3603, %v3619
        %v4111 = vunpack.c.l.s4 1983009808
        %v4112 = vunpack.c.0.s8 %v4111
        %v4113 = vlaneseq
        %v4114 = vshrl.u32 %v4113, 7
        %v4115 = vsub.s32 %v4112, %v4114
        %v4116 = vrot.slane %v4108, %v4115
        %v4118 = vunpack.c.l.s4 1983009808
        %v4119 = vunpack.c.0.s8 %v4118
        %v4120 = vlaneseq
        %v4121 = vshrl.u32 %v4120, 7
        %v4122 = vsub.s32 %v4119, %v4121
        %v4123 = vrot.slane %v4109, %v4122
        %v4124 = vcombine.low %v3627, %v3643
        %v4125 = vcombine.high %v3627, %v3643
        %v4127 = vunpack.c.l.s4 1983009808
        %v4128 = vunpack.c.0.s8 %v4127
        %v4129 = vlaneseq
        %v4130 = vshrl.u32 %v4129, 7
        %v4131 = vsub.s32 %v4128, %v4130
        %v4132 = vrot.slane %v4124, %v4131
        %v4134 = vunpack.c.l.s4 1983009808
        %v4135 = vunpack.c.0.s8 %v4134
        %v4136 = vlaneseq
        %v4137 = vshrl.u32 %v4136, 7
        %v4138 = vsub.s32 %v4135, %v4137
        %v4139 = vrot.slane %v4125, %v4138
        %v4140 = vcombine.low %v3635, %v3651
        %v4141 = vcombine.high %v3635, %v3651
        %v4143 = vunpack.c.l.s4 1983009808
        %v4144 = vunpack.c.0.s8 %v4143
        %v4145 = vlaneseq
        %v4146 = vshrl.u32 %v4145, 7
        %v4147 = vsub.s32 %v4144, %v4146
        %v4148 = vrot.slane %v4140, %v4147
        %v4150 = vunpack.c.l.s4 1983009808
        %v4151 = vunpack.c.0.s8 %v4150
        %v4152 = vlaneseq
        %v4153 = vshrl.u32 %v4152, 7
        %v4154 = vsub.s32 %v4151, %v4153
        %v4155 = vrot.slane %v4141, %v4154
        %v4156 = vcombine.low %v4100, %v4116
        %v4157 = vcombine.high %v4100, %v4116
        %v4159 = vunpack.c.l.s4 1934713408
        %v4160 = vunpack.c.0.s8 %v4159
        %v4161 = vlaneseq
        %v4162 = vshrl.u32 %v4161, 7
        %v4163 = vsub.s32 %v4160, %v4162
        %v4164 = vrot.slane %v4156, %v4163
        %v4166 = vunpack.c.l.s4 1934713408
        %v4167 = vunpack.c.0.s8 %v4166
        %v4168 = vlaneseq
        %v4169 = vshrl.u32 %v4168, 7
        %v4170 = vsub.s32 %v4167, %v4169
        %v4171 = vrot.slane %v4157, %v4170
        %v4172 = vcombine.low %v4107, %v4123
        %v4173 = vcombine.high %v4107, %v4123
        %v4175 = vunpack.c.l.s4 1934713408
        %v4176 = vunpack.c.0.s8 %v4175
        %v4177 = vlaneseq
        %v4178 = vshrl.u32 %v4177, 7
        %v4179 = vsub.s32 %v4176, %v4178
        %v4180 = vrot.slane %v4172, %v4179
        %v4182 = vunpack.c.l.s4 1934713408
        %v4183 = vunpack.c.0.s8 %v4182
        %v4184 = vlaneseq
        %v4185 = vshrl.u32 %v4184, 7
        %v4186 = vsub.s32 %v4183, %v4185
        %v4187 = vrot.slane %v4173, %v4186
        %v4188 = vcombine.low %v4132, %v4148
        %v4189 = vcombine.high %v4132, %v4148
        %v4191 = vunpack.c.l.s4 1934713408
        %v4192 = vunpack.c.0.s8 %v4191
        %v4193 = vlaneseq
        %v4194 = vshrl.u32 %v4193, 7
        %v4195 = vsub.s32 %v4192, %v4194
        %v4196 = vrot.slane %v4188, %v4195
        %v4198 = vunpack.c.l.s4 1934713408
        %v4199 = vunpack.c.0.s8 %v4198
        %v4200 = vlaneseq
        %v4201 = vshrl.u32 %v4200, 7
        %v4202 = vsub.s32 %v4199, %v4201
        %v4203 = vrot.slane %v4189, %v4202
        %v4204 = vcombine.low %v4139, %v4155
        %v4205 = vcombine.high %v4139, %v4155
        %v4207 = vunpack.c.l.s4 1934713408
        %v4208 = vunpack.c.0.s8 %v4207
        %v4209 = vlaneseq
        %v4210 = vshrl.u32 %v4209, 7
        %v4211 = vsub.s32 %v4208, %v4210
        %v4212 = vrot.slane %v4204, %v4211
        %v4214 = vunpack.c.l.s4 1934713408
        %v4215 = vunpack.c.0.s8 %v4214
        %v4216 = vlaneseq
        %v4217 = vshrl.u32 %v4216, 7
        %v4218 = vsub.s32 %v4215, %v4217
        %v4219 = vrot.slane %v4205, %v4218
        %v4220 = vcombine.low %v4164, %v4196
        %v4221 = vcombine.high %v4164, %v4196
        %v4222 = vcombine.low %v4171, %v4203
        %v4223 = vcombine.high %v4171, %v4203
        %v4224 = vcombine.low %v4180, %v4212
        %v4225 = vcombine.high %v4180, %v4212
        %v4226 = vcombine.low %v4187, %v4219
        %v4227 = vcombine.high %v4187, %v4219
        %4229 = vrot.lane.b32.xlu0 %v3813, 32
        %v4230 = vpop.permute.xlu0 %4229
        %4233 = vrot.lane.b32.xlu0 %v3814, 64
        %v4234 = vpop.permute.xlu0 %4233
        %4237 = vrot.lane.b32.xlu0 %v3815, 96
        %v4238 = vpop.permute.xlu0 %4237
        %4241 = vrot.lane.b32.xlu0 %v3817, 32
        %v4242 = vpop.permute.xlu0 %4241
        %4245 = vrot.lane.b32.xlu0 %v3818, 64
        %v4246 = vpop.permute.xlu0 %4245
        %4249 = vrot.lane.b32.xlu0 %v3819, 96
        %v4250 = vpop.permute.xlu0 %4249
        %4253 = vrot.lane.b32.xlu0 %v3949, 32
        %v4254 = vpop.permute.xlu0 %4253
        %4257 = vrot.lane.b32.xlu0 %v3950, 64
        %v4258 = vpop.permute.xlu0 %4257
        %4261 = vrot.lane.b32.xlu0 %v3951, 96
        %v4262 = vpop.permute.xlu0 %4261
        %4265 = vrot.lane.b32.xlu0 %v3953, 32
        %v4266 = vpop.permute.xlu0 %4265
        %4269 = vrot.lane.b32.xlu0 %v3954, 64
        %v4270 = vpop.permute.xlu0 %4269
        %4273 = vrot.lane.b32.xlu0 %v3955, 96
        %v4274 = vpop.permute.xlu0 %4273
        %4277 = vrot.lane.b32.xlu0 %v4085, 32
        %v4278 = vpop.permute.xlu0 %4277
        %4281 = vrot.lane.b32.xlu0 %v4086, 64
        %v4282 = vpop.permute.xlu0 %4281
        %4285 = vrot.lane.b32.xlu0 %v4087, 96
        %v4286 = vpop.permute.xlu0 %4285
        %4289 = vrot.lane.b32.xlu0 %v4089, 32
        %v4290 = vpop.permute.xlu0 %4289
        %4293 = vrot.lane.b32.xlu0 %v4090, 64
        %v4294 = vpop.permute.xlu0 %4293
        %4297 = vrot.lane.b32.xlu0 %v4091, 96
        %v4298 = vpop.permute.xlu0 %4297
        %4301 = vrot.lane.b32.xlu0 %v4221, 32
        %v4302 = vpop.permute.xlu0 %4301
        %4305 = vrot.lane.b32.xlu0 %v4222, 64
        %v4306 = vpop.permute.xlu0 %4305
        %4309 = vrot.lane.b32.xlu0 %v4223, 96
        %v4310 = vpop.permute.xlu0 %4309
        %4313 = vrot.lane.b32.xlu0 %v4225, 32
        %v4314 = vpop.permute.xlu0 %4313
        %4317 = vrot.lane.b32.xlu0 %v4226, 64
        %v4318 = vpop.permute.xlu0 %4317
        %4321 = vrot.lane.b32.xlu0 %v4227, 96
        %v4322 = vpop.permute.xlu0 %4321
        %v4324 = vsel %vm2127, %v3812, %v4230
        %v4325 = vsel %vm2129, %v4324, %v4234
        %v4326 = vsel %vm2131, %v4325, %v4238
        %v4327 = vsel %vm2127, %v3816, %v4242
        %v4328 = vsel %vm2129, %v4327, %v4246
        %v4329 = vsel %vm2131, %v4328, %v4250
        %v4330 = vsel %vm2127, %v3948, %v4254
        %v4331 = vsel %vm2129, %v4330, %v4258
        %v4332 = vsel %vm2131, %v4331, %v4262
        %v4333 = vsel %vm2127, %v3952, %v4266
        %v4334 = vsel %vm2129, %v4333, %v4270
        %v4335 = vsel %vm2131, %v4334, %v4274
        %v4336 = vsel %vm2127, %v4084, %v4278
        %v4337 = vsel %vm2129, %v4336, %v4282
        %v4338 = vsel %vm2131, %v4337, %v4286
        %v4339 = vsel %vm2127, %v4088, %v4290
        %v4340 = vsel %vm2129, %v4339, %v4294
        %v4341 = vsel %vm2131, %v4340, %v4298
        %v4342 = vsel %vm2127, %v4220, %v4302
        %v4343 = vsel %vm2129, %v4342, %v4306
        %v4344 = vsel %vm2131, %v4343, %v4310
        %v4345 = vsel %vm2127, %v4224, %v4314
        %v4346 = vsel %vm2129, %v4345, %v4318
        %v4347 = vsel %vm2131, %v4346, %v4322
        %s4348 = scalar_lea.vmem %s3, 8
        %v4349 = vld [vmem:[%s4348] sm:$0xf]
        %v4351 = vsel %vm2949, %v4349, 0
        %4353 = vmatprep.subr.mxu0 %v4329
        %4354 = vmatpush1.msra.mxu0 %v4326
        %4355 = vmatprep.subr.mxu0 0.0
        %4356 = vmatpush1.msra.mxu0 0.0
        %4357 = vmatprep.subr.mxu0 0.0
        %4358 = vmatpush1.msra.mxu0 0.0
        %4359 = vmatprep.subr.mxu0 0.0
        %4360 = vmatpush1.msra.mxu0 0.0
        %4361 = vmatprep.subr.mxu0 0.0
        %4362 = vmatpush1.msra.mxu0 0.0
        %4363 = vmatprep.subr.mxu0 0.0
        %4364 = vmatpush1.msra.mxu0 0.0
        %4365 = vmatprep.subr.mxu0 0.0
        %4366 = vmatpush1.msra.mxu0 0.0
        %4367 = vmatprep.subr.mxu0 0.0
        %4368 = vmatpush1.msra.mxu0 0.0
        %4369 = vmatprep.subr.mxu0 0.0
        %4370 = vmatpush1.msra.mxu0 0.0
        %4371 = vmatprep.subr.mxu0 0.0
        %4372 = vmatpush1.msra.mxu0 0.0
        %4373 = vmatprep.subr.mxu0 0.0
        %4374 = vmatpush1.msra.mxu0 0.0
        %4375 = vmatprep.subr.mxu0 0.0
        %4376 = vmatpush1.msra.mxu0 0.0
        %4377 = vmatprep.subr.mxu0 0.0
        %4378 = vmatpush1.msra.mxu0 0.0
        %4379 = vmatprep.subr.mxu0 0.0
        %4380 = vmatpush1.msra.mxu0 0.0
        %4381 = vmatprep.subr.mxu0 0.0
        %4382 = vmatpush1.msra.mxu0 0.0
        %4383 = vmatprep.subr.mxu0 0.0
        %4384 = vmatpush1.msra.mxu0 0.0
        %4385 = vmatprep.subr.mxu0 0.0
        %4386 = vmatpush1.msra.mxu0 0.0
        %4387 = vmatprep.subr.mxu0 0.0
        %4388 = vmatpush1.msra.mxu0 0.0
        %4389 = vmatprep.subr.mxu0 0.0
        %4390 = vmatpush1.msra.mxu0 0.0
        %4391 = vmatprep.subr.mxu0 0.0
        %4392 = vmatpush1.msra.mxu0 0.0
        %4393 = vmatprep.subr.mxu0 0.0
        %4394 = vmatpush1.msra.mxu0 0.0
        %4395 = vmatprep.subr.mxu0 0.0
        %4396 = vmatpush1.msra.mxu0 0.0
        %4397 = vmatprep.subr.mxu0 0.0
        %4398 = vmatpush1.msra.mxu0 0.0
        %4399 = vmatprep.subr.mxu0 0.0
        %4400 = vmatpush1.msra.mxu0 0.0
        %4401 = vmatprep.subr.mxu0 0.0
        %4402 = vmatpush1.msra.mxu0 0.0
        %4403 = vmatprep.subr.mxu0 0.0
        %4404 = vmatpush1.msra.mxu0 0.0
        %4405 = vmatprep.subr.mxu0 0.0
        %4406 = vmatpush1.msra.mxu0 0.0
        %4407 = vmatprep.subr.mxu0 0.0
        %4408 = vmatpush1.msra.mxu0 0.0
        %4409 = vmatprep.subr.mxu0 0.0
        %4410 = vmatpush1.msra.mxu0 0.0
        %4411 = vmatprep.subr.mxu0 0.0
        %4412 = vmatpush1.msra.mxu0 0.0
        %4413 = vmatprep.subr.mxu0 0.0
        %4414 = vmatpush1.msra.mxu0 0.0
        %4415 = vmatprep.subr.mxu0 0.0
        %4416 = vmatpush1.msra.mxu0 0.0
        %4417 = vmatprep.mubr.f32.mxu0 0.0
        %4418 = vmatmul.mubr.f32.gmra.mrb[0].mxu0 %v4351
        %v4419 = vpop.f32.mrb[0].mxu0
        %v4420 = vadd.f32 0.0, %v4419
        %v4421 = vpop.f32.mrb[0].mxu0
        %v4422 = vadd.f32 0.0, %v4421
        %4423 = vdwg.mxu0
        %4424 = vmatprep.subr.mxu0 %v4335
        %4425 = vmatpush1.msra.mxu0 %v4332
        %4426 = vmatprep.subr.mxu0 0.0
        %4427 = vmatpush1.msra.mxu0 0.0
        %4428 = vmatprep.subr.mxu0 0.0
        %4429 = vmatpush1.msra.mxu0 0.0
        %4430 = vmatprep.subr.mxu0 0.0
        %4431 = vmatpush1.msra.mxu0 0.0
        %4432 = vmatprep.subr.mxu0 0.0
        %4433 = vmatpush1.msra.mxu0 0.0
        %4434 = vmatprep.subr.mxu0 0.0
        %4435 = vmatpush1.msra.mxu0 0.0
        %4436 = vmatprep.subr.mxu0 0.0
        %4437 = vmatpush1.msra.mxu0 0.0
        %4438 = vmatprep.subr.mxu0 0.0
        %4439 = vmatpush1.msra.mxu0 0.0
        %4440 = vmatprep.subr.mxu0 0.0
        %4441 = vmatpush1.msra.mxu0 0.0
        %4442 = vmatprep.subr.mxu0 0.0
        %4443 = vmatpush1.msra.mxu0 0.0
        %4444 = vmatprep.subr.mxu0 0.0
        %4445 = vmatpush1.msra.mxu0 0.0
        %4446 = vmatprep.subr.mxu0 0.0
        %4447 = vmatpush1.msra.mxu0 0.0
        %4448 = vmatprep.subr.mxu0 0.0
        %4449 = vmatpush1.msra.mxu0 0.0
        %4450 = vmatprep.subr.mxu0 0.0
        %4451 = vmatpush1.msra.mxu0 0.0
        %4452 = vmatprep.subr.mxu0 0.0
        %4453 = vmatpush1.msra.mxu0 0.0
        %4454 = vmatprep.subr.mxu0 0.0
        %4455 = vmatpush1.msra.mxu0 0.0
        %4456 = vmatprep.subr.mxu0 0.0
        %4457 = vmatpush1.msra.mxu0 0.0
        %4458 = vmatprep.subr.mxu0 0.0
        %4459 = vmatpush1.msra.mxu0 0.0
        %4460 = vmatprep.subr.mxu0 0.0
        %4461 = vmatpush1.msra.mxu0 0.0
        %4462 = vmatprep.subr.mxu0 0.0
        %4463 = vmatpush1.msra.mxu0 0.0
        %4464 = vmatprep.subr.mxu0 0.0
        %4465 = vmatpush1.msra.mxu0 0.0
        %4466 = vmatprep.subr.mxu0 0.0
        %4467 = vmatpush1.msra.mxu0 0.0
        %4468 = vmatprep.subr.mxu0 0.0
        %4469 = vmatpush1.msra.mxu0 0.0
        %4470 = vmatprep.subr.mxu0 0.0
        %4471 = vmatpush1.msra.mxu0 0.0
        %4472 = vmatprep.subr.mxu0 0.0
        %4473 = vmatpush1.msra.mxu0 0.0
        %4474 = vmatprep.subr.mxu0 0.0
        %4475 = vmatpush1.msra.mxu0 0.0
        %4476 = vmatprep.subr.mxu0 0.0
        %4477 = vmatpush1.msra.mxu0 0.0
        %4478 = vmatprep.subr.mxu0 0.0
        %4479 = vmatpush1.msra.mxu0 0.0
        %4480 = vmatprep.subr.mxu0 0.0
        %4481 = vmatpush1.msra.mxu0 0.0
        %4482 = vmatprep.subr.mxu0 0.0
        %4483 = vmatpush1.msra.mxu0 0.0
        %4484 = vmatprep.subr.mxu0 0.0
        %4485 = vmatpush1.msra.mxu0 0.0
        %4486 = vmatprep.subr.mxu0 0.0
        %4487 = vmatpush1.msra.mxu0 0.0
        %4488 = vmatprep.mubr.f32.mxu0 0.0
        %4489 = vmatmul.mubr.f32.gmra.mrb[0].mxu0 %v4351
        %v4490 = vpop.f32.mrb[0].mxu0
        %v4491 = vadd.f32 0.0, %v4490
        %v4492 = vpop.f32.mrb[0].mxu0
        %v4493 = vadd.f32 0.0, %v4492
        %4494 = vdwg.mxu0
        %4495 = vmatprep.subr.mxu0 %v4341
        %4496 = vmatpush1.msra.mxu0 %v4338
        %4497 = vmatprep.subr.mxu0 0.0
        %4498 = vmatpush1.msra.mxu0 0.0
        %4499 = vmatprep.subr.mxu0 0.0
        %4500 = vmatpush1.msra.mxu0 0.0
        %4501 = vmatprep.subr.mxu0 0.0
        %4502 = vmatpush1.msra.mxu0 0.0
        %4503 = vmatprep.subr.mxu0 0.0
        %4504 = vmatpush1.msra.mxu0 0.0
        %4505 = vmatprep.subr.mxu0 0.0
        %4506 = vmatpush1.msra.mxu0 0.0
        %4507 = vmatprep.subr.mxu0 0.0
        %4508 = vmatpush1.msra.mxu0 0.0
        %4509 = vmatprep.subr.mxu0 0.0
        %4510 = vmatpush1.msra.mxu0 0.0
        %4511 = vmatprep.subr.mxu0 0.0
        %4512 = vmatpush1.msra.mxu0 0.0
        %4513 = vmatprep.subr.mxu0 0.0
        %4514 = vmatpush1.msra.mxu0 0.0
        %4515 = vmatprep.subr.mxu0 0.0
        %4516 = vmatpush1.msra.mxu0 0.0
        %4517 = vmatprep.subr.mxu0 0.0
        %4518 = vmatpush1.msra.mxu0 0.0
        %4519 = vmatprep.subr.mxu0 0.0
        %4520 = vmatpush1.msra.mxu0 0.0
        %4521 = vmatprep.subr.mxu0 0.0
        %4522 = vmatpush1.msra.mxu0 0.0
        %4523 = vmatprep.subr.mxu0 0.0
        %4524 = vmatpush1.msra.mxu0 0.0
        %4525 = vmatprep.subr.mxu0 0.0
        %4526 = vmatpush1.msra.mxu0 0.0
        %4527 = vmatprep.subr.mxu0 0.0
        %4528 = vmatpush1.msra.mxu0 0.0
        %4529 = vmatprep.subr.mxu0 0.0
        %4530 = vmatpush1.msra.mxu0 0.0
        %4531 = vmatprep.subr.mxu0 0.0
        %4532 = vmatpush1.msra.mxu0 0.0
        %4533 = vmatprep.subr.mxu0 0.0
        %4534 = vmatpush1.msra.mxu0 0.0
        %4535 = vmatprep.subr.mxu0 0.0
        %4536 = vmatpush1.msra.mxu0 0.0
        %4537 = vmatprep.subr.mxu0 0.0
        %4538 = vmatpush1.msra.mxu0 0.0
        %4539 = vmatprep.subr.mxu0 0.0
        %4540 = vmatpush1.msra.mxu0 0.0
        %4541 = vmatprep.subr.mxu0 0.0
        %4542 = vmatpush1.msra.mxu0 0.0
        %4543 = vmatprep.subr.mxu0 0.0
        %4544 = vmatpush1.msra.mxu0 0.0
        %4545 = vmatprep.subr.mxu0 0.0
        %4546 = vmatpush1.msra.mxu0 0.0
        %4547 = vmatprep.subr.mxu0 0.0
        %4548 = vmatpush1.msra.mxu0 0.0
        %4549 = vmatprep.subr.mxu0 0.0
        %4550 = vmatpush1.msra.mxu0 0.0
        %4551 = vmatprep.subr.mxu0 0.0
        %4552 = vmatpush1.msra.mxu0 0.0
        %4553 = vmatprep.subr.mxu0 0.0
        %4554 = vmatpush1.msra.mxu0 0.0
        %4555 = vmatprep.subr.mxu0 0.0
        %4556 = vmatpush1.msra.mxu0 0.0
        %4557 = vmatprep.subr.mxu0 0.0
        %4558 = vmatpush1.msra.mxu0 0.0
        %4559 = vmatprep.mubr.f32.mxu0 0.0
        %4560 = vmatmul.mubr.f32.gmra.mrb[0].mxu0 %v4351
        %v4561 = vpop.f32.mrb[0].mxu0
        %v4562 = vadd.f32 0.0, %v4561
        %v4563 = vpop.f32.mrb[0].mxu0
        %v4564 = vadd.f32 0.0, %v4563
        %4565 = vdwg.mxu0
        %4566 = vmatprep.subr.mxu0 %v4347
        %4567 = vmatpush1.msra.mxu0 %v4344
        %4568 = vmatprep.subr.mxu0 0.0
        %4569 = vmatpush1.msra.mxu0 0.0
        %4570 = vmatprep.subr.mxu0 0.0
        %4571 = vmatpush1.msra.mxu0 0.0
        %4572 = vmatprep.subr.mxu0 0.0
        %4573 = vmatpush1.msra.mxu0 0.0
        %4574 = vmatprep.subr.mxu0 0.0
        %4575 = vmatpush1.msra.mxu0 0.0
        %4576 = vmatprep.subr.mxu0 0.0
        %4577 = vmatpush1.msra.mxu0 0.0
        %4578 = vmatprep.subr.mxu0 0.0
        %4579 = vmatpush1.msra.mxu0 0.0
        %4580 = vmatprep.subr.mxu0 0.0
        %4581 = vmatpush1.msra.mxu0 0.0
        %4582 = vmatprep.subr.mxu0 0.0
        %4583 = vmatpush1.msra.mxu0 0.0
        %4584 = vmatprep.subr.mxu0 0.0
        %4585 = vmatpush1.msra.mxu0 0.0
        %4586 = vmatprep.subr.mxu0 0.0
        %4587 = vmatpush1.msra.mxu0 0.0
        %4588 = vmatprep.subr.mxu0 0.0
        %4589 = vmatpush1.msra.mxu0 0.0
        %4590 = vmatprep.subr.mxu0 0.0
        %4591 = vmatpush1.msra.mxu0 0.0
        %4592 = vmatprep.subr.mxu0 0.0
        %4593 = vmatpush1.msra.mxu0 0.0
        %4594 = vmatprep.subr.mxu0 0.0
        %4595 = vmatpush1.msra.mxu0 0.0
        %4596 = vmatprep.subr.mxu0 0.0
        %4597 = vmatpush1.msra.mxu0 0.0
        %4598 = vmatprep.subr.mxu0 0.0
        %4599 = vmatpush1.msra.mxu0 0.0
        %4600 = vmatprep.subr.mxu0 0.0
        %4601 = vmatpush1.msra.mxu0 0.0
        %4602 = vmatprep.subr.mxu0 0.0
        %4603 = vmatpush1.msra.mxu0 0.0
        %4604 = vmatprep.subr.mxu0 0.0
        %4605 = vmatpush1.msra.mxu0 0.0
        %4606 = vmatprep.subr.mxu0 0.0
        %4607 = vmatpush1.msra.mxu0 0.0
        %4608 = vmatprep.subr.mxu0 0.0
        %4609 = vmatpush1.msra.mxu0 0.0
        %4610 = vmatprep.subr.mxu0 0.0
        %4611 = vmatpush1.msra.mxu0 0.0
        %4612 = vmatprep.subr.mxu0 0.0
        %4613 = vmatpush1.msra.mxu0 0.0
        %4614 = vmatprep.subr.mxu0 0.0
        %4615 = vmatpush1.msra.mxu0 0.0
        %4616 = vmatprep.subr.mxu0 0.0
        %4617 = vmatpush1.msra.mxu0 0.0
        %4618 = vmatprep.subr.mxu0 0.0
        %4619 = vmatpush1.msra.mxu0 0.0
        %4620 = vmatprep.subr.mxu0 0.0
        %4621 = vmatpush1.msra.mxu0 0.0
        %4622 = vmatprep.subr.mxu0 0.0
        %4623 = vmatpush1.msra.mxu0 0.0
        %4624 = vmatprep.subr.mxu0 0.0
        %4625 = vmatpush1.msra.mxu0 0.0
        %4626 = vmatprep.subr.mxu0 0.0
        %4627 = vmatpush1.msra.mxu0 0.0
        %4628 = vmatprep.subr.mxu0 0.0
        %4629 = vmatpush1.msra.mxu0 0.0
        %4630 = vmatprep.mubr.f32.mxu0 0.0
        %4631 = vmatmul.mubr.f32.gmra.mrb[0].mxu0 %v4351
        %v4632 = vpop.f32.mrb[0].mxu0
        %v4633 = vadd.f32 0.0, %v4632
        %v4634 = vpop.f32.mrb[0].mxu0
        %v4635 = vadd.f32 0.0, %v4634
        %4636 = vdwg.mxu0
        %v4637 = vadd.f32 %v3307, %v4420
        %v4638 = vadd.f32 %v3309, %v4422
        %v4639 = vadd.f32 %v3378, %v4491
        %v4640 = vadd.f32 %v3380, %v4493
        %v4641 = vadd.f32 %v3449, %v4562
        %v4642 = vadd.f32 %v3451, %v4564
        %v4643 = vadd.f32 %v3520, %v4633
        %v4644 = vadd.f32 %v3522, %v4635
        %v4645 = vld [vmem:[#allocation2 + $0x1] sm:$0xff]
        %v4646 = vld [vmem:[#allocation2 + $0x9] sm:$0xff]
        %v4647 = vld [vmem:[#allocation2 + $0x11] sm:$0xff]
        %v4648 = vld [vmem:[#allocation2 + $0x19] sm:$0xff]
        %v4649 = vld [vmem:[#allocation2 + $0x29] sm:$0xff]
        %v4650 = vld [vmem:[#allocation2 + $0x31] sm:$0xff]
        %v4651 = vld [vmem:[#allocation2 + $0x39] sm:$0xff]
        %v4652 = vld [vmem:[#allocation2 + $0x41] sm:$0xff]
        %v4653 = vld [vmem:[#allocation2 + $0x51] sm:$0xff]
        %v4654 = vld [vmem:[#allocation2 + $0x59] sm:$0xff]
        %v4655 = vld [vmem:[#allocation2 + $0x61] sm:$0xff]
        %v4656 = vld [vmem:[#allocation2 + $0x69] sm:$0xff]
        %v4657 = vld [vmem:[#allocation2 + $0x79] sm:$0xff]
        %v4658 = vld [vmem:[#allocation2 + $0x81] sm:$0xff]
        %v4659 = vld [vmem:[#allocation2 + $0x89] sm:$0xff]
        %v4660 = vld [vmem:[#allocation2 + $0x91] sm:$0xff]
        %v4661 = vld [vmem:[#allocation2 + $0xa1] sm:$0xff]
        %v4662 = vld [vmem:[#allocation2 + $0xa9] sm:$0xff]
        %v4663 = vld [vmem:[#allocation2 + $0xb1] sm:$0xff]
        %v4664 = vld [vmem:[#allocation2 + $0xb9] sm:$0xff]
        %v4665 = vld [vmem:[#allocation2 + $0xc9] sm:$0xff]
        %v4666 = vld [vmem:[#allocation2 + $0xd1] sm:$0xff]
        %v4667 = vld [vmem:[#allocation2 + $0xd9] sm:$0xff]
        %v4668 = vld [vmem:[#allocation2 + $0xe1] sm:$0xff]
        %v4669 = vld [vmem:[#allocation2 + $0xf1] sm:$0xff]
        %v4670 = vld [vmem:[#allocation2 + $0xf9] sm:$0xff]
        %v4671 = vld [vmem:[#allocation2 + $0x101] sm:$0xff]
        %v4672 = vld [vmem:[#allocation2 + $0x109] sm:$0xff]
        %v4673 = vld [vmem:[#allocation2 + $0x119] sm:$0xff]
        %v4674 = vld [vmem:[#allocation2 + $0x121] sm:$0xff]
        %v4675 = vld [vmem:[#allocation2 + $0x129] sm:$0xff]
        %v4676 = vld [vmem:[#allocation2 + $0x131] sm:$0xff]
        %v4677 = vcombine.low %v4645, %v4653
        %v4678 = vcombine.high %v4645, %v4653
        %v4680 = vunpack.c.l.s4 1983009808
        %v4681 = vunpack.c.0.s8 %v4680
        %v4682 = vlaneseq
        %v4683 = vshrl.u32 %v4682, 7
        %v4684 = vsub.s32 %v4681, %v4683
        %v4685 = vrot.slane %v4677, %v4684
        %v4687 = vunpack.c.l.s4 1983009808
        %v4688 = vunpack.c.0.s8 %v4687
        %v4689 = vlaneseq
        %v4690 = vshrl.u32 %v4689, 7
        %v4691 = vsub.s32 %v4688, %v4690
        %v4692 = vrot.slane %v4678, %v4691
        %v4693 = vcombine.low %v4649, %v4657
        %v4694 = vcombine.high %v4649, %v4657
        %v4696 = vunpack.c.l.s4 1983009808
        %v4697 = vunpack.c.0.s8 %v4696
        %v4698 = vlaneseq
        %v4699 = vshrl.u32 %v4698, 7
        %v4700 = vsub.s32 %v4697, %v4699
        %v4701 = vrot.slane %v4693, %v4700
        %v4703 = vunpack.c.l.s4 1983009808
        %v4704 = vunpack.c.0.s8 %v4703
        %v4705 = vlaneseq
        %v4706 = vshrl.u32 %v4705, 7
        %v4707 = vsub.s32 %v4704, %v4706
        %v4708 = vrot.slane %v4694, %v4707
        %v4709 = vcombine.low %v4661, %v4669
        %v4710 = vcombine.high %v4661, %v4669
        %v4712 = vunpack.c.l.s4 1983009808
        %v4713 = vunpack.c.0.s8 %v4712
        %v4714 = vlaneseq
        %v4715 = vshrl.u32 %v4714, 7
        %v4716 = vsub.s32 %v4713, %v4715
        %v4717 = vrot.slane %v4709, %v4716
        %v4719 = vunpack.c.l.s4 1983009808
        %v4720 = vunpack.c.0.s8 %v4719
        %v4721 = vlaneseq
        %v4722 = vshrl.u32 %v4721, 7
        %v4723 = vsub.s32 %v4720, %v4722
        %v4724 = vrot.slane %v4710, %v4723
        %v4725 = vcombine.low %v4665, %v4673
        %v4726 = vcombine.high %v4665, %v4673
        %v4728 = vunpack.c.l.s4 1983009808
        %v4729 = vunpack.c.0.s8 %v4728
        %v4730 = vlaneseq
        %v4731 = vshrl.u32 %v4730, 7
        %v4732 = vsub.s32 %v4729, %v4731
        %v4733 = vrot.slane %v4725, %v4732
        %v4735 = vunpack.c.l.s4 1983009808
        %v4736 = vunpack.c.0.s8 %v4735
        %v4737 = vlaneseq
        %v4738 = vshrl.u32 %v4737, 7
        %v4739 = vsub.s32 %v4736, %v4738
        %v4740 = vrot.slane %v4726, %v4739
        %v4741 = vcombine.low %v4685, %v4701
        %v4742 = vcombine.high %v4685, %v4701
        %v4744 = vunpack.c.l.s4 1934713408
        %v4745 = vunpack.c.0.s8 %v4744
        %v4746 = vlaneseq
        %v4747 = vshrl.u32 %v4746, 7
        %v4748 = vsub.s32 %v4745, %v4747
        %v4749 = vrot.slane %v4741, %v4748
        %v4751 = vunpack.c.l.s4 1934713408
        %v4752 = vunpack.c.0.s8 %v4751
        %v4753 = vlaneseq
        %v4754 = vshrl.u32 %v4753, 7
        %v4755 = vsub.s32 %v4752, %v4754
        %v4756 = vrot.slane %v4742, %v4755
        %v4757 = vcombine.low %v4692, %v4708
        %v4758 = vcombine.high %v4692, %v4708
        %v4760 = vunpack.c.l.s4 1934713408
        %v4761 = vunpack.c.0.s8 %v4760
        %v4762 = vlaneseq
        %v4763 = vshrl.u32 %v4762, 7
        %v4764 = vsub.s32 %v4761, %v4763
        %v4765 = vrot.slane %v4757, %v4764
        %v4767 = vunpack.c.l.s4 1934713408
        %v4768 = vunpack.c.0.s8 %v4767
        %v4769 = vlaneseq
        %v4770 = vshrl.u32 %v4769, 7
        %v4771 = vsub.s32 %v4768, %v4770
        %v4772 = vrot.slane %v4758, %v4771
        %v4773 = vcombine.low %v4717, %v4733
        %v4774 = vcombine.high %v4717, %v4733
        %v4776 = vunpack.c.l.s4 1934713408
        %v4777 = vunpack.c.0.s8 %v4776
        %v4778 = vlaneseq
        %v4779 = vshrl.u32 %v4778, 7
        %v4780 = vsub.s32 %v4777, %v4779
        %v4781 = vrot.slane %v4773, %v4780
        %v4783 = vunpack.c.l.s4 1934713408
        %v4784 = vunpack.c.0.s8 %v4783
        %v4785 = vlaneseq
        %v4786 = vshrl.u32 %v4785, 7
        %v4787 = vsub.s32 %v4784, %v4786
        %v4788 = vrot.slane %v4774, %v4787
        %v4789 = vcombine.low %v4724, %v4740
        %v4790 = vcombine.high %v4724, %v4740
        %v4792 = vunpack.c.l.s4 1934713408
        %v4793 = vunpack.c.0.s8 %v4792
        %v4794 = vlaneseq
        %v4795 = vshrl.u32 %v4794, 7
        %v4796 = vsub.s32 %v4793, %v4795
        %v4797 = vrot.slane %v4789, %v4796
        %v4799 = vunpack.c.l.s4 1934713408
        %v4800 = vunpack.c.0.s8 %v4799
        %v4801 = vlaneseq
        %v4802 = vshrl.u32 %v4801, 7
        %v4803 = vsub.s32 %v4800, %v4802
        %v4804 = vrot.slane %v4790, %v4803
        %v4805 = vcombine.low %v4749, %v4781
        %v4806 = vcombine.high %v4749, %v4781
        %v4807 = vcombine.low %v4756, %v4788
        %v4808 = vcombine.high %v4756, %v4788
        %v4809 = vcombine.low %v4765, %v4797
        %v4810 = vcombine.high %v4765, %v4797
        %v4811 = vcombine.low %v4772, %v4804
        %v4812 = vcombine.high %v4772, %v4804
        %v4813 = vcombine.low %v4646, %v4654
        %v4814 = vcombine.high %v4646, %v4654
        %v4816 = vunpack.c.l.s4 1983009808
        %v4817 = vunpack.c.0.s8 %v4816
        %v4818 = vlaneseq
        %v4819 = vshrl.u32 %v4818, 7
        %v4820 = vsub.s32 %v4817, %v4819
        %v4821 = vrot.slane %v4813, %v4820
        %v4823 = vunpack.c.l.s4 1983009808
        %v4824 = vunpack.c.0.s8 %v4823
        %v4825 = vlaneseq
        %v4826 = vshrl.u32 %v4825, 7
        %v4827 = vsub.s32 %v4824, %v4826
        %v4828 = vrot.slane %v4814, %v4827
        %v4829 = vcombine.low %v4650, %v4658
        %v4830 = vcombine.high %v4650, %v4658
        %v4832 = vunpack.c.l.s4 1983009808
        %v4833 = vunpack.c.0.s8 %v4832
        %v4834 = vlaneseq
        %v4835 = vshrl.u32 %v4834, 7
        %v4836 = vsub.s32 %v4833, %v4835
        %v4837 = vrot.slane %v4829, %v4836
        %v4839 = vunpack.c.l.s4 1983009808
        %v4840 = vunpack.c.0.s8 %v4839
        %v4841 = vlaneseq
        %v4842 = vshrl.u32 %v4841, 7
        %v4843 = vsub.s32 %v4840, %v4842
        %v4844 = vrot.slane %v4830, %v4843
        %v4845 = vcombine.low %v4662, %v4670
        %v4846 = vcombine.high %v4662, %v4670
        %v4848 = vunpack.c.l.s4 1983009808
        %v4849 = vunpack.c.0.s8 %v4848
        %v4850 = vlaneseq
        %v4851 = vshrl.u32 %v4850, 7
        %v4852 = vsub.s32 %v4849, %v4851
        %v4853 = vrot.slane %v4845, %v4852
        %v4855 = vunpack.c.l.s4 1983009808
        %v4856 = vunpack.c.0.s8 %v4855
        %v4857 = vlaneseq
        %v4858 = vshrl.u32 %v4857, 7
        %v4859 = vsub.s32 %v4856, %v4858
        %v4860 = vrot.slane %v4846, %v4859
        %v4861 = vcombine.low %v4666, %v4674
        %v4862 = vcombine.high %v4666, %v4674
        %v4864 = vunpack.c.l.s4 1983009808
        %v4865 = vunpack.c.0.s8 %v4864
        %v4866 = vlaneseq
        %v4867 = vshrl.u32 %v4866, 7
        %v4868 = vsub.s32 %v4865, %v4867
        %v4869 = vrot.slane %v4861, %v4868
        %v4871 = vunpack.c.l.s4 1983009808
        %v4872 = vunpack.c.0.s8 %v4871
        %v4873 = vlaneseq
        %v4874 = vshrl.u32 %v4873, 7
        %v4875 = vsub.s32 %v4872, %v4874
        %v4876 = vrot.slane %v4862, %v4875
        %v4877 = vcombine.low %v4821, %v4837
        %v4878 = vcombine.high %v4821, %v4837
        %v4880 = vunpack.c.l.s4 1934713408
        %v4881 = vunpack.c.0.s8 %v4880
        %v4882 = vlaneseq
        %v4883 = vshrl.u32 %v4882, 7
        %v4884 = vsub.s32 %v4881, %v4883
        %v4885 = vrot.slane %v4877, %v4884
        %v4887 = vunpack.c.l.s4 1934713408
        %v4888 = vunpack.c.0.s8 %v4887
        %v4889 = vlaneseq
        %v4890 = vshrl.u32 %v4889, 7
        %v4891 = vsub.s32 %v4888, %v4890
        %v4892 = vrot.slane %v4878, %v4891
        %v4893 = vcombine.low %v4828, %v4844
        %v4894 = vcombine.high %v4828, %v4844
        %v4896 = vunpack.c.l.s4 1934713408
        %v4897 = vunpack.c.0.s8 %v4896
        %v4898 = vlaneseq
        %v4899 = vshrl.u32 %v4898, 7
        %v4900 = vsub.s32 %v4897, %v4899
        %v4901 = vrot.slane %v4893, %v4900
        %v4903 = vunpack.c.l.s4 1934713408
        %v4904 = vunpack.c.0.s8 %v4903
        %v4905 = vlaneseq
        %v4906 = vshrl.u32 %v4905, 7
        %v4907 = vsub.s32 %v4904, %v4906
        %v4908 = vrot.slane %v4894, %v4907
        %v4909 = vcombine.low %v4853, %v4869
        %v4910 = vcombine.high %v4853, %v4869
        %v4912 = vunpack.c.l.s4 1934713408
        %v4913 = vunpack.c.0.s8 %v4912
        %v4914 = vlaneseq
        %v4915 = vshrl.u32 %v4914, 7
        %v4916 = vsub.s32 %v4913, %v4915
        %v4917 = vrot.slane %v4909, %v4916
        %v4919 = vunpack.c.l.s4 1934713408
        %v4920 = vunpack.c.0.s8 %v4919
        %v4921 = vlaneseq
        %v4922 = vshrl.u32 %v4921, 7
        %v4923 = vsub.s32 %v4920, %v4922
        %v4924 = vrot.slane %v4910, %v4923
        %v4925 = vcombine.low %v4860, %v4876
        %v4926 = vcombine.high %v4860, %v4876
        %v4928 = vunpack.c.l.s4 1934713408
        %v4929 = vunpack.c.0.s8 %v4928
        %v4930 = vlaneseq
        %v4931 = vshrl.u32 %v4930, 7
        %v4932 = vsub.s32 %v4929, %v4931
        %v4933 = vrot.slane %v4925, %v4932
        %v4935 = vunpack.c.l.s4 1934713408
        %v4936 = vunpack.c.0.s8 %v4935
        %v4937 = vlaneseq
        %v4938 = vshrl.u32 %v4937, 7
        %v4939 = vsub.s32 %v4936, %v4938
        %v4940 = vrot.slane %v4926, %v4939
        %v4941 = vcombine.low %v4885, %v4917
        %v4942 = vcombine.high %v4885, %v4917
        %v4943 = vcombine.low %v4892, %v4924
        %v4944 = vcombine.high %v4892, %v4924
        %v4945 = vcombine.low %v4901, %v4933
        %v4946 = vcombine.high %v4901, %v4933
        %v4947 = vcombine.low %v4908, %v4940
        %v4948 = vcombine.high %v4908, %v4940
        %v4949 = vcombine.low %v4647, %v4655
        %v4950 = vcombine.high %v4647, %v4655
        %v4952 = vunpack.c.l.s4 1983009808
        %v4953 = vunpack.c.0.s8 %v4952
        %v4954 = vlaneseq
        %v4955 = vshrl.u32 %v4954, 7
        %v4956 = vsub.s32 %v4953, %v4955
        %v4957 = vrot.slane %v4949, %v4956
        %v4959 = vunpack.c.l.s4 1983009808
        %v4960 = vunpack.c.0.s8 %v4959
        %v4961 = vlaneseq
        %v4962 = vshrl.u32 %v4961, 7
        %v4963 = vsub.s32 %v4960, %v4962
        %v4964 = vrot.slane %v4950, %v4963
        %v4965 = vcombine.low %v4651, %v4659
        %v4966 = vcombine.high %v4651, %v4659
        %v4968 = vunpack.c.l.s4 1983009808
        %v4969 = vunpack.c.0.s8 %v4968
        %v4970 = vlaneseq
        %v4971 = vshrl.u32 %v4970, 7
        %v4972 = vsub.s32 %v4969, %v4971
        %v4973 = vrot.slane %v4965, %v4972
        %v4975 = vunpack.c.l.s4 1983009808
        %v4976 = vunpack.c.0.s8 %v4975
        %v4977 = vlaneseq
        %v4978 = vshrl.u32 %v4977, 7
        %v4979 = vsub.s32 %v4976, %v4978
        %v4980 = vrot.slane %v4966, %v4979
        %v4981 = vcombine.low %v4663, %v4671
        %v4982 = vcombine.high %v4663, %v4671
        %v4984 = vunpack.c.l.s4 1983009808
        %v4985 = vunpack.c.0.s8 %v4984
        %v4986 = vlaneseq
        %v4987 = vshrl.u32 %v4986, 7
        %v4988 = vsub.s32 %v4985, %v4987
        %v4989 = vrot.slane %v4981, %v4988
        %v4991 = vunpack.c.l.s4 1983009808
        %v4992 = vunpack.c.0.s8 %v4991
        %v4993 = vlaneseq
        %v4994 = vshrl.u32 %v4993, 7
        %v4995 = vsub.s32 %v4992, %v4994
        %v4996 = vrot.slane %v4982, %v4995
        %v4997 = vcombine.low %v4667, %v4675
        %v4998 = vcombine.high %v4667, %v4675
        %v5000 = vunpack.c.l.s4 1983009808
        %v5001 = vunpack.c.0.s8 %v5000
        %v5002 = vlaneseq
        %v5003 = vshrl.u32 %v5002, 7
        %v5004 = vsub.s32 %v5001, %v5003
        %v5005 = vrot.slane %v4997, %v5004
        %v5007 = vunpack.c.l.s4 1983009808
        %v5008 = vunpack.c.0.s8 %v5007
        %v5009 = vlaneseq
        %v5010 = vshrl.u32 %v5009, 7
        %v5011 = vsub.s32 %v5008, %v5010
        %v5012 = vrot.slane %v4998, %v5011
        %v5013 = vcombine.low %v4957, %v4973
        %v5014 = vcombine.high %v4957, %v4973
        %v5016 = vunpack.c.l.s4 1934713408
        %v5017 = vunpack.c.0.s8 %v5016
        %v5018 = vlaneseq
        %v5019 = vshrl.u32 %v5018, 7
        %v5020 = vsub.s32 %v5017, %v5019
        %v5021 = vrot.slane %v5013, %v5020
        %v5023 = vunpack.c.l.s4 1934713408
        %v5024 = vunpack.c.0.s8 %v5023
        %v5025 = vlaneseq
        %v5026 = vshrl.u32 %v5025, 7
        %v5027 = vsub.s32 %v5024, %v5026
        %v5028 = vrot.slane %v5014, %v5027
        %v5029 = vcombine.low %v4964, %v4980
        %v5030 = vcombine.high %v4964, %v4980
        %v5032 = vunpack.c.l.s4 1934713408
        %v5033 = vunpack.c.0.s8 %v5032
        %v5034 = vlaneseq
        %v5035 = vshrl.u32 %v5034, 7
        %v5036 = vsub.s32 %v5033, %v5035
        %v5037 = vrot.slane %v5029, %v5036
        %v5039 = vunpack.c.l.s4 1934713408
        %v5040 = vunpack.c.0.s8 %v5039
        %v5041 = vlaneseq
        %v5042 = vshrl.u32 %v5041, 7
        %v5043 = vsub.s32 %v5040, %v5042
        %v5044 = vrot.slane %v5030, %v5043
        %v5045 = vcombine.low %v4989, %v5005
        %v5046 = vcombine.high %v4989, %v5005
        %v5048 = vunpack.c.l.s4 1934713408
        %v5049 = vunpack.c.0.s8 %v5048
        %v5050 = vlaneseq
        %v5051 = vshrl.u32 %v5050, 7
        %v5052 = vsub.s32 %v5049, %v5051
        %v5053 = vrot.slane %v5045, %v5052
        %v5055 = vunpack.c.l.s4 1934713408
        %v5056 = vunpack.c.0.s8 %v5055
        %v5057 = vlaneseq
        %v5058 = vshrl.u32 %v5057, 7
        %v5059 = vsub.s32 %v5056, %v5058
        %v5060 = vrot.slane %v5046, %v5059
        %v5061 = vcombine.low %v4996, %v5012
        %v5062 = vcombine.high %v4996, %v5012
        %v5064 = vunpack.c.l.s4 1934713408
        %v5065 = vunpack.c.0.s8 %v5064
        %v5066 = vlaneseq
        %v5067 = vshrl.u32 %v5066, 7
        %v5068 = vsub.s32 %v5065, %v5067
        %v5069 = vrot.slane %v5061, %v5068
        %v5071 = vunpack.c.l.s4 1934713408
        %v5072 = vunpack.c.0.s8 %v5071
        %v5073 = vlaneseq
        %v5074 = vshrl.u32 %v5073, 7
        %v5075 = vsub.s32 %v5072, %v5074
        %v5076 = vrot.slane %v5062, %v5075
        %v5077 = vcombine.low %v5021, %v5053
        %v5078 = vcombine.high %v5021, %v5053
        %v5079 = vcombine.low %v5028, %v5060
        %v5080 = vcombine.high %v5028, %v5060
        %v5081 = vcombine.low %v5037, %v5069
        %v5082 = vcombine.high %v5037, %v5069
        %v5083 = vcombine.low %v5044, %v5076
        %v5084 = vcombine.high %v5044, %v5076
        %v5085 = vcombine.low %v4648, %v4656
        %v5086 = vcombine.high %v4648, %v4656
        %v5088 = vunpack.c.l.s4 1983009808
        %v5089 = vunpack.c.0.s8 %v5088
        %v5090 = vlaneseq
        %v5091 = vshrl.u32 %v5090, 7
        %v5092 = vsub.s32 %v5089, %v5091
        %v5093 = vrot.slane %v5085, %v5092
        %v5095 = vunpack.c.l.s4 1983009808
        %v5096 = vunpack.c.0.s8 %v5095
        %v5097 = vlaneseq
        %v5098 = vshrl.u32 %v5097, 7
        %v5099 = vsub.s32 %v5096, %v5098
        %v5100 = vrot.slane %v5086, %v5099
        %v5101 = vcombine.low %v4652, %v4660
        %v5102 = vcombine.high %v4652, %v4660
        %v5104 = vunpack.c.l.s4 1983009808
        %v5105 = vunpack.c.0.s8 %v5104
        %v5106 = vlaneseq
        %v5107 = vshrl.u32 %v5106, 7
        %v5108 = vsub.s32 %v5105, %v5107
        %v5109 = vrot.slane %v5101, %v5108
        %v5111 = vunpack.c.l.s4 1983009808
        %v5112 = vunpack.c.0.s8 %v5111
        %v5113 = vlaneseq
        %v5114 = vshrl.u32 %v5113, 7
        %v5115 = vsub.s32 %v5112, %v5114
        %v5116 = vrot.slane %v5102, %v5115
        %v5117 = vcombine.low %v4664, %v4672
        %v5118 = vcombine.high %v4664, %v4672
        %v5120 = vunpack.c.l.s4 1983009808
        %v5121 = vunpack.c.0.s8 %v5120
        %v5122 = vlaneseq
        %v5123 = vshrl.u32 %v5122, 7
        %v5124 = vsub.s32 %v5121, %v5123
        %v5125 = vrot.slane %v5117, %v5124
        %v5127 = vunpack.c.l.s4 1983009808
        %v5128 = vunpack.c.0.s8 %v5127
        %v5129 = vlaneseq
        %v5130 = vshrl.u32 %v5129, 7
        %v5131 = vsub.s32 %v5128, %v5130
        %v5132 = vrot.slane %v5118, %v5131
        %v5133 = vcombine.low %v4668, %v4676
        %v5134 = vcombine.high %v4668, %v4676
        %v5136 = vunpack.c.l.s4 1983009808
        %v5137 = vunpack.c.0.s8 %v5136
        %v5138 = vlaneseq
        %v5139 = vshrl.u32 %v5138, 7
        %v5140 = vsub.s32 %v5137, %v5139
        %v5141 = vrot.slane %v5133, %v5140
        %v5143 = vunpack.c.l.s4 1983009808
        %v5144 = vunpack.c.0.s8 %v5143
        %v5145 = vlaneseq
        %v5146 = vshrl.u32 %v5145, 7
        %v5147 = vsub.s32 %v5144, %v5146
        %v5148 = vrot.slane %v5134, %v5147
        %v5149 = vcombine.low %v5093, %v5109
        %v5150 = vcombine.high %v5093, %v5109
        %v5152 = vunpack.c.l.s4 1934713408
        %v5153 = vunpack.c.0.s8 %v5152
        %v5154 = vlaneseq
        %v5155 = vshrl.u32 %v5154, 7
        %v5156 = vsub.s32 %v5153, %v5155
        %v5157 = vrot.slane %v5149, %v5156
        %v5159 = vunpack.c.l.s4 1934713408
        %v5160 = vunpack.c.0.s8 %v5159
        %v5161 = vlaneseq
        %v5162 = vshrl.u32 %v5161, 7
        %v5163 = vsub.s32 %v5160, %v5162
        %v5164 = vrot.slane %v5150, %v5163
        %v5165 = vcombine.low %v5100, %v5116
        %v5166 = vcombine.high %v5100, %v5116
        %v5168 = vunpack.c.l.s4 1934713408
        %v5169 = vunpack.c.0.s8 %v5168
        %v5170 = vlaneseq
        %v5171 = vshrl.u32 %v5170, 7
        %v5172 = vsub.s32 %v5169, %v5171
        %v5173 = vrot.slane %v5165, %v5172
        %v5175 = vunpack.c.l.s4 1934713408
        %v5176 = vunpack.c.0.s8 %v5175
        %v5177 = vlaneseq
        %v5178 = vshrl.u32 %v5177, 7
        %v5179 = vsub.s32 %v5176, %v5178
        %v5180 = vrot.slane %v5166, %v5179
        %v5181 = vcombine.low %v5125, %v5141
        %v5182 = vcombine.high %v5125, %v5141
        %v5184 = vunpack.c.l.s4 1934713408
        %v5185 = vunpack.c.0.s8 %v5184
        %v5186 = vlaneseq
        %v5187 = vshrl.u32 %v5186, 7
        %v5188 = vsub.s32 %v5185, %v5187
        %v5189 = vrot.slane %v5181, %v5188
        %v5191 = vunpack.c.l.s4 1934713408
        %v5192 = vunpack.c.0.s8 %v5191
        %v5193 = vlaneseq
        %v5194 = vshrl.u32 %v5193, 7
        %v5195 = vsub.s32 %v5192, %v5194
        %v5196 = vrot.slane %v5182, %v5195
        %v5197 = vcombine.low %v5132, %v5148
        %v5198 = vcombine.high %v5132, %v5148
        %v5200 = vunpack.c.l.s4 1934713408
        %v5201 = vunpack.c.0.s8 %v5200
        %v5202 = vlaneseq
        %v5203 = vshrl.u32 %v5202, 7
        %v5204 = vsub.s32 %v5201, %v5203
        %v5205 = vrot.slane %v5197, %v5204
        %v5207 = vunpack.c.l.s4 1934713408
        %v5208 = vunpack.c.0.s8 %v5207
        %v5209 = vlaneseq
        %v5210 = vshrl.u32 %v5209, 7
        %v5211 = vsub.s32 %v5208, %v5210
        %v5212 = vrot.slane %v5198, %v5211
        %v5213 = vcombine.low %v5157, %v5189
        %v5214 = vcombine.high %v5157, %v5189
        %v5215 = vcombine.low %v5164, %v5196
        %v5216 = vcombine.high %v5164, %v5196
        %v5217 = vcombine.low %v5173, %v5205
        %v5218 = vcombine.high %v5173, %v5205
        %v5219 = vcombine.low %v5180, %v5212
        %v5220 = vcombine.high %v5180, %v5212
        %5222 = vrot.lane.b32.xlu0 %v4806, 32
        %v5223 = vpop.permute.xlu0 %5222
        %5226 = vrot.lane.b32.xlu0 %v4807, 64
        %v5227 = vpop.permute.xlu0 %5226
        %5230 = vrot.lane.b32.xlu0 %v4808, 96
        %v5231 = vpop.permute.xlu0 %5230
        %5234 = vrot.lane.b32.xlu0 %v4810, 32
        %v5235 = vpop.permute.xlu0 %5234
        %5238 = vrot.lane.b32.xlu0 %v4811, 64
        %v5239 = vpop.permute.xlu0 %5238
        %5242 = vrot.lane.b32.xlu0 %v4812, 96
        %v5243 = vpop.permute.xlu0 %5242
        %5246 = vrot.lane.b32.xlu0 %v4942, 32
        %v5247 = vpop.permute.xlu0 %5246
        %5250 = vrot.lane.b32.xlu0 %v4943, 64
        %v5251 = vpop.permute.xlu0 %5250
        %5254 = vrot.lane.b32.xlu0 %v4944, 96
        %v5255 = vpop.permute.xlu0 %5254
        %5258 = vrot.lane.b32.xlu0 %v4946, 32
        %v5259 = vpop.permute.xlu0 %5258
        %5262 = vrot.lane.b32.xlu0 %v4947, 64
        %v5263 = vpop.permute.xlu0 %5262
        %5266 = vrot.lane.b32.xlu0 %v4948, 96
        %v5267 = vpop.permute.xlu0 %5266
        %5270 = vrot.lane.b32.xlu0 %v5078, 32
        %v5271 = vpop.permute.xlu0 %5270
        %5274 = vrot.lane.b32.xlu0 %v5079, 64
        %v5275 = vpop.permute.xlu0 %5274
        %5278 = vrot.lane.b32.xlu0 %v5080, 96
        %v5279 = vpop.permute.xlu0 %5278
        %5282 = vrot.lane.b32.xlu0 %v5082, 32
        %v5283 = vpop.permute.xlu0 %5282
        %5286 = vrot.lane.b32.xlu0 %v5083, 64
        %v5287 = vpop.permute.xlu0 %5286
        %5290 = vrot.lane.b32.xlu0 %v5084, 96
        %v5291 = vpop.permute.xlu0 %5290
        %5294 = vrot.lane.b32.xlu0 %v5214, 32
        %v5295 = vpop.permute.xlu0 %5294
        %5298 = vrot.lane.b32.xlu0 %v5215, 64
        %v5299 = vpop.permute.xlu0 %5298
        %5302 = vrot.lane.b32.xlu0 %v5216, 96
        %v5303 = vpop.permute.xlu0 %5302
        %5306 = vrot.lane.b32.xlu0 %v5218, 32
        %v5307 = vpop.permute.xlu0 %5306
        %5310 = vrot.lane.b32.xlu0 %v5219, 64
        %v5311 = vpop.permute.xlu0 %5310
        %5314 = vrot.lane.b32.xlu0 %v5220, 96
        %v5315 = vpop.permute.xlu0 %5314
        %v5317 = vsel %vm2127, %v4805, %v5223
        %v5318 = vsel %vm2129, %v5317, %v5227
        %v5319 = vsel %vm2131, %v5318, %v5231
        %v5320 = vsel %vm2127, %v4809, %v5235
        %v5321 = vsel %vm2129, %v5320, %v5239
        %v5322 = vsel %vm2131, %v5321, %v5243
        %v5323 = vsel %vm2127, %v4941, %v5247
        %v5324 = vsel %vm2129, %v5323, %v5251
        %v5325 = vsel %vm2131, %v5324, %v5255
        %v5326 = vsel %vm2127, %v4945, %v5259
        %v5327 = vsel %vm2129, %v5326, %v5263
        %v5328 = vsel %vm2131, %v5327, %v5267
        %v5329 = vsel %vm2127, %v5077, %v5271
        %v5330 = vsel %vm2129, %v5329, %v5275
        %v5331 = vsel %vm2131, %v5330, %v5279
        %v5332 = vsel %vm2127, %v5081, %v5283
        %v5333 = vsel %vm2129, %v5332, %v5287
        %v5334 = vsel %vm2131, %v5333, %v5291
        %v5335 = vsel %vm2127, %v5213, %v5295
        %v5336 = vsel %vm2129, %v5335, %v5299
        %v5337 = vsel %vm2131, %v5336, %v5303
        %v5338 = vsel %vm2127, %v5217, %v5307
        %v5339 = vsel %vm2129, %v5338, %v5311
        %v5340 = vsel %vm2131, %v5339, %v5315
        %s5341 = scalar_lea.vmem %s3, 12
        %v5342 = vld [vmem:[%s5341] sm:$0xf]
        %v5344 = vsel %vm2949, %v5342, 0
        %5346 = vmatprep.subr.mxu0 %v5322
        %5347 = vmatpush1.msra.mxu0 %v5319
        %5348 = vmatprep.subr.mxu0 0.0
        %5349 = vmatpush1.msra.mxu0 0.0
        %5350 = vmatprep.subr.mxu0 0.0
        %5351 = vmatpush1.msra.mxu0 0.0
        %5352 = vmatprep.subr.mxu0 0.0
        %5353 = vmatpush1.msra.mxu0 0.0
        %5354 = vmatprep.subr.mxu0 0.0
        %5355 = vmatpush1.msra.mxu0 0.0
        %5356 = vmatprep.subr.mxu0 0.0
        %5357 = vmatpush1.msra.mxu0 0.0
        %5358 = vmatprep.subr.mxu0 0.0
        %5359 = vmatpush1.msra.mxu0 0.0
        %5360 = vmatprep.subr.mxu0 0.0
        %5361 = vmatpush1.msra.mxu0 0.0
        %5362 = vmatprep.subr.mxu0 0.0
        %5363 = vmatpush1.msra.mxu0 0.0
        %5364 = vmatprep.subr.mxu0 0.0
        %5365 = vmatpush1.msra.mxu0 0.0
        %5366 = vmatprep.subr.mxu0 0.0
        %5367 = vmatpush1.msra.mxu0 0.0
        %5368 = vmatprep.subr.mxu0 0.0
        %5369 = vmatpush1.msra.mxu0 0.0
        %5370 = vmatprep.subr.mxu0 0.0
        %5371 = vmatpush1.msra.mxu0 0.0
        %5372 = vmatprep.subr.mxu0 0.0
        %5373 = vmatpush1.msra.mxu0 0.0
        %5374 = vmatprep.subr.mxu0 0.0
        %5375 = vmatpush1.msra.mxu0 0.0
        %5376 = vmatprep.subr.mxu0 0.0
        %5377 = vmatpush1.msra.mxu0 0.0
        %5378 = vmatprep.subr.mxu0 0.0
        %5379 = vmatpush1.msra.mxu0 0.0
        %5380 = vmatprep.subr.mxu0 0.0
        %5381 = vmatpush1.msra.mxu0 0.0
        %5382 = vmatprep.subr.mxu0 0.0
        %5383 = vmatpush1.msra.mxu0 0.0
        %5384 = vmatprep.subr.mxu0 0.0
        %5385 = vmatpush1.msra.mxu0 0.0
        %5386 = vmatprep.subr.mxu0 0.0
        %5387 = vmatpush1.msra.mxu0 0.0
        %5388 = vmatprep.subr.mxu0 0.0
        %5389 = vmatpush1.msra.mxu0 0.0
        %5390 = vmatprep.subr.mxu0 0.0
        %5391 = vmatpush1.msra.mxu0 0.0
        %5392 = vmatprep.subr.mxu0 0.0
        %5393 = vmatpush1.msra.mxu0 0.0
        %5394 = vmatprep.subr.mxu0 0.0
        %5395 = vmatpush1.msra.mxu0 0.0
        %5396 = vmatprep.subr.mxu0 0.0
        %5397 = vmatpush1.msra.mxu0 0.0
        %5398 = vmatprep.subr.mxu0 0.0
        %5399 = vmatpush1.msra.mxu0 0.0
        %5400 = vmatprep.subr.mxu0 0.0
        %5401 = vmatpush1.msra.mxu0 0.0
        %5402 = vmatprep.subr.mxu0 0.0
        %5403 = vmatpush1.msra.mxu0 0.0
        %5404 = vmatprep.subr.mxu0 0.0
        %5405 = vmatpush1.msra.mxu0 0.0
        %5406 = vmatprep.subr.mxu0 0.0
        %5407 = vmatpush1.msra.mxu0 0.0
        %5408 = vmatprep.subr.mxu0 0.0
        %5409 = vmatpush1.msra.mxu0 0.0
        %5410 = vmatprep.mubr.f32.mxu0 0.0
        %5411 = vmatmul.mubr.f32.gmra.mrb[0].mxu0 %v5344
        %v5412 = vpop.f32.mrb[0].mxu0
        %v5413 = vadd.f32 0.0, %v5412
        %v5414 = vpop.f32.mrb[0].mxu0
        %v5415 = vadd.f32 0.0, %v5414
        %5416 = vdwg.mxu0
        %5417 = vmatprep.subr.mxu0 %v5328
        %5418 = vmatpush1.msra.mxu0 %v5325
        %5419 = vmatprep.subr.mxu0 0.0
        %5420 = vmatpush1.msra.mxu0 0.0
        %5421 = vmatprep.subr.mxu0 0.0
        %5422 = vmatpush1.msra.mxu0 0.0
        %5423 = vmatprep.subr.mxu0 0.0
        %5424 = vmatpush1.msra.mxu0 0.0
        %5425 = vmatprep.subr.mxu0 0.0
        %5426 = vmatpush1.msra.mxu0 0.0
        %5427 = vmatprep.subr.mxu0 0.0
        %5428 = vmatpush1.msra.mxu0 0.0
        %5429 = vmatprep.subr.mxu0 0.0
        %5430 = vmatpush1.msra.mxu0 0.0
        %5431 = vmatprep.subr.mxu0 0.0
        %5432 = vmatpush1.msra.mxu0 0.0
        %5433 = vmatprep.subr.mxu0 0.0
        %5434 = vmatpush1.msra.mxu0 0.0
        %5435 = vmatprep.subr.mxu0 0.0
        %5436 = vmatpush1.msra.mxu0 0.0
        %5437 = vmatprep.subr.mxu0 0.0
        %5438 = vmatpush1.msra.mxu0 0.0
        %5439 = vmatprep.subr.mxu0 0.0
        %5440 = vmatpush1.msra.mxu0 0.0
        %5441 = vmatprep.subr.mxu0 0.0
        %5442 = vmatpush1.msra.mxu0 0.0
        %5443 = vmatprep.subr.mxu0 0.0
        %5444 = vmatpush1.msra.mxu0 0.0
        %5445 = vmatprep.subr.mxu0 0.0
        %5446 = vmatpush1.msra.mxu0 0.0
        %5447 = vmatprep.subr.mxu0 0.0
        %5448 = vmatpush1.msra.mxu0 0.0
        %5449 = vmatprep.subr.mxu0 0.0
        %5450 = vmatpush1.msra.mxu0 0.0
        %5451 = vmatprep.subr.mxu0 0.0
        %5452 = vmatpush1.msra.mxu0 0.0
        %5453 = vmatprep.subr.mxu0 0.0
        %5454 = vmatpush1.msra.mxu0 0.0
        %5455 = vmatprep.subr.mxu0 0.0
        %5456 = vmatpush1.msra.mxu0 0.0
        %5457 = vmatprep.subr.mxu0 0.0
        %5458 = vmatpush1.msra.mxu0 0.0
        %5459 = vmatprep.subr.mxu0 0.0
        %5460 = vmatpush1.msra.mxu0 0.0
        %5461 = vmatprep.subr.mxu0 0.0
        %5462 = vmatpush1.msra.mxu0 0.0
        %5463 = vmatprep.subr.mxu0 0.0
        %5464 = vmatpush1.msra.mxu0 0.0
        %5465 = vmatprep.subr.mxu0 0.0
        %5466 = vmatpush1.msra.mxu0 0.0
        %5467 = vmatprep.subr.mxu0 0.0
        %5468 = vmatpush1.msra.mxu0 0.0
        %5469 = vmatprep.subr.mxu0 0.0
        %5470 = vmatpush1.msra.mxu0 0.0
        %5471 = vmatprep.subr.mxu0 0.0
        %5472 = vmatpush1.msra.mxu0 0.0
        %5473 = vmatprep.subr.mxu0 0.0
        %5474 = vmatpush1.msra.mxu0 0.0
        %5475 = vmatprep.subr.mxu0 0.0
        %5476 = vmatpush1.msra.mxu0 0.0
        %5477 = vmatprep.subr.mxu0 0.0
        %5478 = vmatpush1.msra.mxu0 0.0
        %5479 = vmatprep.subr.mxu0 0.0
        %5480 = vmatpush1.msra.mxu0 0.0
        %5481 = vmatprep.mubr.f32.mxu0 0.0
        %5482 = vmatmul.mubr.f32.gmra.mrb[0].mxu0 %v5344
        %v5483 = vpop.f32.mrb[0].mxu0
        %v5484 = vadd.f32 0.0, %v5483
        %v5485 = vpop.f32.mrb[0].mxu0
        %v5486 = vadd.f32 0.0, %v5485
        %5487 = vdwg.mxu0
        %5488 = vmatprep.subr.mxu0 %v5334
        %5489 = vmatpush1.msra.mxu0 %v5331
        %5490 = vmatprep.subr.mxu0 0.0
        %5491 = vmatpush1.msra.mxu0 0.0
        %5492 = vmatprep.subr.mxu0 0.0
        %5493 = vmatpush1.msra.mxu0 0.0
        %5494 = vmatprep.subr.mxu0 0.0
        %5495 = vmatpush1.msra.mxu0 0.0
        %5496 = vmatprep.subr.mxu0 0.0
        %5497 = vmatpush1.msra.mxu0 0.0
        %5498 = vmatprep.subr.mxu0 0.0
        %5499 = vmatpush1.msra.mxu0 0.0
        %5500 = vmatprep.subr.mxu0 0.0
        %5501 = vmatpush1.msra.mxu0 0.0
        %5502 = vmatprep.subr.mxu0 0.0
        %5503 = vmatpush1.msra.mxu0 0.0
        %5504 = vmatprep.subr.mxu0 0.0
        %5505 = vmatpush1.msra.mxu0 0.0
        %5506 = vmatprep.subr.mxu0 0.0
        %5507 = vmatpush1.msra.mxu0 0.0
        %5508 = vmatprep.subr.mxu0 0.0
        %5509 = vmatpush1.msra.mxu0 0.0
        %5510 = vmatprep.subr.mxu0 0.0
        %5511 = vmatpush1.msra.mxu0 0.0
        %5512 = vmatprep.subr.mxu0 0.0
        %5513 = vmatpush1.msra.mxu0 0.0
        %5514 = vmatprep.subr.mxu0 0.0
        %5515 = vmatpush1.msra.mxu0 0.0
        %5516 = vmatprep.subr.mxu0 0.0
        %5517 = vmatpush1.msra.mxu0 0.0
        %5518 = vmatprep.subr.mxu0 0.0
        %5519 = vmatpush1.msra.mxu0 0.0
        %5520 = vmatprep.subr.mxu0 0.0
        %5521 = vmatpush1.msra.mxu0 0.0
        %5522 = vmatprep.subr.mxu0 0.0
        %5523 = vmatpush1.msra.mxu0 0.0
        %5524 = vmatprep.subr.mxu0 0.0
        %5525 = vmatpush1.msra.mxu0 0.0
        %5526 = vmatprep.subr.mxu0 0.0
        %5527 = vmatpush1.msra.mxu0 0.0
        %5528 = vmatprep.subr.mxu0 0.0
        %5529 = vmatpush1.msra.mxu0 0.0
        %5530 = vmatprep.subr.mxu0 0.0
        %5531 = vmatpush1.msra.mxu0 0.0
        %5532 = vmatprep.subr.mxu0 0.0
        %5533 = vmatpush1.msra.mxu0 0.0
        %5534 = vmatprep.subr.mxu0 0.0
        %5535 = vmatpush1.msra.mxu0 0.0
        %5536 = vmatprep.subr.mxu0 0.0
        %5537 = vmatpush1.msra.mxu0 0.0
        %5538 = vmatprep.subr.mxu0 0.0
        %5539 = vmatpush1.msra.mxu0 0.0
        %5540 = vmatprep.subr.mxu0 0.0
        %5541 = vmatpush1.msra.mxu0 0.0
        %5542 = vmatprep.subr.mxu0 0.0
        %5543 = vmatpush1.msra.mxu0 0.0
        %5544 = vmatprep.subr.mxu0 0.0
        %5545 = vmatpush1.msra.mxu0 0.0
        %5546 = vmatprep.subr.mxu0 0.0
        %5547 = vmatpush1.msra.mxu0 0.0
        %5548 = vmatprep.subr.mxu0 0.0
        %5549 = vmatpush1.msra.mxu0 0.0
        %5550 = vmatprep.subr.mxu0 0.0
        %5551 = vmatpush1.msra.mxu0 0.0
        %5552 = vmatprep.mubr.f32.mxu0 0.0
        %5553 = vmatmul.mubr.f32.gmra.mrb[0].mxu0 %v5344
        %v5554 = vpop.f32.mrb[0].mxu0
        %v5555 = vadd.f32 0.0, %v5554
        %v5556 = vpop.f32.mrb[0].mxu0
        %v5557 = vadd.f32 0.0, %v5556
        %5558 = vdwg.mxu0
        %5559 = vmatprep.subr.mxu0 %v5340
        %5560 = vmatpush1.msra.mxu0 %v5337
        %5561 = vmatprep.subr.mxu0 0.0
        %5562 = vmatpush1.msra.mxu0 0.0
        %5563 = vmatprep.subr.mxu0 0.0
        %5564 = vmatpush1.msra.mxu0 0.0
        %5565 = vmatprep.subr.mxu0 0.0
        %5566 = vmatpush1.msra.mxu0 0.0
        %5567 = vmatprep.subr.mxu0 0.0
        %5568 = vmatpush1.msra.mxu0 0.0
        %5569 = vmatprep.subr.mxu0 0.0
        %5570 = vmatpush1.msra.mxu0 0.0
        %5571 = vmatprep.subr.mxu0 0.0
        %5572 = vmatpush1.msra.mxu0 0.0
        %5573 = vmatprep.subr.mxu0 0.0
        %5574 = vmatpush1.msra.mxu0 0.0
        %5575 = vmatprep.subr.mxu0 0.0
        %5576 = vmatpush1.msra.mxu0 0.0
        %5577 = vmatprep.subr.mxu0 0.0
        %5578 = vmatpush1.msra.mxu0 0.0
        %5579 = vmatprep.subr.mxu0 0.0
        %5580 = vmatpush1.msra.mxu0 0.0
        %5581 = vmatprep.subr.mxu0 0.0
        %5582 = vmatpush1.msra.mxu0 0.0
        %5583 = vmatprep.subr.mxu0 0.0
        %5584 = vmatpush1.msra.mxu0 0.0
        %5585 = vmatprep.subr.mxu0 0.0
        %5586 = vmatpush1.msra.mxu0 0.0
        %5587 = vmatprep.subr.mxu0 0.0
        %5588 = vmatpush1.msra.mxu0 0.0
        %5589 = vmatprep.subr.mxu0 0.0
        %5590 = vmatpush1.msra.mxu0 0.0
        %5591 = vmatprep.subr.mxu0 0.0
        %5592 = vmatpush1.msra.mxu0 0.0
        %5593 = vmatprep.subr.mxu0 0.0
        %5594 = vmatpush1.msra.mxu0 0.0
        %5595 = vmatprep.subr.mxu0 0.0
        %5596 = vmatpush1.msra.mxu0 0.0
        %5597 = vmatprep.subr.mxu0 0.0
        %5598 = vmatpush1.msra.mxu0 0.0
        %5599 = vmatprep.subr.mxu0 0.0
        %5600 = vmatpush1.msra.mxu0 0.0
        %5601 = vmatprep.subr.mxu0 0.0
        %5602 = vmatpush1.msra.mxu0 0.0
        %5603 = vmatprep.subr.mxu0 0.0
        %5604 = vmatpush1.msra.mxu0 0.0
        %5605 = vmatprep.subr.mxu0 0.0
        %5606 = vmatpush1.msra.mxu0 0.0
        %5607 = vmatprep.subr.mxu0 0.0
        %5608 = vmatpush1.msra.mxu0 0.0
        %5609 = vmatprep.subr.mxu0 0.0
        %5610 = vmatpush1.msra.mxu0 0.0
        %5611 = vmatprep.subr.mxu0 0.0
        %5612 = vmatpush1.msra.mxu0 0.0
        %5613 = vmatprep.subr.mxu0 0.0
        %5614 = vmatpush1.msra.mxu0 0.0
        %5615 = vmatprep.subr.mxu0 0.0
        %5616 = vmatpush1.msra.mxu0 0.0
        %5617 = vmatprep.subr.mxu0 0.0
        %5618 = vmatpush1.msra.mxu0 0.0
        %5619 = vmatprep.subr.mxu0 0.0
        %5620 = vmatpush1.msra.mxu0 0.0
        %5621 = vmatprep.subr.mxu0 0.0
        %5622 = vmatpush1.msra.mxu0 0.0
        %5623 = vmatprep.mubr.f32.mxu0 0.0
        %5624 = vmatmul.mubr.f32.gmra.mrb[0].mxu0 %v5344
        %v5625 = vpop.f32.mrb[0].mxu0
        %v5626 = vadd.f32 0.0, %v5625
        %v5627 = vpop.f32.mrb[0].mxu0
        %v5628 = vadd.f32 0.0, %v5627
        %5629 = vdwg.mxu0
        %v5630 = vadd.f32 %v4637, %v5413
        %v5631 = vadd.f32 %v4638, %v5415
        %v5632 = vadd.f32 %v4639, %v5484
        %v5633 = vadd.f32 %v4640, %v5486
        %v5634 = vadd.f32 %v4641, %v5555
        %v5635 = vadd.f32 %v4642, %v5557
        %v5636 = vadd.f32 %v4643, %v5626
        %v5637 = vadd.f32 %v4644, %v5628
        %v5638 = vld [vmem:[#allocation2 + $0x1] sm:$0xff]
        %v5639 = vld [vmem:[#allocation2 + $0x9] sm:$0xff]
        %v5640 = vld [vmem:[#allocation2 + $0x11] sm:$0xff]
        %v5641 = vld [vmem:[#allocation2 + $0x19] sm:$0xff]
        %v5642 = vld [vmem:[#allocation2 + $0x29] sm:$0xff]
        %v5643 = vld [vmem:[#allocation2 + $0x31] sm:$0xff]
        %v5644 = vld [vmem:[#allocation2 + $0x39] sm:$0xff]
        %v5645 = vld [vmem:[#allocation2 + $0x41] sm:$0xff]
        %v5646 = vld [vmem:[#allocation2 + $0x51] sm:$0xff]
        %v5647 = vld [vmem:[#allocation2 + $0x59] sm:$0xff]
        %v5648 = vld [vmem:[#allocation2 + $0x61] sm:$0xff]
        %v5649 = vld [vmem:[#allocation2 + $0x69] sm:$0xff]
        %v5650 = vld [vmem:[#allocation2 + $0x79] sm:$0xff]
        %v5651 = vld [vmem:[#allocation2 + $0x81] sm:$0xff]
        %v5652 = vld [vmem:[#allocation2 + $0x89] sm:$0xff]
        %v5653 = vld [vmem:[#allocation2 + $0x91] sm:$0xff]
        %v5654 = vld [vmem:[#allocation2 + $0xa1] sm:$0xff]
        %v5655 = vld [vmem:[#allocation2 + $0xa9] sm:$0xff]
        %v5656 = vld [vmem:[#allocation2 + $0xb1] sm:$0xff]
        %v5657 = vld [vmem:[#allocation2 + $0xb9] sm:$0xff]
        %v5658 = vld [vmem:[#allocation2 + $0xc9] sm:$0xff]
        %v5659 = vld [vmem:[#allocation2 + $0xd1] sm:$0xff]
        %v5660 = vld [vmem:[#allocation2 + $0xd9] sm:$0xff]
        %v5661 = vld [vmem:[#allocation2 + $0xe1] sm:$0xff]
        %v5662 = vld [vmem:[#allocation2 + $0xf1] sm:$0xff]
        %v5663 = vld [vmem:[#allocation2 + $0xf9] sm:$0xff]
        %v5664 = vld [vmem:[#allocation2 + $0x101] sm:$0xff]
        %v5665 = vld [vmem:[#allocation2 + $0x109] sm:$0xff]
        %v5666 = vld [vmem:[#allocation2 + $0x119] sm:$0xff]
        %v5667 = vld [vmem:[#allocation2 + $0x121] sm:$0xff]
        %v5668 = vld [vmem:[#allocation2 + $0x129] sm:$0xff]
        %v5669 = vld [vmem:[#allocation2 + $0x131] sm:$0xff]
        %5702 = vrot.lane.b32.xlu0 %v5638, 127
        %v5703 = vpop.permute.xlu0 %5702
        %5704 = vrot.lane.b32.xlu0 %v5639, 127
        %v5705 = vpop.permute.xlu0 %5704
        %5706 = vrot.lane.b32.xlu0 %v5640, 127
        %v5707 = vpop.permute.xlu0 %5706
        %5708 = vrot.lane.b32.xlu0 %v5641, 127
        %v5709 = vpop.permute.xlu0 %5708
        %5710 = vrot.lane.b32.xlu0 %v5642, 127
        %v5711 = vpop.permute.xlu0 %5710
        %5712 = vrot.lane.b32.xlu0 %v5643, 127
        %v5713 = vpop.permute.xlu0 %5712
        %5714 = vrot.lane.b32.xlu0 %v5644, 127
        %v5715 = vpop.permute.xlu0 %5714
        %5716 = vrot.lane.b32.xlu0 %v5645, 127
        %v5717 = vpop.permute.xlu0 %5716
        %5718 = vrot.lane.b32.xlu0 %v5646, 127
        %v5719 = vpop.permute.xlu0 %5718
        %5720 = vrot.lane.b32.xlu0 %v5647, 127
        %v5721 = vpop.permute.xlu0 %5720
        %5722 = vrot.lane.b32.xlu0 %v5648, 127
        %v5723 = vpop.permute.xlu0 %5722
        %5724 = vrot.lane.b32.xlu0 %v5649, 127
        %v5725 = vpop.permute.xlu0 %5724
        %5726 = vrot.lane.b32.xlu0 %v5650, 127
        %v5727 = vpop.permute.xlu0 %5726
        %5728 = vrot.lane.b32.xlu0 %v5651, 127
        %v5729 = vpop.permute.xlu0 %5728
        %5730 = vrot.lane.b32.xlu0 %v5652, 127
        %v5731 = vpop.permute.xlu0 %5730
        %5732 = vrot.lane.b32.xlu0 %v5653, 127
        %v5733 = vpop.permute.xlu0 %5732
        %5734 = vrot.lane.b32.xlu0 %v5654, 127
        %v5735 = vpop.permute.xlu0 %5734
        %5736 = vrot.lane.b32.xlu0 %v5655, 127
        %v5737 = vpop.permute.xlu0 %5736
        %5738 = vrot.lane.b32.xlu0 %v5656, 127
        %v5739 = vpop.permute.xlu0 %5738
        %5740 = vrot.lane.b32.xlu0 %v5657, 127
        %v5741 = vpop.permute.xlu0 %5740
        %5742 = vrot.lane.b32.xlu0 %v5658, 127
        %v5743 = vpop.permute.xlu0 %5742
        %5744 = vrot.lane.b32.xlu0 %v5659, 127
        %v5745 = vpop.permute.xlu0 %5744
        %5746 = vrot.lane.b32.xlu0 %v5660, 127
        %v5747 = vpop.permute.xlu0 %5746
        %5748 = vrot.lane.b32.xlu0 %v5661, 127
        %v5749 = vpop.permute.xlu0 %5748
        %5750 = vrot.lane.b32.xlu0 %v5662, 127
        %v5751 = vpop.permute.xlu0 %5750
        %5752 = vrot.lane.b32.xlu0 %v5663, 127
        %v5753 = vpop.permute.xlu0 %5752
        %5754 = vrot.lane.b32.xlu0 %v5664, 127
        %v5755 = vpop.permute.xlu0 %5754
        %5756 = vrot.lane.b32.xlu0 %v5665, 127
        %v5757 = vpop.permute.xlu0 %5756
        %5758 = vrot.lane.b32.xlu0 %v5666, 127
        %v5759 = vpop.permute.xlu0 %5758
        %5760 = vrot.lane.b32.xlu0 %v5667, 127
        %v5761 = vpop.permute.xlu0 %5760
        %5762 = vrot.lane.b32.xlu0 %v5668, 127
        %v5763 = vpop.permute.xlu0 %5762
        %5764 = vrot.lane.b32.xlu0 %v5669, 127
        %v5765 = vpop.permute.xlu0 %5764
        %v5798 = vcombine.low %v5703, %v5719
        %v5799 = vcombine.high %v5703, %v5719
        %v5801 = vunpack.c.l.s4 1983009808
        %v5802 = vunpack.c.0.s8 %v5801
        %v5803 = vlaneseq
        %v5804 = vshrl.u32 %v5803, 7
        %v5805 = vsub.s32 %v5802, %v5804
        %v5806 = vrot.slane %v5798, %v5805
        %v5808 = vunpack.c.l.s4 1983009808
        %v5809 = vunpack.c.0.s8 %v5808
        %v5810 = vlaneseq
        %v5811 = vshrl.u32 %v5810, 7
        %v5812 = vsub.s32 %v5809, %v5811
        %v5813 = vrot.slane %v5799, %v5812
        %v5814 = vcombine.low %v5711, %v5727
        %v5815 = vcombine.high %v5711, %v5727
        %v5817 = vunpack.c.l.s4 1983009808
        %v5818 = vunpack.c.0.s8 %v5817
        %v5819 = vlaneseq
        %v5820 = vshrl.u32 %v5819, 7
        %v5821 = vsub.s32 %v5818, %v5820
        %v5822 = vrot.slane %v5814, %v5821
        %v5824 = vunpack.c.l.s4 1983009808
        %v5825 = vunpack.c.0.s8 %v5824
        %v5826 = vlaneseq
        %v5827 = vshrl.u32 %v5826, 7
        %v5828 = vsub.s32 %v5825, %v5827
        %v5829 = vrot.slane %v5815, %v5828
        %v5830 = vcombine.low %v5735, %v5751
        %v5831 = vcombine.high %v5735, %v5751
        %v5833 = vunpack.c.l.s4 1983009808
        %v5834 = vunpack.c.0.s8 %v5833
        %v5835 = vlaneseq
        %v5836 = vshrl.u32 %v5835, 7
        %v5837 = vsub.s32 %v5834, %v5836
        %v5838 = vrot.slane %v5830, %v5837
        %v5840 = vunpack.c.l.s4 1983009808
        %v5841 = vunpack.c.0.s8 %v5840
        %v5842 = vlaneseq
        %v5843 = vshrl.u32 %v5842, 7
        %v5844 = vsub.s32 %v5841, %v5843
        %v5845 = vrot.slane %v5831, %v5844
        %v5846 = vcombine.low %v5743, %v5759
        %v5847 = vcombine.high %v5743, %v5759
        %v5849 = vunpack.c.l.s4 1983009808
        %v5850 = vunpack.c.0.s8 %v5849
        %v5851 = vlaneseq
        %v5852 = vshrl.u32 %v5851, 7
        %v5853 = vsub.s32 %v5850, %v5852
        %v5854 = vrot.slane %v5846, %v5853
        %v5856 = vunpack.c.l.s4 1983009808
        %v5857 = vunpack.c.0.s8 %v5856
        %v5858 = vlaneseq
        %v5859 = vshrl.u32 %v5858, 7
        %v5860 = vsub.s32 %v5857, %v5859
        %v5861 = vrot.slane %v5847, %v5860
        %v5862 = vcombine.low %v5806, %v5822
        %v5863 = vcombine.high %v5806, %v5822
        %v5865 = vunpack.c.l.s4 1934713408
        %v5866 = vunpack.c.0.s8 %v5865
        %v5867 = vlaneseq
        %v5868 = vshrl.u32 %v5867, 7
        %v5869 = vsub.s32 %v5866, %v5868
        %v5870 = vrot.slane %v5862, %v5869
        %v5872 = vunpack.c.l.s4 1934713408
        %v5873 = vunpack.c.0.s8 %v5872
        %v5874 = vlaneseq
        %v5875 = vshrl.u32 %v5874, 7
        %v5876 = vsub.s32 %v5873, %v5875
        %v5877 = vrot.slane %v5863, %v5876
        %v5878 = vcombine.low %v5813, %v5829
        %v5879 = vcombine.high %v5813, %v5829
        %v5881 = vunpack.c.l.s4 1934713408
        %v5882 = vunpack.c.0.s8 %v5881
        %v5883 = vlaneseq
        %v5884 = vshrl.u32 %v5883, 7
        %v5885 = vsub.s32 %v5882, %v5884
        %v5886 = vrot.slane %v5878, %v5885
        %v5888 = vunpack.c.l.s4 1934713408
        %v5889 = vunpack.c.0.s8 %v5888
        %v5890 = vlaneseq
        %v5891 = vshrl.u32 %v5890, 7
        %v5892 = vsub.s32 %v5889, %v5891
        %v5893 = vrot.slane %v5879, %v5892
        %v5894 = vcombine.low %v5838, %v5854
        %v5895 = vcombine.high %v5838, %v5854
        %v5897 = vunpack.c.l.s4 1934713408
        %v5898 = vunpack.c.0.s8 %v5897
        %v5899 = vlaneseq
        %v5900 = vshrl.u32 %v5899, 7
        %v5901 = vsub.s32 %v5898, %v5900
        %v5902 = vrot.slane %v5894, %v5901
        %v5904 = vunpack.c.l.s4 1934713408
        %v5905 = vunpack.c.0.s8 %v5904
        %v5906 = vlaneseq
        %v5907 = vshrl.u32 %v5906, 7
        %v5908 = vsub.s32 %v5905, %v5907
        %v5909 = vrot.slane %v5895, %v5908
        %v5910 = vcombine.low %v5845, %v5861
        %v5911 = vcombine.high %v5845, %v5861
        %v5913 = vunpack.c.l.s4 1934713408
        %v5914 = vunpack.c.0.s8 %v5913
        %v5915 = vlaneseq
        %v5916 = vshrl.u32 %v5915, 7
        %v5917 = vsub.s32 %v5914, %v5916
        %v5918 = vrot.slane %v5910, %v5917
        %v5920 = vunpack.c.l.s4 1934713408
        %v5921 = vunpack.c.0.s8 %v5920
        %v5922 = vlaneseq
        %v5923 = vshrl.u32 %v5922, 7
        %v5924 = vsub.s32 %v5921, %v5923
        %v5925 = vrot.slane %v5911, %v5924
        %v5926 = vcombine.low %v5870, %v5902
        %v5927 = vcombine.high %v5870, %v5902
        %v5928 = vcombine.low %v5877, %v5909
        %v5929 = vcombine.high %v5877, %v5909
        %v5930 = vcombine.low %v5886, %v5918
        %v5931 = vcombine.high %v5886, %v5918
        %v5932 = vcombine.low %v5893, %v5925
        %v5933 = vcombine.high %v5893, %v5925
        %v5934 = vcombine.low %v5705, %v5721
        %v5935 = vcombine.high %v5705, %v5721
        %v5937 = vunpack.c.l.s4 1983009808
        %v5938 = vunpack.c.0.s8 %v5937
        %v5939 = vlaneseq
        %v5940 = vshrl.u32 %v5939, 7
        %v5941 = vsub.s32 %v5938, %v5940
        %v5942 = vrot.slane %v5934, %v5941
        %v5944 = vunpack.c.l.s4 1983009808
        %v5945 = vunpack.c.0.s8 %v5944
        %v5946 = vlaneseq
        %v5947 = vshrl.u32 %v5946, 7
        %v5948 = vsub.s32 %v5945, %v5947
        %v5949 = vrot.slane %v5935, %v5948
        %v5950 = vcombine.low %v5713, %v5729
        %v5951 = vcombine.high %v5713, %v5729
        %v5953 = vunpack.c.l.s4 1983009808
        %v5954 = vunpack.c.0.s8 %v5953
        %v5955 = vlaneseq
        %v5956 = vshrl.u32 %v5955, 7
        %v5957 = vsub.s32 %v5954, %v5956
        %v5958 = vrot.slane %v5950, %v5957
        %v5960 = vunpack.c.l.s4 1983009808
        %v5961 = vunpack.c.0.s8 %v5960
        %v5962 = vlaneseq
        %v5963 = vshrl.u32 %v5962, 7
        %v5964 = vsub.s32 %v5961, %v5963
        %v5965 = vrot.slane %v5951, %v5964
        %v5966 = vcombine.low %v5737, %v5753
        %v5967 = vcombine.high %v5737, %v5753
        %v5969 = vunpack.c.l.s4 1983009808
        %v5970 = vunpack.c.0.s8 %v5969
        %v5971 = vlaneseq
        %v5972 = vshrl.u32 %v5971, 7
        %v5973 = vsub.s32 %v5970, %v5972
        %v5974 = vrot.slane %v5966, %v5973
        %v5976 = vunpack.c.l.s4 1983009808
        %v5977 = vunpack.c.0.s8 %v5976
        %v5978 = vlaneseq
        %v5979 = vshrl.u32 %v5978, 7
        %v5980 = vsub.s32 %v5977, %v5979
        %v5981 = vrot.slane %v5967, %v5980
        %v5982 = vcombine.low %v5745, %v5761
        %v5983 = vcombine.high %v5745, %v5761
        %v5985 = vunpack.c.l.s4 1983009808
        %v5986 = vunpack.c.0.s8 %v5985
        %v5987 = vlaneseq
        %v5988 = vshrl.u32 %v5987, 7
        %v5989 = vsub.s32 %v5986, %v5988
        %v5990 = vrot.slane %v5982, %v5989
        %v5992 = vunpack.c.l.s4 1983009808
        %v5993 = vunpack.c.0.s8 %v5992
        %v5994 = vlaneseq
        %v5995 = vshrl.u32 %v5994, 7
        %v5996 = vsub.s32 %v5993, %v5995
        %v5997 = vrot.slane %v5983, %v5996
        %v5998 = vcombine.low %v5942, %v5958
        %v5999 = vcombine.high %v5942, %v5958
        %v6001 = vunpack.c.l.s4 1934713408
        %v6002 = vunpack.c.0.s8 %v6001
        %v6003 = vlaneseq
        %v6004 = vshrl.u32 %v6003, 7
        %v6005 = vsub.s32 %v6002, %v6004
        %v6006 = vrot.slane %v5998, %v6005
        %v6008 = vunpack.c.l.s4 1934713408
        %v6009 = vunpack.c.0.s8 %v6008
        %v6010 = vlaneseq
        %v6011 = vshrl.u32 %v6010, 7
        %v6012 = vsub.s32 %v6009, %v6011
        %v6013 = vrot.slane %v5999, %v6012
        %v6014 = vcombine.low %v5949, %v5965
        %v6015 = vcombine.high %v5949, %v5965
        %v6017 = vunpack.c.l.s4 1934713408
        %v6018 = vunpack.c.0.s8 %v6017
        %v6019 = vlaneseq
        %v6020 = vshrl.u32 %v6019, 7
        %v6021 = vsub.s32 %v6018, %v6020
        %v6022 = vrot.slane %v6014, %v6021
        %v6024 = vunpack.c.l.s4 1934713408
        %v6025 = vunpack.c.0.s8 %v6024
        %v6026 = vlaneseq
        %v6027 = vshrl.u32 %v6026, 7
        %v6028 = vsub.s32 %v6025, %v6027
        %v6029 = vrot.slane %v6015, %v6028
        %v6030 = vcombine.low %v5974, %v5990
        %v6031 = vcombine.high %v5974, %v5990
        %v6033 = vunpack.c.l.s4 1934713408
        %v6034 = vunpack.c.0.s8 %v6033
        %v6035 = vlaneseq
        %v6036 = vshrl.u32 %v6035, 7
        %v6037 = vsub.s32 %v6034, %v6036
        %v6038 = vrot.slane %v6030, %v6037
        %v6040 = vunpack.c.l.s4 1934713408
        %v6041 = vunpack.c.0.s8 %v6040
        %v6042 = vlaneseq
        %v6043 = vshrl.u32 %v6042, 7
        %v6044 = vsub.s32 %v6041, %v6043
        %v6045 = vrot.slane %v6031, %v6044
        %v6046 = vcombine.low %v5981, %v5997
        %v6047 = vcombine.high %v5981, %v5997
        %v6049 = vunpack.c.l.s4 1934713408
        %v6050 = vunpack.c.0.s8 %v6049
        %v6051 = vlaneseq
        %v6052 = vshrl.u32 %v6051, 7
        %v6053 = vsub.s32 %v6050, %v6052
        %v6054 = vrot.slane %v6046, %v6053
        %v6056 = vunpack.c.l.s4 1934713408
        %v6057 = vunpack.c.0.s8 %v6056
        %v6058 = vlaneseq
        %v6059 = vshrl.u32 %v6058, 7
        %v6060 = vsub.s32 %v6057, %v6059
        %v6061 = vrot.slane %v6047, %v6060
        %v6062 = vcombine.low %v6006, %v6038
        %v6063 = vcombine.high %v6006, %v6038
        %v6064 = vcombine.low %v6013, %v6045
        %v6065 = vcombine.high %v6013, %v6045
        %v6066 = vcombine.low %v6022, %v6054
        %v6067 = vcombine.high %v6022, %v6054
        %v6068 = vcombine.low %v6029, %v6061
        %v6069 = vcombine.high %v6029, %v6061
        %v6070 = vcombine.low %v5707, %v5723
        %v6071 = vcombine.high %v5707, %v5723
        %v6073 = vunpack.c.l.s4 1983009808
        %v6074 = vunpack.c.0.s8 %v6073
        %v6075 = vlaneseq
        %v6076 = vshrl.u32 %v6075, 7
        %v6077 = vsub.s32 %v6074, %v6076
        %v6078 = vrot.slane %v6070, %v6077
        %v6080 = vunpack.c.l.s4 1983009808
        %v6081 = vunpack.c.0.s8 %v6080
        %v6082 = vlaneseq
        %v6083 = vshrl.u32 %v6082, 7
        %v6084 = vsub.s32 %v6081, %v6083
        %v6085 = vrot.slane %v6071, %v6084
        %v6086 = vcombine.low %v5715, %v5731
        %v6087 = vcombine.high %v5715, %v5731
        %v6089 = vunpack.c.l.s4 1983009808
        %v6090 = vunpack.c.0.s8 %v6089
        %v6091 = vlaneseq
        %v6092 = vshrl.u32 %v6091, 7
        %v6093 = vsub.s32 %v6090, %v6092
        %v6094 = vrot.slane %v6086, %v6093
        %v6096 = vunpack.c.l.s4 1983009808
        %v6097 = vunpack.c.0.s8 %v6096
        %v6098 = vlaneseq
        %v6099 = vshrl.u32 %v6098, 7
        %v6100 = vsub.s32 %v6097, %v6099
        %v6101 = vrot.slane %v6087, %v6100
        %v6102 = vcombine.low %v5739, %v5755
        %v6103 = vcombine.high %v5739, %v5755
        %v6105 = vunpack.c.l.s4 1983009808
        %v6106 = vunpack.c.0.s8 %v6105
        %v6107 = vlaneseq
        %v6108 = vshrl.u32 %v6107, 7
        %v6109 = vsub.s32 %v6106, %v6108
        %v6110 = vrot.slane %v6102, %v6109
        %v6112 = vunpack.c.l.s4 1983009808
        %v6113 = vunpack.c.0.s8 %v6112
        %v6114 = vlaneseq
        %v6115 = vshrl.u32 %v6114, 7
        %v6116 = vsub.s32 %v6113, %v6115
        %v6117 = vrot.slane %v6103, %v6116
        %v6118 = vcombine.low %v5747, %v5763
        %v6119 = vcombine.high %v5747, %v5763
        %v6121 = vunpack.c.l.s4 1983009808
        %v6122 = vunpack.c.0.s8 %v6121
        %v6123 = vlaneseq
        %v6124 = vshrl.u32 %v6123, 7
        %v6125 = vsub.s32 %v6122, %v6124
        %v6126 = vrot.slane %v6118, %v6125
        %v6128 = vunpack.c.l.s4 1983009808
        %v6129 = vunpack.c.0.s8 %v6128
        %v6130 = vlaneseq
        %v6131 = vshrl.u32 %v6130, 7
        %v6132 = vsub.s32 %v6129, %v6131
        %v6133 = vrot.slane %v6119, %v6132
        %v6134 = vcombine.low %v6078, %v6094
        %v6135 = vcombine.high %v6078, %v6094
        %v6137 = vunpack.c.l.s4 1934713408
        %v6138 = vunpack.c.0.s8 %v6137
        %v6139 = vlaneseq
        %v6140 = vshrl.u32 %v6139, 7
        %v6141 = vsub.s32 %v6138, %v6140
        %v6142 = vrot.slane %v6134, %v6141
        %v6144 = vunpack.c.l.s4 1934713408
        %v6145 = vunpack.c.0.s8 %v6144
        %v6146 = vlaneseq
        %v6147 = vshrl.u32 %v6146, 7
        %v6148 = vsub.s32 %v6145, %v6147
        %v6149 = vrot.slane %v6135, %v6148
        %v6150 = vcombine.low %v6085, %v6101
        %v6151 = vcombine.high %v6085, %v6101
        %v6153 = vunpack.c.l.s4 1934713408
        %v6154 = vunpack.c.0.s8 %v6153
        %v6155 = vlaneseq
        %v6156 = vshrl.u32 %v6155, 7
        %v6157 = vsub.s32 %v6154, %v6156
        %v6158 = vrot.slane %v6150, %v6157
        %v6160 = vunpack.c.l.s4 1934713408
        %v6161 = vunpack.c.0.s8 %v6160
        %v6162 = vlaneseq
        %v6163 = vshrl.u32 %v6162, 7
        %v6164 = vsub.s32 %v6161, %v6163
        %v6165 = vrot.slane %v6151, %v6164
        %v6166 = vcombine.low %v6110, %v6126
        %v6167 = vcombine.high %v6110, %v6126
        %v6169 = vunpack.c.l.s4 1934713408
        %v6170 = vunpack.c.0.s8 %v6169
        %v6171 = vlaneseq
        %v6172 = vshrl.u32 %v6171, 7
        %v6173 = vsub.s32 %v6170, %v6172
        %v6174 = vrot.slane %v6166, %v6173
        %v6176 = vunpack.c.l.s4 1934713408
        %v6177 = vunpack.c.0.s8 %v6176
        %v6178 = vlaneseq
        %v6179 = vshrl.u32 %v6178, 7
        %v6180 = vsub.s32 %v6177, %v6179
        %v6181 = vrot.slane %v6167, %v6180
        %v6182 = vcombine.low %v6117, %v6133
        %v6183 = vcombine.high %v6117, %v6133
        %v6185 = vunpack.c.l.s4 1934713408
        %v6186 = vunpack.c.0.s8 %v6185
        %v6187 = vlaneseq
        %v6188 = vshrl.u32 %v6187, 7
        %v6189 = vsub.s32 %v6186, %v6188
        %v6190 = vrot.slane %v6182, %v6189
        %v6192 = vunpack.c.l.s4 1934713408
        %v6193 = vunpack.c.0.s8 %v6192
        %v6194 = vlaneseq
        %v6195 = vshrl.u32 %v6194, 7
        %v6196 = vsub.s32 %v6193, %v6195
        %v6197 = vrot.slane %v6183, %v6196
        %v6198 = vcombine.low %v6142, %v6174
        %v6199 = vcombine.high %v6142, %v6174
        %v6200 = vcombine.low %v6149, %v6181
        %v6201 = vcombine.high %v6149, %v6181
        %v6202 = vcombine.low %v6158, %v6190
        %v6203 = vcombine.high %v6158, %v6190
        %v6204 = vcombine.low %v6165, %v6197
        %v6205 = vcombine.high %v6165, %v6197
        %v6206 = vcombine.low %v5709, %v5725
        %v6207 = vcombine.high %v5709, %v5725
        %v6209 = vunpack.c.l.s4 1983009808
        %v6210 = vunpack.c.0.s8 %v6209
        %v6211 = vlaneseq
        %v6212 = vshrl.u32 %v6211, 7
        %v6213 = vsub.s32 %v6210, %v6212
        %v6214 = vrot.slane %v6206, %v6213
        %v6216 = vunpack.c.l.s4 1983009808
        %v6217 = vunpack.c.0.s8 %v6216
        %v6218 = vlaneseq
        %v6219 = vshrl.u32 %v6218, 7
        %v6220 = vsub.s32 %v6217, %v6219
        %v6221 = vrot.slane %v6207, %v6220
        %v6222 = vcombine.low %v5717, %v5733
        %v6223 = vcombine.high %v5717, %v5733
        %v6225 = vunpack.c.l.s4 1983009808
        %v6226 = vunpack.c.0.s8 %v6225
        %v6227 = vlaneseq
        %v6228 = vshrl.u32 %v6227, 7
        %v6229 = vsub.s32 %v6226, %v6228
        %v6230 = vrot.slane %v6222, %v6229
        %v6232 = vunpack.c.l.s4 1983009808
        %v6233 = vunpack.c.0.s8 %v6232
        %v6234 = vlaneseq
        %v6235 = vshrl.u32 %v6234, 7
        %v6236 = vsub.s32 %v6233, %v6235
        %v6237 = vrot.slane %v6223, %v6236
        %v6238 = vcombine.low %v5741, %v5757
        %v6239 = vcombine.high %v5741, %v5757
        %v6241 = vunpack.c.l.s4 1983009808
        %v6242 = vunpack.c.0.s8 %v6241
        %v6243 = vlaneseq
        %v6244 = vshrl.u32 %v6243, 7
        %v6245 = vsub.s32 %v6242, %v6244
        %v6246 = vrot.slane %v6238, %v6245
        %v6248 = vunpack.c.l.s4 1983009808
        %v6249 = vunpack.c.0.s8 %v6248
        %v6250 = vlaneseq
        %v6251 = vshrl.u32 %v6250, 7
        %v6252 = vsub.s32 %v6249, %v6251
        %v6253 = vrot.slane %v6239, %v6252
        %v6254 = vcombine.low %v5749, %v5765
        %v6255 = vcombine.high %v5749, %v5765
        %v6257 = vunpack.c.l.s4 1983009808
        %v6258 = vunpack.c.0.s8 %v6257
        %v6259 = vlaneseq
        %v6260 = vshrl.u32 %v6259, 7
        %v6261 = vsub.s32 %v6258, %v6260
        %v6262 = vrot.slane %v6254, %v6261
        %v6264 = vunpack.c.l.s4 1983009808
        %v6265 = vunpack.c.0.s8 %v6264
        %v6266 = vlaneseq
        %v6267 = vshrl.u32 %v6266, 7
        %v6268 = vsub.s32 %v6265, %v6267
        %v6269 = vrot.slane %v6255, %v6268
        %v6270 = vcombine.low %v6214, %v6230
        %v6271 = vcombine.high %v6214, %v6230
        %v6273 = vunpack.c.l.s4 1934713408
        %v6274 = vunpack.c.0.s8 %v6273
        %v6275 = vlaneseq
        %v6276 = vshrl.u32 %v6275, 7
        %v6277 = vsub.s32 %v6274, %v6276
        %v6278 = vrot.slane %v6270, %v6277
        %v6280 = vunpack.c.l.s4 1934713408
        %v6281 = vunpack.c.0.s8 %v6280
        %v6282 = vlaneseq
        %v6283 = vshrl.u32 %v6282, 7
        %v6284 = vsub.s32 %v6281, %v6283
        %v6285 = vrot.slane %v6271, %v6284
        %v6286 = vcombine.low %v6221, %v6237
        %v6287 = vcombine.high %v6221, %v6237
        %v6289 = vunpack.c.l.s4 1934713408
        %v6290 = vunpack.c.0.s8 %v6289
        %v6291 = vlaneseq
        %v6292 = vshrl.u32 %v6291, 7
        %v6293 = vsub.s32 %v6290, %v6292
        %v6294 = vrot.slane %v6286, %v6293
        %v6296 = vunpack.c.l.s4 1934713408
        %v6297 = vunpack.c.0.s8 %v6296
        %v6298 = vlaneseq
        %v6299 = vshrl.u32 %v6298, 7
        %v6300 = vsub.s32 %v6297, %v6299
        %v6301 = vrot.slane %v6287, %v6300
        %v6302 = vcombine.low %v6246, %v6262
        %v6303 = vcombine.high %v6246, %v6262
        %v6305 = vunpack.c.l.s4 1934713408
        %v6306 = vunpack.c.0.s8 %v6305
        %v6307 = vlaneseq
        %v6308 = vshrl.u32 %v6307, 7
        %v6309 = vsub.s32 %v6306, %v6308
        %v6310 = vrot.slane %v6302, %v6309
        %v6312 = vunpack.c.l.s4 1934713408
        %v6313 = vunpack.c.0.s8 %v6312
        %v6314 = vlaneseq
        %v6315 = vshrl.u32 %v6314, 7
        %v6316 = vsub.s32 %v6313, %v6315
        %v6317 = vrot.slane %v6303, %v6316
        %v6318 = vcombine.low %v6253, %v6269
        %v6319 = vcombine.high %v6253, %v6269
        %v6321 = vunpack.c.l.s4 1934713408
        %v6322 = vunpack.c.0.s8 %v6321
        %v6323 = vlaneseq
        %v6324 = vshrl.u32 %v6323, 7
        %v6325 = vsub.s32 %v6322, %v6324
        %v6326 = vrot.slane %v6318, %v6325
        %v6328 = vunpack.c.l.s4 1934713408
        %v6329 = vunpack.c.0.s8 %v6328
        %v6330 = vlaneseq
        %v6331 = vshrl.u32 %v6330, 7
        %v6332 = vsub.s32 %v6329, %v6331
        %v6333 = vrot.slane %v6319, %v6332
        %v6334 = vcombine.low %v6278, %v6310
        %v6335 = vcombine.high %v6278, %v6310
        %v6336 = vcombine.low %v6285, %v6317
        %v6337 = vcombine.high %v6285, %v6317
        %v6338 = vcombine.low %v6294, %v6326
        %v6339 = vcombine.high %v6294, %v6326
        %v6340 = vcombine.low %v6301, %v6333
        %v6341 = vcombine.high %v6301, %v6333
        %6343 = vrot.lane.b32.xlu0 %v5927, 32
        %v6344 = vpop.permute.xlu0 %6343
        %6347 = vrot.lane.b32.xlu0 %v5928, 64
        %v6348 = vpop.permute.xlu0 %6347
        %6351 = vrot.lane.b32.xlu0 %v5929, 96
        %v6352 = vpop.permute.xlu0 %6351
        %6355 = vrot.lane.b32.xlu0 %v5931, 32
        %v6356 = vpop.permute.xlu0 %6355
        %6359 = vrot.lane.b32.xlu0 %v5932, 64
        %v6360 = vpop.permute.xlu0 %6359
        %6363 = vrot.lane.b32.xlu0 %v5933, 96
        %v6364 = vpop.permute.xlu0 %6363
        %6367 = vrot.lane.b32.xlu0 %v6063, 32
        %v6368 = vpop.permute.xlu0 %6367
        %6371 = vrot.lane.b32.xlu0 %v6064, 64
        %v6372 = vpop.permute.xlu0 %6371
        %6375 = vrot.lane.b32.xlu0 %v6065, 96
        %v6376 = vpop.permute.xlu0 %6375
        %6379 = vrot.lane.b32.xlu0 %v6067, 32
        %v6380 = vpop.permute.xlu0 %6379
        %6383 = vrot.lane.b32.xlu0 %v6068, 64
        %v6384 = vpop.permute.xlu0 %6383
        %6387 = vrot.lane.b32.xlu0 %v6069, 96
        %v6388 = vpop.permute.xlu0 %6387
        %6391 = vrot.lane.b32.xlu0 %v6199, 32
        %v6392 = vpop.permute.xlu0 %6391
        %6395 = vrot.lane.b32.xlu0 %v6200, 64
        %v6396 = vpop.permute.xlu0 %6395
        %6399 = vrot.lane.b32.xlu0 %v6201, 96
        %v6400 = vpop.permute.xlu0 %6399
        %6403 = vrot.lane.b32.xlu0 %v6203, 32
        %v6404 = vpop.permute.xlu0 %6403
        %6407 = vrot.lane.b32.xlu0 %v6204, 64
        %v6408 = vpop.permute.xlu0 %6407
        %6411 = vrot.lane.b32.xlu0 %v6205, 96
        %v6412 = vpop.permute.xlu0 %6411
        %6415 = vrot.lane.b32.xlu0 %v6335, 32
        %v6416 = vpop.permute.xlu0 %6415
        %6419 = vrot.lane.b32.xlu0 %v6336, 64
        %v6420 = vpop.permute.xlu0 %6419
        %6423 = vrot.lane.b32.xlu0 %v6337, 96
        %v6424 = vpop.permute.xlu0 %6423
        %6427 = vrot.lane.b32.xlu0 %v6339, 32
        %v6428 = vpop.permute.xlu0 %6427
        %6431 = vrot.lane.b32.xlu0 %v6340, 64
        %v6432 = vpop.permute.xlu0 %6431
        %6435 = vrot.lane.b32.xlu0 %v6341, 96
        %v6436 = vpop.permute.xlu0 %6435
        %v6438 = vsel %vm2127, %v5926, %v6344
        %v6439 = vsel %vm2129, %v6438, %v6348
        %v6440 = vsel %vm2131, %v6439, %v6352
        %v6441 = vsel %vm2127, %v5930, %v6356
        %v6442 = vsel %vm2129, %v6441, %v6360
        %v6443 = vsel %vm2131, %v6442, %v6364
        %v6444 = vsel %vm2127, %v6062, %v6368
        %v6445 = vsel %vm2129, %v6444, %v6372
        %v6446 = vsel %vm2131, %v6445, %v6376
        %v6447 = vsel %vm2127, %v6066, %v6380
        %v6448 = vsel %vm2129, %v6447, %v6384
        %v6449 = vsel %vm2131, %v6448, %v6388
        %v6450 = vsel %vm2127, %v6198, %v6392
        %v6451 = vsel %vm2129, %v6450, %v6396
        %v6452 = vsel %vm2131, %v6451, %v6400
        %v6453 = vsel %vm2127, %v6202, %v6404
        %v6454 = vsel %vm2129, %v6453, %v6408
        %v6455 = vsel %vm2131, %v6454, %v6412
        %v6456 = vsel %vm2127, %v6334, %v6416
        %v6457 = vsel %vm2129, %v6456, %v6420
        %v6458 = vsel %vm2131, %v6457, %v6424
        %v6459 = vsel %vm2127, %v6338, %v6428
        %v6460 = vsel %vm2129, %v6459, %v6432
        %v6461 = vsel %vm2131, %v6460, %v6436
        %s6462 = scalar_lea.vmem %s3, 16
        %v6463 = vld [vmem:[%s6462] sm:$0xf]
        %v6465 = vsel %vm2949, %v6463, 0
        %6467 = vmatprep.subr.mxu0 %v6443
        %6468 = vmatpush1.msra.mxu0 %v6440
        %6469 = vmatprep.subr.mxu0 0.0
        %6470 = vmatpush1.msra.mxu0 0.0
        %6471 = vmatprep.subr.mxu0 0.0
        %6472 = vmatpush1.msra.mxu0 0.0
        %6473 = vmatprep.subr.mxu0 0.0
        %6474 = vmatpush1.msra.mxu0 0.0
        %6475 = vmatprep.subr.mxu0 0.0
        %6476 = vmatpush1.msra.mxu0 0.0
        %6477 = vmatprep.subr.mxu0 0.0
        %6478 = vmatpush1.msra.mxu0 0.0
        %6479 = vmatprep.subr.mxu0 0.0
        %6480 = vmatpush1.msra.mxu0 0.0
        %6481 = vmatprep.subr.mxu0 0.0
        %6482 = vmatpush1.msra.mxu0 0.0
        %6483 = vmatprep.subr.mxu0 0.0
        %6484 = vmatpush1.msra.mxu0 0.0
        %6485 = vmatprep.subr.mxu0 0.0
        %6486 = vmatpush1.msra.mxu0 0.0
        %6487 = vmatprep.subr.mxu0 0.0
        %6488 = vmatpush1.msra.mxu0 0.0
        %6489 = vmatprep.subr.mxu0 0.0
        %6490 = vmatpush1.msra.mxu0 0.0
        %6491 = vmatprep.subr.mxu0 0.0
        %6492 = vmatpush1.msra.mxu0 0.0
        %6493 = vmatprep.subr.mxu0 0.0
        %6494 = vmatpush1.msra.mxu0 0.0
        %6495 = vmatprep.subr.mxu0 0.0
        %6496 = vmatpush1.msra.mxu0 0.0
        %6497 = vmatprep.subr.mxu0 0.0
        %6498 = vmatpush1.msra.mxu0 0.0
        %6499 = vmatprep.subr.mxu0 0.0
        %6500 = vmatpush1.msra.mxu0 0.0
        %6501 = vmatprep.subr.mxu0 0.0
        %6502 = vmatpush1.msra.mxu0 0.0
        %6503 = vmatprep.subr.mxu0 0.0
        %6504 = vmatpush1.msra.mxu0 0.0
        %6505 = vmatprep.subr.mxu0 0.0
        %6506 = vmatpush1.msra.mxu0 0.0
        %6507 = vmatprep.subr.mxu0 0.0
        %6508 = vmatpush1.msra.mxu0 0.0
        %6509 = vmatprep.subr.mxu0 0.0
        %6510 = vmatpush1.msra.mxu0 0.0
        %6511 = vmatprep.subr.mxu0 0.0
        %6512 = vmatpush1.msra.mxu0 0.0
        %6513 = vmatprep.subr.mxu0 0.0
        %6514 = vmatpush1.msra.mxu0 0.0
        %6515 = vmatprep.subr.mxu0 0.0
        %6516 = vmatpush1.msra.mxu0 0.0
        %6517 = vmatprep.subr.mxu0 0.0
        %6518 = vmatpush1.msra.mxu0 0.0
        %6519 = vmatprep.subr.mxu0 0.0
        %6520 = vmatpush1.msra.mxu0 0.0
        %6521 = vmatprep.subr.mxu0 0.0
        %6522 = vmatpush1.msra.mxu0 0.0
        %6523 = vmatprep.subr.mxu0 0.0
        %6524 = vmatpush1.msra.mxu0 0.0
        %6525 = vmatprep.subr.mxu0 0.0
        %6526 = vmatpush1.msra.mxu0 0.0
        %6527 = vmatprep.subr.mxu0 0.0
        %6528 = vmatpush1.msra.mxu0 0.0
        %6529 = vmatprep.subr.mxu0 0.0
        %6530 = vmatpush1.msra.mxu0 0.0
        %6531 = vmatprep.mubr.f32.mxu0 0.0
        %6532 = vmatmul.mubr.f32.gmra.mrb[0].mxu0 %v6465
        %v6533 = vpop.f32.mrb[0].mxu0
        %v6534 = vadd.f32 0.0, %v6533
        %v6535 = vpop.f32.mrb[0].mxu0
        %v6536 = vadd.f32 0.0, %v6535
        %6537 = vdwg.mxu0
        %6538 = vmatprep.subr.mxu0 %v6449
        %6539 = vmatpush1.msra.mxu0 %v6446
        %6540 = vmatprep.subr.mxu0 0.0
        %6541 = vmatpush1.msra.mxu0 0.0
        %6542 = vmatprep.subr.mxu0 0.0
        %6543 = vmatpush1.msra.mxu0 0.0
        %6544 = vmatprep.subr.mxu0 0.0
        %6545 = vmatpush1.msra.mxu0 0.0
        %6546 = vmatprep.subr.mxu0 0.0
        %6547 = vmatpush1.msra.mxu0 0.0
        %6548 = vmatprep.subr.mxu0 0.0
        %6549 = vmatpush1.msra.mxu0 0.0
        %6550 = vmatprep.subr.mxu0 0.0
        %6551 = vmatpush1.msra.mxu0 0.0
        %6552 = vmatprep.subr.mxu0 0.0
        %6553 = vmatpush1.msra.mxu0 0.0
        %6554 = vmatprep.subr.mxu0 0.0
        %6555 = vmatpush1.msra.mxu0 0.0
        %6556 = vmatprep.subr.mxu0 0.0
        %6557 = vmatpush1.msra.mxu0 0.0
        %6558 = vmatprep.subr.mxu0 0.0
        %6559 = vmatpush1.msra.mxu0 0.0
        %6560 = vmatprep.subr.mxu0 0.0
        %6561 = vmatpush1.msra.mxu0 0.0
        %6562 = vmatprep.subr.mxu0 0.0
        %6563 = vmatpush1.msra.mxu0 0.0
        %6564 = vmatprep.subr.mxu0 0.0
        %6565 = vmatpush1.msra.mxu0 0.0
        %6566 = vmatprep.subr.mxu0 0.0
        %6567 = vmatpush1.msra.mxu0 0.0
        %6568 = vmatprep.subr.mxu0 0.0
        %6569 = vmatpush1.msra.mxu0 0.0
        %6570 = vmatprep.subr.mxu0 0.0
        %6571 = vmatpush1.msra.mxu0 0.0
        %6572 = vmatprep.subr.mxu0 0.0
        %6573 = vmatpush1.msra.mxu0 0.0
        %6574 = vmatprep.subr.mxu0 0.0
        %6575 = vmatpush1.msra.mxu0 0.0
        %6576 = vmatprep.subr.mxu0 0.0
        %6577 = vmatpush1.msra.mxu0 0.0
        %6578 = vmatprep.subr.mxu0 0.0
        %6579 = vmatpush1.msra.mxu0 0.0
        %6580 = vmatprep.subr.mxu0 0.0
        %6581 = vmatpush1.msra.mxu0 0.0
        %6582 = vmatprep.subr.mxu0 0.0
        %6583 = vmatpush1.msra.mxu0 0.0
        %6584 = vmatprep.subr.mxu0 0.0
        %6585 = vmatpush1.msra.mxu0 0.0
        %6586 = vmatprep.subr.mxu0 0.0
        %6587 = vmatpush1.msra.mxu0 0.0
        %6588 = vmatprep.subr.mxu0 0.0
        %6589 = vmatpush1.msra.mxu0 0.0
        %6590 = vmatprep.subr.mxu0 0.0
        %6591 = vmatpush1.msra.mxu0 0.0
        %6592 = vmatprep.subr.mxu0 0.0
        %6593 = vmatpush1.msra.mxu0 0.0
        %6594 = vmatprep.subr.mxu0 0.0
        %6595 = vmatpush1.msra.mxu0 0.0
        %6596 = vmatprep.subr.mxu0 0.0
        %6597 = vmatpush1.msra.mxu0 0.0
        %6598 = vmatprep.subr.mxu0 0.0
        %6599 = vmatpush1.msra.mxu0 0.0
        %6600 = vmatprep.subr.mxu0 0.0
        %6601 = vmatpush1.msra.mxu0 0.0
        %6602 = vmatprep.mubr.f32.mxu0 0.0
        %6603 = vmatmul.mubr.f32.gmra.mrb[0].mxu0 %v6465
        %v6604 = vpop.f32.mrb[0].mxu0
        %v6605 = vadd.f32 0.0, %v6604
        %v6606 = vpop.f32.mrb[0].mxu0
        %v6607 = vadd.f32 0.0, %v6606
        %6608 = vdwg.mxu0
        %6609 = vmatprep.subr.mxu0 %v6455
        %6610 = vmatpush1.msra.mxu0 %v6452
        %6611 = vmatprep.subr.mxu0 0.0
        %6612 = vmatpush1.msra.mxu0 0.0
        %6613 = vmatprep.subr.mxu0 0.0
        %6614 = vmatpush1.msra.mxu0 0.0
        %6615 = vmatprep.subr.mxu0 0.0
        %6616 = vmatpush1.msra.mxu0 0.0
        %6617 = vmatprep.subr.mxu0 0.0
        %6618 = vmatpush1.msra.mxu0 0.0
        %6619 = vmatprep.subr.mxu0 0.0
        %6620 = vmatpush1.msra.mxu0 0.0
        %6621 = vmatprep.subr.mxu0 0.0
        %6622 = vmatpush1.msra.mxu0 0.0
        %6623 = vmatprep.subr.mxu0 0.0
        %6624 = vmatpush1.msra.mxu0 0.0
        %6625 = vmatprep.subr.mxu0 0.0
        %6626 = vmatpush1.msra.mxu0 0.0
        %6627 = vmatprep.subr.mxu0 0.0
        %6628 = vmatpush1.msra.mxu0 0.0
        %6629 = vmatprep.subr.mxu0 0.0
        %6630 = vmatpush1.msra.mxu0 0.0
        %6631 = vmatprep.subr.mxu0 0.0
        %6632 = vmatpush1.msra.mxu0 0.0
        %6633 = vmatprep.subr.mxu0 0.0
        %6634 = vmatpush1.msra.mxu0 0.0
        %6635 = vmatprep.subr.mxu0 0.0
        %6636 = vmatpush1.msra.mxu0 0.0
        %6637 = vmatprep.subr.mxu0 0.0
        %6638 = vmatpush1.msra.mxu0 0.0
        %6639 = vmatprep.subr.mxu0 0.0
        %6640 = vmatpush1.msra.mxu0 0.0
        %6641 = vmatprep.subr.mxu0 0.0
        %6642 = vmatpush1.msra.mxu0 0.0
        %6643 = vmatprep.subr.mxu0 0.0
        %6644 = vmatpush1.msra.mxu0 0.0
        %6645 = vmatprep.subr.mxu0 0.0
        %6646 = vmatpush1.msra.mxu0 0.0
        %6647 = vmatprep.subr.mxu0 0.0
        %6648 = vmatpush1.msra.mxu0 0.0
        %6649 = vmatprep.subr.mxu0 0.0
        %6650 = vmatpush1.msra.mxu0 0.0
        %6651 = vmatprep.subr.mxu0 0.0
        %6652 = vmatpush1.msra.mxu0 0.0
        %6653 = vmatprep.subr.mxu0 0.0
        %6654 = vmatpush1.msra.mxu0 0.0
        %6655 = vmatprep.subr.mxu0 0.0
        %6656 = vmatpush1.msra.mxu0 0.0
        %6657 = vmatprep.subr.mxu0 0.0
        %6658 = vmatpush1.msra.mxu0 0.0
        %6659 = vmatprep.subr.mxu0 0.0
        %6660 = vmatpush1.msra.mxu0 0.0
        %6661 = vmatprep.subr.mxu0 0.0
        %6662 = vmatpush1.msra.mxu0 0.0
        %6663 = vmatprep.subr.mxu0 0.0
        %6664 = vmatpush1.msra.mxu0 0.0
        %6665 = vmatprep.subr.mxu0 0.0
        %6666 = vmatpush1.msra.mxu0 0.0
        %6667 = vmatprep.subr.mxu0 0.0
        %6668 = vmatpush1.msra.mxu0 0.0
        %6669 = vmatprep.subr.mxu0 0.0
        %6670 = vmatpush1.msra.mxu0 0.0
        %6671 = vmatprep.subr.mxu0 0.0
        %6672 = vmatpush1.msra.mxu0 0.0
        %6673 = vmatprep.mubr.f32.mxu0 0.0
        %6674 = vmatmul.mubr.f32.gmra.mrb[0].mxu0 %v6465
        %v6675 = vpop.f32.mrb[0].mxu0
        %v6676 = vadd.f32 0.0, %v6675
        %v6677 = vpop.f32.mrb[0].mxu0
        %v6678 = vadd.f32 0.0, %v6677
        %6679 = vdwg.mxu0
        %6680 = vmatprep.subr.mxu0 %v6461
        %6681 = vmatpush1.msra.mxu0 %v6458
        %6682 = vmatprep.subr.mxu0 0.0
        %6683 = vmatpush1.msra.mxu0 0.0
        %6684 = vmatprep.subr.mxu0 0.0
        %6685 = vmatpush1.msra.mxu0 0.0
        %6686 = vmatprep.subr.mxu0 0.0
        %6687 = vmatpush1.msra.mxu0 0.0
        %6688 = vmatprep.subr.mxu0 0.0
        %6689 = vmatpush1.msra.mxu0 0.0
        %6690 = vmatprep.subr.mxu0 0.0
        %6691 = vmatpush1.msra.mxu0 0.0
        %6692 = vmatprep.subr.mxu0 0.0
        %6693 = vmatpush1.msra.mxu0 0.0
        %6694 = vmatprep.subr.mxu0 0.0
        %6695 = vmatpush1.msra.mxu0 0.0
        %6696 = vmatprep.subr.mxu0 0.0
        %6697 = vmatpush1.msra.mxu0 0.0
        %6698 = vmatprep.subr.mxu0 0.0
        %6699 = vmatpush1.msra.mxu0 0.0
        %6700 = vmatprep.subr.mxu0 0.0
        %6701 = vmatpush1.msra.mxu0 0.0
        %6702 = vmatprep.subr.mxu0 0.0
        %6703 = vmatpush1.msra.mxu0 0.0
        %6704 = vmatprep.subr.mxu0 0.0
        %6705 = vmatpush1.msra.mxu0 0.0
        %6706 = vmatprep.subr.mxu0 0.0
        %6707 = vmatpush1.msra.mxu0 0.0
        %6708 = vmatprep.subr.mxu0 0.0
        %6709 = vmatpush1.msra.mxu0 0.0
        %6710 = vmatprep.subr.mxu0 0.0
        %6711 = vmatpush1.msra.mxu0 0.0
        %6712 = vmatprep.subr.mxu0 0.0
        %6713 = vmatpush1.msra.mxu0 0.0
        %6714 = vmatprep.subr.mxu0 0.0
        %6715 = vmatpush1.msra.mxu0 0.0
        %6716 = vmatprep.subr.mxu0 0.0
        %6717 = vmatpush1.msra.mxu0 0.0
        %6718 = vmatprep.subr.mxu0 0.0
        %6719 = vmatpush1.msra.mxu0 0.0
        %6720 = vmatprep.subr.mxu0 0.0
        %6721 = vmatpush1.msra.mxu0 0.0
        %6722 = vmatprep.subr.mxu0 0.0
        %6723 = vmatpush1.msra.mxu0 0.0
        %6724 = vmatprep.subr.mxu0 0.0
        %6725 = vmatpush1.msra.mxu0 0.0
        %6726 = vmatprep.subr.mxu0 0.0
        %6727 = vmatpush1.msra.mxu0 0.0
        %6728 = vmatprep.subr.mxu0 0.0
        %6729 = vmatpush1.msra.mxu0 0.0
        %6730 = vmatprep.subr.mxu0 0.0
        %6731 = vmatpush1.msra.mxu0 0.0
        %6732 = vmatprep.subr.mxu0 0.0
        %6733 = vmatpush1.msra.mxu0 0.0
        %6734 = vmatprep.subr.mxu0 0.0
        %6735 = vmatpush1.msra.mxu0 0.0
        %6736 = vmatprep.subr.mxu0 0.0
        %6737 = vmatpush1.msra.mxu0 0.0
        %6738 = vmatprep.subr.mxu0 0.0
        %6739 = vmatpush1.msra.mxu0 0.0
        %6740 = vmatprep.subr.mxu0 0.0
        %6741 = vmatpush1.msra.mxu0 0.0
        %6742 = vmatprep.subr.mxu0 0.0
        %6743 = vmatpush1.msra.mxu0 0.0
        %6744 = vmatprep.mubr.f32.mxu0 0.0
        %6745 = vmatmul.mubr.f32.gmra.mrb[0].mxu0 %v6465
        %v6746 = vpop.f32.mrb[0].mxu0
        %v6747 = vadd.f32 0.0, %v6746
        %v6748 = vpop.f32.mrb[0].mxu0
        %v6749 = vadd.f32 0.0, %v6748
        %6750 = vdwg.mxu0
        %v6751 = vadd.f32 %v5630, %v6534
        %v6752 = vadd.f32 %v5631, %v6536
        %v6753 = vadd.f32 %v5632, %v6605
        %v6754 = vadd.f32 %v5633, %v6607
        %v6755 = vadd.f32 %v5634, %v6676
        %v6756 = vadd.f32 %v5635, %v6678
        %v6757 = vadd.f32 %v5636, %v6747
        %v6758 = vadd.f32 %v5637, %v6749
        %v6759 = vld [vmem:[#allocation2 + $0x1] sm:$0xff]
        %v6760 = vld [vmem:[#allocation2 + $0x9] sm:$0xff]
        %v6761 = vld [vmem:[#allocation2 + $0x11] sm:$0xff]
        %v6762 = vld [vmem:[#allocation2 + $0x19] sm:$0xff]
        %v6763 = vld [vmem:[#allocation2 + $0x29] sm:$0xff]
        %v6764 = vld [vmem:[#allocation2 + $0x31] sm:$0xff]
        %v6765 = vld [vmem:[#allocation2 + $0x39] sm:$0xff]
        %v6766 = vld [vmem:[#allocation2 + $0x41] sm:$0xff]
        %v6767 = vld [vmem:[#allocation2 + $0x51] sm:$0xff]
        %v6768 = vld [vmem:[#allocation2 + $0x59] sm:$0xff]
        %v6769 = vld [vmem:[#allocation2 + $0x61] sm:$0xff]
        %v6770 = vld [vmem:[#allocation2 + $0x69] sm:$0xff]
        %v6771 = vld [vmem:[#allocation2 + $0x79] sm:$0xff]
        %v6772 = vld [vmem:[#allocation2 + $0x81] sm:$0xff]
        %v6773 = vld [vmem:[#allocation2 + $0x89] sm:$0xff]
        %v6774 = vld [vmem:[#allocation2 + $0x91] sm:$0xff]
        %v6775 = vld [vmem:[#allocation2 + $0xa1] sm:$0xff]
        %v6776 = vld [vmem:[#allocation2 + $0xa9] sm:$0xff]
        %v6777 = vld [vmem:[#allocation2 + $0xb1] sm:$0xff]
        %v6778 = vld [vmem:[#allocation2 + $0xb9] sm:$0xff]
        %v6779 = vld [vmem:[#allocation2 + $0xc9] sm:$0xff]
        %v6780 = vld [vmem:[#allocation2 + $0xd1] sm:$0xff]
        %v6781 = vld [vmem:[#allocation2 + $0xd9] sm:$0xff]
        %v6782 = vld [vmem:[#allocation2 + $0xe1] sm:$0xff]
        %v6783 = vld [vmem:[#allocation2 + $0xf1] sm:$0xff]
        %v6784 = vld [vmem:[#allocation2 + $0xf9] sm:$0xff]
        %v6785 = vld [vmem:[#allocation2 + $0x101] sm:$0xff]
        %v6786 = vld [vmem:[#allocation2 + $0x109] sm:$0xff]
        %v6787 = vld [vmem:[#allocation2 + $0x119] sm:$0xff]
        %v6788 = vld [vmem:[#allocation2 + $0x121] sm:$0xff]
        %v6789 = vld [vmem:[#allocation2 + $0x129] sm:$0xff]
        %v6790 = vld [vmem:[#allocation2 + $0x131] sm:$0xff]
        %6823 = vrot.lane.b32.xlu0 %v6759, 126
        %v6824 = vpop.permute.xlu0 %6823
        %6825 = vrot.lane.b32.xlu0 %v6760, 126
        %v6826 = vpop.permute.xlu0 %6825
        %6827 = vrot.lane.b32.xlu0 %v6761, 126
        %v6828 = vpop.permute.xlu0 %6827
        %6829 = vrot.lane.b32.xlu0 %v6762, 126
        %v6830 = vpop.permute.xlu0 %6829
        %6831 = vrot.lane.b32.xlu0 %v6763, 126
        %v6832 = vpop.permute.xlu0 %6831
        %6833 = vrot.lane.b32.xlu0 %v6764, 126
        %v6834 = vpop.permute.xlu0 %6833
        %6835 = vrot.lane.b32.xlu0 %v6765, 126
        %v6836 = vpop.permute.xlu0 %6835
        %6837 = vrot.lane.b32.xlu0 %v6766, 126
        %v6838 = vpop.permute.xlu0 %6837
        %6839 = vrot.lane.b32.xlu0 %v6767, 126
        %v6840 = vpop.permute.xlu0 %6839
        %6841 = vrot.lane.b32.xlu0 %v6768, 126
        %v6842 = vpop.permute.xlu0 %6841
        %6843 = vrot.lane.b32.xlu0 %v6769, 126
        %v6844 = vpop.permute.xlu0 %6843
        %6845 = vrot.lane.b32.xlu0 %v6770, 126
        %v6846 = vpop.permute.xlu0 %6845
        %6847 = vrot.lane.b32.xlu0 %v6771, 126
        %v6848 = vpop.permute.xlu0 %6847
        %6849 = vrot.lane.b32.xlu0 %v6772, 126
        %v6850 = vpop.permute.xlu0 %6849
        %6851 = vrot.lane.b32.xlu0 %v6773, 126
        %v6852 = vpop.permute.xlu0 %6851
        %6853 = vrot.lane.b32.xlu0 %v6774, 126
        %v6854 = vpop.permute.xlu0 %6853
        %6855 = vrot.lane.b32.xlu0 %v6775, 126
        %v6856 = vpop.permute.xlu0 %6855
        %6857 = vrot.lane.b32.xlu0 %v6776, 126
        %v6858 = vpop.permute.xlu0 %6857
        %6859 = vrot.lane.b32.xlu0 %v6777, 126
        %v6860 = vpop.permute.xlu0 %6859
        %6861 = vrot.lane.b32.xlu0 %v6778, 126
        %v6862 = vpop.permute.xlu0 %6861
        %6863 = vrot.lane.b32.xlu0 %v6779, 126
        %v6864 = vpop.permute.xlu0 %6863
        %6865 = vrot.lane.b32.xlu0 %v6780, 126
        %v6866 = vpop.permute.xlu0 %6865
        %6867 = vrot.lane.b32.xlu0 %v6781, 126
        %v6868 = vpop.permute.xlu0 %6867
        %6869 = vrot.lane.b32.xlu0 %v6782, 126
        %v6870 = vpop.permute.xlu0 %6869
        %6871 = vrot.lane.b32.xlu0 %v6783, 126
        %v6872 = vpop.permute.xlu0 %6871
        %6873 = vrot.lane.b32.xlu0 %v6784, 126
        %v6874 = vpop.permute.xlu0 %6873
        %6875 = vrot.lane.b32.xlu0 %v6785, 126
        %v6876 = vpop.permute.xlu0 %6875
        %6877 = vrot.lane.b32.xlu0 %v6786, 126
        %v6878 = vpop.permute.xlu0 %6877
        %6879 = vrot.lane.b32.xlu0 %v6787, 126
        %v6880 = vpop.permute.xlu0 %6879
        %6881 = vrot.lane.b32.xlu0 %v6788, 126
        %v6882 = vpop.permute.xlu0 %6881
        %6883 = vrot.lane.b32.xlu0 %v6789, 126
        %v6884 = vpop.permute.xlu0 %6883
        %6885 = vrot.lane.b32.xlu0 %v6790, 126
        %v6886 = vpop.permute.xlu0 %6885
        %v6919 = vcombine.low %v6824, %v6840
        %v6920 = vcombine.high %v6824, %v6840
        %v6922 = vunpack.c.l.s4 1983009808
        %v6923 = vunpack.c.0.s8 %v6922
        %v6924 = vlaneseq
        %v6925 = vshrl.u32 %v6924, 7
        %v6926 = vsub.s32 %v6923, %v6925
        %v6927 = vrot.slane %v6919, %v6926
        %v6929 = vunpack.c.l.s4 1983009808
        %v6930 = vunpack.c.0.s8 %v6929
        %v6931 = vlaneseq
        %v6932 = vshrl.u32 %v6931, 7
        %v6933 = vsub.s32 %v6930, %v6932
        %v6934 = vrot.slane %v6920, %v6933
        %v6935 = vcombine.low %v6832, %v6848
        %v6936 = vcombine.high %v6832, %v6848
        %v6938 = vunpack.c.l.s4 1983009808
        %v6939 = vunpack.c.0.s8 %v6938
        %v6940 = vlaneseq
        %v6941 = vshrl.u32 %v6940, 7
        %v6942 = vsub.s32 %v6939, %v6941
        %v6943 = vrot.slane %v6935, %v6942
        %v6945 = vunpack.c.l.s4 1983009808
        %v6946 = vunpack.c.0.s8 %v6945
        %v6947 = vlaneseq
        %v6948 = vshrl.u32 %v6947, 7
        %v6949 = vsub.s32 %v6946, %v6948
        %v6950 = vrot.slane %v6936, %v6949
        %v6951 = vcombine.low %v6856, %v6872
        %v6952 = vcombine.high %v6856, %v6872
        %v6954 = vunpack.c.l.s4 1983009808
        %v6955 = vunpack.c.0.s8 %v6954
        %v6956 = vlaneseq
        %v6957 = vshrl.u32 %v6956, 7
        %v6958 = vsub.s32 %v6955, %v6957
        %v6959 = vrot.slane %v6951, %v6958
        %v6961 = vunpack.c.l.s4 1983009808
        %v6962 = vunpack.c.0.s8 %v6961
        %v6963 = vlaneseq
        %v6964 = vshrl.u32 %v6963, 7
        %v6965 = vsub.s32 %v6962, %v6964
        %v6966 = vrot.slane %v6952, %v6965
        %v6967 = vcombine.low %v6864, %v6880
        %v6968 = vcombine.high %v6864, %v6880
        %v6970 = vunpack.c.l.s4 1983009808
        %v6971 = vunpack.c.0.s8 %v6970
        %v6972 = vlaneseq
        %v6973 = vshrl.u32 %v6972, 7
        %v6974 = vsub.s32 %v6971, %v6973
        %v6975 = vrot.slane %v6967, %v6974
        %v6977 = vunpack.c.l.s4 1983009808
        %v6978 = vunpack.c.0.s8 %v6977
        %v6979 = vlaneseq
        %v6980 = vshrl.u32 %v6979, 7
        %v6981 = vsub.s32 %v6978, %v6980
        %v6982 = vrot.slane %v6968, %v6981
        %v6983 = vcombine.low %v6927, %v6943
        %v6984 = vcombine.high %v6927, %v6943
        %v6986 = vunpack.c.l.s4 1934713408
        %v6987 = vunpack.c.0.s8 %v6986
        %v6988 = vlaneseq
        %v6989 = vshrl.u32 %v6988, 7
        %v6990 = vsub.s32 %v6987, %v6989
        %v6991 = vrot.slane %v6983, %v6990
        %v6993 = vunpack.c.l.s4 1934713408
        %v6994 = vunpack.c.0.s8 %v6993
        %v6995 = vlaneseq
        %v6996 = vshrl.u32 %v6995, 7
        %v6997 = vsub.s32 %v6994, %v6996
        %v6998 = vrot.slane %v6984, %v6997
        %v6999 = vcombine.low %v6934, %v6950
        %v7000 = vcombine.high %v6934, %v6950
        %v7002 = vunpack.c.l.s4 1934713408
        %v7003 = vunpack.c.0.s8 %v7002
        %v7004 = vlaneseq
        %v7005 = vshrl.u32 %v7004, 7
        %v7006 = vsub.s32 %v7003, %v7005
        %v7007 = vrot.slane %v6999, %v7006
        %v7009 = vunpack.c.l.s4 1934713408
        %v7010 = vunpack.c.0.s8 %v7009
        %v7011 = vlaneseq
        %v7012 = vshrl.u32 %v7011, 7
        %v7013 = vsub.s32 %v7010, %v7012
        %v7014 = vrot.slane %v7000, %v7013
        %v7015 = vcombine.low %v6959, %v6975
        %v7016 = vcombine.high %v6959, %v6975
        %v7018 = vunpack.c.l.s4 1934713408
        %v7019 = vunpack.c.0.s8 %v7018
        %v7020 = vlaneseq
        %v7021 = vshrl.u32 %v7020, 7
        %v7022 = vsub.s32 %v7019, %v7021
        %v7023 = vrot.slane %v7015, %v7022
        %v7025 = vunpack.c.l.s4 1934713408
        %v7026 = vunpack.c.0.s8 %v7025
        %v7027 = vlaneseq
        %v7028 = vshrl.u32 %v7027, 7
        %v7029 = vsub.s32 %v7026, %v7028
        %v7030 = vrot.slane %v7016, %v7029
        %v7031 = vcombine.low %v6966, %v6982
        %v7032 = vcombine.high %v6966, %v6982
        %v7034 = vunpack.c.l.s4 1934713408
        %v7035 = vunpack.c.0.s8 %v7034
        %v7036 = vlaneseq
        %v7037 = vshrl.u32 %v7036, 7
        %v7038 = vsub.s32 %v7035, %v7037
        %v7039 = vrot.slane %v7031, %v7038
        %v7041 = vunpack.c.l.s4 1934713408
        %v7042 = vunpack.c.0.s8 %v7041
        %v7043 = vlaneseq
        %v7044 = vshrl.u32 %v7043, 7
        %v7045 = vsub.s32 %v7042, %v7044
        %v7046 = vrot.slane %v7032, %v7045
        %v7047 = vcombine.low %v6991, %v7023
        %v7048 = vcombine.high %v6991, %v7023
        %v7049 = vcombine.low %v6998, %v7030
        %v7050 = vcombine.high %v6998, %v7030
        %v7051 = vcombine.low %v7007, %v7039
        %v7052 = vcombine.high %v7007, %v7039
        %v7053 = vcombine.low %v7014, %v7046
        %v7054 = vcombine.high %v7014, %v7046
        %v7055 = vcombine.low %v6826, %v6842
        %v7056 = vcombine.high %v6826, %v6842
        %v7058 = vunpack.c.l.s4 1983009808
        %v7059 = vunpack.c.0.s8 %v7058
        %v7060 = vlaneseq
        %v7061 = vshrl.u32 %v7060, 7
        %v7062 = vsub.s32 %v7059, %v7061
        %v7063 = vrot.slane %v7055, %v7062
        %v7065 = vunpack.c.l.s4 1983009808
        %v7066 = vunpack.c.0.s8 %v7065
        %v7067 = vlaneseq
        %v7068 = vshrl.u32 %v7067, 7
        %v7069 = vsub.s32 %v7066, %v7068
        %v7070 = vrot.slane %v7056, %v7069
        %v7071 = vcombine.low %v6834, %v6850
        %v7072 = vcombine.high %v6834, %v6850
        %v7074 = vunpack.c.l.s4 1983009808
        %v7075 = vunpack.c.0.s8 %v7074
        %v7076 = vlaneseq
        %v7077 = vshrl.u32 %v7076, 7
        %v7078 = vsub.s32 %v7075, %v7077
        %v7079 = vrot.slane %v7071, %v7078
        %v7081 = vunpack.c.l.s4 1983009808
        %v7082 = vunpack.c.0.s8 %v7081
        %v7083 = vlaneseq
        %v7084 = vshrl.u32 %v7083, 7
        %v7085 = vsub.s32 %v7082, %v7084
        %v7086 = vrot.slane %v7072, %v7085
        %v7087 = vcombine.low %v6858, %v6874
        %v7088 = vcombine.high %v6858, %v6874
        %v7090 = vunpack.c.l.s4 1983009808
        %v7091 = vunpack.c.0.s8 %v7090
        %v7092 = vlaneseq
        %v7093 = vshrl.u32 %v7092, 7
        %v7094 = vsub.s32 %v7091, %v7093
        %v7095 = vrot.slane %v7087, %v7094
        %v7097 = vunpack.c.l.s4 1983009808
        %v7098 = vunpack.c.0.s8 %v7097
        %v7099 = vlaneseq
        %v7100 = vshrl.u32 %v7099, 7
        %v7101 = vsub.s32 %v7098, %v7100
        %v7102 = vrot.slane %v7088, %v7101
        %v7103 = vcombine.low %v6866, %v6882
        %v7104 = vcombine.high %v6866, %v6882
        %v7106 = vunpack.c.l.s4 1983009808
        %v7107 = vunpack.c.0.s8 %v7106
        %v7108 = vlaneseq
        %v7109 = vshrl.u32 %v7108, 7
        %v7110 = vsub.s32 %v7107, %v7109
        %v7111 = vrot.slane %v7103, %v7110
        %v7113 = vunpack.c.l.s4 1983009808
        %v7114 = vunpack.c.0.s8 %v7113
        %v7115 = vlaneseq
        %v7116 = vshrl.u32 %v7115, 7
        %v7117 = vsub.s32 %v7114, %v7116
        %v7118 = vrot.slane %v7104, %v7117
        %v7119 = vcombine.low %v7063, %v7079
        %v7120 = vcombine.high %v7063, %v7079
        %v7122 = vunpack.c.l.s4 1934713408
        %v7123 = vunpack.c.0.s8 %v7122
        %v7124 = vlaneseq
        %v7125 = vshrl.u32 %v7124, 7
        %v7126 = vsub.s32 %v7123, %v7125
        %v7127 = vrot.slane %v7119, %v7126
        %v7129 = vunpack.c.l.s4 1934713408
        %v7130 = vunpack.c.0.s8 %v7129
        %v7131 = vlaneseq
        %v7132 = vshrl.u32 %v7131, 7
        %v7133 = vsub.s32 %v7130, %v7132
        %v7134 = vrot.slane %v7120, %v7133
        %v7135 = vcombine.low %v7070, %v7086
        %v7136 = vcombine.high %v7070, %v7086
        %v7138 = vunpack.c.l.s4 1934713408
        %v7139 = vunpack.c.0.s8 %v7138
        %v7140 = vlaneseq
        %v7141 = vshrl.u32 %v7140, 7
        %v7142 = vsub.s32 %v7139, %v7141
        %v7143 = vrot.slane %v7135, %v7142
        %v7145 = vunpack.c.l.s4 1934713408
        %v7146 = vunpack.c.0.s8 %v7145
        %v7147 = vlaneseq
        %v7148 = vshrl.u32 %v7147, 7
        %v7149 = vsub.s32 %v7146, %v7148
        %v7150 = vrot.slane %v7136, %v7149
        %v7151 = vcombine.low %v7095, %v7111
        %v7152 = vcombine.high %v7095, %v7111
        %v7154 = vunpack.c.l.s4 1934713408
        %v7155 = vunpack.c.0.s8 %v7154
        %v7156 = vlaneseq
        %v7157 = vshrl.u32 %v7156, 7
        %v7158 = vsub.s32 %v7155, %v7157
        %v7159 = vrot.slane %v7151, %v7158
        %v7161 = vunpack.c.l.s4 1934713408
        %v7162 = vunpack.c.0.s8 %v7161
        %v7163 = vlaneseq
        %v7164 = vshrl.u32 %v7163, 7
        %v7165 = vsub.s32 %v7162, %v7164
        %v7166 = vrot.slane %v7152, %v7165
        %v7167 = vcombine.low %v7102, %v7118
        %v7168 = vcombine.high %v7102, %v7118
        %v7170 = vunpack.c.l.s4 1934713408
        %v7171 = vunpack.c.0.s8 %v7170
        %v7172 = vlaneseq
        %v7173 = vshrl.u32 %v7172, 7
        %v7174 = vsub.s32 %v7171, %v7173
        %v7175 = vrot.slane %v7167, %v7174
        %v7177 = vunpack.c.l.s4 1934713408
        %v7178 = vunpack.c.0.s8 %v7177
        %v7179 = vlaneseq
        %v7180 = vshrl.u32 %v7179, 7
        %v7181 = vsub.s32 %v7178, %v7180
        %v7182 = vrot.slane %v7168, %v7181
        %v7183 = vcombine.low %v7127, %v7159
        %v7184 = vcombine.high %v7127, %v7159
        %v7185 = vcombine.low %v7134, %v7166
        %v7186 = vcombine.high %v7134, %v7166
        %v7187 = vcombine.low %v7143, %v7175
        %v7188 = vcombine.high %v7143, %v7175
        %v7189 = vcombine.low %v7150, %v7182
        %v7190 = vcombine.high %v7150, %v7182
        %v7191 = vcombine.low %v6828, %v6844
        %v7192 = vcombine.high %v6828, %v6844
        %v7194 = vunpack.c.l.s4 1983009808
        %v7195 = vunpack.c.0.s8 %v7194
        %v7196 = vlaneseq
        %v7197 = vshrl.u32 %v7196, 7
        %v7198 = vsub.s32 %v7195, %v7197
        %v7199 = vrot.slane %v7191, %v7198
        %v7201 = vunpack.c.l.s4 1983009808
        %v7202 = vunpack.c.0.s8 %v7201
        %v7203 = vlaneseq
        %v7204 = vshrl.u32 %v7203, 7
        %v7205 = vsub.s32 %v7202, %v7204
        %v7206 = vrot.slane %v7192, %v7205
        %v7207 = vcombine.low %v6836, %v6852
        %v7208 = vcombine.high %v6836, %v6852
        %v7210 = vunpack.c.l.s4 1983009808
        %v7211 = vunpack.c.0.s8 %v7210
        %v7212 = vlaneseq
        %v7213 = vshrl.u32 %v7212, 7
        %v7214 = vsub.s32 %v7211, %v7213
        %v7215 = vrot.slane %v7207, %v7214
        %v7217 = vunpack.c.l.s4 1983009808
        %v7218 = vunpack.c.0.s8 %v7217
        %v7219 = vlaneseq
        %v7220 = vshrl.u32 %v7219, 7
        %v7221 = vsub.s32 %v7218, %v7220
        %v7222 = vrot.slane %v7208, %v7221
        %v7223 = vcombine.low %v6860, %v6876
        %v7224 = vcombine.high %v6860, %v6876
        %v7226 = vunpack.c.l.s4 1983009808
        %v7227 = vunpack.c.0.s8 %v7226
        %v7228 = vlaneseq
        %v7229 = vshrl.u32 %v7228, 7
        %v7230 = vsub.s32 %v7227, %v7229
        %v7231 = vrot.slane %v7223, %v7230
        %v7233 = vunpack.c.l.s4 1983009808
        %v7234 = vunpack.c.0.s8 %v7233
        %v7235 = vlaneseq
        %v7236 = vshrl.u32 %v7235, 7
        %v7237 = vsub.s32 %v7234, %v7236
        %v7238 = vrot.slane %v7224, %v7237
        %v7239 = vcombine.low %v6868, %v6884
        %v7240 = vcombine.high %v6868, %v6884
        %v7242 = vunpack.c.l.s4 1983009808
        %v7243 = vunpack.c.0.s8 %v7242
        %v7244 = vlaneseq
        %v7245 = vshrl.u32 %v7244, 7
        %v7246 = vsub.s32 %v7243, %v7245
        %v7247 = vrot.slane %v7239, %v7246
        %v7249 = vunpack.c.l.s4 1983009808
        %v7250 = vunpack.c.0.s8 %v7249
        %v7251 = vlaneseq
        %v7252 = vshrl.u32 %v7251, 7
        %v7253 = vsub.s32 %v7250, %v7252
        %v7254 = vrot.slane %v7240, %v7253
        %v7255 = vcombine.low %v7199, %v7215
        %v7256 = vcombine.high %v7199, %v7215
        %v7258 = vunpack.c.l.s4 1934713408
        %v7259 = vunpack.c.0.s8 %v7258
        %v7260 = vlaneseq
        %v7261 = vshrl.u32 %v7260, 7
        %v7262 = vsub.s32 %v7259, %v7261
        %v7263 = vrot.slane %v7255, %v7262
        %v7265 = vunpack.c.l.s4 1934713408
        %v7266 = vunpack.c.0.s8 %v7265
        %v7267 = vlaneseq
        %v7268 = vshrl.u32 %v7267, 7
        %v7269 = vsub.s32 %v7266, %v7268
        %v7270 = vrot.slane %v7256, %v7269
        %v7271 = vcombine.low %v7206, %v7222
        %v7272 = vcombine.high %v7206, %v7222
        %v7274 = vunpack.c.l.s4 1934713408
        %v7275 = vunpack.c.0.s8 %v7274
        %v7276 = vlaneseq
        %v7277 = vshrl.u32 %v7276, 7
        %v7278 = vsub.s32 %v7275, %v7277
        %v7279 = vrot.slane %v7271, %v7278
        %v7281 = vunpack.c.l.s4 1934713408
        %v7282 = vunpack.c.0.s8 %v7281
        %v7283 = vlaneseq
        %v7284 = vshrl.u32 %v7283, 7
        %v7285 = vsub.s32 %v7282, %v7284
        %v7286 = vrot.slane %v7272, %v7285
        %v7287 = vcombine.low %v7231, %v7247
        %v7288 = vcombine.high %v7231, %v7247
        %v7290 = vunpack.c.l.s4 1934713408
        %v7291 = vunpack.c.0.s8 %v7290
        %v7292 = vlaneseq
        %v7293 = vshrl.u32 %v7292, 7
        %v7294 = vsub.s32 %v7291, %v7293
        %v7295 = vrot.slane %v7287, %v7294
        %v7297 = vunpack.c.l.s4 1934713408
        %v7298 = vunpack.c.0.s8 %v7297
        %v7299 = vlaneseq
        %v7300 = vshrl.u32 %v7299, 7
        %v7301 = vsub.s32 %v7298, %v7300
        %v7302 = vrot.slane %v7288, %v7301
        %v7303 = vcombine.low %v7238, %v7254
        %v7304 = vcombine.high %v7238, %v7254
        %v7306 = vunpack.c.l.s4 1934713408
        %v7307 = vunpack.c.0.s8 %v7306
        %v7308 = vlaneseq
        %v7309 = vshrl.u32 %v7308, 7
        %v7310 = vsub.s32 %v7307, %v7309
        %v7311 = vrot.slane %v7303, %v7310
        %v7313 = vunpack.c.l.s4 1934713408
        %v7314 = vunpack.c.0.s8 %v7313
        %v7315 = vlaneseq
        %v7316 = vshrl.u32 %v7315, 7
        %v7317 = vsub.s32 %v7314, %v7316
        %v7318 = vrot.slane %v7304, %v7317
        %v7319 = vcombine.low %v7263, %v7295
        %v7320 = vcombine.high %v7263, %v7295
        %v7321 = vcombine.low %v7270, %v7302
        %v7322 = vcombine.high %v7270, %v7302
        %v7323 = vcombine.low %v7279, %v7311
        %v7324 = vcombine.high %v7279, %v7311
        %v7325 = vcombine.low %v7286, %v7318
        %v7326 = vcombine.high %v7286, %v7318
        %v7327 = vcombine.low %v6830, %v6846
        %v7328 = vcombine.high %v6830, %v6846
        %v7330 = vunpack.c.l.s4 1983009808
        %v7331 = vunpack.c.0.s8 %v7330
        %v7332 = vlaneseq
        %v7333 = vshrl.u32 %v7332, 7
        %v7334 = vsub.s32 %v7331, %v7333
        %v7335 = vrot.slane %v7327, %v7334
        %v7337 = vunpack.c.l.s4 1983009808
        %v7338 = vunpack.c.0.s8 %v7337
        %v7339 = vlaneseq
        %v7340 = vshrl.u32 %v7339, 7
        %v7341 = vsub.s32 %v7338, %v7340
        %v7342 = vrot.slane %v7328, %v7341
        %v7343 = vcombine.low %v6838, %v6854
        %v7344 = vcombine.high %v6838, %v6854
        %v7346 = vunpack.c.l.s4 1983009808
        %v7347 = vunpack.c.0.s8 %v7346
        %v7348 = vlaneseq
        %v7349 = vshrl.u32 %v7348, 7
        %v7350 = vsub.s32 %v7347, %v7349
        %v7351 = vrot.slane %v7343, %v7350
        %v7353 = vunpack.c.l.s4 1983009808
        %v7354 = vunpack.c.0.s8 %v7353
        %v7355 = vlaneseq
        %v7356 = vshrl.u32 %v7355, 7
        %v7357 = vsub.s32 %v7354, %v7356
        %v7358 = vrot.slane %v7344, %v7357
        %v7359 = vcombine.low %v6862, %v6878
        %v7360 = vcombine.high %v6862, %v6878
        %v7362 = vunpack.c.l.s4 1983009808
        %v7363 = vunpack.c.0.s8 %v7362
        %v7364 = vlaneseq
        %v7365 = vshrl.u32 %v7364, 7
        %v7366 = vsub.s32 %v7363, %v7365
        %v7367 = vrot.slane %v7359, %v7366
        %v7369 = vunpack.c.l.s4 1983009808
        %v7370 = vunpack.c.0.s8 %v7369
        %v7371 = vlaneseq
        %v7372 = vshrl.u32 %v7371, 7
        %v7373 = vsub.s32 %v7370, %v7372
        %v7374 = vrot.slane %v7360, %v7373
        %v7375 = vcombine.low %v6870, %v6886
        %v7376 = vcombine.high %v6870, %v6886
        %v7378 = vunpack.c.l.s4 1983009808
        %v7379 = vunpack.c.0.s8 %v7378
        %v7380 = vlaneseq
        %v7381 = vshrl.u32 %v7380, 7
        %v7382 = vsub.s32 %v7379, %v7381
        %v7383 = vrot.slane %v7375, %v7382
        %v7385 = vunpack.c.l.s4 1983009808
        %v7386 = vunpack.c.0.s8 %v7385
        %v7387 = vlaneseq
        %v7388 = vshrl.u32 %v7387, 7
        %v7389 = vsub.s32 %v7386, %v7388
        %v7390 = vrot.slane %v7376, %v7389
        %v7391 = vcombine.low %v7335, %v7351
        %v7392 = vcombine.high %v7335, %v7351
        %v7394 = vunpack.c.l.s4 1934713408
        %v7395 = vunpack.c.0.s8 %v7394
        %v7396 = vlaneseq
        %v7397 = vshrl.u32 %v7396, 7
        %v7398 = vsub.s32 %v7395, %v7397
        %v7399 = vrot.slane %v7391, %v7398
        %v7401 = vunpack.c.l.s4 1934713408
        %v7402 = vunpack.c.0.s8 %v7401
        %v7403 = vlaneseq
        %v7404 = vshrl.u32 %v7403, 7
        %v7405 = vsub.s32 %v7402, %v7404
        %v7406 = vrot.slane %v7392, %v7405
        %v7407 = vcombine.low %v7342, %v7358
        %v7408 = vcombine.high %v7342, %v7358
        %v7410 = vunpack.c.l.s4 1934713408
        %v7411 = vunpack.c.0.s8 %v7410
        %v7412 = vlaneseq
        %v7413 = vshrl.u32 %v7412, 7
        %v7414 = vsub.s32 %v7411, %v7413
        %v7415 = vrot.slane %v7407, %v7414
        %v7417 = vunpack.c.l.s4 1934713408
        %v7418 = vunpack.c.0.s8 %v7417
        %v7419 = vlaneseq
        %v7420 = vshrl.u32 %v7419, 7
        %v7421 = vsub.s32 %v7418, %v7420
        %v7422 = vrot.slane %v7408, %v7421
        %v7423 = vcombine.low %v7367, %v7383
        %v7424 = vcombine.high %v7367, %v7383
        %v7426 = vunpack.c.l.s4 1934713408
        %v7427 = vunpack.c.0.s8 %v7426
        %v7428 = vlaneseq
        %v7429 = vshrl.u32 %v7428, 7
        %v7430 = vsub.s32 %v7427, %v7429
        %v7431 = vrot.slane %v7423, %v7430
        %v7433 = vunpack.c.l.s4 1934713408
        %v7434 = vunpack.c.0.s8 %v7433
        %v7435 = vlaneseq
        %v7436 = vshrl.u32 %v7435, 7
        %v7437 = vsub.s32 %v7434, %v7436
        %v7438 = vrot.slane %v7424, %v7437
        %v7439 = vcombine.low %v7374, %v7390
        %v7440 = vcombine.high %v7374, %v7390
        %v7442 = vunpack.c.l.s4 1934713408
        %v7443 = vunpack.c.0.s8 %v7442
        %v7444 = vlaneseq
        %v7445 = vshrl.u32 %v7444, 7
        %v7446 = vsub.s32 %v7443, %v7445
        %v7447 = vrot.slane %v7439, %v7446
        %v7449 = vunpack.c.l.s4 1934713408
        %v7450 = vunpack.c.0.s8 %v7449
        %v7451 = vlaneseq
        %v7452 = vshrl.u32 %v7451, 7
        %v7453 = vsub.s32 %v7450, %v7452
        %v7454 = vrot.slane %v7440, %v7453
        %v7455 = vcombine.low %v7399, %v7431
        %v7456 = vcombine.high %v7399, %v7431
        %v7457 = vcombine.low %v7406, %v7438
        %v7458 = vcombine.high %v7406, %v7438
        %v7459 = vcombine.low %v7415, %v7447
        %v7460 = vcombine.high %v7415, %v7447
        %v7461 = vcombine.low %v7422, %v7454
        %v7462 = vcombine.high %v7422, %v7454
        %7464 = vrot.lane.b32.xlu0 %v7048, 32
        %v7465 = vpop.permute.xlu0 %7464
        %7468 = vrot.lane.b32.xlu0 %v7049, 64
        %v7469 = vpop.permute.xlu0 %7468
        %7472 = vrot.lane.b32.xlu0 %v7050, 96
        %v7473 = vpop.permute.xlu0 %7472
        %7476 = vrot.lane.b32.xlu0 %v7052, 32
        %v7477 = vpop.permute.xlu0 %7476
        %7480 = vrot.lane.b32.xlu0 %v7053, 64
        %v7481 = vpop.permute.xlu0 %7480
        %7484 = vrot.lane.b32.xlu0 %v7054, 96
        %v7485 = vpop.permute.xlu0 %7484
        %7488 = vrot.lane.b32.xlu0 %v7184, 32
        %v7489 = vpop.permute.xlu0 %7488
        %7492 = vrot.lane.b32.xlu0 %v7185, 64
        %v7493 = vpop.permute.xlu0 %7492
        %7496 = vrot.lane.b32.xlu0 %v7186, 96
        %v7497 = vpop.permute.xlu0 %7496
        %7500 = vrot.lane.b32.xlu0 %v7188, 32
        %v7501 = vpop.permute.xlu0 %7500
        %7504 = vrot.lane.b32.xlu0 %v7189, 64
        %v7505 = vpop.permute.xlu0 %7504
        %7508 = vrot.lane.b32.xlu0 %v7190, 96
        %v7509 = vpop.permute.xlu0 %7508
        %7512 = vrot.lane.b32.xlu0 %v7320, 32
        %v7513 = vpop.permute.xlu0 %7512
        %7516 = vrot.lane.b32.xlu0 %v7321, 64
        %v7517 = vpop.permute.xlu0 %7516
        %7520 = vrot.lane.b32.xlu0 %v7322, 96
        %v7521 = vpop.permute.xlu0 %7520
        %7524 = vrot.lane.b32.xlu0 %v7324, 32
        %v7525 = vpop.permute.xlu0 %7524
        %7528 = vrot.lane.b32.xlu0 %v7325, 64
        %v7529 = vpop.permute.xlu0 %7528
        %7532 = vrot.lane.b32.xlu0 %v7326, 96
        %v7533 = vpop.permute.xlu0 %7532
        %7536 = vrot.lane.b32.xlu0 %v7456, 32
        %v7537 = vpop.permute.xlu0 %7536
        %7540 = vrot.lane.b32.xlu0 %v7457, 64
        %v7541 = vpop.permute.xlu0 %7540
        %7544 = vrot.lane.b32.xlu0 %v7458, 96
        %v7545 = vpop.permute.xlu0 %7544
        %7548 = vrot.lane.b32.xlu0 %v7460, 32
        %v7549 = vpop.permute.xlu0 %7548
        %7552 = vrot.lane.b32.xlu0 %v7461, 64
        %v7553 = vpop.permute.xlu0 %7552
        %7556 = vrot.lane.b32.xlu0 %v7462, 96
        %v7557 = vpop.permute.xlu0 %7556
        %v7559 = vsel %vm2127, %v7047, %v7465
        %v7560 = vsel %vm2129, %v7559, %v7469
        %v7561 = vsel %vm2131, %v7560, %v7473
        %v7562 = vsel %vm2127, %v7051, %v7477
        %v7563 = vsel %vm2129, %v7562, %v7481
        %v7564 = vsel %vm2131, %v7563, %v7485
        %v7565 = vsel %vm2127, %v7183, %v7489
        %v7566 = vsel %vm2129, %v7565, %v7493
        %v7567 = vsel %vm2131, %v7566, %v7497
        %v7568 = vsel %vm2127, %v7187, %v7501
        %v7569 = vsel %vm2129, %v7568, %v7505
        %v7570 = vsel %vm2131, %v7569, %v7509
        %v7571 = vsel %vm2127, %v7319, %v7513
        %v7572 = vsel %vm2129, %v7571, %v7517
        %v7573 = vsel %vm2131, %v7572, %v7521
        %v7574 = vsel %vm2127, %v7323, %v7525
        %v7575 = vsel %vm2129, %v7574, %v7529
        %v7576 = vsel %vm2131, %v7575, %v7533
        %v7577 = vsel %vm2127, %v7455, %v7537
        %v7578 = vsel %vm2129, %v7577, %v7541
        %v7579 = vsel %vm2131, %v7578, %v7545
        %v7580 = vsel %vm2127, %v7459, %v7549
        %v7581 = vsel %vm2129, %v7580, %v7553
        %v7582 = vsel %vm2131, %v7581, %v7557
        %s7583 = scalar_lea.vmem %s3, 20
        %v7584 = vld [vmem:[%s7583] sm:$0xf]
        %v7586 = vsel %vm2949, %v7584, 0
        %7588 = vmatprep.subr.mxu0 %v7564
        %7589 = vmatpush1.msra.mxu0 %v7561
        %7590 = vmatprep.subr.mxu0 0.0
        %7591 = vmatpush1.msra.mxu0 0.0
        %7592 = vmatprep.subr.mxu0 0.0
        %7593 = vmatpush1.msra.mxu0 0.0
        %7594 = vmatprep.subr.mxu0 0.0
        %7595 = vmatpush1.msra.mxu0 0.0
        %7596 = vmatprep.subr.mxu0 0.0
        %7597 = vmatpush1.msra.mxu0 0.0
        %7598 = vmatprep.subr.mxu0 0.0
        %7599 = vmatpush1.msra.mxu0 0.0
        %7600 = vmatprep.subr.mxu0 0.0
        %7601 = vmatpush1.msra.mxu0 0.0
        %7602 = vmatprep.subr.mxu0 0.0
        %7603 = vmatpush1.msra.mxu0 0.0
        %7604 = vmatprep.subr.mxu0 0.0
        %7605 = vmatpush1.msra.mxu0 0.0
        %7606 = vmatprep.subr.mxu0 0.0
        %7607 = vmatpush1.msra.mxu0 0.0
        %7608 = vmatprep.subr.mxu0 0.0
        %7609 = vmatpush1.msra.mxu0 0.0
        %7610 = vmatprep.subr.mxu0 0.0
        %7611 = vmatpush1.msra.mxu0 0.0
        %7612 = vmatprep.subr.mxu0 0.0
        %7613 = vmatpush1.msra.mxu0 0.0
        %7614 = vmatprep.subr.mxu0 0.0
        %7615 = vmatpush1.msra.mxu0 0.0
        %7616 = vmatprep.subr.mxu0 0.0
        %7617 = vmatpush1.msra.mxu0 0.0
        %7618 = vmatprep.subr.mxu0 0.0
        %7619 = vmatpush1.msra.mxu0 0.0
        %7620 = vmatprep.subr.mxu0 0.0
        %7621 = vmatpush1.msra.mxu0 0.0
        %7622 = vmatprep.subr.mxu0 0.0
        %7623 = vmatpush1.msra.mxu0 0.0
        %7624 = vmatprep.subr.mxu0 0.0
        %7625 = vmatpush1.msra.mxu0 0.0
        %7626 = vmatprep.subr.mxu0 0.0
        %7627 = vmatpush1.msra.mxu0 0.0
        %7628 = vmatprep.subr.mxu0 0.0
        %7629 = vmatpush1.msra.mxu0 0.0
        %7630 = vmatprep.subr.mxu0 0.0
        %7631 = vmatpush1.msra.mxu0 0.0
        %7632 = vmatprep.subr.mxu0 0.0
        %7633 = vmatpush1.msra.mxu0 0.0
        %7634 = vmatprep.subr.mxu0 0.0
        %7635 = vmatpush1.msra.mxu0 0.0
        %7636 = vmatprep.subr.mxu0 0.0
        %7637 = vmatpush1.msra.mxu0 0.0
        %7638 = vmatprep.subr.mxu0 0.0
        %7639 = vmatpush1.msra.mxu0 0.0
        %7640 = vmatprep.subr.mxu0 0.0
        %7641 = vmatpush1.msra.mxu0 0.0
        %7642 = vmatprep.subr.mxu0 0.0
        %7643 = vmatpush1.msra.mxu0 0.0
        %7644 = vmatprep.subr.mxu0 0.0
        %7645 = vmatpush1.msra.mxu0 0.0
        %7646 = vmatprep.subr.mxu0 0.0
        %7647 = vmatpush1.msra.mxu0 0.0
        %7648 = vmatprep.subr.mxu0 0.0
        %7649 = vmatpush1.msra.mxu0 0.0
        %7650 = vmatprep.subr.mxu0 0.0
        %7651 = vmatpush1.msra.mxu0 0.0
        %7652 = vmatprep.mubr.f32.mxu0 0.0
        %7653 = vmatmul.mubr.f32.gmra.mrb[0].mxu0 %v7586
        %v7654 = vpop.f32.mrb[0].mxu0
        %v7655 = vadd.f32 0.0, %v7654
        %v7656 = vpop.f32.mrb[0].mxu0
        %v7657 = vadd.f32 0.0, %v7656
        %7658 = vdwg.mxu0
        %7659 = vmatprep.subr.mxu0 %v7570
        %7660 = vmatpush1.msra.mxu0 %v7567
        %7661 = vmatprep.subr.mxu0 0.0
        %7662 = vmatpush1.msra.mxu0 0.0
        %7663 = vmatprep.subr.mxu0 0.0
        %7664 = vmatpush1.msra.mxu0 0.0
        %7665 = vmatprep.subr.mxu0 0.0
        %7666 = vmatpush1.msra.mxu0 0.0
        %7667 = vmatprep.subr.mxu0 0.0
        %7668 = vmatpush1.msra.mxu0 0.0
        %7669 = vmatprep.subr.mxu0 0.0
        %7670 = vmatpush1.msra.mxu0 0.0
        %7671 = vmatprep.subr.mxu0 0.0
        %7672 = vmatpush1.msra.mxu0 0.0
        %7673 = vmatprep.subr.mxu0 0.0
        %7674 = vmatpush1.msra.mxu0 0.0
        %7675 = vmatprep.subr.mxu0 0.0
        %7676 = vmatpush1.msra.mxu0 0.0
        %7677 = vmatprep.subr.mxu0 0.0
        %7678 = vmatpush1.msra.mxu0 0.0
        %7679 = vmatprep.subr.mxu0 0.0
        %7680 = vmatpush1.msra.mxu0 0.0
        %7681 = vmatprep.subr.mxu0 0.0
        %7682 = vmatpush1.msra.mxu0 0.0
        %7683 = vmatprep.subr.mxu0 0.0
        %7684 = vmatpush1.msra.mxu0 0.0
        %7685 = vmatprep.subr.mxu0 0.0
        %7686 = vmatpush1.msra.mxu0 0.0
        %7687 = vmatprep.subr.mxu0 0.0
        %7688 = vmatpush1.msra.mxu0 0.0
        %7689 = vmatprep.subr.mxu0 0.0
        %7690 = vmatpush1.msra.mxu0 0.0
        %7691 = vmatprep.subr.mxu0 0.0
        %7692 = vmatpush1.msra.mxu0 0.0
        %7693 = vmatprep.subr.mxu0 0.0
        %7694 = vmatpush1.msra.mxu0 0.0
        %7695 = vmatprep.subr.mxu0 0.0
        %7696 = vmatpush1.msra.mxu0 0.0
        %7697 = vmatprep.subr.mxu0 0.0
        %7698 = vmatpush1.msra.mxu0 0.0
        %7699 = vmatprep.subr.mxu0 0.0
        %7700 = vmatpush1.msra.mxu0 0.0
        %7701 = vmatprep.subr.mxu0 0.0
        %7702 = vmatpush1.msra.mxu0 0.0
        %7703 = vmatprep.subr.mxu0 0.0
        %7704 = vmatpush1.msra.mxu0 0.0
        %7705 = vmatprep.subr.mxu0 0.0
        %7706 = vmatpush1.msra.mxu0 0.0
        %7707 = vmatprep.subr.mxu0 0.0
        %7708 = vmatpush1.msra.mxu0 0.0
        %7709 = vmatprep.subr.mxu0 0.0
        %7710 = vmatpush1.msra.mxu0 0.0
        %7711 = vmatprep.subr.mxu0 0.0
        %7712 = vmatpush1.msra.mxu0 0.0
        %7713 = vmatprep.subr.mxu0 0.0
        %7714 = vmatpush1.msra.mxu0 0.0
        %7715 = vmatprep.subr.mxu0 0.0
        %7716 = vmatpush1.msra.mxu0 0.0
        %7717 = vmatprep.subr.mxu0 0.0
        %7718 = vmatpush1.msra.mxu0 0.0
        %7719 = vmatprep.subr.mxu0 0.0
        %7720 = vmatpush1.msra.mxu0 0.0
        %7721 = vmatprep.subr.mxu0 0.0
        %7722 = vmatpush1.msra.mxu0 0.0
        %7723 = vmatprep.mubr.f32.mxu0 0.0
        %7724 = vmatmul.mubr.f32.gmra.mrb[0].mxu0 %v7586
        %v7725 = vpop.f32.mrb[0].mxu0
        %v7726 = vadd.f32 0.0, %v7725
        %v7727 = vpop.f32.mrb[0].mxu0
        %v7728 = vadd.f32 0.0, %v7727
        %7729 = vdwg.mxu0
        %7730 = vmatprep.subr.mxu0 %v7576
        %7731 = vmatpush1.msra.mxu0 %v7573
        %7732 = vmatprep.subr.mxu0 0.0
        %7733 = vmatpush1.msra.mxu0 0.0
        %7734 = vmatprep.subr.mxu0 0.0
        %7735 = vmatpush1.msra.mxu0 0.0
        %7736 = vmatprep.subr.mxu0 0.0
        %7737 = vmatpush1.msra.mxu0 0.0
        %7738 = vmatprep.subr.mxu0 0.0
        %7739 = vmatpush1.msra.mxu0 0.0
        %7740 = vmatprep.subr.mxu0 0.0
        %7741 = vmatpush1.msra.mxu0 0.0
        %7742 = vmatprep.subr.mxu0 0.0
        %7743 = vmatpush1.msra.mxu0 0.0
        %7744 = vmatprep.subr.mxu0 0.0
        %7745 = vmatpush1.msra.mxu0 0.0
        %7746 = vmatprep.subr.mxu0 0.0
        %7747 = vmatpush1.msra.mxu0 0.0
        %7748 = vmatprep.subr.mxu0 0.0
        %7749 = vmatpush1.msra.mxu0 0.0
        %7750 = vmatprep.subr.mxu0 0.0
        %7751 = vmatpush1.msra.mxu0 0.0
        %7752 = vmatprep.subr.mxu0 0.0
        %7753 = vmatpush1.msra.mxu0 0.0
        %7754 = vmatprep.subr.mxu0 0.0
        %7755 = vmatpush1.msra.mxu0 0.0
        %7756 = vmatprep.subr.mxu0 0.0
        %7757 = vmatpush1.msra.mxu0 0.0
        %7758 = vmatprep.subr.mxu0 0.0
        %7759 = vmatpush1.msra.mxu0 0.0
        %7760 = vmatprep.subr.mxu0 0.0
        %7761 = vmatpush1.msra.mxu0 0.0
        %7762 = vmatprep.subr.mxu0 0.0
        %7763 = vmatpush1.msra.mxu0 0.0
        %7764 = vmatprep.subr.mxu0 0.0
        %7765 = vmatpush1.msra.mxu0 0.0
        %7766 = vmatprep.subr.mxu0 0.0
        %7767 = vmatpush1.msra.mxu0 0.0
        %7768 = vmatprep.subr.mxu0 0.0
        %7769 = vmatpush1.msra.mxu0 0.0
        %7770 = vmatprep.subr.mxu0 0.0
        %7771 = vmatpush1.msra.mxu0 0.0
        %7772 = vmatprep.subr.mxu0 0.0
        %7773 = vmatpush1.msra.mxu0 0.0
        %7774 = vmatprep.subr.mxu0 0.0
        %7775 = vmatpush1.msra.mxu0 0.0
        %7776 = vmatprep.subr.mxu0 0.0
        %7777 = vmatpush1.msra.mxu0 0.0
        %7778 = vmatprep.subr.mxu0 0.0
        %7779 = vmatpush1.msra.mxu0 0.0
        %7780 = vmatprep.subr.mxu0 0.0
        %7781 = vmatpush1.msra.mxu0 0.0
        %7782 = vmatprep.subr.mxu0 0.0
        %7783 = vmatpush1.msra.mxu0 0.0
        %7784 = vmatprep.subr.mxu0 0.0
        %7785 = vmatpush1.msra.mxu0 0.0
        %7786 = vmatprep.subr.mxu0 0.0
        %7787 = vmatpush1.msra.mxu0 0.0
        %7788 = vmatprep.subr.mxu0 0.0
        %7789 = vmatpush1.msra.mxu0 0.0
        %7790 = vmatprep.subr.mxu0 0.0
        %7791 = vmatpush1.msra.mxu0 0.0
        %7792 = vmatprep.subr.mxu0 0.0
        %7793 = vmatpush1.msra.mxu0 0.0
        %7794 = vmatprep.mubr.f32.mxu0 0.0
        %7795 = vmatmul.mubr.f32.gmra.mrb[0].mxu0 %v7586
        %v7796 = vpop.f32.mrb[0].mxu0
        %v7797 = vadd.f32 0.0, %v7796
        %v7798 = vpop.f32.mrb[0].mxu0
        %v7799 = vadd.f32 0.0, %v7798
        %7800 = vdwg.mxu0
        %7801 = vmatprep.subr.mxu0 %v7582
        %7802 = vmatpush1.msra.mxu0 %v7579
        %7803 = vmatprep.subr.mxu0 0.0
        %7804 = vmatpush1.msra.mxu0 0.0
        %7805 = vmatprep.subr.mxu0 0.0
        %7806 = vmatpush1.msra.mxu0 0.0
        %7807 = vmatprep.subr.mxu0 0.0
        %7808 = vmatpush1.msra.mxu0 0.0
        %7809 = vmatprep.subr.mxu0 0.0
        %7810 = vmatpush1.msra.mxu0 0.0
        %7811 = vmatprep.subr.mxu0 0.0
        %7812 = vmatpush1.msra.mxu0 0.0
        %7813 = vmatprep.subr.mxu0 0.0
        %7814 = vmatpush1.msra.mxu0 0.0
        %7815 = vmatprep.subr.mxu0 0.0
        %7816 = vmatpush1.msra.mxu0 0.0
        %7817 = vmatprep.subr.mxu0 0.0
        %7818 = vmatpush1.msra.mxu0 0.0
        %7819 = vmatprep.subr.mxu0 0.0
        %7820 = vmatpush1.msra.mxu0 0.0
        %7821 = vmatprep.subr.mxu0 0.0
        %7822 = vmatpush1.msra.mxu0 0.0
        %7823 = vmatprep.subr.mxu0 0.0
        %7824 = vmatpush1.msra.mxu0 0.0
        %7825 = vmatprep.subr.mxu0 0.0
        %7826 = vmatpush1.msra.mxu0 0.0
        %7827 = vmatprep.subr.mxu0 0.0
        %7828 = vmatpush1.msra.mxu0 0.0
        %7829 = vmatprep.subr.mxu0 0.0
        %7830 = vmatpush1.msra.mxu0 0.0
        %7831 = vmatprep.subr.mxu0 0.0
        %7832 = vmatpush1.msra.mxu0 0.0
        %7833 = vmatprep.subr.mxu0 0.0
        %7834 = vmatpush1.msra.mxu0 0.0
        %7835 = vmatprep.subr.mxu0 0.0
        %7836 = vmatpush1.msra.mxu0 0.0
        %7837 = vmatprep.subr.mxu0 0.0
        %7838 = vmatpush1.msra.mxu0 0.0
        %7839 = vmatprep.subr.mxu0 0.0
        %7840 = vmatpush1.msra.mxu0 0.0
        %7841 = vmatprep.subr.mxu0 0.0
        %7842 = vmatpush1.msra.mxu0 0.0
        %7843 = vmatprep.subr.mxu0 0.0
        %7844 = vmatpush1.msra.mxu0 0.0
        %7845 = vmatprep.subr.mxu0 0.0
        %7846 = vmatpush1.msra.mxu0 0.0
        %7847 = vmatprep.subr.mxu0 0.0
        %7848 = vmatpush1.msra.mxu0 0.0
        %7849 = vmatprep.subr.mxu0 0.0
        %7850 = vmatpush1.msra.mxu0 0.0
        %7851 = vmatprep.subr.mxu0 0.0
        %7852 = vmatpush1.msra.mxu0 0.0
        %7853 = vmatprep.subr.mxu0 0.0
        %7854 = vmatpush1.msra.mxu0 0.0
        %7855 = vmatprep.subr.mxu0 0.0
        %7856 = vmatpush1.msra.mxu0 0.0
        %7857 = vmatprep.subr.mxu0 0.0
        %7858 = vmatpush1.msra.mxu0 0.0
        %7859 = vmatprep.subr.mxu0 0.0
        %7860 = vmatpush1.msra.mxu0 0.0
        %7861 = vmatprep.subr.mxu0 0.0
        %7862 = vmatpush1.msra.mxu0 0.0
        %7863 = vmatprep.subr.mxu0 0.0
        %7864 = vmatpush1.msra.mxu0 0.0
        %7865 = vmatprep.mubr.f32.mxu0 0.0
        %7866 = vmatmul.mubr.f32.gmra.mrb[0].mxu0 %v7586
        %v7867 = vpop.f32.mrb[0].mxu0
        %v7868 = vadd.f32 0.0, %v7867
        %v7869 = vpop.f32.mrb[0].mxu0
        %v7870 = vadd.f32 0.0, %v7869
        %7871 = vdwg.mxu0
        %v7872 = vadd.f32 %v6751, %v7655
        %v7873 = vadd.f32 %v6752, %v7657
        %v7874 = vadd.f32 %v6753, %v7726
        %v7875 = vadd.f32 %v6754, %v7728
        %v7876 = vadd.f32 %v6755, %v7797
        %v7877 = vadd.f32 %v6756, %v7799
        %v7878 = vadd.f32 %v6757, %v7868
        %v7879 = vadd.f32 %v6758, %v7870
        %v7880 = vld [vmem:[#allocation2 + $0x2] sm:$0xff]
        %v7881 = vld [vmem:[#allocation2 + $0xa] sm:$0xff]
        %v7882 = vld [vmem:[#allocation2 + $0x12] sm:$0xff]
        %v7883 = vld [vmem:[#allocation2 + $0x1a] sm:$0xff]
        %v7884 = vld [vmem:[#allocation2 + $0x2a] sm:$0xff]
        %v7885 = vld [vmem:[#allocation2 + $0x32] sm:$0xff]
        %v7886 = vld [vmem:[#allocation2 + $0x3a] sm:$0xff]
        %v7887 = vld [vmem:[#allocation2 + $0x42] sm:$0xff]
        %v7888 = vld [vmem:[#allocation2 + $0x52] sm:$0xff]
        %v7889 = vld [vmem:[#allocation2 + $0x5a] sm:$0xff]
        %v7890 = vld [vmem:[#allocation2 + $0x62] sm:$0xff]
        %v7891 = vld [vmem:[#allocation2 + $0x6a] sm:$0xff]
        %v7892 = vld [vmem:[#allocation2 + $0x7a] sm:$0xff]
        %v7893 = vld [vmem:[#allocation2 + $0x82] sm:$0xff]
        %v7894 = vld [vmem:[#allocation2 + $0x8a] sm:$0xff]
        %v7895 = vld [vmem:[#allocation2 + $0x92] sm:$0xff]
        %v7896 = vld [vmem:[#allocation2 + $0xa2] sm:$0xff]
        %v7897 = vld [vmem:[#allocation2 + $0xaa] sm:$0xff]
        %v7898 = vld [vmem:[#allocation2 + $0xb2] sm:$0xff]
        %v7899 = vld [vmem:[#allocation2 + $0xba] sm:$0xff]
        %v7900 = vld [vmem:[#allocation2 + $0xca] sm:$0xff]
        %v7901 = vld [vmem:[#allocation2 + $0xd2] sm:$0xff]
        %v7902 = vld [vmem:[#allocation2 + $0xda] sm:$0xff]
        %v7903 = vld [vmem:[#allocation2 + $0xe2] sm:$0xff]
        %v7904 = vld [vmem:[#allocation2 + $0xf2] sm:$0xff]
        %v7905 = vld [vmem:[#allocation2 + $0xfa] sm:$0xff]
        %v7906 = vld [vmem:[#allocation2 + $0x102] sm:$0xff]
        %v7907 = vld [vmem:[#allocation2 + $0x10a] sm:$0xff]
        %v7908 = vld [vmem:[#allocation2 + $0x11a] sm:$0xff]
        %v7909 = vld [vmem:[#allocation2 + $0x122] sm:$0xff]
        %v7910 = vld [vmem:[#allocation2 + $0x12a] sm:$0xff]
        %v7911 = vld [vmem:[#allocation2 + $0x132] sm:$0xff]
        %v7912 = vcombine.low %v7880, %v7888
        %v7913 = vcombine.high %v7880, %v7888
        %v7915 = vunpack.c.l.s4 1983009808
        %v7916 = vunpack.c.0.s8 %v7915
        %v7917 = vlaneseq
        %v7918 = vshrl.u32 %v7917, 7
        %v7919 = vsub.s32 %v7916, %v7918
        %v7920 = vrot.slane %v7912, %v7919
        %v7922 = vunpack.c.l.s4 1983009808
        %v7923 = vunpack.c.0.s8 %v7922
        %v7924 = vlaneseq
        %v7925 = vshrl.u32 %v7924, 7
        %v7926 = vsub.s32 %v7923, %v7925
        %v7927 = vrot.slane %v7913, %v7926
        %v7928 = vcombine.low %v7884, %v7892
        %v7929 = vcombine.high %v7884, %v7892
        %v7931 = vunpack.c.l.s4 1983009808
        %v7932 = vunpack.c.0.s8 %v7931
        %v7933 = vlaneseq
        %v7934 = vshrl.u32 %v7933, 7
        %v7935 = vsub.s32 %v7932, %v7934
        %v7936 = vrot.slane %v7928, %v7935
        %v7938 = vunpack.c.l.s4 1983009808
        %v7939 = vunpack.c.0.s8 %v7938
        %v7940 = vlaneseq
        %v7941 = vshrl.u32 %v7940, 7
        %v7942 = vsub.s32 %v7939, %v7941
        %v7943 = vrot.slane %v7929, %v7942
        %v7944 = vcombine.low %v7896, %v7904
        %v7945 = vcombine.high %v7896, %v7904
        %v7947 = vunpack.c.l.s4 1983009808
        %v7948 = vunpack.c.0.s8 %v7947
        %v7949 = vlaneseq
        %v7950 = vshrl.u32 %v7949, 7
        %v7951 = vsub.s32 %v7948, %v7950
        %v7952 = vrot.slane %v7944, %v7951
        %v7954 = vunpack.c.l.s4 1983009808
        %v7955 = vunpack.c.0.s8 %v7954
        %v7956 = vlaneseq
        %v7957 = vshrl.u32 %v7956, 7
        %v7958 = vsub.s32 %v7955, %v7957
        %v7959 = vrot.slane %v7945, %v7958
        %v7960 = vcombine.low %v7900, %v7908
        %v7961 = vcombine.high %v7900, %v7908
        %v7963 = vunpack.c.l.s4 1983009808
        %v7964 = vunpack.c.0.s8 %v7963
        %v7965 = vlaneseq
        %v7966 = vshrl.u32 %v7965, 7
        %v7967 = vsub.s32 %v7964, %v7966
        %v7968 = vrot.slane %v7960, %v7967
        %v7970 = vunpack.c.l.s4 1983009808
        %v7971 = vunpack.c.0.s8 %v7970
        %v7972 = vlaneseq
        %v7973 = vshrl.u32 %v7972, 7
        %v7974 = vsub.s32 %v7971, %v7973
        %v7975 = vrot.slane %v7961, %v7974
        %v7976 = vcombine.low %v7920, %v7936
        %v7977 = vcombine.high %v7920, %v7936
        %v7979 = vunpack.c.l.s4 1934713408
        %v7980 = vunpack.c.0.s8 %v7979
        %v7981 = vlaneseq
        %v7982 = vshrl.u32 %v7981, 7
        %v7983 = vsub.s32 %v7980, %v7982
        %v7984 = vrot.slane %v7976, %v7983
        %v7986 = vunpack.c.l.s4 1934713408
        %v7987 = vunpack.c.0.s8 %v7986
        %v7988 = vlaneseq
        %v7989 = vshrl.u32 %v7988, 7
        %v7990 = vsub.s32 %v7987, %v7989
        %v7991 = vrot.slane %v7977, %v7990
        %v7992 = vcombine.low %v7927, %v7943
        %v7993 = vcombine.high %v7927, %v7943
        %v7995 = vunpack.c.l.s4 1934713408
        %v7996 = vunpack.c.0.s8 %v7995
        %v7997 = vlaneseq
        %v7998 = vshrl.u32 %v7997, 7
        %v7999 = vsub.s32 %v7996, %v7998
        %v8000 = vrot.slane %v7992, %v7999
        %v8002 = vunpack.c.l.s4 1934713408
        %v8003 = vunpack.c.0.s8 %v8002
        %v8004 = vlaneseq
        %v8005 = vshrl.u32 %v8004, 7
        %v8006 = vsub.s32 %v8003, %v8005
        %v8007 = vrot.slane %v7993, %v8006
        %v8008 = vcombine.low %v7952, %v7968
        %v8009 = vcombine.high %v7952, %v7968
        %v8011 = vunpack.c.l.s4 1934713408
        %v8012 = vunpack.c.0.s8 %v8011
        %v8013 = vlaneseq
        %v8014 = vshrl.u32 %v8013, 7
        %v8015 = vsub.s32 %v8012, %v8014
        %v8016 = vrot.slane %v8008, %v8015
        %v8018 = vunpack.c.l.s4 1934713408
        %v8019 = vunpack.c.0.s8 %v8018
        %v8020 = vlaneseq
        %v8021 = vshrl.u32 %v8020, 7
        %v8022 = vsub.s32 %v8019, %v8021
        %v8023 = vrot.slane %v8009, %v8022
        %v8024 = vcombine.low %v7959, %v7975
        %v8025 = vcombine.high %v7959, %v7975
        %v8027 = vunpack.c.l.s4 1934713408
        %v8028 = vunpack.c.0.s8 %v8027
        %v8029 = vlaneseq
        %v8030 = vshrl.u32 %v8029, 7
        %v8031 = vsub.s32 %v8028, %v8030
        %v8032 = vrot.slane %v8024, %v8031
        %v8034 = vunpack.c.l.s4 1934713408
        %v8035 = vunpack.c.0.s8 %v8034
        %v8036 = vlaneseq
        %v8037 = vshrl.u32 %v8036, 7
        %v8038 = vsub.s32 %v8035, %v8037
        %v8039 = vrot.slane %v8025, %v8038
        %v8040 = vcombine.low %v7984, %v8016
        %v8041 = vcombine.high %v7984, %v8016
        %v8042 = vcombine.low %v7991, %v8023
        %v8043 = vcombine.high %v7991, %v8023
        %v8044 = vcombine.low %v8000, %v8032
        %v8045 = vcombine.high %v8000, %v8032
        %v8046 = vcombine.low %v8007, %v8039
        %v8047 = vcombine.high %v8007, %v8039
        %v8048 = vcombine.low %v7881, %v7889
        %v8049 = vcombine.high %v7881, %v7889
        %v8051 = vunpack.c.l.s4 1983009808
        %v8052 = vunpack.c.0.s8 %v8051
        %v8053 = vlaneseq
        %v8054 = vshrl.u32 %v8053, 7
        %v8055 = vsub.s32 %v8052, %v8054
        %v8056 = vrot.slane %v8048, %v8055
        %v8058 = vunpack.c.l.s4 1983009808
        %v8059 = vunpack.c.0.s8 %v8058
        %v8060 = vlaneseq
        %v8061 = vshrl.u32 %v8060, 7
        %v8062 = vsub.s32 %v8059, %v8061
        %v8063 = vrot.slane %v8049, %v8062
        %v8064 = vcombine.low %v7885, %v7893
        %v8065 = vcombine.high %v7885, %v7893
        %v8067 = vunpack.c.l.s4 1983009808
        %v8068 = vunpack.c.0.s8 %v8067
        %v8069 = vlaneseq
        %v8070 = vshrl.u32 %v8069, 7
        %v8071 = vsub.s32 %v8068, %v8070
        %v8072 = vrot.slane %v8064, %v8071
        %v8074 = vunpack.c.l.s4 1983009808
        %v8075 = vunpack.c.0.s8 %v8074
        %v8076 = vlaneseq
        %v8077 = vshrl.u32 %v8076, 7
        %v8078 = vsub.s32 %v8075, %v8077
        %v8079 = vrot.slane %v8065, %v8078
        %v8080 = vcombine.low %v7897, %v7905
        %v8081 = vcombine.high %v7897, %v7905
        %v8083 = vunpack.c.l.s4 1983009808
        %v8084 = vunpack.c.0.s8 %v8083
        %v8085 = vlaneseq
        %v8086 = vshrl.u32 %v8085, 7
        %v8087 = vsub.s32 %v8084, %v8086
        %v8088 = vrot.slane %v8080, %v8087
        %v8090 = vunpack.c.l.s4 1983009808
        %v8091 = vunpack.c.0.s8 %v8090
        %v8092 = vlaneseq
        %v8093 = vshrl.u32 %v8092, 7
        %v8094 = vsub.s32 %v8091, %v8093
        %v8095 = vrot.slane %v8081, %v8094
        %v8096 = vcombine.low %v7901, %v7909
        %v8097 = vcombine.high %v7901, %v7909
        %v8099 = vunpack.c.l.s4 1983009808
        %v8100 = vunpack.c.0.s8 %v8099
        %v8101 = vlaneseq
        %v8102 = vshrl.u32 %v8101, 7
        %v8103 = vsub.s32 %v8100, %v8102
        %v8104 = vrot.slane %v8096, %v8103
        %v8106 = vunpack.c.l.s4 1983009808
        %v8107 = vunpack.c.0.s8 %v8106
        %v8108 = vlaneseq
        %v8109 = vshrl.u32 %v8108, 7
        %v8110 = vsub.s32 %v8107, %v8109
        %v8111 = vrot.slane %v8097, %v8110
        %v8112 = vcombine.low %v8056, %v8072
        %v8113 = vcombine.high %v8056, %v8072
        %v8115 = vunpack.c.l.s4 1934713408
        %v8116 = vunpack.c.0.s8 %v8115
        %v8117 = vlaneseq
        %v8118 = vshrl.u32 %v8117, 7
        %v8119 = vsub.s32 %v8116, %v8118
        %v8120 = vrot.slane %v8112, %v8119
        %v8122 = vunpack.c.l.s4 1934713408
        %v8123 = vunpack.c.0.s8 %v8122
        %v8124 = vlaneseq
        %v8125 = vshrl.u32 %v8124, 7
        %v8126 = vsub.s32 %v8123, %v8125
        %v8127 = vrot.slane %v8113, %v8126
        %v8128 = vcombine.low %v8063, %v8079
        %v8129 = vcombine.high %v8063, %v8079
        %v8131 = vunpack.c.l.s4 1934713408
        %v8132 = vunpack.c.0.s8 %v8131
        %v8133 = vlaneseq
        %v8134 = vshrl.u32 %v8133, 7
        %v8135 = vsub.s32 %v8132, %v8134
        %v8136 = vrot.slane %v8128, %v8135
        %v8138 = vunpack.c.l.s4 1934713408
        %v8139 = vunpack.c.0.s8 %v8138
        %v8140 = vlaneseq
        %v8141 = vshrl.u32 %v8140, 7
        %v8142 = vsub.s32 %v8139, %v8141
        %v8143 = vrot.slane %v8129, %v8142
        %v8144 = vcombine.low %v8088, %v8104
        %v8145 = vcombine.high %v8088, %v8104
        %v8147 = vunpack.c.l.s4 1934713408
        %v8148 = vunpack.c.0.s8 %v8147
        %v8149 = vlaneseq
        %v8150 = vshrl.u32 %v8149, 7
        %v8151 = vsub.s32 %v8148, %v8150
        %v8152 = vrot.slane %v8144, %v8151
        %v8154 = vunpack.c.l.s4 1934713408
        %v8155 = vunpack.c.0.s8 %v8154
        %v8156 = vlaneseq
        %v8157 = vshrl.u32 %v8156, 7
        %v8158 = vsub.s32 %v8155, %v8157
        %v8159 = vrot.slane %v8145, %v8158
        %v8160 = vcombine.low %v8095, %v8111
        %v8161 = vcombine.high %v8095, %v8111
        %v8163 = vunpack.c.l.s4 1934713408
        %v8164 = vunpack.c.0.s8 %v8163
        %v8165 = vlaneseq
        %v8166 = vshrl.u32 %v8165, 7
        %v8167 = vsub.s32 %v8164, %v8166
        %v8168 = vrot.slane %v8160, %v8167
        %v8170 = vunpack.c.l.s4 1934713408
        %v8171 = vunpack.c.0.s8 %v8170
        %v8172 = vlaneseq
        %v8173 = vshrl.u32 %v8172, 7
        %v8174 = vsub.s32 %v8171, %v8173
        %v8175 = vrot.slane %v8161, %v8174
        %v8176 = vcombine.low %v8120, %v8152
        %v8177 = vcombine.high %v8120, %v8152
        %v8178 = vcombine.low %v8127, %v8159
        %v8179 = vcombine.high %v8127, %v8159
        %v8180 = vcombine.low %v8136, %v8168
        %v8181 = vcombine.high %v8136, %v8168
        %v8182 = vcombine.low %v8143, %v8175
        %v8183 = vcombine.high %v8143, %v8175
        %v8184 = vcombine.low %v7882, %v7890
        %v8185 = vcombine.high %v7882, %v7890
        %v8187 = vunpack.c.l.s4 1983009808
        %v8188 = vunpack.c.0.s8 %v8187
        %v8189 = vlaneseq
        %v8190 = vshrl.u32 %v8189, 7
        %v8191 = vsub.s32 %v8188, %v8190
        %v8192 = vrot.slane %v8184, %v8191
        %v8194 = vunpack.c.l.s4 1983009808
        %v8195 = vunpack.c.0.s8 %v8194
        %v8196 = vlaneseq
        %v8197 = vshrl.u32 %v8196, 7
        %v8198 = vsub.s32 %v8195, %v8197
        %v8199 = vrot.slane %v8185, %v8198
        %v8200 = vcombine.low %v7886, %v7894
        %v8201 = vcombine.high %v7886, %v7894
        %v8203 = vunpack.c.l.s4 1983009808
        %v8204 = vunpack.c.0.s8 %v8203
        %v8205 = vlaneseq
        %v8206 = vshrl.u32 %v8205, 7
        %v8207 = vsub.s32 %v8204, %v8206
        %v8208 = vrot.slane %v8200, %v8207
        %v8210 = vunpack.c.l.s4 1983009808
        %v8211 = vunpack.c.0.s8 %v8210
        %v8212 = vlaneseq
        %v8213 = vshrl.u32 %v8212, 7
        %v8214 = vsub.s32 %v8211, %v8213
        %v8215 = vrot.slane %v8201, %v8214
        %v8216 = vcombine.low %v7898, %v7906
        %v8217 = vcombine.high %v7898, %v7906
        %v8219 = vunpack.c.l.s4 1983009808
        %v8220 = vunpack.c.0.s8 %v8219
        %v8221 = vlaneseq
        %v8222 = vshrl.u32 %v8221, 7
        %v8223 = vsub.s32 %v8220, %v8222
        %v8224 = vrot.slane %v8216, %v8223
        %v8226 = vunpack.c.l.s4 1983009808
        %v8227 = vunpack.c.0.s8 %v8226
        %v8228 = vlaneseq
        %v8229 = vshrl.u32 %v8228, 7
        %v8230 = vsub.s32 %v8227, %v8229
        %v8231 = vrot.slane %v8217, %v8230
        %v8232 = vcombine.low %v7902, %v7910
        %v8233 = vcombine.high %v7902, %v7910
        %v8235 = vunpack.c.l.s4 1983009808
        %v8236 = vunpack.c.0.s8 %v8235
        %v8237 = vlaneseq
        %v8238 = vshrl.u32 %v8237, 7
        %v8239 = vsub.s32 %v8236, %v8238
        %v8240 = vrot.slane %v8232, %v8239
        %v8242 = vunpack.c.l.s4 1983009808
        %v8243 = vunpack.c.0.s8 %v8242
        %v8244 = vlaneseq
        %v8245 = vshrl.u32 %v8244, 7
        %v8246 = vsub.s32 %v8243, %v8245
        %v8247 = vrot.slane %v8233, %v8246
        %v8248 = vcombine.low %v8192, %v8208
        %v8249 = vcombine.high %v8192, %v8208
        %v8251 = vunpack.c.l.s4 1934713408
        %v8252 = vunpack.c.0.s8 %v8251
        %v8253 = vlaneseq
        %v8254 = vshrl.u32 %v8253, 7
        %v8255 = vsub.s32 %v8252, %v8254
        %v8256 = vrot.slane %v8248, %v8255
        %v8258 = vunpack.c.l.s4 1934713408
        %v8259 = vunpack.c.0.s8 %v8258
        %v8260 = vlaneseq
        %v8261 = vshrl.u32 %v8260, 7
        %v8262 = vsub.s32 %v8259, %v8261
        %v8263 = vrot.slane %v8249, %v8262
        %v8264 = vcombine.low %v8199, %v8215
        %v8265 = vcombine.high %v8199, %v8215
        %v8267 = vunpack.c.l.s4 1934713408
        %v8268 = vunpack.c.0.s8 %v8267
        %v8269 = vlaneseq
        %v8270 = vshrl.u32 %v8269, 7
        %v8271 = vsub.s32 %v8268, %v8270
        %v8272 = vrot.slane %v8264, %v8271
        %v8274 = vunpack.c.l.s4 1934713408
        %v8275 = vunpack.c.0.s8 %v8274
        %v8276 = vlaneseq
        %v8277 = vshrl.u32 %v8276, 7
        %v8278 = vsub.s32 %v8275, %v8277
        %v8279 = vrot.slane %v8265, %v8278
        %v8280 = vcombine.low %v8224, %v8240
        %v8281 = vcombine.high %v8224, %v8240
        %v8283 = vunpack.c.l.s4 1934713408
        %v8284 = vunpack.c.0.s8 %v8283
        %v8285 = vlaneseq
        %v8286 = vshrl.u32 %v8285, 7
        %v8287 = vsub.s32 %v8284, %v8286
        %v8288 = vrot.slane %v8280, %v8287
        %v8290 = vunpack.c.l.s4 1934713408
        %v8291 = vunpack.c.0.s8 %v8290
        %v8292 = vlaneseq
        %v8293 = vshrl.u32 %v8292, 7
        %v8294 = vsub.s32 %v8291, %v8293
        %v8295 = vrot.slane %v8281, %v8294
        %v8296 = vcombine.low %v8231, %v8247
        %v8297 = vcombine.high %v8231, %v8247
        %v8299 = vunpack.c.l.s4 1934713408
        %v8300 = vunpack.c.0.s8 %v8299
        %v8301 = vlaneseq
        %v8302 = vshrl.u32 %v8301, 7
        %v8303 = vsub.s32 %v8300, %v8302
        %v8304 = vrot.slane %v8296, %v8303
        %v8306 = vunpack.c.l.s4 1934713408
        %v8307 = vunpack.c.0.s8 %v8306
        %v8308 = vlaneseq
        %v8309 = vshrl.u32 %v8308, 7
        %v8310 = vsub.s32 %v8307, %v8309
        %v8311 = vrot.slane %v8297, %v8310
        %v8312 = vcombine.low %v8256, %v8288
        %v8313 = vcombine.high %v8256, %v8288
        %v8314 = vcombine.low %v8263, %v8295
        %v8315 = vcombine.high %v8263, %v8295
        %v8316 = vcombine.low %v8272, %v8304
        %v8317 = vcombine.high %v8272, %v8304
        %v8318 = vcombine.low %v8279, %v8311
        %v8319 = vcombine.high %v8279, %v8311
        %v8320 = vcombine.low %v7883, %v7891
        %v8321 = vcombine.high %v7883, %v7891
        %v8323 = vunpack.c.l.s4 1983009808
        %v8324 = vunpack.c.0.s8 %v8323
        %v8325 = vlaneseq
        %v8326 = vshrl.u32 %v8325, 7
        %v8327 = vsub.s32 %v8324, %v8326
        %v8328 = vrot.slane %v8320, %v8327
        %v8330 = vunpack.c.l.s4 1983009808
        %v8331 = vunpack.c.0.s8 %v8330
        %v8332 = vlaneseq
        %v8333 = vshrl.u32 %v8332, 7
        %v8334 = vsub.s32 %v8331, %v8333
        %v8335 = vrot.slane %v8321, %v8334
        %v8336 = vcombine.low %v7887, %v7895
        %v8337 = vcombine.high %v7887, %v7895
        %v8339 = vunpack.c.l.s4 1983009808
        %v8340 = vunpack.c.0.s8 %v8339
        %v8341 = vlaneseq
        %v8342 = vshrl.u32 %v8341, 7
        %v8343 = vsub.s32 %v8340, %v8342
        %v8344 = vrot.slane %v8336, %v8343
        %v8346 = vunpack.c.l.s4 1983009808
        %v8347 = vunpack.c.0.s8 %v8346
        %v8348 = vlaneseq
        %v8349 = vshrl.u32 %v8348, 7
        %v8350 = vsub.s32 %v8347, %v8349
        %v8351 = vrot.slane %v8337, %v8350
        %v8352 = vcombine.low %v7899, %v7907
        %v8353 = vcombine.high %v7899, %v7907
        %v8355 = vunpack.c.l.s4 1983009808
        %v8356 = vunpack.c.0.s8 %v8355
        %v8357 = vlaneseq
        %v8358 = vshrl.u32 %v8357, 7
        %v8359 = vsub.s32 %v8356, %v8358
        %v8360 = vrot.slane %v8352, %v8359
        %v8362 = vunpack.c.l.s4 1983009808
        %v8363 = vunpack.c.0.s8 %v8362
        %v8364 = vlaneseq
        %v8365 = vshrl.u32 %v8364, 7
        %v8366 = vsub.s32 %v8363, %v8365
        %v8367 = vrot.slane %v8353, %v8366
        %v8368 = vcombine.low %v7903, %v7911
        %v8369 = vcombine.high %v7903, %v7911
        %v8371 = vunpack.c.l.s4 1983009808
        %v8372 = vunpack.c.0.s8 %v8371
        %v8373 = vlaneseq
        %v8374 = vshrl.u32 %v8373, 7
        %v8375 = vsub.s32 %v8372, %v8374
        %v8376 = vrot.slane %v8368, %v8375
        %v8378 = vunpack.c.l.s4 1983009808
        %v8379 = vunpack.c.0.s8 %v8378
        %v8380 = vlaneseq
        %v8381 = vshrl.u32 %v8380, 7
        %v8382 = vsub.s32 %v8379, %v8381
        %v8383 = vrot.slane %v8369, %v8382
        %v8384 = vcombine.low %v8328, %v8344
        %v8385 = vcombine.high %v8328, %v8344
        %v8387 = vunpack.c.l.s4 1934713408
        %v8388 = vunpack.c.0.s8 %v8387
        %v8389 = vlaneseq
        %v8390 = vshrl.u32 %v8389, 7
        %v8391 = vsub.s32 %v8388, %v8390
        %v8392 = vrot.slane %v8384, %v8391
        %v8394 = vunpack.c.l.s4 1934713408
        %v8395 = vunpack.c.0.s8 %v8394
        %v8396 = vlaneseq
        %v8397 = vshrl.u32 %v8396, 7
        %v8398 = vsub.s32 %v8395, %v8397
        %v8399 = vrot.slane %v8385, %v8398
        %v8400 = vcombine.low %v8335, %v8351
        %v8401 = vcombine.high %v8335, %v8351
        %v8403 = vunpack.c.l.s4 1934713408
        %v8404 = vunpack.c.0.s8 %v8403
        %v8405 = vlaneseq
        %v8406 = vshrl.u32 %v8405, 7
        %v8407 = vsub.s32 %v8404, %v8406
        %v8408 = vrot.slane %v8400, %v8407
        %v8410 = vunpack.c.l.s4 1934713408
        %v8411 = vunpack.c.0.s8 %v8410
        %v8412 = vlaneseq
        %v8413 = vshrl.u32 %v8412, 7
        %v8414 = vsub.s32 %v8411, %v8413
        %v8415 = vrot.slane %v8401, %v8414
        %v8416 = vcombine.low %v8360, %v8376
        %v8417 = vcombine.high %v8360, %v8376
        %v8419 = vunpack.c.l.s4 1934713408
        %v8420 = vunpack.c.0.s8 %v8419
        %v8421 = vlaneseq
        %v8422 = vshrl.u32 %v8421, 7
        %v8423 = vsub.s32 %v8420, %v8422
        %v8424 = vrot.slane %v8416, %v8423
        %v8426 = vunpack.c.l.s4 1934713408
        %v8427 = vunpack.c.0.s8 %v8426
        %v8428 = vlaneseq
        %v8429 = vshrl.u32 %v8428, 7
        %v8430 = vsub.s32 %v8427, %v8429
        %v8431 = vrot.slane %v8417, %v8430
        %v8432 = vcombine.low %v8367, %v8383
        %v8433 = vcombine.high %v8367, %v8383
        %v8435 = vunpack.c.l.s4 1934713408
        %v8436 = vunpack.c.0.s8 %v8435
        %v8437 = vlaneseq
        %v8438 = vshrl.u32 %v8437, 7
        %v8439 = vsub.s32 %v8436, %v8438
        %v8440 = vrot.slane %v8432, %v8439
        %v8442 = vunpack.c.l.s4 1934713408
        %v8443 = vunpack.c.0.s8 %v8442
        %v8444 = vlaneseq
        %v8445 = vshrl.u32 %v8444, 7
        %v8446 = vsub.s32 %v8443, %v8445
        %v8447 = vrot.slane %v8433, %v8446
        %v8448 = vcombine.low %v8392, %v8424
        %v8449 = vcombine.high %v8392, %v8424
        %v8450 = vcombine.low %v8399, %v8431
        %v8451 = vcombine.high %v8399, %v8431
        %v8452 = vcombine.low %v8408, %v8440
        %v8453 = vcombine.high %v8408, %v8440
        %v8454 = vcombine.low %v8415, %v8447
        %v8455 = vcombine.high %v8415, %v8447
        %8457 = vrot.lane.b32.xlu0 %v8041, 32
        %v8458 = vpop.permute.xlu0 %8457
        %8461 = vrot.lane.b32.xlu0 %v8042, 64
        %v8462 = vpop.permute.xlu0 %8461
        %8465 = vrot.lane.b32.xlu0 %v8043, 96
        %v8466 = vpop.permute.xlu0 %8465
        %8469 = vrot.lane.b32.xlu0 %v8045, 32
        %v8470 = vpop.permute.xlu0 %8469
        %8473 = vrot.lane.b32.xlu0 %v8046, 64
        %v8474 = vpop.permute.xlu0 %8473
        %8477 = vrot.lane.b32.xlu0 %v8047, 96
        %v8478 = vpop.permute.xlu0 %8477
        %8481 = vrot.lane.b32.xlu0 %v8177, 32
        %v8482 = vpop.permute.xlu0 %8481
        %8485 = vrot.lane.b32.xlu0 %v8178, 64
        %v8486 = vpop.permute.xlu0 %8485
        %8489 = vrot.lane.b32.xlu0 %v8179, 96
        %v8490 = vpop.permute.xlu0 %8489
        %8493 = vrot.lane.b32.xlu0 %v8181, 32
        %v8494 = vpop.permute.xlu0 %8493
        %8497 = vrot.lane.b32.xlu0 %v8182, 64
        %v8498 = vpop.permute.xlu0 %8497
        %8501 = vrot.lane.b32.xlu0 %v8183, 96
        %v8502 = vpop.permute.xlu0 %8501
        %8505 = vrot.lane.b32.xlu0 %v8313, 32
        %v8506 = vpop.permute.xlu0 %8505
        %8509 = vrot.lane.b32.xlu0 %v8314, 64
        %v8510 = vpop.permute.xlu0 %8509
        %8513 = vrot.lane.b32.xlu0 %v8315, 96
        %v8514 = vpop.permute.xlu0 %8513
        %8517 = vrot.lane.b32.xlu0 %v8317, 32
        %v8518 = vpop.permute.xlu0 %8517
        %8521 = vrot.lane.b32.xlu0 %v8318, 64
        %v8522 = vpop.permute.xlu0 %8521
        %8525 = vrot.lane.b32.xlu0 %v8319, 96
        %v8526 = vpop.permute.xlu0 %8525
        %8529 = vrot.lane.b32.xlu0 %v8449, 32
        %v8530 = vpop.permute.xlu0 %8529
        %8533 = vrot.lane.b32.xlu0 %v8450, 64
        %v8534 = vpop.permute.xlu0 %8533
        %8537 = vrot.lane.b32.xlu0 %v8451, 96
        %v8538 = vpop.permute.xlu0 %8537
        %8541 = vrot.lane.b32.xlu0 %v8453, 32
        %v8542 = vpop.permute.xlu0 %8541
        %8545 = vrot.lane.b32.xlu0 %v8454, 64
        %v8546 = vpop.permute.xlu0 %8545
        %8549 = vrot.lane.b32.xlu0 %v8455, 96
        %v8550 = vpop.permute.xlu0 %8549
        %v8552 = vsel %vm2127, %v8040, %v8458
        %v8553 = vsel %vm2129, %v8552, %v8462
        %v8554 = vsel %vm2131, %v8553, %v8466
        %v8555 = vsel %vm2127, %v8044, %v8470
        %v8556 = vsel %vm2129, %v8555, %v8474
        %v8557 = vsel %vm2131, %v8556, %v8478
        %v8558 = vsel %vm2127, %v8176, %v8482
        %v8559 = vsel %vm2129, %v8558, %v8486
        %v8560 = vsel %vm2131, %v8559, %v8490
        %v8561 = vsel %vm2127, %v8180, %v8494
        %v8562 = vsel %vm2129, %v8561, %v8498
        %v8563 = vsel %vm2131, %v8562, %v8502
        %v8564 = vsel %vm2127, %v8312, %v8506
        %v8565 = vsel %vm2129, %v8564, %v8510
        %v8566 = vsel %vm2131, %v8565, %v8514
        %v8567 = vsel %vm2127, %v8316, %v8518
        %v8568 = vsel %vm2129, %v8567, %v8522
        %v8569 = vsel %vm2131, %v8568, %v8526
        %v8570 = vsel %vm2127, %v8448, %v8530
        %v8571 = vsel %vm2129, %v8570, %v8534
        %v8572 = vsel %vm2131, %v8571, %v8538
        %v8573 = vsel %vm2127, %v8452, %v8542
        %v8574 = vsel %vm2129, %v8573, %v8546
        %v8575 = vsel %vm2131, %v8574, %v8550
        %s8576 = scalar_lea.vmem %s3, 24
        %v8577 = vld [vmem:[%s8576] sm:$0xf]
        %v8579 = vsel %vm2949, %v8577, 0
        %8581 = vmatprep.subr.mxu0 %v8557
        %8582 = vmatpush1.msra.mxu0 %v8554
        %8583 = vmatprep.subr.mxu0 0.0
        %8584 = vmatpush1.msra.mxu0 0.0
        %8585 = vmatprep.subr.mxu0 0.0
        %8586 = vmatpush1.msra.mxu0 0.0
        %8587 = vmatprep.subr.mxu0 0.0
        %8588 = vmatpush1.msra.mxu0 0.0
        %8589 = vmatprep.subr.mxu0 0.0
        %8590 = vmatpush1.msra.mxu0 0.0
        %8591 = vmatprep.subr.mxu0 0.0
        %8592 = vmatpush1.msra.mxu0 0.0
        %8593 = vmatprep.subr.mxu0 0.0
        %8594 = vmatpush1.msra.mxu0 0.0
        %8595 = vmatprep.subr.mxu0 0.0
        %8596 = vmatpush1.msra.mxu0 0.0
        %8597 = vmatprep.subr.mxu0 0.0
        %8598 = vmatpush1.msra.mxu0 0.0
        %8599 = vmatprep.subr.mxu0 0.0
        %8600 = vmatpush1.msra.mxu0 0.0
        %8601 = vmatprep.subr.mxu0 0.0
        %8602 = vmatpush1.msra.mxu0 0.0
        %8603 = vmatprep.subr.mxu0 0.0
        %8604 = vmatpush1.msra.mxu0 0.0
        %8605 = vmatprep.subr.mxu0 0.0
        %8606 = vmatpush1.msra.mxu0 0.0
        %8607 = vmatprep.subr.mxu0 0.0
        %8608 = vmatpush1.msra.mxu0 0.0
        %8609 = vmatprep.subr.mxu0 0.0
        %8610 = vmatpush1.msra.mxu0 0.0
        %8611 = vmatprep.subr.mxu0 0.0
        %8612 = vmatpush1.msra.mxu0 0.0
        %8613 = vmatprep.subr.mxu0 0.0
        %8614 = vmatpush1.msra.mxu0 0.0
        %8615 = vmatprep.subr.mxu0 0.0
        %8616 = vmatpush1.msra.mxu0 0.0
        %8617 = vmatprep.subr.mxu0 0.0
        %8618 = vmatpush1.msra.mxu0 0.0
        %8619 = vmatprep.subr.mxu0 0.0
        %8620 = vmatpush1.msra.mxu0 0.0
        %8621 = vmatprep.subr.mxu0 0.0
        %8622 = vmatpush1.msra.mxu0 0.0
        %8623 = vmatprep.subr.mxu0 0.0
        %8624 = vmatpush1.msra.mxu0 0.0
        %8625 = vmatprep.subr.mxu0 0.0
        %8626 = vmatpush1.msra.mxu0 0.0
        %8627 = vmatprep.subr.mxu0 0.0
        %8628 = vmatpush1.msra.mxu0 0.0
        %8629 = vmatprep.subr.mxu0 0.0
        %8630 = vmatpush1.msra.mxu0 0.0
        %8631 = vmatprep.subr.mxu0 0.0
        %8632 = vmatpush1.msra.mxu0 0.0
        %8633 = vmatprep.subr.mxu0 0.0
        %8634 = vmatpush1.msra.mxu0 0.0
        %8635 = vmatprep.subr.mxu0 0.0
        %8636 = vmatpush1.msra.mxu0 0.0
        %8637 = vmatprep.subr.mxu0 0.0
        %8638 = vmatpush1.msra.mxu0 0.0
        %8639 = vmatprep.subr.mxu0 0.0
        %8640 = vmatpush1.msra.mxu0 0.0
        %8641 = vmatprep.subr.mxu0 0.0
        %8642 = vmatpush1.msra.mxu0 0.0
        %8643 = vmatprep.subr.mxu0 0.0
        %8644 = vmatpush1.msra.mxu0 0.0
        %8645 = vmatprep.mubr.f32.mxu0 0.0
        %8646 = vmatmul.mubr.f32.gmra.mrb[0].mxu0 %v8579
        %v8647 = vpop.f32.mrb[0].mxu0
        %v8648 = vadd.f32 0.0, %v8647
        %v8649 = vpop.f32.mrb[0].mxu0
        %v8650 = vadd.f32 0.0, %v8649
        %8651 = vdwg.mxu0
        %8652 = vmatprep.subr.mxu0 %v8563
        %8653 = vmatpush1.msra.mxu0 %v8560
        %8654 = vmatprep.subr.mxu0 0.0
        %8655 = vmatpush1.msra.mxu0 0.0
        %8656 = vmatprep.subr.mxu0 0.0
        %8657 = vmatpush1.msra.mxu0 0.0
        %8658 = vmatprep.subr.mxu0 0.0
        %8659 = vmatpush1.msra.mxu0 0.0
        %8660 = vmatprep.subr.mxu0 0.0
        %8661 = vmatpush1.msra.mxu0 0.0
        %8662 = vmatprep.subr.mxu0 0.0
        %8663 = vmatpush1.msra.mxu0 0.0
        %8664 = vmatprep.subr.mxu0 0.0
        %8665 = vmatpush1.msra.mxu0 0.0
        %8666 = vmatprep.subr.mxu0 0.0
        %8667 = vmatpush1.msra.mxu0 0.0
        %8668 = vmatprep.subr.mxu0 0.0
        %8669 = vmatpush1.msra.mxu0 0.0
        %8670 = vmatprep.subr.mxu0 0.0
        %8671 = vmatpush1.msra.mxu0 0.0
        %8672 = vmatprep.subr.mxu0 0.0
        %8673 = vmatpush1.msra.mxu0 0.0
        %8674 = vmatprep.subr.mxu0 0.0
        %8675 = vmatpush1.msra.mxu0 0.0
        %8676 = vmatprep.subr.mxu0 0.0
        %8677 = vmatpush1.msra.mxu0 0.0
        %8678 = vmatprep.subr.mxu0 0.0
        %8679 = vmatpush1.msra.mxu0 0.0
        %8680 = vmatprep.subr.mxu0 0.0
        %8681 = vmatpush1.msra.mxu0 0.0
        %8682 = vmatprep.subr.mxu0 0.0
        %8683 = vmatpush1.msra.mxu0 0.0
        %8684 = vmatprep.subr.mxu0 0.0
        %8685 = vmatpush1.msra.mxu0 0.0
        %8686 = vmatprep.subr.mxu0 0.0
        %8687 = vmatpush1.msra.mxu0 0.0
        %8688 = vmatprep.subr.mxu0 0.0
        %8689 = vmatpush1.msra.mxu0 0.0
        %8690 = vmatprep.subr.mxu0 0.0
        %8691 = vmatpush1.msra.mxu0 0.0
        %8692 = vmatprep.subr.mxu0 0.0
        %8693 = vmatpush1.msra.mxu0 0.0
        %8694 = vmatprep.subr.mxu0 0.0
        %8695 = vmatpush1.msra.mxu0 0.0
        %8696 = vmatprep.subr.mxu0 0.0
        %8697 = vmatpush1.msra.mxu0 0.0
        %8698 = vmatprep.subr.mxu0 0.0
        %8699 = vmatpush1.msra.mxu0 0.0
        %8700 = vmatprep.subr.mxu0 0.0
        %8701 = vmatpush1.msra.mxu0 0.0
        %8702 = vmatprep.subr.mxu0 0.0
        %8703 = vmatpush1.msra.mxu0 0.0
        %8704 = vmatprep.subr.mxu0 0.0
        %8705 = vmatpush1.msra.mxu0 0.0
        %8706 = vmatprep.subr.mxu0 0.0
        %8707 = vmatpush1.msra.mxu0 0.0
        %8708 = vmatprep.subr.mxu0 0.0
        %8709 = vmatpush1.msra.mxu0 0.0
        %8710 = vmatprep.subr.mxu0 0.0
        %8711 = vmatpush1.msra.mxu0 0.0
        %8712 = vmatprep.subr.mxu0 0.0
        %8713 = vmatpush1.msra.mxu0 0.0
        %8714 = vmatprep.subr.mxu0 0.0
        %8715 = vmatpush1.msra.mxu0 0.0
        %8716 = vmatprep.mubr.f32.mxu0 0.0
        %8717 = vmatmul.mubr.f32.gmra.mrb[0].mxu0 %v8579
        %v8718 = vpop.f32.mrb[0].mxu0
        %v8719 = vadd.f32 0.0, %v8718
        %v8720 = vpop.f32.mrb[0].mxu0
        %v8721 = vadd.f32 0.0, %v8720
        %8722 = vdwg.mxu0
        %8723 = vmatprep.subr.mxu0 %v8569
        %8724 = vmatpush1.msra.mxu0 %v8566
        %8725 = vmatprep.subr.mxu0 0.0
        %8726 = vmatpush1.msra.mxu0 0.0
        %8727 = vmatprep.subr.mxu0 0.0
        %8728 = vmatpush1.msra.mxu0 0.0
        %8729 = vmatprep.subr.mxu0 0.0
        %8730 = vmatpush1.msra.mxu0 0.0
        %8731 = vmatprep.subr.mxu0 0.0
        %8732 = vmatpush1.msra.mxu0 0.0
        %8733 = vmatprep.subr.mxu0 0.0
        %8734 = vmatpush1.msra.mxu0 0.0
        %8735 = vmatprep.subr.mxu0 0.0
        %8736 = vmatpush1.msra.mxu0 0.0
        %8737 = vmatprep.subr.mxu0 0.0
        %8738 = vmatpush1.msra.mxu0 0.0
        %8739 = vmatprep.subr.mxu0 0.0
        %8740 = vmatpush1.msra.mxu0 0.0
        %8741 = vmatprep.subr.mxu0 0.0
        %8742 = vmatpush1.msra.mxu0 0.0
        %8743 = vmatprep.subr.mxu0 0.0
        %8744 = vmatpush1.msra.mxu0 0.0
        %8745 = vmatprep.subr.mxu0 0.0
        %8746 = vmatpush1.msra.mxu0 0.0
        %8747 = vmatprep.subr.mxu0 0.0
        %8748 = vmatpush1.msra.mxu0 0.0
        %8749 = vmatprep.subr.mxu0 0.0
        %8750 = vmatpush1.msra.mxu0 0.0
        %8751 = vmatprep.subr.mxu0 0.0
        %8752 = vmatpush1.msra.mxu0 0.0
        %8753 = vmatprep.subr.mxu0 0.0
        %8754 = vmatpush1.msra.mxu0 0.0
        %8755 = vmatprep.subr.mxu0 0.0
        %8756 = vmatpush1.msra.mxu0 0.0
        %8757 = vmatprep.subr.mxu0 0.0
        %8758 = vmatpush1.msra.mxu0 0.0
        %8759 = vmatprep.subr.mxu0 0.0
        %8760 = vmatpush1.msra.mxu0 0.0
        %8761 = vmatprep.subr.mxu0 0.0
        %8762 = vmatpush1.msra.mxu0 0.0
        %8763 = vmatprep.subr.mxu0 0.0
        %8764 = vmatpush1.msra.mxu0 0.0
        %8765 = vmatprep.subr.mxu0 0.0
        %8766 = vmatpush1.msra.mxu0 0.0
        %8767 = vmatprep.subr.mxu0 0.0
        %8768 = vmatpush1.msra.mxu0 0.0
        %8769 = vmatprep.subr.mxu0 0.0
        %8770 = vmatpush1.msra.mxu0 0.0
        %8771 = vmatprep.subr.mxu0 0.0
        %8772 = vmatpush1.msra.mxu0 0.0
        %8773 = vmatprep.subr.mxu0 0.0
        %8774 = vmatpush1.msra.mxu0 0.0
        %8775 = vmatprep.subr.mxu0 0.0
        %8776 = vmatpush1.msra.mxu0 0.0
        %8777 = vmatprep.subr.mxu0 0.0
        %8778 = vmatpush1.msra.mxu0 0.0
        %8779 = vmatprep.subr.mxu0 0.0
        %8780 = vmatpush1.msra.mxu0 0.0
        %8781 = vmatprep.subr.mxu0 0.0
        %8782 = vmatpush1.msra.mxu0 0.0
        %8783 = vmatprep.subr.mxu0 0.0
        %8784 = vmatpush1.msra.mxu0 0.0
        %8785 = vmatprep.subr.mxu0 0.0
        %8786 = vmatpush1.msra.mxu0 0.0
        %8787 = vmatprep.mubr.f32.mxu0 0.0
        %8788 = vmatmul.mubr.f32.gmra.mrb[0].mxu0 %v8579
        %v8789 = vpop.f32.mrb[0].mxu0
        %v8790 = vadd.f32 0.0, %v8789
        %v8791 = vpop.f32.mrb[0].mxu0
        %v8792 = vadd.f32 0.0, %v8791
        %8793 = vdwg.mxu0
        %8794 = vmatprep.subr.mxu0 %v8575
        %8795 = vmatpush1.msra.mxu0 %v8572
        %8796 = vmatprep.subr.mxu0 0.0
        %8797 = vmatpush1.msra.mxu0 0.0
        %8798 = vmatprep.subr.mxu0 0.0
        %8799 = vmatpush1.msra.mxu0 0.0
        %8800 = vmatprep.subr.mxu0 0.0
        %8801 = vmatpush1.msra.mxu0 0.0
        %8802 = vmatprep.subr.mxu0 0.0
        %8803 = vmatpush1.msra.mxu0 0.0
        %8804 = vmatprep.subr.mxu0 0.0
        %8805 = vmatpush1.msra.mxu0 0.0
        %8806 = vmatprep.subr.mxu0 0.0
        %8807 = vmatpush1.msra.mxu0 0.0
        %8808 = vmatprep.subr.mxu0 0.0
        %8809 = vmatpush1.msra.mxu0 0.0
        %8810 = vmatprep.subr.mxu0 0.0
        %8811 = vmatpush1.msra.mxu0 0.0
        %8812 = vmatprep.subr.mxu0 0.0
        %8813 = vmatpush1.msra.mxu0 0.0
        %8814 = vmatprep.subr.mxu0 0.0
        %8815 = vmatpush1.msra.mxu0 0.0
        %8816 = vmatprep.subr.mxu0 0.0
        %8817 = vmatpush1.msra.mxu0 0.0
        %8818 = vmatprep.subr.mxu0 0.0
        %8819 = vmatpush1.msra.mxu0 0.0
        %8820 = vmatprep.subr.mxu0 0.0
        %8821 = vmatpush1.msra.mxu0 0.0
        %8822 = vmatprep.subr.mxu0 0.0
        %8823 = vmatpush1.msra.mxu0 0.0
        %8824 = vmatprep.subr.mxu0 0.0
        %8825 = vmatpush1.msra.mxu0 0.0
        %8826 = vmatprep.subr.mxu0 0.0
        %8827 = vmatpush1.msra.mxu0 0.0
        %8828 = vmatprep.subr.mxu0 0.0
        %8829 = vmatpush1.msra.mxu0 0.0
        %8830 = vmatprep.subr.mxu0 0.0
        %8831 = vmatpush1.msra.mxu0 0.0
        %8832 = vmatprep.subr.mxu0 0.0
        %8833 = vmatpush1.msra.mxu0 0.0
        %8834 = vmatprep.subr.mxu0 0.0
        %8835 = vmatpush1.msra.mxu0 0.0
        %8836 = vmatprep.subr.mxu0 0.0
        %8837 = vmatpush1.msra.mxu0 0.0
        %8838 = vmatprep.subr.mxu0 0.0
        %8839 = vmatpush1.msra.mxu0 0.0
        %8840 = vmatprep.subr.mxu0 0.0
        %8841 = vmatpush1.msra.mxu0 0.0
        %8842 = vmatprep.subr.mxu0 0.0
        %8843 = vmatpush1.msra.mxu0 0.0
        %8844 = vmatprep.subr.mxu0 0.0
        %8845 = vmatpush1.msra.mxu0 0.0
        %8846 = vmatprep.subr.mxu0 0.0
        %8847 = vmatpush1.msra.mxu0 0.0
        %8848 = vmatprep.subr.mxu0 0.0
        %8849 = vmatpush1.msra.mxu0 0.0
        %8850 = vmatprep.subr.mxu0 0.0
        %8851 = vmatpush1.msra.mxu0 0.0
        %8852 = vmatprep.subr.mxu0 0.0
        %8853 = vmatpush1.msra.mxu0 0.0
        %8854 = vmatprep.subr.mxu0 0.0
        %8855 = vmatpush1.msra.mxu0 0.0
        %8856 = vmatprep.subr.mxu0 0.0
        %8857 = vmatpush1.msra.mxu0 0.0
        %8858 = vmatprep.mubr.f32.mxu0 0.0
        %8859 = vmatmul.mubr.f32.gmra.mrb[0].mxu0 %v8579
        %v8860 = vpop.f32.mrb[0].mxu0
        %v8861 = vadd.f32 0.0, %v8860
        %v8862 = vpop.f32.mrb[0].mxu0
        %v8863 = vadd.f32 0.0, %v8862
        %8864 = vdwg.mxu0
        %v8865 = vadd.f32 %v7872, %v8648
        %v8866 = vadd.f32 %v7873, %v8650
        %v8867 = vadd.f32 %v7874, %v8719
        %v8868 = vadd.f32 %v7875, %v8721
        %v8869 = vadd.f32 %v7876, %v8790
        %v8870 = vadd.f32 %v7877, %v8792
        %v8871 = vadd.f32 %v7878, %v8861
        %v8872 = vadd.f32 %v7879, %v8863
        %v8873 = vld [vmem:[#allocation2 + $0x2] sm:$0xff]
        %v8874 = vld [vmem:[#allocation2 + $0xa] sm:$0xff]
        %v8875 = vld [vmem:[#allocation2 + $0x12] sm:$0xff]
        %v8876 = vld [vmem:[#allocation2 + $0x1a] sm:$0xff]
        %v8877 = vld [vmem:[#allocation2 + $0x2a] sm:$0xff]
        %v8878 = vld [vmem:[#allocation2 + $0x32] sm:$0xff]
        %v8879 = vld [vmem:[#allocation2 + $0x3a] sm:$0xff]
        %v8880 = vld [vmem:[#allocation2 + $0x42] sm:$0xff]
        %v8881 = vld [vmem:[#allocation2 + $0x52] sm:$0xff]
        %v8882 = vld [vmem:[#allocation2 + $0x5a] sm:$0xff]
        %v8883 = vld [vmem:[#allocation2 + $0x62] sm:$0xff]
        %v8884 = vld [vmem:[#allocation2 + $0x6a] sm:$0xff]
        %v8885 = vld [vmem:[#allocation2 + $0x7a] sm:$0xff]
        %v8886 = vld [vmem:[#allocation2 + $0x82] sm:$0xff]
        %v8887 = vld [vmem:[#allocation2 + $0x8a] sm:$0xff]
        %v8888 = vld [vmem:[#allocation2 + $0x92] sm:$0xff]
        %v8889 = vld [vmem:[#allocation2 + $0xa2] sm:$0xff]
        %v8890 = vld [vmem:[#allocation2 + $0xaa] sm:$0xff]
        %v8891 = vld [vmem:[#allocation2 + $0xb2] sm:$0xff]
        %v8892 = vld [vmem:[#allocation2 + $0xba] sm:$0xff]
        %v8893 = vld [vmem:[#allocation2 + $0xca] sm:$0xff]
        %v8894 = vld [vmem:[#allocation2 + $0xd2] sm:$0xff]
        %v8895 = vld [vmem:[#allocation2 + $0xda] sm:$0xff]
        %v8896 = vld [vmem:[#allocation2 + $0xe2] sm:$0xff]
        %v8897 = vld [vmem:[#allocation2 + $0xf2] sm:$0xff]
        %v8898 = vld [vmem:[#allocation2 + $0xfa] sm:$0xff]
        %v8899 = vld [vmem:[#allocation2 + $0x102] sm:$0xff]
        %v8900 = vld [vmem:[#allocation2 + $0x10a] sm:$0xff]
        %v8901 = vld [vmem:[#allocation2 + $0x11a] sm:$0xff]
        %v8902 = vld [vmem:[#allocation2 + $0x122] sm:$0xff]
        %v8903 = vld [vmem:[#allocation2 + $0x12a] sm:$0xff]
        %v8904 = vld [vmem:[#allocation2 + $0x132] sm:$0xff]
        %8937 = vrot.lane.b32.xlu0 %v8873, 127
        %v8938 = vpop.permute.xlu0 %8937
        %8939 = vrot.lane.b32.xlu0 %v8874, 127
        %v8940 = vpop.permute.xlu0 %8939
        %8941 = vrot.lane.b32.xlu0 %v8875, 127
        %v8942 = vpop.permute.xlu0 %8941
        %8943 = vrot.lane.b32.xlu0 %v8876, 127
        %v8944 = vpop.permute.xlu0 %8943
        %8945 = vrot.lane.b32.xlu0 %v8877, 127
        %v8946 = vpop.permute.xlu0 %8945
        %8947 = vrot.lane.b32.xlu0 %v8878, 127
        %v8948 = vpop.permute.xlu0 %8947
        %8949 = vrot.lane.b32.xlu0 %v8879, 127
        %v8950 = vpop.permute.xlu0 %8949
        %8951 = vrot.lane.b32.xlu0 %v8880, 127
        %v8952 = vpop.permute.xlu0 %8951
        %8953 = vrot.lane.b32.xlu0 %v8881, 127
        %v8954 = vpop.permute.xlu0 %8953
        %8955 = vrot.lane.b32.xlu0 %v8882, 127
        %v8956 = vpop.permute.xlu0 %8955
        %8957 = vrot.lane.b32.xlu0 %v8883, 127
        %v8958 = vpop.permute.xlu0 %8957
        %8959 = vrot.lane.b32.xlu0 %v8884, 127
        %v8960 = vpop.permute.xlu0 %8959
        %8961 = vrot.lane.b32.xlu0 %v8885, 127
        %v8962 = vpop.permute.xlu0 %8961
        %8963 = vrot.lane.b32.xlu0 %v8886, 127
        %v8964 = vpop.permute.xlu0 %8963
        %8965 = vrot.lane.b32.xlu0 %v8887, 127
        %v8966 = vpop.permute.xlu0 %8965
        %8967 = vrot.lane.b32.xlu0 %v8888, 127
        %v8968 = vpop.permute.xlu0 %8967
        %8969 = vrot.lane.b32.xlu0 %v8889, 127
        %v8970 = vpop.permute.xlu0 %8969
        %8971 = vrot.lane.b32.xlu0 %v8890, 127
        %v8972 = vpop.permute.xlu0 %8971
        %8973 = vrot.lane.b32.xlu0 %v8891, 127
        %v8974 = vpop.permute.xlu0 %8973
        %8975 = vrot.lane.b32.xlu0 %v8892, 127
        %v8976 = vpop.permute.xlu0 %8975
        %8977 = vrot.lane.b32.xlu0 %v8893, 127
        %v8978 = vpop.permute.xlu0 %8977
        %8979 = vrot.lane.b32.xlu0 %v8894, 127
        %v8980 = vpop.permute.xlu0 %8979
        %8981 = vrot.lane.b32.xlu0 %v8895, 127
        %v8982 = vpop.permute.xlu0 %8981
        %8983 = vrot.lane.b32.xlu0 %v8896, 127
        %v8984 = vpop.permute.xlu0 %8983
        %8985 = vrot.lane.b32.xlu0 %v8897, 127
        %v8986 = vpop.permute.xlu0 %8985
        %8987 = vrot.lane.b32.xlu0 %v8898, 127
        %v8988 = vpop.permute.xlu0 %8987
        %8989 = vrot.lane.b32.xlu0 %v8899, 127
        %v8990 = vpop.permute.xlu0 %8989
        %8991 = vrot.lane.b32.xlu0 %v8900, 127
        %v8992 = vpop.permute.xlu0 %8991
        %8993 = vrot.lane.b32.xlu0 %v8901, 127
        %v8994 = vpop.permute.xlu0 %8993
        %8995 = vrot.lane.b32.xlu0 %v8902, 127
        %v8996 = vpop.permute.xlu0 %8995
        %8997 = vrot.lane.b32.xlu0 %v8903, 127
        %v8998 = vpop.permute.xlu0 %8997
        %8999 = vrot.lane.b32.xlu0 %v8904, 127
        %v9000 = vpop.permute.xlu0 %8999
        %v9033 = vcombine.low %v8938, %v8954
        %v9034 = vcombine.high %v8938, %v8954
        %v9036 = vunpack.c.l.s4 1983009808
        %v9037 = vunpack.c.0.s8 %v9036
        %v9038 = vlaneseq
        %v9039 = vshrl.u32 %v9038, 7
        %v9040 = vsub.s32 %v9037, %v9039
        %v9041 = vrot.slane %v9033, %v9040
        %v9043 = vunpack.c.l.s4 1983009808
        %v9044 = vunpack.c.0.s8 %v9043
        %v9045 = vlaneseq
        %v9046 = vshrl.u32 %v9045, 7
        %v9047 = vsub.s32 %v9044, %v9046
        %v9048 = vrot.slane %v9034, %v9047
        %v9049 = vcombine.low %v8946, %v8962
        %v9050 = vcombine.high %v8946, %v8962
        %v9052 = vunpack.c.l.s4 1983009808
        %v9053 = vunpack.c.0.s8 %v9052
        %v9054 = vlaneseq
        %v9055 = vshrl.u32 %v9054, 7
        %v9056 = vsub.s32 %v9053, %v9055
        %v9057 = vrot.slane %v9049, %v9056
        %v9059 = vunpack.c.l.s4 1983009808
        %v9060 = vunpack.c.0.s8 %v9059
        %v9061 = vlaneseq
        %v9062 = vshrl.u32 %v9061, 7
        %v9063 = vsub.s32 %v9060, %v9062
        %v9064 = vrot.slane %v9050, %v9063
        %v9065 = vcombine.low %v8970, %v8986
        %v9066 = vcombine.high %v8970, %v8986
        %v9068 = vunpack.c.l.s4 1983009808
        %v9069 = vunpack.c.0.s8 %v9068
        %v9070 = vlaneseq
        %v9071 = vshrl.u32 %v9070, 7
        %v9072 = vsub.s32 %v9069, %v9071
        %v9073 = vrot.slane %v9065, %v9072
        %v9075 = vunpack.c.l.s4 1983009808
        %v9076 = vunpack.c.0.s8 %v9075
        %v9077 = vlaneseq
        %v9078 = vshrl.u32 %v9077, 7
        %v9079 = vsub.s32 %v9076, %v9078
        %v9080 = vrot.slane %v9066, %v9079
        %v9081 = vcombine.low %v8978, %v8994
        %v9082 = vcombine.high %v8978, %v8994
        %v9084 = vunpack.c.l.s4 1983009808
        %v9085 = vunpack.c.0.s8 %v9084
        %v9086 = vlaneseq
        %v9087 = vshrl.u32 %v9086, 7
        %v9088 = vsub.s32 %v9085, %v9087
        %v9089 = vrot.slane %v9081, %v9088
        %v9091 = vunpack.c.l.s4 1983009808
        %v9092 = vunpack.c.0.s8 %v9091
        %v9093 = vlaneseq
        %v9094 = vshrl.u32 %v9093, 7
        %v9095 = vsub.s32 %v9092, %v9094
        %v9096 = vrot.slane %v9082, %v9095
        %v9097 = vcombine.low %v9041, %v9057
        %v9098 = vcombine.high %v9041, %v9057
        %v9100 = vunpack.c.l.s4 1934713408
        %v9101 = vunpack.c.0.s8 %v9100
        %v9102 = vlaneseq
        %v9103 = vshrl.u32 %v9102, 7
        %v9104 = vsub.s32 %v9101, %v9103
        %v9105 = vrot.slane %v9097, %v9104
        %v9107 = vunpack.c.l.s4 1934713408
        %v9108 = vunpack.c.0.s8 %v9107
        %v9109 = vlaneseq
        %v9110 = vshrl.u32 %v9109, 7
        %v9111 = vsub.s32 %v9108, %v9110
        %v9112 = vrot.slane %v9098, %v9111
        %v9113 = vcombine.low %v9048, %v9064
        %v9114 = vcombine.high %v9048, %v9064
        %v9116 = vunpack.c.l.s4 1934713408
        %v9117 = vunpack.c.0.s8 %v9116
        %v9118 = vlaneseq
        %v9119 = vshrl.u32 %v9118, 7
        %v9120 = vsub.s32 %v9117, %v9119
        %v9121 = vrot.slane %v9113, %v9120
        %v9123 = vunpack.c.l.s4 1934713408
        %v9124 = vunpack.c.0.s8 %v9123
        %v9125 = vlaneseq
        %v9126 = vshrl.u32 %v9125, 7
        %v9127 = vsub.s32 %v9124, %v9126
        %v9128 = vrot.slane %v9114, %v9127
        %v9129 = vcombine.low %v9073, %v9089
        %v9130 = vcombine.high %v9073, %v9089
        %v9132 = vunpack.c.l.s4 1934713408
        %v9133 = vunpack.c.0.s8 %v9132
        %v9134 = vlaneseq
        %v9135 = vshrl.u32 %v9134, 7
        %v9136 = vsub.s32 %v9133, %v9135
        %v9137 = vrot.slane %v9129, %v9136
        %v9139 = vunpack.c.l.s4 1934713408
        %v9140 = vunpack.c.0.s8 %v9139
        %v9141 = vlaneseq
        %v9142 = vshrl.u32 %v9141, 7
        %v9143 = vsub.s32 %v9140, %v9142
        %v9144 = vrot.slane %v9130, %v9143
        %v9145 = vcombine.low %v9080, %v9096
        %v9146 = vcombine.high %v9080, %v9096
        %v9148 = vunpack.c.l.s4 1934713408
        %v9149 = vunpack.c.0.s8 %v9148
        %v9150 = vlaneseq
        %v9151 = vshrl.u32 %v9150, 7
        %v9152 = vsub.s32 %v9149, %v9151
        %v9153 = vrot.slane %v9145, %v9152
        %v9155 = vunpack.c.l.s4 1934713408
        %v9156 = vunpack.c.0.s8 %v9155
        %v9157 = vlaneseq
        %v9158 = vshrl.u32 %v9157, 7
        %v9159 = vsub.s32 %v9156, %v9158
        %v9160 = vrot.slane %v9146, %v9159
        %v9161 = vcombine.low %v9105, %v9137
        %v9162 = vcombine.high %v9105, %v9137
        %v9163 = vcombine.low %v9112, %v9144
        %v9164 = vcombine.high %v9112, %v9144
        %v9165 = vcombine.low %v9121, %v9153
        %v9166 = vcombine.high %v9121, %v9153
        %v9167 = vcombine.low %v9128, %v9160
        %v9168 = vcombine.high %v9128, %v9160
        %v9169 = vcombine.low %v8940, %v8956
        %v9170 = vcombine.high %v8940, %v8956
        %v9172 = vunpack.c.l.s4 1983009808
        %v9173 = vunpack.c.0.s8 %v9172
        %v9174 = vlaneseq
        %v9175 = vshrl.u32 %v9174, 7
        %v9176 = vsub.s32 %v9173, %v9175
        %v9177 = vrot.slane %v9169, %v9176
        %v9179 = vunpack.c.l.s4 1983009808
        %v9180 = vunpack.c.0.s8 %v9179
        %v9181 = vlaneseq
        %v9182 = vshrl.u32 %v9181, 7
        %v9183 = vsub.s32 %v9180, %v9182
        %v9184 = vrot.slane %v9170, %v9183
        %v9185 = vcombine.low %v8948, %v8964
        %v9186 = vcombine.high %v8948, %v8964
        %v9188 = vunpack.c.l.s4 1983009808
        %v9189 = vunpack.c.0.s8 %v9188
        %v9190 = vlaneseq
        %v9191 = vshrl.u32 %v9190, 7
        %v9192 = vsub.s32 %v9189, %v9191
        %v9193 = vrot.slane %v9185, %v9192
        %v9195 = vunpack.c.l.s4 1983009808
        %v9196 = vunpack.c.0.s8 %v9195
        %v9197 = vlaneseq
        %v9198 = vshrl.u32 %v9197, 7
        %v9199 = vsub.s32 %v9196, %v9198
        %v9200 = vrot.slane %v9186, %v9199
        %v9201 = vcombine.low %v8972, %v8988
        %v9202 = vcombine.high %v8972, %v8988
        %v9204 = vunpack.c.l.s4 1983009808
        %v9205 = vunpack.c.0.s8 %v9204
        %v9206 = vlaneseq
        %v9207 = vshrl.u32 %v9206, 7
        %v9208 = vsub.s32 %v9205, %v9207
        %v9209 = vrot.slane %v9201, %v9208
        %v9211 = vunpack.c.l.s4 1983009808
        %v9212 = vunpack.c.0.s8 %v9211
        %v9213 = vlaneseq
        %v9214 = vshrl.u32 %v9213, 7
        %v9215 = vsub.s32 %v9212, %v9214
        %v9216 = vrot.slane %v9202, %v9215
        %v9217 = vcombine.low %v8980, %v8996
        %v9218 = vcombine.high %v8980, %v8996
        %v9220 = vunpack.c.l.s4 1983009808
        %v9221 = vunpack.c.0.s8 %v9220
        %v9222 = vlaneseq
        %v9223 = vshrl.u32 %v9222, 7
        %v9224 = vsub.s32 %v9221, %v9223
        %v9225 = vrot.slane %v9217, %v9224
        %v9227 = vunpack.c.l.s4 1983009808
        %v9228 = vunpack.c.0.s8 %v9227
        %v9229 = vlaneseq
        %v9230 = vshrl.u32 %v9229, 7
        %v9231 = vsub.s32 %v9228, %v9230
        %v9232 = vrot.slane %v9218, %v9231
        %v9233 = vcombine.low %v9177, %v9193
        %v9234 = vcombine.high %v9177, %v9193
        %v9236 = vunpack.c.l.s4 1934713408
        %v9237 = vunpack.c.0.s8 %v9236
        %v9238 = vlaneseq
        %v9239 = vshrl.u32 %v9238, 7
        %v9240 = vsub.s32 %v9237, %v9239
        %v9241 = vrot.slane %v9233, %v9240
        %v9243 = vunpack.c.l.s4 1934713408
        %v9244 = vunpack.c.0.s8 %v9243
        %v9245 = vlaneseq
        %v9246 = vshrl.u32 %v9245, 7
        %v9247 = vsub.s32 %v9244, %v9246
        %v9248 = vrot.slane %v9234, %v9247
        %v9249 = vcombine.low %v9184, %v9200
        %v9250 = vcombine.high %v9184, %v9200
        %v9252 = vunpack.c.l.s4 1934713408
        %v9253 = vunpack.c.0.s8 %v9252
        %v9254 = vlaneseq
        %v9255 = vshrl.u32 %v9254, 7
        %v9256 = vsub.s32 %v9253, %v9255
        %v9257 = vrot.slane %v9249, %v9256
        %v9259 = vunpack.c.l.s4 1934713408
        %v9260 = vunpack.c.0.s8 %v9259
        %v9261 = vlaneseq
        %v9262 = vshrl.u32 %v9261, 7
        %v9263 = vsub.s32 %v9260, %v9262
        %v9264 = vrot.slane %v9250, %v9263
        %v9265 = vcombine.low %v9209, %v9225
        %v9266 = vcombine.high %v9209, %v9225
        %v9268 = vunpack.c.l.s4 1934713408
        %v9269 = vunpack.c.0.s8 %v9268
        %v9270 = vlaneseq
        %v9271 = vshrl.u32 %v9270, 7
        %v9272 = vsub.s32 %v9269, %v9271
        %v9273 = vrot.slane %v9265, %v9272
        %v9275 = vunpack.c.l.s4 1934713408
        %v9276 = vunpack.c.0.s8 %v9275
        %v9277 = vlaneseq
        %v9278 = vshrl.u32 %v9277, 7
        %v9279 = vsub.s32 %v9276, %v9278
        %v9280 = vrot.slane %v9266, %v9279
        %v9281 = vcombine.low %v9216, %v9232
        %v9282 = vcombine.high %v9216, %v9232
        %v9284 = vunpack.c.l.s4 1934713408
        %v9285 = vunpack.c.0.s8 %v9284
        %v9286 = vlaneseq
        %v9287 = vshrl.u32 %v9286, 7
        %v9288 = vsub.s32 %v9285, %v9287
        %v9289 = vrot.slane %v9281, %v9288
        %v9291 = vunpack.c.l.s4 1934713408
        %v9292 = vunpack.c.0.s8 %v9291
        %v9293 = vlaneseq
        %v9294 = vshrl.u32 %v9293, 7
        %v9295 = vsub.s32 %v9292, %v9294
        %v9296 = vrot.slane %v9282, %v9295
        %v9297 = vcombine.low %v9241, %v9273
        %v9298 = vcombine.high %v9241, %v9273
        %v9299 = vcombine.low %v9248, %v9280
        %v9300 = vcombine.high %v9248, %v9280
        %v9301 = vcombine.low %v9257, %v9289
        %v9302 = vcombine.high %v9257, %v9289
        %v9303 = vcombine.low %v9264, %v9296
        %v9304 = vcombine.high %v9264, %v9296
        %v9305 = vcombine.low %v8942, %v8958
        %v9306 = vcombine.high %v8942, %v8958
        %v9308 = vunpack.c.l.s4 1983009808
        %v9309 = vunpack.c.0.s8 %v9308
        %v9310 = vlaneseq
        %v9311 = vshrl.u32 %v9310, 7
        %v9312 = vsub.s32 %v9309, %v9311
        %v9313 = vrot.slane %v9305, %v9312
        %v9315 = vunpack.c.l.s4 1983009808
        %v9316 = vunpack.c.0.s8 %v9315
        %v9317 = vlaneseq
        %v9318 = vshrl.u32 %v9317, 7
        %v9319 = vsub.s32 %v9316, %v9318
        %v9320 = vrot.slane %v9306, %v9319
        %v9321 = vcombine.low %v8950, %v8966
        %v9322 = vcombine.high %v8950, %v8966
        %v9324 = vunpack.c.l.s4 1983009808
        %v9325 = vunpack.c.0.s8 %v9324
        %v9326 = vlaneseq
        %v9327 = vshrl.u32 %v9326, 7
        %v9328 = vsub.s32 %v9325, %v9327
        %v9329 = vrot.slane %v9321, %v9328
        %v9331 = vunpack.c.l.s4 1983009808
        %v9332 = vunpack.c.0.s8 %v9331
        %v9333 = vlaneseq
        %v9334 = vshrl.u32 %v9333, 7
        %v9335 = vsub.s32 %v9332, %v9334
        %v9336 = vrot.slane %v9322, %v9335
        %v9337 = vcombine.low %v8974, %v8990
        %v9338 = vcombine.high %v8974, %v8990
        %v9340 = vunpack.c.l.s4 1983009808
        %v9341 = vunpack.c.0.s8 %v9340
        %v9342 = vlaneseq
        %v9343 = vshrl.u32 %v9342, 7
        %v9344 = vsub.s32 %v9341, %v9343
        %v9345 = vrot.slane %v9337, %v9344
        %v9347 = vunpack.c.l.s4 1983009808
        %v9348 = vunpack.c.0.s8 %v9347
        %v9349 = vlaneseq
        %v9350 = vshrl.u32 %v9349, 7
        %v9351 = vsub.s32 %v9348, %v9350
        %v9352 = vrot.slane %v9338, %v9351
        %v9353 = vcombine.low %v8982, %v8998
        %v9354 = vcombine.high %v8982, %v8998
        %v9356 = vunpack.c.l.s4 1983009808
        %v9357 = vunpack.c.0.s8 %v9356
        %v9358 = vlaneseq
        %v9359 = vshrl.u32 %v9358, 7
        %v9360 = vsub.s32 %v9357, %v9359
        %v9361 = vrot.slane %v9353, %v9360
        %v9363 = vunpack.c.l.s4 1983009808
        %v9364 = vunpack.c.0.s8 %v9363
        %v9365 = vlaneseq
        %v9366 = vshrl.u32 %v9365, 7
        %v9367 = vsub.s32 %v9364, %v9366
        %v9368 = vrot.slane %v9354, %v9367
        %v9369 = vcombine.low %v9313, %v9329
        %v9370 = vcombine.high %v9313, %v9329
        %v9372 = vunpack.c.l.s4 1934713408
        %v9373 = vunpack.c.0.s8 %v9372
        %v9374 = vlaneseq
        %v9375 = vshrl.u32 %v9374, 7
        %v9376 = vsub.s32 %v9373, %v9375
        %v9377 = vrot.slane %v9369, %v9376
        %v9379 = vunpack.c.l.s4 1934713408
        %v9380 = vunpack.c.0.s8 %v9379
        %v9381 = vlaneseq
        %v9382 = vshrl.u32 %v9381, 7
        %v9383 = vsub.s32 %v9380, %v9382
        %v9384 = vrot.slane %v9370, %v9383
        %v9385 = vcombine.low %v9320, %v9336
        %v9386 = vcombine.high %v9320, %v9336
        %v9388 = vunpack.c.l.s4 1934713408
        %v9389 = vunpack.c.0.s8 %v9388
        %v9390 = vlaneseq
        %v9391 = vshrl.u32 %v9390, 7
        %v9392 = vsub.s32 %v9389, %v9391
        %v9393 = vrot.slane %v9385, %v9392
        %v9395 = vunpack.c.l.s4 1934713408
        %v9396 = vunpack.c.0.s8 %v9395
        %v9397 = vlaneseq
        %v9398 = vshrl.u32 %v9397, 7
        %v9399 = vsub.s32 %v9396, %v9398
        %v9400 = vrot.slane %v9386, %v9399
        %v9401 = vcombine.low %v9345, %v9361
        %v9402 = vcombine.high %v9345, %v9361
        %v9404 = vunpack.c.l.s4 1934713408
        %v9405 = vunpack.c.0.s8 %v9404
        %v9406 = vlaneseq
        %v9407 = vshrl.u32 %v9406, 7
        %v9408 = vsub.s32 %v9405, %v9407
        %v9409 = vrot.slane %v9401, %v9408
        %v9411 = vunpack.c.l.s4 1934713408
        %v9412 = vunpack.c.0.s8 %v9411
        %v9413 = vlaneseq
        %v9414 = vshrl.u32 %v9413, 7
        %v9415 = vsub.s32 %v9412, %v9414
        %v9416 = vrot.slane %v9402, %v9415
        %v9417 = vcombine.low %v9352, %v9368
        %v9418 = vcombine.high %v9352, %v9368
        %v9420 = vunpack.c.l.s4 1934713408
        %v9421 = vunpack.c.0.s8 %v9420
        %v9422 = vlaneseq
        %v9423 = vshrl.u32 %v9422, 7
        %v9424 = vsub.s32 %v9421, %v9423
        %v9425 = vrot.slane %v9417, %v9424
        %v9427 = vunpack.c.l.s4 1934713408
        %v9428 = vunpack.c.0.s8 %v9427
        %v9429 = vlaneseq
        %v9430 = vshrl.u32 %v9429, 7
        %v9431 = vsub.s32 %v9428, %v9430
        %v9432 = vrot.slane %v9418, %v9431
        %v9433 = vcombine.low %v9377, %v9409
        %v9434 = vcombine.high %v9377, %v9409
        %v9435 = vcombine.low %v9384, %v9416
        %v9436 = vcombine.high %v9384, %v9416
        %v9437 = vcombine.low %v9393, %v9425
        %v9438 = vcombine.high %v9393, %v9425
        %v9439 = vcombine.low %v9400, %v9432
        %v9440 = vcombine.high %v9400, %v9432
        %v9441 = vcombine.low %v8944, %v8960
        %v9442 = vcombine.high %v8944, %v8960
        %v9444 = vunpack.c.l.s4 1983009808
        %v9445 = vunpack.c.0.s8 %v9444
        %v9446 = vlaneseq
        %v9447 = vshrl.u32 %v9446, 7
        %v9448 = vsub.s32 %v9445, %v9447
        %v9449 = vrot.slane %v9441, %v9448
        %v9451 = vunpack.c.l.s4 1983009808
        %v9452 = vunpack.c.0.s8 %v9451
        %v9453 = vlaneseq
        %v9454 = vshrl.u32 %v9453, 7
        %v9455 = vsub.s32 %v9452, %v9454
        %v9456 = vrot.slane %v9442, %v9455
        %v9457 = vcombine.low %v8952, %v8968
        %v9458 = vcombine.high %v8952, %v8968
        %v9460 = vunpack.c.l.s4 1983009808
        %v9461 = vunpack.c.0.s8 %v9460
        %v9462 = vlaneseq
        %v9463 = vshrl.u32 %v9462, 7
        %v9464 = vsub.s32 %v9461, %v9463
        %v9465 = vrot.slane %v9457, %v9464
        %v9467 = vunpack.c.l.s4 1983009808
        %v9468 = vunpack.c.0.s8 %v9467
        %v9469 = vlaneseq
        %v9470 = vshrl.u32 %v9469, 7
        %v9471 = vsub.s32 %v9468, %v9470
        %v9472 = vrot.slane %v9458, %v9471
        %v9473 = vcombine.low %v8976, %v8992
        %v9474 = vcombine.high %v8976, %v8992
        %v9476 = vunpack.c.l.s4 1983009808
        %v9477 = vunpack.c.0.s8 %v9476
        %v9478 = vlaneseq
        %v9479 = vshrl.u32 %v9478, 7
        %v9480 = vsub.s32 %v9477, %v9479
        %v9481 = vrot.slane %v9473, %v9480
        %v9483 = vunpack.c.l.s4 1983009808
        %v9484 = vunpack.c.0.s8 %v9483
        %v9485 = vlaneseq
        %v9486 = vshrl.u32 %v9485, 7
        %v9487 = vsub.s32 %v9484, %v9486
        %v9488 = vrot.slane %v9474, %v9487
        %v9489 = vcombine.low %v8984, %v9000
        %v9490 = vcombine.high %v8984, %v9000
        %v9492 = vunpack.c.l.s4 1983009808
        %v9493 = vunpack.c.0.s8 %v9492
        %v9494 = vlaneseq
        %v9495 = vshrl.u32 %v9494, 7
        %v9496 = vsub.s32 %v9493, %v9495
        %v9497 = vrot.slane %v9489, %v9496
        %v9499 = vunpack.c.l.s4 1983009808
        %v9500 = vunpack.c.0.s8 %v9499
        %v9501 = vlaneseq
        %v9502 = vshrl.u32 %v9501, 7
        %v9503 = vsub.s32 %v9500, %v9502
        %v9504 = vrot.slane %v9490, %v9503
        %v9505 = vcombine.low %v9449, %v9465
        %v9506 = vcombine.high %v9449, %v9465
        %v9508 = vunpack.c.l.s4 1934713408
        %v9509 = vunpack.c.0.s8 %v9508
        %v9510 = vlaneseq
        %v9511 = vshrl.u32 %v9510, 7
        %v9512 = vsub.s32 %v9509, %v9511
        %v9513 = vrot.slane %v9505, %v9512
        %v9515 = vunpack.c.l.s4 1934713408
        %v9516 = vunpack.c.0.s8 %v9515
        %v9517 = vlaneseq
        %v9518 = vshrl.u32 %v9517, 7
        %v9519 = vsub.s32 %v9516, %v9518
        %v9520 = vrot.slane %v9506, %v9519
        %v9521 = vcombine.low %v9456, %v9472
        %v9522 = vcombine.high %v9456, %v9472
        %v9524 = vunpack.c.l.s4 1934713408
        %v9525 = vunpack.c.0.s8 %v9524
        %v9526 = vlaneseq
        %v9527 = vshrl.u32 %v9526, 7
        %v9528 = vsub.s32 %v9525, %v9527
        %v9529 = vrot.slane %v9521, %v9528
        %v9531 = vunpack.c.l.s4 1934713408
        %v9532 = vunpack.c.0.s8 %v9531
        %v9533 = vlaneseq
        %v9534 = vshrl.u32 %v9533, 7
        %v9535 = vsub.s32 %v9532, %v9534
        %v9536 = vrot.slane %v9522, %v9535
        %v9537 = vcombine.low %v9481, %v9497
        %v9538 = vcombine.high %v9481, %v9497
        %v9540 = vunpack.c.l.s4 1934713408
        %v9541 = vunpack.c.0.s8 %v9540
        %v9542 = vlaneseq
        %v9543 = vshrl.u32 %v9542, 7
        %v9544 = vsub.s32 %v9541, %v9543
        %v9545 = vrot.slane %v9537, %v9544
        %v9547 = vunpack.c.l.s4 1934713408
        %v9548 = vunpack.c.0.s8 %v9547
        %v9549 = vlaneseq
        %v9550 = vshrl.u32 %v9549, 7
        %v9551 = vsub.s32 %v9548, %v9550
        %v9552 = vrot.slane %v9538, %v9551
        %v9553 = vcombine.low %v9488, %v9504
        %v9554 = vcombine.high %v9488, %v9504
        %v9556 = vunpack.c.l.s4 1934713408
        %v9557 = vunpack.c.0.s8 %v9556
        %v9558 = vlaneseq
        %v9559 = vshrl.u32 %v9558, 7
        %v9560 = vsub.s32 %v9557, %v9559
        %v9561 = vrot.slane %v9553, %v9560
        %v9563 = vunpack.c.l.s4 1934713408
        %v9564 = vunpack.c.0.s8 %v9563
        %v9565 = vlaneseq
        %v9566 = vshrl.u32 %v9565, 7
        %v9567 = vsub.s32 %v9564, %v9566
        %v9568 = vrot.slane %v9554, %v9567
        %v9569 = vcombine.low %v9513, %v9545
        %v9570 = vcombine.high %v9513, %v9545
        %v9571 = vcombine.low %v9520, %v9552
        %v9572 = vcombine.high %v9520, %v9552
        %v9573 = vcombine.low %v9529, %v9561
        %v9574 = vcombine.high %v9529, %v9561
        %v9575 = vcombine.low %v9536, %v9568
        %v9576 = vcombine.high %v9536, %v9568
        %9578 = vrot.lane.b32.xlu0 %v9162, 32
        %v9579 = vpop.permute.xlu0 %9578
        %9582 = vrot.lane.b32.xlu0 %v9163, 64
        %v9583 = vpop.permute.xlu0 %9582
        %9586 = vrot.lane.b32.xlu0 %v9164, 96
        %v9587 = vpop.permute.xlu0 %9586
        %9590 = vrot.lane.b32.xlu0 %v9166, 32
        %v9591 = vpop.permute.xlu0 %9590
        %9594 = vrot.lane.b32.xlu0 %v9167, 64
        %v9595 = vpop.permute.xlu0 %9594
        %9598 = vrot.lane.b32.xlu0 %v9168, 96
        %v9599 = vpop.permute.xlu0 %9598
        %9602 = vrot.lane.b32.xlu0 %v9298, 32
        %v9603 = vpop.permute.xlu0 %9602
        %9606 = vrot.lane.b32.xlu0 %v9299, 64
        %v9607 = vpop.permute.xlu0 %9606
        %9610 = vrot.lane.b32.xlu0 %v9300, 96
        %v9611 = vpop.permute.xlu0 %9610
        %9614 = vrot.lane.b32.xlu0 %v9302, 32
        %v9615 = vpop.permute.xlu0 %9614
        %9618 = vrot.lane.b32.xlu0 %v9303, 64
        %v9619 = vpop.permute.xlu0 %9618
        %9622 = vrot.lane.b32.xlu0 %v9304, 96
        %v9623 = vpop.permute.xlu0 %9622
        %9626 = vrot.lane.b32.xlu0 %v9434, 32
        %v9627 = vpop.permute.xlu0 %9626
        %9630 = vrot.lane.b32.xlu0 %v9435, 64
        %v9631 = vpop.permute.xlu0 %9630
        %9634 = vrot.lane.b32.xlu0 %v9436, 96
        %v9635 = vpop.permute.xlu0 %9634
        %9638 = vrot.lane.b32.xlu0 %v9438, 32
        %v9639 = vpop.permute.xlu0 %9638
        %9642 = vrot.lane.b32.xlu0 %v9439, 64
        %v9643 = vpop.permute.xlu0 %9642
        %9646 = vrot.lane.b32.xlu0 %v9440, 96
        %v9647 = vpop.permute.xlu0 %9646
        %9650 = vrot.lane.b32.xlu0 %v9570, 32
        %v9651 = vpop.permute.xlu0 %9650
        %9654 = vrot.lane.b32.xlu0 %v9571, 64
        %v9655 = vpop.permute.xlu0 %9654
        %9658 = vrot.lane.b32.xlu0 %v9572, 96
        %v9659 = vpop.permute.xlu0 %9658
        %9662 = vrot.lane.b32.xlu0 %v9574, 32
        %v9663 = vpop.permute.xlu0 %9662
        %9666 = vrot.lane.b32.xlu0 %v9575, 64
        %v9667 = vpop.permute.xlu0 %9666
        %9670 = vrot.lane.b32.xlu0 %v9576, 96
        %v9671 = vpop.permute.xlu0 %9670
        %v9673 = vsel %vm2127, %v9161, %v9579
        %v9674 = vsel %vm2129, %v9673, %v9583
        %v9675 = vsel %vm2131, %v9674, %v9587
        %v9676 = vsel %vm2127, %v9165, %v9591
        %v9677 = vsel %vm2129, %v9676, %v9595
        %v9678 = vsel %vm2131, %v9677, %v9599
        %v9679 = vsel %vm2127, %v9297, %v9603
        %v9680 = vsel %vm2129, %v9679, %v9607
        %v9681 = vsel %vm2131, %v9680, %v9611
        %v9682 = vsel %vm2127, %v9301, %v9615
        %v9683 = vsel %vm2129, %v9682, %v9619
        %v9684 = vsel %vm2131, %v9683, %v9623
        %v9685 = vsel %vm2127, %v9433, %v9627
        %v9686 = vsel %vm2129, %v9685, %v9631
        %v9687 = vsel %vm2131, %v9686, %v9635
        %v9688 = vsel %vm2127, %v9437, %v9639
        %v9689 = vsel %vm2129, %v9688, %v9643
        %v9690 = vsel %vm2131, %v9689, %v9647
        %v9691 = vsel %vm2127, %v9569, %v9651
        %v9692 = vsel %vm2129, %v9691, %v9655
        %v9693 = vsel %vm2131, %v9692, %v9659
        %v9694 = vsel %vm2127, %v9573, %v9663
        %v9695 = vsel %vm2129, %v9694, %v9667
        %v9696 = vsel %vm2131, %v9695, %v9671
        %s9697 = scalar_lea.vmem %s3, 28
        %v9698 = vld [vmem:[%s9697] sm:$0xf]
        %v9700 = vsel %vm2949, %v9698, 0
        %9702 = vmatprep.subr.mxu0 %v9678
        %9703 = vmatpush1.msra.mxu0 %v9675
        %9704 = vmatprep.subr.mxu0 0.0
        %9705 = vmatpush1.msra.mxu0 0.0
        %9706 = vmatprep.subr.mxu0 0.0
        %9707 = vmatpush1.msra.mxu0 0.0
        %9708 = vmatprep.subr.mxu0 0.0
        %9709 = vmatpush1.msra.mxu0 0.0
        %9710 = vmatprep.subr.mxu0 0.0
        %9711 = vmatpush1.msra.mxu0 0.0
        %9712 = vmatprep.subr.mxu0 0.0
        %9713 = vmatpush1.msra.mxu0 0.0
        %9714 = vmatprep.subr.mxu0 0.0
        %9715 = vmatpush1.msra.mxu0 0.0
        %9716 = vmatprep.subr.mxu0 0.0
        %9717 = vmatpush1.msra.mxu0 0.0
        %9718 = vmatprep.subr.mxu0 0.0
        %9719 = vmatpush1.msra.mxu0 0.0
        %9720 = vmatprep.subr.mxu0 0.0
        %9721 = vmatpush1.msra.mxu0 0.0
        %9722 = vmatprep.subr.mxu0 0.0
        %9723 = vmatpush1.msra.mxu0 0.0
        %9724 = vmatprep.subr.mxu0 0.0
        %9725 = vmatpush1.msra.mxu0 0.0
        %9726 = vmatprep.subr.mxu0 0.0
        %9727 = vmatpush1.msra.mxu0 0.0
        %9728 = vmatprep.subr.mxu0 0.0
        %9729 = vmatpush1.msra.mxu0 0.0
        %9730 = vmatprep.subr.mxu0 0.0
        %9731 = vmatpush1.msra.mxu0 0.0
        %9732 = vmatprep.subr.mxu0 0.0
        %9733 = vmatpush1.msra.mxu0 0.0
        %9734 = vmatprep.subr.mxu0 0.0
        %9735 = vmatpush1.msra.mxu0 0.0
        %9736 = vmatprep.subr.mxu0 0.0
        %9737 = vmatpush1.msra.mxu0 0.0
        %9738 = vmatprep.subr.mxu0 0.0
        %9739 = vmatpush1.msra.mxu0 0.0
        %9740 = vmatprep.subr.mxu0 0.0
        %9741 = vmatpush1.msra.mxu0 0.0
        %9742 = vmatprep.subr.mxu0 0.0
        %9743 = vmatpush1.msra.mxu0 0.0
        %9744 = vmatprep.subr.mxu0 0.0
        %9745 = vmatpush1.msra.mxu0 0.0
        %9746 = vmatprep.subr.mxu0 0.0
        %9747 = vmatpush1.msra.mxu0 0.0
        %9748 = vmatprep.subr.mxu0 0.0
        %9749 = vmatpush1.msra.mxu0 0.0
        %9750 = vmatprep.subr.mxu0 0.0
        %9751 = vmatpush1.msra.mxu0 0.0
        %9752 = vmatprep.subr.mxu0 0.0
        %9753 = vmatpush1.msra.mxu0 0.0
        %9754 = vmatprep.subr.mxu0 0.0
        %9755 = vmatpush1.msra.mxu0 0.0
        %9756 = vmatprep.subr.mxu0 0.0
        %9757 = vmatpush1.msra.mxu0 0.0
        %9758 = vmatprep.subr.mxu0 0.0
        %9759 = vmatpush1.msra.mxu0 0.0
        %9760 = vmatprep.subr.mxu0 0.0
        %9761 = vmatpush1.msra.mxu0 0.0
        %9762 = vmatprep.subr.mxu0 0.0
        %9763 = vmatpush1.msra.mxu0 0.0
        %9764 = vmatprep.subr.mxu0 0.0
        %9765 = vmatpush1.msra.mxu0 0.0
        %9766 = vmatprep.mubr.f32.mxu0 0.0
        %9767 = vmatmul.mubr.f32.gmra.mrb[0].mxu0 %v9700
        %v9768 = vpop.f32.mrb[0].mxu0
        %v9769 = vadd.f32 0.0, %v9768
        %v9770 = vpop.f32.mrb[0].mxu0
        %v9771 = vadd.f32 0.0, %v9770
        %9772 = vdwg.mxu0
        %9773 = vmatprep.subr.mxu0 %v9684
        %9774 = vmatpush1.msra.mxu0 %v9681
        %9775 = vmatprep.subr.mxu0 0.0
        %9776 = vmatpush1.msra.mxu0 0.0
        %9777 = vmatprep.subr.mxu0 0.0
        %9778 = vmatpush1.msra.mxu0 0.0
        %9779 = vmatprep.subr.mxu0 0.0
        %9780 = vmatpush1.msra.mxu0 0.0
        %9781 = vmatprep.subr.mxu0 0.0
        %9782 = vmatpush1.msra.mxu0 0.0
        %9783 = vmatprep.subr.mxu0 0.0
        %9784 = vmatpush1.msra.mxu0 0.0
        %9785 = vmatprep.subr.mxu0 0.0
        %9786 = vmatpush1.msra.mxu0 0.0
        %9787 = vmatprep.subr.mxu0 0.0
        %9788 = vmatpush1.msra.mxu0 0.0
        %9789 = vmatprep.subr.mxu0 0.0
        %9790 = vmatpush1.msra.mxu0 0.0
        %9791 = vmatprep.subr.mxu0 0.0
        %9792 = vmatpush1.msra.mxu0 0.0
        %9793 = vmatprep.subr.mxu0 0.0
        %9794 = vmatpush1.msra.mxu0 0.0
        %9795 = vmatprep.subr.mxu0 0.0
        %9796 = vmatpush1.msra.mxu0 0.0
        %9797 = vmatprep.subr.mxu0 0.0
        %9798 = vmatpush1.msra.mxu0 0.0
        %9799 = vmatprep.subr.mxu0 0.0
        %9800 = vmatpush1.msra.mxu0 0.0
        %9801 = vmatprep.subr.mxu0 0.0
        %9802 = vmatpush1.msra.mxu0 0.0
        %9803 = vmatprep.subr.mxu0 0.0
        %9804 = vmatpush1.msra.mxu0 0.0
        %9805 = vmatprep.subr.mxu0 0.0
        %9806 = vmatpush1.msra.mxu0 0.0
        %9807 = vmatprep.subr.mxu0 0.0
        %9808 = vmatpush1.msra.mxu0 0.0
        %9809 = vmatprep.subr.mxu0 0.0
        %9810 = vmatpush1.msra.mxu0 0.0
        %9811 = vmatprep.subr.mxu0 0.0
        %9812 = vmatpush1.msra.mxu0 0.0
        %9813 = vmatprep.subr.mxu0 0.0
        %9814 = vmatpush1.msra.mxu0 0.0
        %9815 = vmatprep.subr.mxu0 0.0
        %9816 = vmatpush1.msra.mxu0 0.0
        %9817 = vmatprep.subr.mxu0 0.0
        %9818 = vmatpush1.msra.mxu0 0.0
        %9819 = vmatprep.subr.mxu0 0.0
        %9820 = vmatpush1.msra.mxu0 0.0
        %9821 = vmatprep.subr.mxu0 0.0
        %9822 = vmatpush1.msra.mxu0 0.0
        %9823 = vmatprep.subr.mxu0 0.0
        %9824 = vmatpush1.msra.mxu0 0.0
        %9825 = vmatprep.subr.mxu0 0.0
        %9826 = vmatpush1.msra.mxu0 0.0
        %9827 = vmatprep.subr.mxu0 0.0
        %9828 = vmatpush1.msra.mxu0 0.0
        %9829 = vmatprep.subr.mxu0 0.0
        %9830 = vmatpush1.msra.mxu0 0.0
        %9831 = vmatprep.subr.mxu0 0.0
        %9832 = vmatpush1.msra.mxu0 0.0
        %9833 = vmatprep.subr.mxu0 0.0
        %9834 = vmatpush1.msra.mxu0 0.0
        %9835 = vmatprep.subr.mxu0 0.0
        %9836 = vmatpush1.msra.mxu0 0.0
        %9837 = vmatprep.mubr.f32.mxu0 0.0
        %9838 = vmatmul.mubr.f32.gmra.mrb[0].mxu0 %v9700
        %v9839 = vpop.f32.mrb[0].mxu0
        %v9840 = vadd.f32 0.0, %v9839
        %v9841 = vpop.f32.mrb[0].mxu0
        %v9842 = vadd.f32 0.0, %v9841
        %9843 = vdwg.mxu0
        %9844 = vmatprep.subr.mxu0 %v9690
        %9845 = vmatpush1.msra.mxu0 %v9687
        %9846 = vmatprep.subr.mxu0 0.0
        %9847 = vmatpush1.msra.mxu0 0.0
        %9848 = vmatprep.subr.mxu0 0.0
        %9849 = vmatpush1.msra.mxu0 0.0
        %9850 = vmatprep.subr.mxu0 0.0
        %9851 = vmatpush1.msra.mxu0 0.0
        %9852 = vmatprep.subr.mxu0 0.0
        %9853 = vmatpush1.msra.mxu0 0.0
        %9854 = vmatprep.subr.mxu0 0.0
        %9855 = vmatpush1.msra.mxu0 0.0
        %9856 = vmatprep.subr.mxu0 0.0
        %9857 = vmatpush1.msra.mxu0 0.0
        %9858 = vmatprep.subr.mxu0 0.0
        %9859 = vmatpush1.msra.mxu0 0.0
        %9860 = vmatprep.subr.mxu0 0.0
        %9861 = vmatpush1.msra.mxu0 0.0
        %9862 = vmatprep.subr.mxu0 0.0
        %9863 = vmatpush1.msra.mxu0 0.0
        %9864 = vmatprep.subr.mxu0 0.0
        %9865 = vmatpush1.msra.mxu0 0.0
        %9866 = vmatprep.subr.mxu0 0.0
        %9867 = vmatpush1.msra.mxu0 0.0
        %9868 = vmatprep.subr.mxu0 0.0
        %9869 = vmatpush1.msra.mxu0 0.0
        %9870 = vmatprep.subr.mxu0 0.0
        %9871 = vmatpush1.msra.mxu0 0.0
        %9872 = vmatprep.subr.mxu0 0.0
        %9873 = vmatpush1.msra.mxu0 0.0
        %9874 = vmatprep.subr.mxu0 0.0
        %9875 = vmatpush1.msra.mxu0 0.0
        %9876 = vmatprep.subr.mxu0 0.0
        %9877 = vmatpush1.msra.mxu0 0.0
        %9878 = vmatprep.subr.mxu0 0.0
        %9879 = vmatpush1.msra.mxu0 0.0
        %9880 = vmatprep.subr.mxu0 0.0
        %9881 = vmatpush1.msra.mxu0 0.0
        %9882 = vmatprep.subr.mxu0 0.0
        %9883 = vmatpush1.msra.mxu0 0.0
        %9884 = vmatprep.subr.mxu0 0.0
        %9885 = vmatpush1.msra.mxu0 0.0
        %9886 = vmatprep.subr.mxu0 0.0
        %9887 = vmatpush1.msra.mxu0 0.0
        %9888 = vmatprep.subr.mxu0 0.0
        %9889 = vmatpush1.msra.mxu0 0.0
        %9890 = vmatprep.subr.mxu0 0.0
        %9891 = vmatpush1.msra.mxu0 0.0
        %9892 = vmatprep.subr.mxu0 0.0
        %9893 = vmatpush1.msra.mxu0 0.0
        %9894 = vmatprep.subr.mxu0 0.0
        %9895 = vmatpush1.msra.mxu0 0.0
        %9896 = vmatprep.subr.mxu0 0.0
        %9897 = vmatpush1.msra.mxu0 0.0
        %9898 = vmatprep.subr.mxu0 0.0
        %9899 = vmatpush1.msra.mxu0 0.0
        %9900 = vmatprep.subr.mxu0 0.0
        %9901 = vmatpush1.msra.mxu0 0.0
        %9902 = vmatprep.subr.mxu0 0.0
        %9903 = vmatpush1.msra.mxu0 0.0
        %9904 = vmatprep.subr.mxu0 0.0
        %9905 = vmatpush1.msra.mxu0 0.0
        %9906 = vmatprep.subr.mxu0 0.0
        %9907 = vmatpush1.msra.mxu0 0.0
        %9908 = vmatprep.mubr.f32.mxu0 0.0
        %9909 = vmatmul.mubr.f32.gmra.mrb[0].mxu0 %v9700
        %v9910 = vpop.f32.mrb[0].mxu0
        %v9911 = vadd.f32 0.0, %v9910
        %v9912 = vpop.f32.mrb[0].mxu0
        %v9913 = vadd.f32 0.0, %v9912
        %9914 = vdwg.mxu0
        %9915 = vmatprep.subr.mxu0 %v9696
        %9916 = vmatpush1.msra.mxu0 %v9693
        %9917 = vmatprep.subr.mxu0 0.0
        %9918 = vmatpush1.msra.mxu0 0.0
        %9919 = vmatprep.subr.mxu0 0.0
        %9920 = vmatpush1.msra.mxu0 0.0
        %9921 = vmatprep.subr.mxu0 0.0
        %9922 = vmatpush1.msra.mxu0 0.0
        %9923 = vmatprep.subr.mxu0 0.0
        %9924 = vmatpush1.msra.mxu0 0.0
        %9925 = vmatprep.subr.mxu0 0.0
        %9926 = vmatpush1.msra.mxu0 0.0
        %9927 = vmatprep.subr.mxu0 0.0
        %9928 = vmatpush1.msra.mxu0 0.0
        %9929 = vmatprep.subr.mxu0 0.0
        %9930 = vmatpush1.msra.mxu0 0.0
        %9931 = vmatprep.subr.mxu0 0.0
        %9932 = vmatpush1.msra.mxu0 0.0
        %9933 = vmatprep.subr.mxu0 0.0
        %9934 = vmatpush1.msra.mxu0 0.0
        %9935 = vmatprep.subr.mxu0 0.0
        %9936 = vmatpush1.msra.mxu0 0.0
        %9937 = vmatprep.subr.mxu0 0.0
        %9938 = vmatpush1.msra.mxu0 0.0
        %9939 = vmatprep.subr.mxu0 0.0
        %9940 = vmatpush1.msra.mxu0 0.0
        %9941 = vmatprep.subr.mxu0 0.0
        %9942 = vmatpush1.msra.mxu0 0.0
        %9943 = vmatprep.subr.mxu0 0.0
        %9944 = vmatpush1.msra.mxu0 0.0
        %9945 = vmatprep.subr.mxu0 0.0
        %9946 = vmatpush1.msra.mxu0 0.0
        %9947 = vmatprep.subr.mxu0 0.0
        %9948 = vmatpush1.msra.mxu0 0.0
        %9949 = vmatprep.subr.mxu0 0.0
        %9950 = vmatpush1.msra.mxu0 0.0
        %9951 = vmatprep.subr.mxu0 0.0
        %9952 = vmatpush1.msra.mxu0 0.0
        %9953 = vmatprep.subr.mxu0 0.0
        %9954 = vmatpush1.msra.mxu0 0.0
        %9955 = vmatprep.subr.mxu0 0.0
        %9956 = vmatpush1.msra.mxu0 0.0
        %9957 = vmatprep.subr.mxu0 0.0
        %9958 = vmatpush1.msra.mxu0 0.0
        %9959 = vmatprep.subr.mxu0 0.0
        %9960 = vmatpush1.msra.mxu0 0.0
        %9961 = vmatprep.subr.mxu0 0.0
        %9962 = vmatpush1.msra.mxu0 0.0
        %9963 = vmatprep.subr.mxu0 0.0
        %9964 = vmatpush1.msra.mxu0 0.0
        %9965 = vmatprep.subr.mxu0 0.0
        %9966 = vmatpush1.msra.mxu0 0.0
        %9967 = vmatprep.subr.mxu0 0.0
        %9968 = vmatpush1.msra.mxu0 0.0
        %9969 = vmatprep.subr.mxu0 0.0
        %9970 = vmatpush1.msra.mxu0 0.0
        %9971 = vmatprep.subr.mxu0 0.0
        %9972 = vmatpush1.msra.mxu0 0.0
        %9973 = vmatprep.subr.mxu0 0.0
        %9974 = vmatpush1.msra.mxu0 0.0
        %9975 = vmatprep.subr.mxu0 0.0
        %9976 = vmatpush1.msra.mxu0 0.0
        %9977 = vmatprep.subr.mxu0 0.0
        %9978 = vmatpush1.msra.mxu0 0.0
        %9979 = vmatprep.mubr.f32.mxu0 0.0
        %9980 = vmatmul.mubr.f32.gmra.mrb[0].mxu0 %v9700
        %v9981 = vpop.f32.mrb[0].mxu0
        %v9982 = vadd.f32 0.0, %v9981
        %v9983 = vpop.f32.mrb[0].mxu0
        %v9984 = vadd.f32 0.0, %v9983
        %9985 = vdwg.mxu0
        %v9986 = vadd.f32 %v8865, %v9769
        %v9987 = vadd.f32 %v8866, %v9771
        %v9988 = vadd.f32 %v8867, %v9840
        %v9989 = vadd.f32 %v8868, %v9842
        %v9990 = vadd.f32 %v8869, %v9911
        %v9991 = vadd.f32 %v8870, %v9913
        %v9992 = vadd.f32 %v8871, %v9982
        %v9993 = vadd.f32 %v8872, %v9984
        %v9994 = vld [vmem:[#allocation2 + $0x2] sm:$0xff]
        %v9995 = vld [vmem:[#allocation2 + $0xa] sm:$0xff]
        %v9996 = vld [vmem:[#allocation2 + $0x12] sm:$0xff]
        %v9997 = vld [vmem:[#allocation2 + $0x1a] sm:$0xff]
        %v9998 = vld [vmem:[#allocation2 + $0x2a] sm:$0xff]
        %v9999 = vld [vmem:[#allocation2 + $0x32] sm:$0xff]
        %v10000 = vld [vmem:[#allocation2 + $0x3a] sm:$0xff]
        %v10001 = vld [vmem:[#allocation2 + $0x42] sm:$0xff]
        %v10002 = vld [vmem:[#allocation2 + $0x52] sm:$0xff]
        %v10003 = vld [vmem:[#allocation2 + $0x5a] sm:$0xff]
        %v10004 = vld [vmem:[#allocation2 + $0x62] sm:$0xff]
        %v10005 = vld [vmem:[#allocation2 + $0x6a] sm:$0xff]
        %v10006 = vld [vmem:[#allocation2 + $0x7a] sm:$0xff]
        %v10007 = vld [vmem:[#allocation2 + $0x82] sm:$0xff]
        %v10008 = vld [vmem:[#allocation2 + $0x8a] sm:$0xff]
        %v10009 = vld [vmem:[#allocation2 + $0x92] sm:$0xff]
        %v10010 = vld [vmem:[#allocation2 + $0xa2] sm:$0xff]
        %v10011 = vld [vmem:[#allocation2 + $0xaa] sm:$0xff]
        %v10012 = vld [vmem:[#allocation2 + $0xb2] sm:$0xff]
        %v10013 = vld [vmem:[#allocation2 + $0xba] sm:$0xff]
        %v10014 = vld [vmem:[#allocation2 + $0xca] sm:$0xff]
        %v10015 = vld [vmem:[#allocation2 + $0xd2] sm:$0xff]
        %v10016 = vld [vmem:[#allocation2 + $0xda] sm:$0xff]
        %v10017 = vld [vmem:[#allocation2 + $0xe2] sm:$0xff]
        %v10018 = vld [vmem:[#allocation2 + $0xf2] sm:$0xff]
        %v10019 = vld [vmem:[#allocation2 + $0xfa] sm:$0xff]
        %v10020 = vld [vmem:[#allocation2 + $0x102] sm:$0xff]
        %v10021 = vld [vmem:[#allocation2 + $0x10a] sm:$0xff]
        %v10022 = vld [vmem:[#allocation2 + $0x11a] sm:$0xff]
        %v10023 = vld [vmem:[#allocation2 + $0x122] sm:$0xff]
        %v10024 = vld [vmem:[#allocation2 + $0x12a] sm:$0xff]
        %v10025 = vld [vmem:[#allocation2 + $0x132] sm:$0xff]
        %10058 = vrot.lane.b32.xlu0 %v9994, 126
        %v10059 = vpop.permute.xlu0 %10058
        %10060 = vrot.lane.b32.xlu0 %v9995, 126
        %v10061 = vpop.permute.xlu0 %10060
        %10062 = vrot.lane.b32.xlu0 %v9996, 126
        %v10063 = vpop.permute.xlu0 %10062
        %10064 = vrot.lane.b32.xlu0 %v9997, 126
        %v10065 = vpop.permute.xlu0 %10064
        %10066 = vrot.lane.b32.xlu0 %v9998, 126
        %v10067 = vpop.permute.xlu0 %10066
        %10068 = vrot.lane.b32.xlu0 %v9999, 126
        %v10069 = vpop.permute.xlu0 %10068
        %10070 = vrot.lane.b32.xlu0 %v10000, 126
        %v10071 = vpop.permute.xlu0 %10070
        %10072 = vrot.lane.b32.xlu0 %v10001, 126
        %v10073 = vpop.permute.xlu0 %10072
        %10074 = vrot.lane.b32.xlu0 %v10002, 126
        %v10075 = vpop.permute.xlu0 %10074
        %10076 = vrot.lane.b32.xlu0 %v10003, 126
        %v10077 = vpop.permute.xlu0 %10076
        %10078 = vrot.lane.b32.xlu0 %v10004, 126
        %v10079 = vpop.permute.xlu0 %10078
        %10080 = vrot.lane.b32.xlu0 %v10005, 126
        %v10081 = vpop.permute.xlu0 %10080
        %10082 = vrot.lane.b32.xlu0 %v10006, 126
        %v10083 = vpop.permute.xlu0 %10082
        %10084 = vrot.lane.b32.xlu0 %v10007, 126
        %v10085 = vpop.permute.xlu0 %10084
        %10086 = vrot.lane.b32.xlu0 %v10008, 126
        %v10087 = vpop.permute.xlu0 %10086
        %10088 = vrot.lane.b32.xlu0 %v10009, 126
        %v10089 = vpop.permute.xlu0 %10088
        %10090 = vrot.lane.b32.xlu0 %v10010, 126
        %v10091 = vpop.permute.xlu0 %10090
        %10092 = vrot.lane.b32.xlu0 %v10011, 126
        %v10093 = vpop.permute.xlu0 %10092
        %10094 = vrot.lane.b32.xlu0 %v10012, 126
        %v10095 = vpop.permute.xlu0 %10094
        %10096 = vrot.lane.b32.xlu0 %v10013, 126
        %v10097 = vpop.permute.xlu0 %10096
        %10098 = vrot.lane.b32.xlu0 %v10014, 126
        %v10099 = vpop.permute.xlu0 %10098
        %10100 = vrot.lane.b32.xlu0 %v10015, 126
        %v10101 = vpop.permute.xlu0 %10100
        %10102 = vrot.lane.b32.xlu0 %v10016, 126
        %v10103 = vpop.permute.xlu0 %10102
        %10104 = vrot.lane.b32.xlu0 %v10017, 126
        %v10105 = vpop.permute.xlu0 %10104
        %10106 = vrot.lane.b32.xlu0 %v10018, 126
        %v10107 = vpop.permute.xlu0 %10106
        %10108 = vrot.lane.b32.xlu0 %v10019, 126
        %v10109 = vpop.permute.xlu0 %10108
        %10110 = vrot.lane.b32.xlu0 %v10020, 126
        %v10111 = vpop.permute.xlu0 %10110
        %10112 = vrot.lane.b32.xlu0 %v10021, 126
        %v10113 = vpop.permute.xlu0 %10112
        %10114 = vrot.lane.b32.xlu0 %v10022, 126
        %v10115 = vpop.permute.xlu0 %10114
        %10116 = vrot.lane.b32.xlu0 %v10023, 126
        %v10117 = vpop.permute.xlu0 %10116
        %10118 = vrot.lane.b32.xlu0 %v10024, 126
        %v10119 = vpop.permute.xlu0 %10118
        %10120 = vrot.lane.b32.xlu0 %v10025, 126
        %v10121 = vpop.permute.xlu0 %10120
        %v10154 = vcombine.low %v10059, %v10075
        %v10155 = vcombine.high %v10059, %v10075
        %v10157 = vunpack.c.l.s4 1983009808
        %v10158 = vunpack.c.0.s8 %v10157
        %v10159 = vlaneseq
        %v10160 = vshrl.u32 %v10159, 7
        %v10161 = vsub.s32 %v10158, %v10160
        %v10162 = vrot.slane %v10154, %v10161
        %v10164 = vunpack.c.l.s4 1983009808
        %v10165 = vunpack.c.0.s8 %v10164
        %v10166 = vlaneseq
        %v10167 = vshrl.u32 %v10166, 7
        %v10168 = vsub.s32 %v10165, %v10167
        %v10169 = vrot.slane %v10155, %v10168
        %v10170 = vcombine.low %v10067, %v10083
        %v10171 = vcombine.high %v10067, %v10083
        %v10173 = vunpack.c.l.s4 1983009808
        %v10174 = vunpack.c.0.s8 %v10173
        %v10175 = vlaneseq
        %v10176 = vshrl.u32 %v10175, 7
        %v10177 = vsub.s32 %v10174, %v10176
        %v10178 = vrot.slane %v10170, %v10177
        %v10180 = vunpack.c.l.s4 1983009808
        %v10181 = vunpack.c.0.s8 %v10180
        %v10182 = vlaneseq
        %v10183 = vshrl.u32 %v10182, 7
        %v10184 = vsub.s32 %v10181, %v10183
        %v10185 = vrot.slane %v10171, %v10184
        %v10186 = vcombine.low %v10091, %v10107
        %v10187 = vcombine.high %v10091, %v10107
        %v10189 = vunpack.c.l.s4 1983009808
        %v10190 = vunpack.c.0.s8 %v10189
        %v10191 = vlaneseq
        %v10192 = vshrl.u32 %v10191, 7
        %v10193 = vsub.s32 %v10190, %v10192
        %v10194 = vrot.slane %v10186, %v10193
        %v10196 = vunpack.c.l.s4 1983009808
        %v10197 = vunpack.c.0.s8 %v10196
        %v10198 = vlaneseq
        %v10199 = vshrl.u32 %v10198, 7
        %v10200 = vsub.s32 %v10197, %v10199
        %v10201 = vrot.slane %v10187, %v10200
        %v10202 = vcombine.low %v10099, %v10115
        %v10203 = vcombine.high %v10099, %v10115
        %v10205 = vunpack.c.l.s4 1983009808
        %v10206 = vunpack.c.0.s8 %v10205
        %v10207 = vlaneseq
        %v10208 = vshrl.u32 %v10207, 7
        %v10209 = vsub.s32 %v10206, %v10208
        %v10210 = vrot.slane %v10202, %v10209
        %v10212 = vunpack.c.l.s4 1983009808
        %v10213 = vunpack.c.0.s8 %v10212
        %v10214 = vlaneseq
        %v10215 = vshrl.u32 %v10214, 7
        %v10216 = vsub.s32 %v10213, %v10215
        %v10217 = vrot.slane %v10203, %v10216
        %v10218 = vcombine.low %v10162, %v10178
        %v10219 = vcombine.high %v10162, %v10178
        %v10221 = vunpack.c.l.s4 1934713408
        %v10222 = vunpack.c.0.s8 %v10221
        %v10223 = vlaneseq
        %v10224 = vshrl.u32 %v10223, 7
        %v10225 = vsub.s32 %v10222, %v10224
        %v10226 = vrot.slane %v10218, %v10225
        %v10228 = vunpack.c.l.s4 1934713408
        %v10229 = vunpack.c.0.s8 %v10228
        %v10230 = vlaneseq
        %v10231 = vshrl.u32 %v10230, 7
        %v10232 = vsub.s32 %v10229, %v10231
        %v10233 = vrot.slane %v10219, %v10232
        %v10234 = vcombine.low %v10169, %v10185
        %v10235 = vcombine.high %v10169, %v10185
        %v10237 = vunpack.c.l.s4 1934713408
        %v10238 = vunpack.c.0.s8 %v10237
        %v10239 = vlaneseq
        %v10240 = vshrl.u32 %v10239, 7
        %v10241 = vsub.s32 %v10238, %v10240
        %v10242 = vrot.slane %v10234, %v10241
        %v10244 = vunpack.c.l.s4 1934713408
        %v10245 = vunpack.c.0.s8 %v10244
        %v10246 = vlaneseq
        %v10247 = vshrl.u32 %v10246, 7
        %v10248 = vsub.s32 %v10245, %v10247
        %v10249 = vrot.slane %v10235, %v10248
        %v10250 = vcombine.low %v10194, %v10210
        %v10251 = vcombine.high %v10194, %v10210
        %v10253 = vunpack.c.l.s4 1934713408
        %v10254 = vunpack.c.0.s8 %v10253
        %v10255 = vlaneseq
        %v10256 = vshrl.u32 %v10255, 7
        %v10257 = vsub.s32 %v10254, %v10256
        %v10258 = vrot.slane %v10250, %v10257
        %v10260 = vunpack.c.l.s4 1934713408
        %v10261 = vunpack.c.0.s8 %v10260
        %v10262 = vlaneseq
        %v10263 = vshrl.u32 %v10262, 7
        %v10264 = vsub.s32 %v10261, %v10263
        %v10265 = vrot.slane %v10251, %v10264
        %v10266 = vcombine.low %v10201, %v10217
        %v10267 = vcombine.high %v10201, %v10217
        %v10269 = vunpack.c.l.s4 1934713408
        %v10270 = vunpack.c.0.s8 %v10269
        %v10271 = vlaneseq
        %v10272 = vshrl.u32 %v10271, 7
        %v10273 = vsub.s32 %v10270, %v10272
        %v10274 = vrot.slane %v10266, %v10273
        %v10276 = vunpack.c.l.s4 1934713408
        %v10277 = vunpack.c.0.s8 %v10276
        %v10278 = vlaneseq
        %v10279 = vshrl.u32 %v10278, 7
        %v10280 = vsub.s32 %v10277, %v10279
        %v10281 = vrot.slane %v10267, %v10280
        %v10282 = vcombine.low %v10226, %v10258
        %v10283 = vcombine.high %v10226, %v10258
        %v10284 = vcombine.low %v10233, %v10265
        %v10285 = vcombine.high %v10233, %v10265
        %v10286 = vcombine.low %v10242, %v10274
        %v10287 = vcombine.high %v10242, %v10274
        %v10288 = vcombine.low %v10249, %v10281
        %v10289 = vcombine.high %v10249, %v10281
        %v10290 = vcombine.low %v10061, %v10077
        %v10291 = vcombine.high %v10061, %v10077
        %v10293 = vunpack.c.l.s4 1983009808
        %v10294 = vunpack.c.0.s8 %v10293
        %v10295 = vlaneseq
        %v10296 = vshrl.u32 %v10295, 7
        %v10297 = vsub.s32 %v10294, %v10296
        %v10298 = vrot.slane %v10290, %v10297
        %v10300 = vunpack.c.l.s4 1983009808
        %v10301 = vunpack.c.0.s8 %v10300
        %v10302 = vlaneseq
        %v10303 = vshrl.u32 %v10302, 7
        %v10304 = vsub.s32 %v10301, %v10303
        %v10305 = vrot.slane %v10291, %v10304
        %v10306 = vcombine.low %v10069, %v10085
        %v10307 = vcombine.high %v10069, %v10085
        %v10309 = vunpack.c.l.s4 1983009808
        %v10310 = vunpack.c.0.s8 %v10309
        %v10311 = vlaneseq
        %v10312 = vshrl.u32 %v10311, 7
        %v10313 = vsub.s32 %v10310, %v10312
        %v10314 = vrot.slane %v10306, %v10313
        %v10316 = vunpack.c.l.s4 1983009808
        %v10317 = vunpack.c.0.s8 %v10316
        %v10318 = vlaneseq
        %v10319 = vshrl.u32 %v10318, 7
        %v10320 = vsub.s32 %v10317, %v10319
        %v10321 = vrot.slane %v10307, %v10320
        %v10322 = vcombine.low %v10093, %v10109
        %v10323 = vcombine.high %v10093, %v10109
        %v10325 = vunpack.c.l.s4 1983009808
        %v10326 = vunpack.c.0.s8 %v10325
        %v10327 = vlaneseq
        %v10328 = vshrl.u32 %v10327, 7
        %v10329 = vsub.s32 %v10326, %v10328
        %v10330 = vrot.slane %v10322, %v10329
        %v10332 = vunpack.c.l.s4 1983009808
        %v10333 = vunpack.c.0.s8 %v10332
        %v10334 = vlaneseq
        %v10335 = vshrl.u32 %v10334, 7
        %v10336 = vsub.s32 %v10333, %v10335
        %v10337 = vrot.slane %v10323, %v10336
        %v10338 = vcombine.low %v10101, %v10117
        %v10339 = vcombine.high %v10101, %v10117
        %v10341 = vunpack.c.l.s4 1983009808
        %v10342 = vunpack.c.0.s8 %v10341
        %v10343 = vlaneseq
        %v10344 = vshrl.u32 %v10343, 7
        %v10345 = vsub.s32 %v10342, %v10344
        %v10346 = vrot.slane %v10338, %v10345
        %v10348 = vunpack.c.l.s4 1983009808
        %v10349 = vunpack.c.0.s8 %v10348
        %v10350 = vlaneseq
        %v10351 = vshrl.u32 %v10350, 7
        %v10352 = vsub.s32 %v10349, %v10351
        %v10353 = vrot.slane %v10339, %v10352
        %v10354 = vcombine.low %v10298, %v10314
        %v10355 = vcombine.high %v10298, %v10314
        %v10357 = vunpack.c.l.s4 1934713408
        %v10358 = vunpack.c.0.s8 %v10357
        %v10359 = vlaneseq
        %v10360 = vshrl.u32 %v10359, 7
        %v10361 = vsub.s32 %v10358, %v10360
        %v10362 = vrot.slane %v10354, %v10361
        %v10364 = vunpack.c.l.s4 1934713408
        %v10365 = vunpack.c.0.s8 %v10364
        %v10366 = vlaneseq
        %v10367 = vshrl.u32 %v10366, 7
        %v10368 = vsub.s32 %v10365, %v10367
        %v10369 = vrot.slane %v10355, %v10368
        %v10370 = vcombine.low %v10305, %v10321
        %v10371 = vcombine.high %v10305, %v10321
        %v10373 = vunpack.c.l.s4 1934713408
        %v10374 = vunpack.c.0.s8 %v10373
        %v10375 = vlaneseq
        %v10376 = vshrl.u32 %v10375, 7
        %v10377 = vsub.s32 %v10374, %v10376
        %v10378 = vrot.slane %v10370, %v10377
        %v10380 = vunpack.c.l.s4 1934713408
        %v10381 = vunpack.c.0.s8 %v10380
        %v10382 = vlaneseq
        %v10383 = vshrl.u32 %v10382, 7
        %v10384 = vsub.s32 %v10381, %v10383
        %v10385 = vrot.slane %v10371, %v10384
        %v10386 = vcombine.low %v10330, %v10346
        %v10387 = vcombine.high %v10330, %v10346
        %v10389 = vunpack.c.l.s4 1934713408
        %v10390 = vunpack.c.0.s8 %v10389
        %v10391 = vlaneseq
        %v10392 = vshrl.u32 %v10391, 7
        %v10393 = vsub.s32 %v10390, %v10392
        %v10394 = vrot.slane %v10386, %v10393
        %v10396 = vunpack.c.l.s4 1934713408
        %v10397 = vunpack.c.0.s8 %v10396
        %v10398 = vlaneseq
        %v10399 = vshrl.u32 %v10398, 7
        %v10400 = vsub.s32 %v10397, %v10399
        %v10401 = vrot.slane %v10387, %v10400
        %v10402 = vcombine.low %v10337, %v10353
        %v10403 = vcombine.high %v10337, %v10353
        %v10405 = vunpack.c.l.s4 1934713408
        %v10406 = vunpack.c.0.s8 %v10405
        %v10407 = vlaneseq
        %v10408 = vshrl.u32 %v10407, 7
        %v10409 = vsub.s32 %v10406, %v10408
        %v10410 = vrot.slane %v10402, %v10409
        %v10412 = vunpack.c.l.s4 1934713408
        %v10413 = vunpack.c.0.s8 %v10412
        %v10414 = vlaneseq
        %v10415 = vshrl.u32 %v10414, 7
        %v10416 = vsub.s32 %v10413, %v10415
        %v10417 = vrot.slane %v10403, %v10416
        %v10418 = vcombine.low %v10362, %v10394
        %v10419 = vcombine.high %v10362, %v10394
        %v10420 = vcombine.low %v10369, %v10401
        %v10421 = vcombine.high %v10369, %v10401
        %v10422 = vcombine.low %v10378, %v10410
        %v10423 = vcombine.high %v10378, %v10410
        %v10424 = vcombine.low %v10385, %v10417
        %v10425 = vcombine.high %v10385, %v10417
        %v10426 = vcombine.low %v10063, %v10079
        %v10427 = vcombine.high %v10063, %v10079
        %v10429 = vunpack.c.l.s4 1983009808
        %v10430 = vunpack.c.0.s8 %v10429
        %v10431 = vlaneseq
        %v10432 = vshrl.u32 %v10431, 7
        %v10433 = vsub.s32 %v10430, %v10432
        %v10434 = vrot.slane %v10426, %v10433
        %v10436 = vunpack.c.l.s4 1983009808
        %v10437 = vunpack.c.0.s8 %v10436
        %v10438 = vlaneseq
        %v10439 = vshrl.u32 %v10438, 7
        %v10440 = vsub.s32 %v10437, %v10439
        %v10441 = vrot.slane %v10427, %v10440
        %v10442 = vcombine.low %v10071, %v10087
        %v10443 = vcombine.high %v10071, %v10087
        %v10445 = vunpack.c.l.s4 1983009808
        %v10446 = vunpack.c.0.s8 %v10445
        %v10447 = vlaneseq
        %v10448 = vshrl.u32 %v10447, 7
        %v10449 = vsub.s32 %v10446, %v10448
        %v10450 = vrot.slane %v10442, %v10449
        %v10452 = vunpack.c.l.s4 1983009808
        %v10453 = vunpack.c.0.s8 %v10452
        %v10454 = vlaneseq
        %v10455 = vshrl.u32 %v10454, 7
        %v10456 = vsub.s32 %v10453, %v10455
        %v10457 = vrot.slane %v10443, %v10456
        %v10458 = vcombine.low %v10095, %v10111
        %v10459 = vcombine.high %v10095, %v10111
        %v10461 = vunpack.c.l.s4 1983009808
        %v10462 = vunpack.c.0.s8 %v10461
        %v10463 = vlaneseq
        %v10464 = vshrl.u32 %v10463, 7
        %v10465 = vsub.s32 %v10462, %v10464
        %v10466 = vrot.slane %v10458, %v10465
        %v10468 = vunpack.c.l.s4 1983009808
        %v10469 = vunpack.c.0.s8 %v10468
        %v10470 = vlaneseq
        %v10471 = vshrl.u32 %v10470, 7
        %v10472 = vsub.s32 %v10469, %v10471
        %v10473 = vrot.slane %v10459, %v10472
        %v10474 = vcombine.low %v10103, %v10119
        %v10475 = vcombine.high %v10103, %v10119
        %v10477 = vunpack.c.l.s4 1983009808
        %v10478 = vunpack.c.0.s8 %v10477
        %v10479 = vlaneseq
        %v10480 = vshrl.u32 %v10479, 7
        %v10481 = vsub.s32 %v10478, %v10480
        %v10482 = vrot.slane %v10474, %v10481
        %v10484 = vunpack.c.l.s4 1983009808
        %v10485 = vunpack.c.0.s8 %v10484
        %v10486 = vlaneseq
        %v10487 = vshrl.u32 %v10486, 7
        %v10488 = vsub.s32 %v10485, %v10487
        %v10489 = vrot.slane %v10475, %v10488
        %v10490 = vcombine.low %v10434, %v10450
        %v10491 = vcombine.high %v10434, %v10450
        %v10493 = vunpack.c.l.s4 1934713408
        %v10494 = vunpack.c.0.s8 %v10493
        %v10495 = vlaneseq
        %v10496 = vshrl.u32 %v10495, 7
        %v10497 = vsub.s32 %v10494, %v10496
        %v10498 = vrot.slane %v10490, %v10497
        %v10500 = vunpack.c.l.s4 1934713408
        %v10501 = vunpack.c.0.s8 %v10500
        %v10502 = vlaneseq
        %v10503 = vshrl.u32 %v10502, 7
        %v10504 = vsub.s32 %v10501, %v10503
        %v10505 = vrot.slane %v10491, %v10504
        %v10506 = vcombine.low %v10441, %v10457
        %v10507 = vcombine.high %v10441, %v10457
        %v10509 = vunpack.c.l.s4 1934713408
        %v10510 = vunpack.c.0.s8 %v10509
        %v10511 = vlaneseq
        %v10512 = vshrl.u32 %v10511, 7
        %v10513 = vsub.s32 %v10510, %v10512
        %v10514 = vrot.slane %v10506, %v10513
        %v10516 = vunpack.c.l.s4 1934713408
        %v10517 = vunpack.c.0.s8 %v10516
        %v10518 = vlaneseq
        %v10519 = vshrl.u32 %v10518, 7
        %v10520 = vsub.s32 %v10517, %v10519
        %v10521 = vrot.slane %v10507, %v10520
        %v10522 = vcombine.low %v10466, %v10482
        %v10523 = vcombine.high %v10466, %v10482
        %v10525 = vunpack.c.l.s4 1934713408
        %v10526 = vunpack.c.0.s8 %v10525
        %v10527 = vlaneseq
        %v10528 = vshrl.u32 %v10527, 7
        %v10529 = vsub.s32 %v10526, %v10528
        %v10530 = vrot.slane %v10522, %v10529
        %v10532 = vunpack.c.l.s4 1934713408
        %v10533 = vunpack.c.0.s8 %v10532
        %v10534 = vlaneseq
        %v10535 = vshrl.u32 %v10534, 7
        %v10536 = vsub.s32 %v10533, %v10535
        %v10537 = vrot.slane %v10523, %v10536
        %v10538 = vcombine.low %v10473, %v10489
        %v10539 = vcombine.high %v10473, %v10489
        %v10541 = vunpack.c.l.s4 1934713408
        %v10542 = vunpack.c.0.s8 %v10541
        %v10543 = vlaneseq
        %v10544 = vshrl.u32 %v10543, 7
        %v10545 = vsub.s32 %v10542, %v10544
        %v10546 = vrot.slane %v10538, %v10545
        %v10548 = vunpack.c.l.s4 1934713408
        %v10549 = vunpack.c.0.s8 %v10548
        %v10550 = vlaneseq
        %v10551 = vshrl.u32 %v10550, 7
        %v10552 = vsub.s32 %v10549, %v10551
        %v10553 = vrot.slane %v10539, %v10552
        %v10554 = vcombine.low %v10498, %v10530
        %v10555 = vcombine.high %v10498, %v10530
        %v10556 = vcombine.low %v10505, %v10537
        %v10557 = vcombine.high %v10505, %v10537
        %v10558 = vcombine.low %v10514, %v10546
        %v10559 = vcombine.high %v10514, %v10546
        %v10560 = vcombine.low %v10521, %v10553
        %v10561 = vcombine.high %v10521, %v10553
        %v10562 = vcombine.low %v10065, %v10081
        %v10563 = vcombine.high %v10065, %v10081
        %v10565 = vunpack.c.l.s4 1983009808
        %v10566 = vunpack.c.0.s8 %v10565
        %v10567 = vlaneseq
        %v10568 = vshrl.u32 %v10567, 7
        %v10569 = vsub.s32 %v10566, %v10568
        %v10570 = vrot.slane %v10562, %v10569
        %v10572 = vunpack.c.l.s4 1983009808
        %v10573 = vunpack.c.0.s8 %v10572
        %v10574 = vlaneseq
        %v10575 = vshrl.u32 %v10574, 7
        %v10576 = vsub.s32 %v10573, %v10575
        %v10577 = vrot.slane %v10563, %v10576
        %v10578 = vcombine.low %v10073, %v10089
        %v10579 = vcombine.high %v10073, %v10089
        %v10581 = vunpack.c.l.s4 1983009808
        %v10582 = vunpack.c.0.s8 %v10581
        %v10583 = vlaneseq
        %v10584 = vshrl.u32 %v10583, 7
        %v10585 = vsub.s32 %v10582, %v10584
        %v10586 = vrot.slane %v10578, %v10585
        %v10588 = vunpack.c.l.s4 1983009808
        %v10589 = vunpack.c.0.s8 %v10588
        %v10590 = vlaneseq
        %v10591 = vshrl.u32 %v10590, 7
        %v10592 = vsub.s32 %v10589, %v10591
        %v10593 = vrot.slane %v10579, %v10592
        %v10594 = vcombine.low %v10097, %v10113
        %v10595 = vcombine.high %v10097, %v10113
        %v10597 = vunpack.c.l.s4 1983009808
        %v10598 = vunpack.c.0.s8 %v10597
        %v10599 = vlaneseq
        %v10600 = vshrl.u32 %v10599, 7
        %v10601 = vsub.s32 %v10598, %v10600
        %v10602 = vrot.slane %v10594, %v10601
        %v10604 = vunpack.c.l.s4 1983009808
        %v10605 = vunpack.c.0.s8 %v10604
        %v10606 = vlaneseq
        %v10607 = vshrl.u32 %v10606, 7
        %v10608 = vsub.s32 %v10605, %v10607
        %v10609 = vrot.slane %v10595, %v10608
        %v10610 = vcombine.low %v10105, %v10121
        %v10611 = vcombine.high %v10105, %v10121
        %v10613 = vunpack.c.l.s4 1983009808
        %v10614 = vunpack.c.0.s8 %v10613
        %v10615 = vlaneseq
        %v10616 = vshrl.u32 %v10615, 7
        %v10617 = vsub.s32 %v10614, %v10616
        %v10618 = vrot.slane %v10610, %v10617
        %v10620 = vunpack.c.l.s4 1983009808
        %v10621 = vunpack.c.0.s8 %v10620
        %v10622 = vlaneseq
        %v10623 = vshrl.u32 %v10622, 7
        %v10624 = vsub.s32 %v10621, %v10623
        %v10625 = vrot.slane %v10611, %v10624
        %v10626 = vcombine.low %v10570, %v10586
        %v10627 = vcombine.high %v10570, %v10586
        %v10629 = vunpack.c.l.s4 1934713408
        %v10630 = vunpack.c.0.s8 %v10629
        %v10631 = vlaneseq
        %v10632 = vshrl.u32 %v10631, 7
        %v10633 = vsub.s32 %v10630, %v10632
        %v10634 = vrot.slane %v10626, %v10633
        %v10636 = vunpack.c.l.s4 1934713408
        %v10637 = vunpack.c.0.s8 %v10636
        %v10638 = vlaneseq
        %v10639 = vshrl.u32 %v10638, 7
        %v10640 = vsub.s32 %v10637, %v10639
        %v10641 = vrot.slane %v10627, %v10640
        %v10642 = vcombine.low %v10577, %v10593
        %v10643 = vcombine.high %v10577, %v10593
        %v10645 = vunpack.c.l.s4 1934713408
        %v10646 = vunpack.c.0.s8 %v10645
        %v10647 = vlaneseq
        %v10648 = vshrl.u32 %v10647, 7
        %v10649 = vsub.s32 %v10646, %v10648
        %v10650 = vrot.slane %v10642, %v10649
        %v10652 = vunpack.c.l.s4 1934713408
        %v10653 = vunpack.c.0.s8 %v10652
        %v10654 = vlaneseq
        %v10655 = vshrl.u32 %v10654, 7
        %v10656 = vsub.s32 %v10653, %v10655
        %v10657 = vrot.slane %v10643, %v10656
        %v10658 = vcombine.low %v10602, %v10618
        %v10659 = vcombine.high %v10602, %v10618
        %v10661 = vunpack.c.l.s4 1934713408
        %v10662 = vunpack.c.0.s8 %v10661
        %v10663 = vlaneseq
        %v10664 = vshrl.u32 %v10663, 7
        %v10665 = vsub.s32 %v10662, %v10664
        %v10666 = vrot.slane %v10658, %v10665
        %v10668 = vunpack.c.l.s4 1934713408
        %v10669 = vunpack.c.0.s8 %v10668
        %v10670 = vlaneseq
        %v10671 = vshrl.u32 %v10670, 7
        %v10672 = vsub.s32 %v10669, %v10671
        %v10673 = vrot.slane %v10659, %v10672
        %v10674 = vcombine.low %v10609, %v10625
        %v10675 = vcombine.high %v10609, %v10625
        %v10677 = vunpack.c.l.s4 1934713408
        %v10678 = vunpack.c.0.s8 %v10677
        %v10679 = vlaneseq
        %v10680 = vshrl.u32 %v10679, 7
        %v10681 = vsub.s32 %v10678, %v10680
        %v10682 = vrot.slane %v10674, %v10681
        %v10684 = vunpack.c.l.s4 1934713408
        %v10685 = vunpack.c.0.s8 %v10684
        %v10686 = vlaneseq
        %v10687 = vshrl.u32 %v10686, 7
        %v10688 = vsub.s32 %v10685, %v10687
        %v10689 = vrot.slane %v10675, %v10688
        %v10690 = vcombine.low %v10634, %v10666
        %v10691 = vcombine.high %v10634, %v10666
        %v10692 = vcombine.low %v10641, %v10673
        %v10693 = vcombine.high %v10641, %v10673
        %v10694 = vcombine.low %v10650, %v10682
        %v10695 = vcombine.high %v10650, %v10682
        %v10696 = vcombine.low %v10657, %v10689
        %v10697 = vcombine.high %v10657, %v10689
        %10699 = vrot.lane.b32.xlu0 %v10283, 32
        %v10700 = vpop.permute.xlu0 %10699
        %10703 = vrot.lane.b32.xlu0 %v10284, 64
        %v10704 = vpop.permute.xlu0 %10703
        %10707 = vrot.lane.b32.xlu0 %v10285, 96
        %v10708 = vpop.permute.xlu0 %10707
        %10711 = vrot.lane.b32.xlu0 %v10287, 32
        %v10712 = vpop.permute.xlu0 %10711
        %10715 = vrot.lane.b32.xlu0 %v10288, 64
        %v10716 = vpop.permute.xlu0 %10715
        %10719 = vrot.lane.b32.xlu0 %v10289, 96
        %v10720 = vpop.permute.xlu0 %10719
        %10723 = vrot.lane.b32.xlu0 %v10419, 32
        %v10724 = vpop.permute.xlu0 %10723
        %10727 = vrot.lane.b32.xlu0 %v10420, 64
        %v10728 = vpop.permute.xlu0 %10727
        %10731 = vrot.lane.b32.xlu0 %v10421, 96
        %v10732 = vpop.permute.xlu0 %10731
        %10735 = vrot.lane.b32.xlu0 %v10423, 32
        %v10736 = vpop.permute.xlu0 %10735
        %10739 = vrot.lane.b32.xlu0 %v10424, 64
        %v10740 = vpop.permute.xlu0 %10739
        %10743 = vrot.lane.b32.xlu0 %v10425, 96
        %v10744 = vpop.permute.xlu0 %10743
        %10747 = vrot.lane.b32.xlu0 %v10555, 32
        %v10748 = vpop.permute.xlu0 %10747
        %10751 = vrot.lane.b32.xlu0 %v10556, 64
        %v10752 = vpop.permute.xlu0 %10751
        %10755 = vrot.lane.b32.xlu0 %v10557, 96
        %v10756 = vpop.permute.xlu0 %10755
        %10759 = vrot.lane.b32.xlu0 %v10559, 32
        %v10760 = vpop.permute.xlu0 %10759
        %10763 = vrot.lane.b32.xlu0 %v10560, 64
        %v10764 = vpop.permute.xlu0 %10763
        %10767 = vrot.lane.b32.xlu0 %v10561, 96
        %v10768 = vpop.permute.xlu0 %10767
        %10771 = vrot.lane.b32.xlu0 %v10691, 32
        %v10772 = vpop.permute.xlu0 %10771
        %10775 = vrot.lane.b32.xlu0 %v10692, 64
        %v10776 = vpop.permute.xlu0 %10775
        %10779 = vrot.lane.b32.xlu0 %v10693, 96
        %v10780 = vpop.permute.xlu0 %10779
        %10783 = vrot.lane.b32.xlu0 %v10695, 32
        %v10784 = vpop.permute.xlu0 %10783
        %10787 = vrot.lane.b32.xlu0 %v10696, 64
        %v10788 = vpop.permute.xlu0 %10787
        %10791 = vrot.lane.b32.xlu0 %v10697, 96
        %v10792 = vpop.permute.xlu0 %10791
        %v10794 = vsel %vm2127, %v10282, %v10700
        %v10795 = vsel %vm2129, %v10794, %v10704
        %v10796 = vsel %vm2131, %v10795, %v10708
        %v10797 = vsel %vm2127, %v10286, %v10712
        %v10798 = vsel %vm2129, %v10797, %v10716
        %v10799 = vsel %vm2131, %v10798, %v10720
        %v10800 = vsel %vm2127, %v10418, %v10724
        %v10801 = vsel %vm2129, %v10800, %v10728
        %v10802 = vsel %vm2131, %v10801, %v10732
        %v10803 = vsel %vm2127, %v10422, %v10736
        %v10804 = vsel %vm2129, %v10803, %v10740
        %v10805 = vsel %vm2131, %v10804, %v10744
        %v10806 = vsel %vm2127, %v10554, %v10748
        %v10807 = vsel %vm2129, %v10806, %v10752
        %v10808 = vsel %vm2131, %v10807, %v10756
        %v10809 = vsel %vm2127, %v10558, %v10760
        %v10810 = vsel %vm2129, %v10809, %v10764
        %v10811 = vsel %vm2131, %v10810, %v10768
        %v10812 = vsel %vm2127, %v10690, %v10772
        %v10813 = vsel %vm2129, %v10812, %v10776
        %v10814 = vsel %vm2131, %v10813, %v10780
        %v10815 = vsel %vm2127, %v10694, %v10784
        %v10816 = vsel %vm2129, %v10815, %v10788
        %v10817 = vsel %vm2131, %v10816, %v10792
        %s10818 = scalar_lea.vmem %s3, 32
        %v10819 = vld [vmem:[%s10818] sm:$0xf]
        %v10821 = vsel %vm2949, %v10819, 0
        %10823 = vmatprep.subr.mxu0 %v10799
        %10824 = vmatpush1.msra.mxu0 %v10796
        %10825 = vmatprep.subr.mxu0 0.0
        %10826 = vmatpush1.msra.mxu0 0.0
        %10827 = vmatprep.subr.mxu0 0.0
        %10828 = vmatpush1.msra.mxu0 0.0
        %10829 = vmatprep.subr.mxu0 0.0
        %10830 = vmatpush1.msra.mxu0 0.0
        %10831 = vmatprep.subr.mxu0 0.0
        %10832 = vmatpush1.msra.mxu0 0.0
        %10833 = vmatprep.subr.mxu0 0.0
        %10834 = vmatpush1.msra.mxu0 0.0
        %10835 = vmatprep.subr.mxu0 0.0
        %10836 = vmatpush1.msra.mxu0 0.0
        %10837 = vmatprep.subr.mxu0 0.0
        %10838 = vmatpush1.msra.mxu0 0.0
        %10839 = vmatprep.subr.mxu0 0.0
        %10840 = vmatpush1.msra.mxu0 0.0
        %10841 = vmatprep.subr.mxu0 0.0
        %10842 = vmatpush1.msra.mxu0 0.0
        %10843 = vmatprep.subr.mxu0 0.0
        %10844 = vmatpush1.msra.mxu0 0.0
        %10845 = vmatprep.subr.mxu0 0.0
        %10846 = vmatpush1.msra.mxu0 0.0
        %10847 = vmatprep.subr.mxu0 0.0
        %10848 = vmatpush1.msra.mxu0 0.0
        %10849 = vmatprep.subr.mxu0 0.0
        %10850 = vmatpush1.msra.mxu0 0.0
        %10851 = vmatprep.subr.mxu0 0.0
        %10852 = vmatpush1.msra.mxu0 0.0
        %10853 = vmatprep.subr.mxu0 0.0
        %10854 = vmatpush1.msra.mxu0 0.0
        %10855 = vmatprep.subr.mxu0 0.0
        %10856 = vmatpush1.msra.mxu0 0.0
        %10857 = vmatprep.subr.mxu0 0.0
        %10858 = vmatpush1.msra.mxu0 0.0
        %10859 = vmatprep.subr.mxu0 0.0
        %10860 = vmatpush1.msra.mxu0 0.0
        %10861 = vmatprep.subr.mxu0 0.0
        %10862 = vmatpush1.msra.mxu0 0.0
        %10863 = vmatprep.subr.mxu0 0.0
        %10864 = vmatpush1.msra.mxu0 0.0
        %10865 = vmatprep.subr.mxu0 0.0
        %10866 = vmatpush1.msra.mxu0 0.0
        %10867 = vmatprep.subr.mxu0 0.0
        %10868 = vmatpush1.msra.mxu0 0.0
        %10869 = vmatprep.subr.mxu0 0.0
        %10870 = vmatpush1.msra.mxu0 0.0
        %10871 = vmatprep.subr.mxu0 0.0
        %10872 = vmatpush1.msra.mxu0 0.0
        %10873 = vmatprep.subr.mxu0 0.0
        %10874 = vmatpush1.msra.mxu0 0.0
        %10875 = vmatprep.subr.mxu0 0.0
        %10876 = vmatpush1.msra.mxu0 0.0
        %10877 = vmatprep.subr.mxu0 0.0
        %10878 = vmatpush1.msra.mxu0 0.0
        %10879 = vmatprep.subr.mxu0 0.0
        %10880 = vmatpush1.msra.mxu0 0.0
        %10881 = vmatprep.subr.mxu0 0.0
        %10882 = vmatpush1.msra.mxu0 0.0
        %10883 = vmatprep.subr.mxu0 0.0
        %10884 = vmatpush1.msra.mxu0 0.0
        %10885 = vmatprep.subr.mxu0 0.0
        %10886 = vmatpush1.msra.mxu0 0.0
        %10887 = vmatprep.mubr.f32.mxu0 0.0
        %10888 = vmatmul.mubr.f32.gmra.mrb[0].mxu0 %v10821
        %v10889 = vpop.f32.mrb[0].mxu0
        %v10890 = vadd.f32 0.0, %v10889
        %v10891 = vpop.f32.mrb[0].mxu0
        %v10892 = vadd.f32 0.0, %v10891
        %10893 = vdwg.mxu0
        %10894 = vmatprep.subr.mxu0 %v10805
        %10895 = vmatpush1.msra.mxu0 %v10802
        %10896 = vmatprep.subr.mxu0 0.0
        %10897 = vmatpush1.msra.mxu0 0.0
        %10898 = vmatprep.subr.mxu0 0.0
        %10899 = vmatpush1.msra.mxu0 0.0
        %10900 = vmatprep.subr.mxu0 0.0
        %10901 = vmatpush1.msra.mxu0 0.0
        %10902 = vmatprep.subr.mxu0 0.0
        %10903 = vmatpush1.msra.mxu0 0.0
        %10904 = vmatprep.subr.mxu0 0.0
        %10905 = vmatpush1.msra.mxu0 0.0
        %10906 = vmatprep.subr.mxu0 0.0
        %10907 = vmatpush1.msra.mxu0 0.0
        %10908 = vmatprep.subr.mxu0 0.0
        %10909 = vmatpush1.msra.mxu0 0.0
        %10910 = vmatprep.subr.mxu0 0.0
        %10911 = vmatpush1.msra.mxu0 0.0
        %10912 = vmatprep.subr.mxu0 0.0
        %10913 = vmatpush1.msra.mxu0 0.0
        %10914 = vmatprep.subr.mxu0 0.0
        %10915 = vmatpush1.msra.mxu0 0.0
        %10916 = vmatprep.subr.mxu0 0.0
        %10917 = vmatpush1.msra.mxu0 0.0
        %10918 = vmatprep.subr.mxu0 0.0
        %10919 = vmatpush1.msra.mxu0 0.0
        %10920 = vmatprep.subr.mxu0 0.0
        %10921 = vmatpush1.msra.mxu0 0.0
        %10922 = vmatprep.subr.mxu0 0.0
        %10923 = vmatpush1.msra.mxu0 0.0
        %10924 = vmatprep.subr.mxu0 0.0
        %10925 = vmatpush1.msra.mxu0 0.0
        %10926 = vmatprep.subr.mxu0 0.0
        %10927 = vmatpush1.msra.mxu0 0.0
        %10928 = vmatprep.subr.mxu0 0.0
        %10929 = vmatpush1.msra.mxu0 0.0
        %10930 = vmatprep.subr.mxu0 0.0
        %10931 = vmatpush1.msra.mxu0 0.0
        %10932 = vmatprep.subr.mxu0 0.0
        %10933 = vmatpush1.msra.mxu0 0.0
        %10934 = vmatprep.subr.mxu0 0.0
        %10935 = vmatpush1.msra.mxu0 0.0
        %10936 = vmatprep.subr.mxu0 0.0
        %10937 = vmatpush1.msra.mxu0 0.0
        %10938 = vmatprep.subr.mxu0 0.0
        %10939 = vmatpush1.msra.mxu0 0.0
        %10940 = vmatprep.subr.mxu0 0.0
        %10941 = vmatpush1.msra.mxu0 0.0
        %10942 = vmatprep.subr.mxu0 0.0
        %10943 = vmatpush1.msra.mxu0 0.0
        %10944 = vmatprep.subr.mxu0 0.0
        %10945 = vmatpush1.msra.mxu0 0.0
        %10946 = vmatprep.subr.mxu0 0.0
        %10947 = vmatpush1.msra.mxu0 0.0
        %10948 = vmatprep.subr.mxu0 0.0
        %10949 = vmatpush1.msra.mxu0 0.0
        %10950 = vmatprep.subr.mxu0 0.0
        %10951 = vmatpush1.msra.mxu0 0.0
        %10952 = vmatprep.subr.mxu0 0.0
        %10953 = vmatpush1.msra.mxu0 0.0
        %10954 = vmatprep.subr.mxu0 0.0
        %10955 = vmatpush1.msra.mxu0 0.0
        %10956 = vmatprep.subr.mxu0 0.0
        %10957 = vmatpush1.msra.mxu0 0.0
        %10958 = vmatprep.mubr.f32.mxu0 0.0
        %10959 = vmatmul.mubr.f32.gmra.mrb[0].mxu0 %v10821
        %v10960 = vpop.f32.mrb[0].mxu0
        %v10961 = vadd.f32 0.0, %v10960
        %v10962 = vpop.f32.mrb[0].mxu0
        %v10963 = vadd.f32 0.0, %v10962
        %10964 = vdwg.mxu0
        %10965 = vmatprep.subr.mxu0 %v10811
        %10966 = vmatpush1.msra.mxu0 %v10808
        %10967 = vmatprep.subr.mxu0 0.0
        %10968 = vmatpush1.msra.mxu0 0.0
        %10969 = vmatprep.subr.mxu0 0.0
        %10970 = vmatpush1.msra.mxu0 0.0
        %10971 = vmatprep.subr.mxu0 0.0
        %10972 = vmatpush1.msra.mxu0 0.0
        %10973 = vmatprep.subr.mxu0 0.0
        %10974 = vmatpush1.msra.mxu0 0.0
        %10975 = vmatprep.subr.mxu0 0.0
        %10976 = vmatpush1.msra.mxu0 0.0
        %10977 = vmatprep.subr.mxu0 0.0
        %10978 = vmatpush1.msra.mxu0 0.0
        %10979 = vmatprep.subr.mxu0 0.0
        %10980 = vmatpush1.msra.mxu0 0.0
        %10981 = vmatprep.subr.mxu0 0.0
        %10982 = vmatpush1.msra.mxu0 0.0
        %10983 = vmatprep.subr.mxu0 0.0
        %10984 = vmatpush1.msra.mxu0 0.0
        %10985 = vmatprep.subr.mxu0 0.0
        %10986 = vmatpush1.msra.mxu0 0.0
        %10987 = vmatprep.subr.mxu0 0.0
        %10988 = vmatpush1.msra.mxu0 0.0
        %10989 = vmatprep.subr.mxu0 0.0
        %10990 = vmatpush1.msra.mxu0 0.0
        %10991 = vmatprep.subr.mxu0 0.0
        %10992 = vmatpush1.msra.mxu0 0.0
        %10993 = vmatprep.subr.mxu0 0.0
        %10994 = vmatpush1.msra.mxu0 0.0
        %10995 = vmatprep.subr.mxu0 0.0
        %10996 = vmatpush1.msra.mxu0 0.0
        %10997 = vmatprep.subr.mxu0 0.0
        %10998 = vmatpush1.msra.mxu0 0.0
        %10999 = vmatprep.subr.mxu0 0.0
        %11000 = vmatpush1.msra.mxu0 0.0
        %11001 = vmatprep.subr.mxu0 0.0
        %11002 = vmatpush1.msra.mxu0 0.0
        %11003 = vmatprep.subr.mxu0 0.0
        %11004 = vmatpush1.msra.mxu0 0.0
        %11005 = vmatprep.subr.mxu0 0.0
        %11006 = vmatpush1.msra.mxu0 0.0
        %11007 = vmatprep.subr.mxu0 0.0
        %11008 = vmatpush1.msra.mxu0 0.0
        %11009 = vmatprep.subr.mxu0 0.0
        %11010 = vmatpush1.msra.mxu0 0.0
        %11011 = vmatprep.subr.mxu0 0.0
        %11012 = vmatpush1.msra.mxu0 0.0
        %11013 = vmatprep.subr.mxu0 0.0
        %11014 = vmatpush1.msra.mxu0 0.0
        %11015 = vmatprep.subr.mxu0 0.0
        %11016 = vmatpush1.msra.mxu0 0.0
        %11017 = vmatprep.subr.mxu0 0.0
        %11018 = vmatpush1.msra.mxu0 0.0
        %11019 = vmatprep.subr.mxu0 0.0
        %11020 = vmatpush1.msra.mxu0 0.0
        %11021 = vmatprep.subr.mxu0 0.0
        %11022 = vmatpush1.msra.mxu0 0.0
        %11023 = vmatprep.subr.mxu0 0.0
        %11024 = vmatpush1.msra.mxu0 0.0
        %11025 = vmatprep.subr.mxu0 0.0
        %11026 = vmatpush1.msra.mxu0 0.0
        %11027 = vmatprep.subr.mxu0 0.0
        %11028 = vmatpush1.msra.mxu0 0.0
        %11029 = vmatprep.mubr.f32.mxu0 0.0
        %11030 = vmatmul.mubr.f32.gmra.mrb[0].mxu0 %v10821
        %v11031 = vpop.f32.mrb[0].mxu0
        %v11032 = vadd.f32 0.0, %v11031
        %v11033 = vpop.f32.mrb[0].mxu0
        %v11034 = vadd.f32 0.0, %v11033
        %11035 = vdwg.mxu0
        %11036 = vmatprep.subr.mxu0 %v10817
        %11037 = vmatpush1.msra.mxu0 %v10814
        %11038 = vmatprep.subr.mxu0 0.0
        %11039 = vmatpush1.msra.mxu0 0.0
        %11040 = vmatprep.subr.mxu0 0.0
        %11041 = vmatpush1.msra.mxu0 0.0
        %11042 = vmatprep.subr.mxu0 0.0
        %11043 = vmatpush1.msra.mxu0 0.0
        %11044 = vmatprep.subr.mxu0 0.0
        %11045 = vmatpush1.msra.mxu0 0.0
        %11046 = vmatprep.subr.mxu0 0.0
        %11047 = vmatpush1.msra.mxu0 0.0
        %11048 = vmatprep.subr.mxu0 0.0
        %11049 = vmatpush1.msra.mxu0 0.0
        %11050 = vmatprep.subr.mxu0 0.0
        %11051 = vmatpush1.msra.mxu0 0.0
        %11052 = vmatprep.subr.mxu0 0.0
        %11053 = vmatpush1.msra.mxu0 0.0
        %11054 = vmatprep.subr.mxu0 0.0
        %11055 = vmatpush1.msra.mxu0 0.0
        %11056 = vmatprep.subr.mxu0 0.0
        %11057 = vmatpush1.msra.mxu0 0.0
        %11058 = vmatprep.subr.mxu0 0.0
        %11059 = vmatpush1.msra.mxu0 0.0
        %11060 = vmatprep.subr.mxu0 0.0
        %11061 = vmatpush1.msra.mxu0 0.0
        %11062 = vmatprep.subr.mxu0 0.0
        %11063 = vmatpush1.msra.mxu0 0.0
        %11064 = vmatprep.subr.mxu0 0.0
        %11065 = vmatpush1.msra.mxu0 0.0
        %11066 = vmatprep.subr.mxu0 0.0
        %11067 = vmatpush1.msra.mxu0 0.0
        %11068 = vmatprep.subr.mxu0 0.0
        %11069 = vmatpush1.msra.mxu0 0.0
        %11070 = vmatprep.subr.mxu0 0.0
        %11071 = vmatpush1.msra.mxu0 0.0
        %11072 = vmatprep.subr.mxu0 0.0
        %11073 = vmatpush1.msra.mxu0 0.0
        %11074 = vmatprep.subr.mxu0 0.0
        %11075 = vmatpush1.msra.mxu0 0.0
        %11076 = vmatprep.subr.mxu0 0.0
        %11077 = vmatpush1.msra.mxu0 0.0
        %11078 = vmatprep.subr.mxu0 0.0
        %11079 = vmatpush1.msra.mxu0 0.0
        %11080 = vmatprep.subr.mxu0 0.0
        %11081 = vmatpush1.msra.mxu0 0.0
        %11082 = vmatprep.subr.mxu0 0.0
        %11083 = vmatpush1.msra.mxu0 0.0
        %11084 = vmatprep.subr.mxu0 0.0
        %11085 = vmatpush1.msra.mxu0 0.0
        %11086 = vmatprep.subr.mxu0 0.0
        %11087 = vmatpush1.msra.mxu0 0.0
        %11088 = vmatprep.subr.mxu0 0.0
        %11089 = vmatpush1.msra.mxu0 0.0
        %11090 = vmatprep.subr.mxu0 0.0
        %11091 = vmatpush1.msra.mxu0 0.0
        %11092 = vmatprep.subr.mxu0 0.0
        %11093 = vmatpush1.msra.mxu0 0.0
        %11094 = vmatprep.subr.mxu0 0.0
        %11095 = vmatpush1.msra.mxu0 0.0
        %11096 = vmatprep.subr.mxu0 0.0
        %11097 = vmatpush1.msra.mxu0 0.0
        %11098 = vmatprep.subr.mxu0 0.0
        %11099 = vmatpush1.msra.mxu0 0.0
        %11100 = vmatprep.mubr.f32.mxu0 0.0
        %11101 = vmatmul.mubr.f32.gmra.mrb[0].mxu0 %v10821
        %v11102 = vpop.f32.mrb[0].mxu0
        %v11103 = vadd.f32 0.0, %v11102
        %v11104 = vpop.f32.mrb[0].mxu0
        %v11105 = vadd.f32 0.0, %v11104
        %11106 = vdwg.mxu0
        %v11107 = vadd.f32 %v9986, %v10890
        %v11108 = vadd.f32 %v9987, %v10892
        %v11109 = vadd.f32 %v9988, %v10961
        %v11110 = vadd.f32 %v9989, %v10963
        %v11111 = vadd.f32 %v9990, %v11032
        %v11112 = vadd.f32 %v9991, %v11034
        %v11113 = vadd.f32 %v9992, %v11103
        %v11114 = vadd.f32 %v9993, %v11105
        %v11123 = vcombine.low %v11107, %v11108
        %v11124 = vcombine.low %v11109, %v11110
        %v11125 = vcombine.low %v11111, %v11112
        %v11126 = vcombine.low %v11113, %v11114
        %11131 = vst [vmem:[%s215] sm:$0xff] %v11123
        %11132 = vst [vmem:[%s215 + $0x8] sm:$0xff] %v11124
        %11133 = vst [vmem:[%s215 + $0x10] sm:$0xff] %v11125
        %11134 = vst [vmem:[%s215 + $0x18] sm:$0xff] %v11126
        %s11135 = sand.u32 %s118, 1
        %s11136 = scalar_lea.sflag [#allocation5], %s11135
        %s11137 = sand.u32 %s118, 1
        %s11138 = smul.addr %s11137, 32
        %s11139 = scalar_lea.vmem [#allocation6], %s11138
        // Predicated region
        $region41: #{tpu_custom_call.1} parent=35 // pred_check
          %p11140 = pneg %p128
        $region42: #{tpu_custom_call.1} parent=35 // pred_check_branch
          %11142 = sbr.rel (%p11140) target = $region44
        $region43: #{tpu_custom_call.1} parent=35 // pred_region
          %s11144 = ssub.s32 512, 512
          %11145 = vsyncadd %s11136, %s11144
          %s11146 = smul.addr %s21, 8
          %s11147 = smul.addr %s11146, 64
          %s11148 = scalar_lea.hbm %s4, %s11147
          %s11150 = sshll.u32 %s11139, 4
          %s11151 = int_to_ptr.vmem [resolvable:$true] %s11150
          %11153 = dma.vmem_to_hbm [thread:$0]  %s11151, 512, %s11148, %s11136
        $region44: #{tpu_custom_call.1} parent=35 // pred_fallthru
          _
      $region36: #{tpu_custom_call.1} parent=5 // pred_fallthru
        _
      %p11154 = scmp.le.s32.totalorder 2, %s16
      // Predicated region
      $region45: #{tpu_custom_call.1} parent=5 // pred_check
        %p11155 = pneg %p11154
      $region46: #{tpu_custom_call.1} parent=5 // pred_check_branch
        %11157 = sbr.rel (%p11155) target = $region48
      $region47: #{tpu_custom_call.1} parent=5 // pred_region
        %s11158 = ssub.s32 %s16, 2
        // Predicated region
        $region49: #{tpu_custom_call.1} parent=47 // pred_check
          %p11159 = pneg %p134
        $region50: #{tpu_custom_call.1} parent=47 // pred_check_branch
          %11161 = sbr.rel (%p11159) target = $region52
        $region51: #{tpu_custom_call.1} parent=47 // pred_region
          %s11162 = sand.u32 %s119, 1
          %s11163 = scalar_lea.sflag [#allocation5], %s11162
          %s11164 = sand.u32 %s119, 1
          %s11165 = smul.addr %s11164, 32
          %s11166 = scalar_lea.vmem [#allocation6], %s11165
          %11167 = dma.done %s11163, 512
        $region52: #{tpu_custom_call.1} parent=47 // pred_fallthru
          _
      $region48: #{tpu_custom_call.1} parent=5 // pred_fallthru
        _
    $region6: #{tpu_custom_call.1} parent=1 // loop_footer
      %s20 = sadd.s32 1, %s16
    $region7: #{tpu_custom_call.1} parent=1 // loop_footer_branch
      %15 = sbr.rel target = $region3
    $region8: #{tpu_custom_call.1} parent=1 // loop_exit
      _
    %11168 = vsyncpa [#allocation4], 1
    %s11169 = scalar_lea.sflag [#allocation4], 1
    %11170 = vsyncpa %s11169, 1
    %11171 = vsyncpa [#allocation5], 1
    %s11172 = scalar_lea.sflag [#allocation5], 1
    %11173 = vsyncpa %s11172, 1

</llo_original>
